<compile_context>
chip_gen: v7x
topology: tpu7x:2x2x1
jax: 0.10.0
libtpu: 0.0.40
codegen_flags: <defaults>
</compile_context>

<pallas_src>
import jax
import jax.numpy as jnp
from jax.experimental import pallas as pl
from jax.experimental.pallas import tpu as pltpu

_VMEM = pl.BlockSpec(memory_space=pltpu.MemorySpace.VMEM)
_SMEM = pl.BlockSpec(memory_space=pltpu.MemorySpace.SMEM)


# --------------------------- fused whole-model kernel -------------------------
def _model_kernel(maxlen_ref, lens_ref, x_ref,
                  w1_ref, s1_ref, sh1_ref,
                  w2_ref, s2_ref, sh2_ref,
                  w3_ref, s3_ref, sh3_ref,
                  wih1_ref, b1_ref, whhf1_ref, whhb1_ref,
                  wih2_ref, b2_ref, whhf2_ref, whhb2_ref,
                  wfc1_ref, bfc1_ref, whead_ref, bhead_ref,
                  o_ref,
                  p1_ref, p2_ref, p3_ref,
                  gx1_ref, y1_ref, gx2_ref,
                  hf_ref, cf_ref, hb_ref, cb_ref, hbl_ref):
    T, B, _ = x_ref.shape            # x_ref: (T, B, 128) time-major embeddings
    L = T + 6                        # sequence length after the 3 convs
    H = whhf1_ref.shape[0]           # 128

    # ---------- conv stack: 3 x (Conv1d k=3,p=2 + BN(eval) + ReLU) -----------
    def conv_layer(x_val, pad_ref, w_ref, scale_ref, shift_ref):
        Lin, Bb, Cin = x_val.shape
        Lo = Lin + 2                                  # (Lin + 2*2 - 3)/1 + 1
        Cout = w_ref.shape[1]
        # Zero only the 2 leading + 2 trailing pad rows (time axis).
        pad_ref[0:2] = jnp.zeros((2, Bb, Cin), jnp.float32)
        pad_ref[Lin + 2:Lin + 4] = jnp.zeros((2, Bb, Cin), jnp.float32)
        pad_ref[2:Lin + 2] = x_val
        # 3 accumulating dots (one per tap), M = Lo*B, K = Cin each.
        acc = jnp.dot(pad_ref[0:Lo].reshape(Lo * Bb, Cin).astype(jnp.bfloat16),
                      w_ref[0:Cin, :], preferred_element_type=jnp.float32)
        acc = acc + jnp.dot(
            pad_ref[1:1 + Lo].reshape(Lo * Bb, Cin).astype(jnp.bfloat16),
            w_ref[Cin:2 * Cin, :], preferred_element_type=jnp.float32)
        acc = acc + jnp.dot(
            pad_ref[2:2 + Lo].reshape(Lo * Bb, Cin).astype(jnp.bfloat16),
            w_ref[2 * Cin:3 * Cin, :], preferred_element_type=jnp.float32)
        y = acc.reshape(Lo, Bb, Cout) * scale_ref[...] + shift_ref[...]
        return jnp.maximum(y, 0.0)

    h1 = conv_layer(x_ref[...], p1_ref, w1_ref, s1_ref, sh1_ref)  # (T+2,B,128)
    h2 = conv_layer(h1, p2_ref, w2_ref, s2_ref, sh2_ref)          # (T+4,B,128)
    h3 = conv_layer(h2, p3_ref, w3_ref, s3_ref, sh3_ref)          # (T+6,B,128)

    # ---------- shared LSTM helpers ------------------------------------------
    mx = maxlen_ref[0]                                     # recurrence bound
    lens_bh = jnp.broadcast_to(lens_ref[...], (B, H))      # hoisted mask source
    lens_m1 = lens_bh - 1

    def cell(gates, c_prev):                               # f32 gate math
        i = jax.nn.sigmoid(gates[:, 0:H])
        f = jax.nn.sigmoid(gates[:, H:2 * H])
        g = jnp.tanh(gates[:, 2 * H:3 * H])
        o = jax.nn.sigmoid(gates[:, 3 * H:4 * H])
        c_new = f * c_prev + i * g
        h_new = o * jnp.tanh(c_new)
        return h_new, c_new

    def zero_states():
        hf_ref[...] = jnp.zeros_like(hf_ref)
        cf_ref[...] = jnp.zeros_like(cf_ref)
        hb_ref[...] = jnp.zeros_like(hb_ref)
        cb_ref[...] = jnp.zeros_like(cb_ref)

    # ---------- LSTM layer 1 --------------------------------------------------
    # Hoisted input projection: single (L*B,128)x(128,1024) dot (fwd|bwd).
    gx1_ref[...] = (jnp.dot(h3.reshape(L * B, H).astype(jnp.bfloat16),
                            wih1_ref[...],
                            preferred_element_type=jnp.float32)
                    + b1_ref[...]).reshape(L, B, 8 * H)

    zero_states()

    # Rows < mx are fully rewritten by the recurrence; zero only the tail.
    @pl.loop(mx, L)
    def _zero_tail(t):
        y1_ref[t] = jnp.zeros((B, 2 * H), jnp.float32)

    # Interleaved fwd (t) / bwd (mx-1-t) recurrence; only h @ W_hh is serial.
    @pl.loop(0, mx)
    def _layer1(s):
        tf = s
        tb = mx - 1 - s
        gx_f = gx1_ref[tf]
        gx_b = gx1_ref[tb]
        gates_f = (jnp.dot(hf_ref[...].astype(jnp.bfloat16), whhf1_ref[...],
                           preferred_element_type=jnp.float32)
                   + gx_f[:, 0:4 * H])
        gates_b = (jnp.dot(hb_ref[...].astype(jnp.bfloat16), whhb1_ref[...],
                           preferred_element_type=jnp.float32)
                   + gx_b[:, 4 * H:8 * H])
        hf_new, cf_new = cell(gates_f, cf_ref[...])
        hb_new, cb_new = cell(gates_b, cb_ref[...])
        vf = tf < lens_bh
        vb = tb < lens_bh
        hf_ref[...] = jnp.where(vf, hf_new, hf_ref[...])
        cf_ref[...] = jnp.where(vf, cf_new, cf_ref[...])
        hb_ref[...] = jnp.where(vb, hb_new, hb_ref[...])
        cb_ref[...] = jnp.where(vb, cb_new, cb_ref[...])
        y1_ref[tf, :, 0:H] = jnp.where(vf, hf_new, 0.0)
        y1_ref[tb, :, H:2 * H] = jnp.where(vb, hb_new, 0.0)

    # ---------- LSTM layer 2 (emits only the last valid state) ---------------
    gx2_ref[...] = (jnp.dot(
        y1_ref[...].reshape(L * B, 2 * H).astype(jnp.bfloat16),
        wih2_ref[...], preferred_element_type=jnp.float32)
        + b2_ref[...]).reshape(L, B, 8 * H)

    zero_states()
    hbl_ref[...] = jnp.zeros_like(hbl_ref)

    @pl.loop(0, mx)
    def _layer2(s):
        tf = s
        tb = mx - 1 - s
        gx_f = gx2_ref[tf]
        gx_b = gx2_ref[tb]
        gates_f = (jnp.dot(hf_ref[...].astype(jnp.bfloat16), whhf2_ref[...],
                           preferred_element_type=jnp.float32)
                   + gx_f[:, 0:4 * H])
        gates_b = (jnp.dot(hb_ref[...].astype(jnp.bfloat16), whhb2_ref[...],
                           preferred_element_type=jnp.float32)
                   + gx_b[:, 4 * H:8 * H])
        hf_new, cf_new = cell(gates_f, cf_ref[...])
        hb_new, cb_new = cell(gates_b, cb_ref[...])
        vf = tf < lens_bh
        vb = tb < lens_bh
        hf_ref[...] = jnp.where(vf, hf_new, hf_ref[...])
        cf_ref[...] = jnp.where(vf, cf_new, cf_ref[...])
        hb_ref[...] = jnp.where(vb, hb_new, hb_ref[...])
        cb_ref[...] = jnp.where(vb, cb_new, cb_ref[...])
        # Backward output at t = len-1 (its first valid step) feeds the head.
        hbl_ref[...] = jnp.where(tb == lens_m1, hb_new, hbl_ref[...])

    # ---------- fc_1 + ReLU + merged (rating|coarse) head ---------------------
    # hf_ref is frozen at t = len-1 by the mask == fwd half of x[b, len-1, :].
    # Split-K form of [hf | hbl] @ W_fc1 (avoids a lane concat).
    h = (jnp.dot(hf_ref[...].astype(jnp.bfloat16), wfc1_ref[0:H, :],
                 preferred_element_type=jnp.float32)
         + jnp.dot(hbl_ref[...].astype(jnp.bfloat16), wfc1_ref[H:2 * H, :],
                   preferred_element_type=jnp.float32)
         + bfc1_ref[...])
    h = jnp.maximum(h, 0.0)
    # Single lane-dense (B,128) output: cols 0..9 rating, col 10 coarse.
    o_ref[...] = (jnp.dot(h.astype(jnp.bfloat16), whead_ref[...],
                          preferred_element_type=jnp.float32) + bhead_ref[...])


# ------------------------------- parameters ----------------------------------
def init_params(key, symbol_size, emb_dim=128, hidden=128):
    ks = iter(jax.random.split(key, 64))

    def nrm(shape, scale=0.1):
        return jax.random.normal(next(ks), shape, dtype=jnp.float32) * scale

    p = {}
    p['embedding'] = nrm((symbol_size, emb_dim), 0.5)

    def conv_block(cin, cout, cin_pad=None, cout_pad=None):
        cin_pad = cin if cin_pad is None else cin_pad
        cout_pad = cout if cout_pad is None else cout_pad
        w = nrm((cout, cin, 3))                  # PyTorch Conv1d weight layout
        b = nrm((cout,), 0.05)
        gamma = 1.0 + nrm((cout,), 0.05)
        beta = nrm((cout,), 0.05)
        mean = nrm((cout,), 0.05)
        var = 1.0 + jnp.abs(nrm((cout,), 0.05))
        eps = 1e-5
        scale = gamma / jnp.sqrt(var + eps)      # BN(eval) folded w/ conv bias
        shift = (b - mean) * scale + beta
        # (Cout,Cin,3) -> (3,Cin,Cout), zero-pad to lane-dense 128, tap-major.
        w_k = jnp.transpose(w, (2, 1, 0))
        w_k = jnp.pad(w_k, ((0, 0), (0, cin_pad - cin), (0, cout_pad - cout)))
        scale_p = jnp.pad(scale, (0, cout_pad - cout))[None, :]
        shift_p = jnp.pad(shift, (0, cout_pad - cout))[None, :]
        return (w_k.reshape(3 * cin_pad, cout_pad).astype(jnp.bfloat16),
                scale_p, shift_p)

    p['conv1'] = conv_block(128, 128)
    p['conv2'] = conv_block(128, 64, cout_pad=128)   # lane-dense padded output
    p['conv3'] = conv_block(64, 128, cin_pad=128)    # matching padded input

    def lstm_layer_params(din, h):
        def direction():
            w_ih = nrm((4 * h, din))             # PyTorch layout, gates i,f,g,o
            w_hh = nrm((4 * h, h))
            b_ih = nrm((4 * h,), 0.05)
            b_hh = nrm((4 * h,), 0.05)
            return w_ih, w_hh, b_ih + b_hh
        wih_f, whh_f, b_f = direction()
        wih_b, whh_b, b_b = direction()
        wih_cat = jnp.concatenate([wih_f.T, wih_b.T], axis=1)  # (din,8h) fwd|bwd
        b_cat = jnp.concatenate([b_f, b_b])[None, :]            # (1, 8h)
        return (wih_cat.astype(jnp.bfloat16), b_cat,
                whh_f.T.astype(jnp.bfloat16), whh_b.T.astype(jnp.bfloat16))

    p['lstm1'] = lstm_layer_params(hidden, hidden)
    p['lstm2'] = lstm_layer_params(2 * hidden, hidden)

    w_fc1 = nrm((128, 256)); b_fc1 = nrm((128,), 0.05)
    w_coarse = nrm((1, 128)); b_coarse = nrm((1,), 0.05)
    w_fc = nrm((10, 128)); b_fc = nrm((10,), 0.05)
    # Merge fc (10) and fc_coarse (1) into one lane-dense 128-wide head.
    w_head = jnp.zeros((128, 128), jnp.float32)
    w_head = w_head.at[:, 0:10].set(w_fc.T).at[:, 10:11].set(w_coarse.T)
    b_head = jnp.zeros((1, 128), jnp.float32)
    b_head = b_head.at[:, 0:10].set(b_fc[None, :]).at[:, 10:11].set(
        b_coarse[None, :])
    p['fc1'] = (w_fc1.T.astype(jnp.bfloat16), b_fc1[None, :])
    p['head2'] = (w_head.astype(jnp.bfloat16), b_head)
    return p


# --------------------------------- forward -----------------------------------
def forward(p, x_tokens, ilens):
    B, T = x_tokens.shape
    L = T + 6
    # TODO(synk): nn.Embedding row gather left to XLA jnp.take (arbitrary
    # gather; a Pallas DMA-gather buys nothing at this size).  Indexing with
    # tokens.T yields the time-major (T,B,128) layout the fused kernel wants,
    # so no host-side transpose remains.
    emb_tm = jnp.take(p['embedding'], x_tokens.T, axis=0)        # (T, B, 128)
    # TODO(synk): ilens is assumed to already be valid lengths in the
    # post-conv (T+6) domain, as fed to pack_padded_sequence by the caller.
    # TODO(synk): Dropout(0.2) layers are identity (eval mode); training-mode
    # stochastic dropout is not implemented.
    lens = ilens.astype(jnp.int32).reshape(B, 1)
    maxlen = jnp.max(lens).reshape(1)

    out = pl.pallas_call(
        _model_kernel,
        out_shape=jax.ShapeDtypeStruct((B, 128), jnp.float32),
        in_specs=[_SMEM] + [_VMEM] * 23,
        out_specs=_VMEM,
        scratch_shapes=[
            pltpu.VMEM((T + 4, B, 128), jnp.float32),   # conv1 padded input
            pltpu.VMEM((T + 6, B, 128), jnp.float32),   # conv2 padded input
            pltpu.VMEM((T + 8, B, 128), jnp.float32),   # conv3 padded input
            pltpu.VMEM((L, B, 1024), jnp.float32),      # layer-1 gx (fwd|bwd)
            pltpu.VMEM((L, B, 256), jnp.float32),       # layer-1 output
            pltpu.VMEM((L, B, 1024), jnp.float32),      # layer-2 gx (fwd|bwd)
            pltpu.VMEM((B, 128), jnp.float32),          # h fwd
            pltpu.VMEM((B, 128), jnp.float32),          # c fwd
            pltpu.VMEM((B, 128), jnp.float32),          # h bwd
            pltpu.VMEM((B, 128), jnp.float32),          # c bwd
            pltpu.VMEM((B, 128), jnp.float32),          # bwd h at t = len-1
        ],
    )(maxlen, lens, emb_tm,
      *p['conv1'], *p['conv2'], *p['conv3'],
      *p['lstm1'], *p['lstm2'],
      *p['fc1'], *p['head2'])
    # TODO(synk): on v7x the two LSTM directions could additionally be split
    # across the two TensorCores (grid=(2,), dimension_semantics=('parallel',))
    # and W_hh kept resident in MXU staging regs via pltpu.matmul_push_rhs.
    return out[:, 0:10], out[:, 10:11]                           # rating, coarse


if __name__ == "__main__":
    symbol_size = 50
    B, T = 2, 8
    params = init_params(jax.random.PRNGKey(0), symbol_size)

    kx, _ = jax.random.split(jax.random.PRNGKey(1))
    x = jax.random.randint(kx, (B, T), 0, symbol_size, dtype=jnp.int32)
    L_conv = T + 6                                          # length after convs
    ilens = jnp.array([L_conv, L_conv - 5], dtype=jnp.int32)

    rating, coarse = jax.jit(forward)(params, x, ilens)
    jax.block_until_ready((rating, coarse))
    assert rating.shape == (B, 10) and coarse.shape == (B, 1)
    assert jnp.all(jnp.isfinite(rating)) and jnp.all(jnp.isfinite(coarse))
    print("KERNEL_OK")
</pallas_src>

<mosaic_0001>
module attributes {stable_mosaic.version = 11 : i64} {
  func.func @_model_kernel(%arg0: memref<1xi32, #tpu.memory_space<smem>>, %arg1: memref<2x1xi32, #tpu.memory_space<vmem>>, %arg2: memref<8x2x128xf32, #tpu.memory_space<vmem>>, %arg3: memref<384x128xbf16, #tpu.memory_space<vmem>>, %arg4: memref<1x128xf32, #tpu.memory_space<vmem>>, %arg5: memref<1x128xf32, #tpu.memory_space<vmem>>, %arg6: memref<384x128xbf16, #tpu.memory_space<vmem>>, %arg7: memref<1x128xf32, #tpu.memory_space<vmem>>, %arg8: memref<1x128xf32, #tpu.memory_space<vmem>>, %arg9: memref<384x128xbf16, #tpu.memory_space<vmem>>, %arg10: memref<1x128xf32, #tpu.memory_space<vmem>>, %arg11: memref<1x128xf32, #tpu.memory_space<vmem>>, %arg12: memref<128x1024xbf16, #tpu.memory_space<vmem>>, %arg13: memref<1x1024xf32, #tpu.memory_space<vmem>>, %arg14: memref<128x512xbf16, #tpu.memory_space<vmem>>, %arg15: memref<128x512xbf16, #tpu.memory_space<vmem>>, %arg16: memref<256x1024xbf16, #tpu.memory_space<vmem>>, %arg17: memref<1x1024xf32, #tpu.memory_space<vmem>>, %arg18: memref<128x512xbf16, #tpu.memory_space<vmem>>, %arg19: memref<128x512xbf16, #tpu.memory_space<vmem>>, %arg20: memref<256x128xbf16, #tpu.memory_space<vmem>>, %arg21: memref<1x128xf32, #tpu.memory_space<vmem>>, %arg22: memref<128x128xbf16, #tpu.memory_space<vmem>>, %arg23: memref<1x128xf32, #tpu.memory_space<vmem>>, %arg24: memref<2x128xf32, #tpu.memory_space<vmem>>, %arg25: memref<12x2x128xf32, #tpu.memory_space<vmem>>, %arg26: memref<14x2x128xf32, #tpu.memory_space<vmem>>, %arg27: memref<16x2x128xf32, #tpu.memory_space<vmem>>, %arg28: memref<14x2x1024xf32, #tpu.memory_space<vmem>>, %arg29: memref<14x2x256xf32, #tpu.memory_space<vmem>>, %arg30: memref<14x2x1024xf32, #tpu.memory_space<vmem>>, %arg31: memref<2x128xf32, #tpu.memory_space<vmem>>, %arg32: memref<2x128xf32, #tpu.memory_space<vmem>>, %arg33: memref<2x128xf32, #tpu.memory_space<vmem>>, %arg34: memref<2x128xf32, #tpu.memory_space<vmem>>, %arg35: memref<2x128xf32, #tpu.memory_space<vmem>>) attributes {dimension_semantics = [], scalar_prefetch = 0 : i64, scratch_operands = 11 : i64, tpu.core_type = #tpu.core_type<tc>} {
    %c0 = arith.constant 0 : index
    %c0_0 = arith.constant 0 : index
    %c0_1 = arith.constant 0 : index
    %0 = vector.load %arg2[%c0, %c0_0, %c0_1] : memref<8x2x128xf32, #tpu.memory_space<vmem>>, vector<8x2x128xf32>
    %cst = arith.constant 0.000000e+00 : f32
    %1 = vector.broadcast %cst : f32 to vector<2x2x128xf32>
    %c0_2 = arith.constant 0 : index
    %c0_3 = arith.constant 0 : index
    %c0_4 = arith.constant 0 : index
    %2 = vector.load %arg25[%c0_2, %c0_3, %c0_4] : memref<12x2x128xf32, #tpu.memory_space<vmem>>, vector<2x2x128xf32>
    tpu.vector_store %arg25[%c0_2, %c0_3, %c0_4], %1 {strides = array<i32>} : memref<12x2x128xf32, #tpu.memory_space<vmem>>, vector<2x2x128xf32>,
    %cst_5 = arith.constant 0.000000e+00 : f32
    %3 = vector.broadcast %cst_5 : f32 to vector<2x2x128xf32>
    %c10 = arith.constant 10 : index
    %c0_6 = arith.constant 0 : index
    %c0_7 = arith.constant 0 : index
    %4 = vector.load %arg25[%c10, %c0_6, %c0_7] : memref<12x2x128xf32, #tpu.memory_space<vmem>>, vector<2x2x128xf32>
    tpu.vector_store %arg25[%c10, %c0_6, %c0_7], %3 {strides = array<i32>} : memref<12x2x128xf32, #tpu.memory_space<vmem>>, vector<2x2x128xf32>,
    %c2 = arith.constant 2 : index
    %c0_8 = arith.constant 0 : index
    %c0_9 = arith.constant 0 : index
    %5 = vector.load %arg25[%c2, %c0_8, %c0_9] : memref<12x2x128xf32, #tpu.memory_space<vmem>>, vector<8x2x128xf32>
    tpu.vector_store %arg25[%c2, %c0_8, %c0_9], %0 {strides = array<i32>} : memref<12x2x128xf32, #tpu.memory_space<vmem>>, vector<8x2x128xf32>,
    %c0_10 = arith.constant 0 : index
    %c0_11 = arith.constant 0 : index
    %c0_12 = arith.constant 0 : index
    %6 = vector.load %arg25[%c0_10, %c0_11, %c0_12] : memref<12x2x128xf32, #tpu.memory_space<vmem>>, vector<10x2x128xf32>
    %7 = vector.shape_cast %6 : vector<10x2x128xf32> to vector<20x128xf32>
    %8 = arith.truncf %7 : vector<20x128xf32> to vector<20x128xbf16>
    %c0_13 = arith.constant 0 : index
    %c0_14 = arith.constant 0 : index
    %9 = vector.load %arg3[%c0_13, %c0_14] : memref<384x128xbf16, #tpu.memory_space<vmem>>, vector<128x128xbf16>
    %cst_15 = arith.constant dense<0.000000e+00> : vector<20x128xf32>
    %10 = tpu.matmul %8, %9, %cst_15 {dimension_numbers = #tpu.dot_dimension_numbers<[1], [0], [0], [1], [0, 0, 1, 1], [], []>} : vector<20x128xbf16>, vector<128x128xbf16>, vector<20x128xf32> -> vector<20x128xf32>
    %c1 = arith.constant 1 : index
    %c0_16 = arith.constant 0 : index
    %c0_17 = arith.constant 0 : index
    %11 = vector.load %arg25[%c1, %c0_16, %c0_17] : memref<12x2x128xf32, #tpu.memory_space<vmem>>, vector<10x2x128xf32>
    %12 = vector.shape_cast %11 : vector<10x2x128xf32> to vector<20x128xf32>
    %13 = arith.truncf %12 : vector<20x128xf32> to vector<20x128xbf16>
    %c128 = arith.constant 128 : index
    %c0_18 = arith.constant 0 : index
    %14 = vector.load %arg3[%c128, %c0_18] : memref<384x128xbf16, #tpu.memory_space<vmem>>, vector<128x128xbf16>
    %cst_19 = arith.constant dense<0.000000e+00> : vector<20x128xf32>
    %15 = tpu.matmul %13, %14, %cst_19 {dimension_numbers = #tpu.dot_dimension_numbers<[1], [0], [0], [1], [0, 0, 1, 1], [], []>} : vector<20x128xbf16>, vector<128x128xbf16>, vector<20x128xf32> -> vector<20x128xf32>
    %16 = arith.addf %10, %15 : vector<20x128xf32>
    %c2_20 = arith.constant 2 : index
    %c0_21 = arith.constant 0 : index
    %c0_22 = arith.constant 0 : index
    %17 = vector.load %arg25[%c2_20, %c0_21, %c0_22] : memref<12x2x128xf32, #tpu.memory_space<vmem>>, vector<10x2x128xf32>
    %18 = vector.shape_cast %17 : vector<10x2x128xf32> to vector<20x128xf32>
    %19 = arith.truncf %18 : vector<20x128xf32> to vector<20x128xbf16>
    %c256 = arith.constant 256 : index
    %c0_23 = arith.constant 0 : index
    %20 = vector.load %arg3[%c256, %c0_23] : memref<384x128xbf16, #tpu.memory_space<vmem>>, vector<128x128xbf16>
    %cst_24 = arith.constant dense<0.000000e+00> : vector<20x128xf32>
    %21 = tpu.matmul %19, %20, %cst_24 {dimension_numbers = #tpu.dot_dimension_numbers<[1], [0], [0], [1], [0, 0, 1, 1], [], []>} : vector<20x128xbf16>, vector<128x128xbf16>, vector<20x128xf32> -> vector<20x128xf32>
    %22 = arith.addf %16, %21 : vector<20x128xf32>
    %23 = vector.shape_cast %22 : vector<20x128xf32> to vector<10x2x128xf32>
    %c0_25 = arith.constant 0 : index
    %c0_26 = arith.constant 0 : index
    %24 = vector.load %arg4[%c0_25, %c0_26] : memref<1x128xf32, #tpu.memory_space<vmem>>, vector<1x128xf32>
    %25 = vector.shape_cast %24 : vector<1x128xf32> to vector<1x1x128xf32>
    %26 = vector.broadcast %25 : vector<1x1x128xf32> to vector<10x2x128xf32>
    %27 = arith.mulf %23, %26 : vector<10x2x128xf32>
    %c0_27 = arith.constant 0 : index
    %c0_28 = arith.constant 0 : index
    %28 = vector.load %arg5[%c0_27, %c0_28] : memref<1x128xf32, #tpu.memory_space<vmem>>, vector<1x128xf32>
    %29 = vector.shape_cast %28 : vector<1x128xf32> to vector<1x1x128xf32>
    %30 = vector.broadcast %29 : vector<1x1x128xf32> to vector<10x2x128xf32>
    %31 = arith.addf %27, %30 : vector<10x2x128xf32>
    %cst_29 = arith.constant 0.000000e+00 : f32
    %32 = vector.broadcast %cst_29 : f32 to vector<10x2x128xf32>
    %33 = arith.maximumf %31, %32 : vector<10x2x128xf32>
    %cst_30 = arith.constant 0.000000e+00 : f32
    %34 = vector.broadcast %cst_30 : f32 to vector<2x2x128xf32>
    %c0_31 = arith.constant 0 : index
    %c0_32 = arith.constant 0 : index
    %c0_33 = arith.constant 0 : index
    %35 = vector.load %arg26[%c0_31, %c0_32, %c0_33] : memref<14x2x128xf32, #tpu.memory_space<vmem>>, vector<2x2x128xf32>
    tpu.vector_store %arg26[%c0_31, %c0_32, %c0_33], %34 {strides = array<i32>} : memref<14x2x128xf32, #tpu.memory_space<vmem>>, vector<2x2x128xf32>,
    %cst_34 = arith.constant 0.000000e+00 : f32
    %36 = vector.broadcast %cst_34 : f32 to vector<2x2x128xf32>
    %c12 = arith.constant 12 : index
    %c0_35 = arith.constant 0 : index
    %c0_36 = arith.constant 0 : index
    %37 = vector.load %arg26[%c12, %c0_35, %c0_36] : memref<14x2x128xf32, #tpu.memory_space<vmem>>, vector<2x2x128xf32>
    tpu.vector_store %arg26[%c12, %c0_35, %c0_36], %36 {strides = array<i32>} : memref<14x2x128xf32, #tpu.memory_space<vmem>>, vector<2x2x128xf32>,
    %c2_37 = arith.constant 2 : index
    %c0_38 = arith.constant 0 : index
    %c0_39 = arith.constant 0 : index
    %38 = vector.load %arg26[%c2_37, %c0_38, %c0_39] : memref<14x2x128xf32, #tpu.memory_space<vmem>>, vector<10x2x128xf32>
    tpu.vector_store %arg26[%c2_37, %c0_38, %c0_39], %33 {strides = array<i32>} : memref<14x2x128xf32, #tpu.memory_space<vmem>>, vector<10x2x128xf32>,
    %c0_40 = arith.constant 0 : index
    %c0_41 = arith.constant 0 : index
    %c0_42 = arith.constant 0 : index
    %39 = vector.load %arg26[%c0_40, %c0_41, %c0_42] : memref<14x2x128xf32, #tpu.memory_space<vmem>>, vector<12x2x128xf32>
    %40 = vector.shape_cast %39 : vector<12x2x128xf32> to vector<24x128xf32>
    %41 = arith.truncf %40 : vector<24x128xf32> to vector<24x128xbf16>
    %c0_43 = arith.constant 0 : index
    %c0_44 = arith.constant 0 : index
    %42 = vector.load %arg6[%c0_43, %c0_44] : memref<384x128xbf16, #tpu.memory_space<vmem>>, vector<128x128xbf16>
    %cst_45 = arith.constant dense<0.000000e+00> : vector<24x128xf32>
    %43 = tpu.matmul %41, %42, %cst_45 {dimension_numbers = #tpu.dot_dimension_numbers<[1], [0], [0], [1], [0, 0, 1, 1], [], []>} : vector<24x128xbf16>, vector<128x128xbf16>, vector<24x128xf32> -> vector<24x128xf32>
    %c1_46 = arith.constant 1 : index
    %c0_47 = arith.constant 0 : index
    %c0_48 = arith.constant 0 : index
    %44 = vector.load %arg26[%c1_46, %c0_47, %c0_48] : memref<14x2x128xf32, #tpu.memory_space<vmem>>, vector<12x2x128xf32>
    %45 = vector.shape_cast %44 : vector<12x2x128xf32> to vector<24x128xf32>
    %46 = arith.truncf %45 : vector<24x128xf32> to vector<24x128xbf16>
    %c128_49 = arith.constant 128 : index
    %c0_50 = arith.constant 0 : index
    %47 = vector.load %arg6[%c128_49, %c0_50] : memref<384x128xbf16, #tpu.memory_space<vmem>>, vector<128x128xbf16>
    %cst_51 = arith.constant dense<0.000000e+00> : vector<24x128xf32>
    %48 = tpu.matmul %46, %47, %cst_51 {dimension_numbers = #tpu.dot_dimension_numbers<[1], [0], [0], [1], [0, 0, 1, 1], [], []>} : vector<24x128xbf16>, vector<128x128xbf16>, vector<24x128xf32> -> vector<24x128xf32>
    %49 = arith.addf %43, %48 : vector<24x128xf32>
    %c2_52 = arith.constant 2 : index
    %c0_53 = arith.constant 0 : index
    %c0_54 = arith.constant 0 : index
    %50 = vector.load %arg26[%c2_52, %c0_53, %c0_54] : memref<14x2x128xf32, #tpu.memory_space<vmem>>, vector<12x2x128xf32>
    %51 = vector.shape_cast %50 : vector<12x2x128xf32> to vector<24x128xf32>
    %52 = arith.truncf %51 : vector<24x128xf32> to vector<24x128xbf16>
    %c256_55 = arith.constant 256 : index
    %c0_56 = arith.constant 0 : index
    %53 = vector.load %arg6[%c256_55, %c0_56] : memref<384x128xbf16, #tpu.memory_space<vmem>>, vector<128x128xbf16>
    %cst_57 = arith.constant dense<0.000000e+00> : vector<24x128xf32>
    %54 = tpu.matmul %52, %53, %cst_57 {dimension_numbers = #tpu.dot_dimension_numbers<[1], [0], [0], [1], [0, 0, 1, 1], [], []>} : vector<24x128xbf16>, vector<128x128xbf16>, vector<24x128xf32> -> vector<24x128xf32>
    %55 = arith.addf %49, %54 : vector<24x128xf32>
    %56 = vector.shape_cast %55 : vector<24x128xf32> to vector<12x2x128xf32>
    %c0_58 = arith.constant 0 : index
    %c0_59 = arith.constant 0 : index
    %57 = vector.load %arg7[%c0_58, %c0_59] : memref<1x128xf32, #tpu.memory_space<vmem>>, vector<1x128xf32>
    %58 = vector.shape_cast %57 : vector<1x128xf32> to vector<1x1x128xf32>
    %59 = vector.broadcast %58 : vector<1x1x128xf32> to vector<12x2x128xf32>
    %60 = arith.mulf %56, %59 : vector<12x2x128xf32>
    %c0_60 = arith.constant 0 : index
    %c0_61 = arith.constant 0 : index
    %61 = vector.load %arg8[%c0_60, %c0_61] : memref<1x128xf32, #tpu.memory_space<vmem>>, vector<1x128xf32>
    %62 = vector.shape_cast %61 : vector<1x128xf32> to vector<1x1x128xf32>
    %63 = vector.broadcast %62 : vector<1x1x128xf32> to vector<12x2x128xf32>
    %64 = arith.addf %60, %63 : vector<12x2x128xf32>
    %cst_62 = arith.constant 0.000000e+00 : f32
    %65 = vector.broadcast %cst_62 : f32 to vector<12x2x128xf32>
    %66 = arith.maximumf %64, %65 : vector<12x2x128xf32>
    %cst_63 = arith.constant 0.000000e+00 : f32
    %67 = vector.broadcast %cst_63 : f32 to vector<2x2x128xf32>
    %c0_64 = arith.constant 0 : index
    %c0_65 = arith.constant 0 : index
    %c0_66 = arith.constant 0 : index
    %68 = vector.load %arg27[%c0_64, %c0_65, %c0_66] : memref<16x2x128xf32, #tpu.memory_space<vmem>>, vector<2x2x128xf32>
    tpu.vector_store %arg27[%c0_64, %c0_65, %c0_66], %67 {strides = array<i32>} : memref<16x2x128xf32, #tpu.memory_space<vmem>>, vector<2x2x128xf32>,
    %cst_67 = arith.constant 0.000000e+00 : f32
    %69 = vector.broadcast %cst_67 : f32 to vector<2x2x128xf32>
    %c14 = arith.constant 14 : index
    %c0_68 = arith.constant 0 : index
    %c0_69 = arith.constant 0 : index
    %70 = vector.load %arg27[%c14, %c0_68, %c0_69] : memref<16x2x128xf32, #tpu.memory_space<vmem>>, vector<2x2x128xf32>
    tpu.vector_store %arg27[%c14, %c0_68, %c0_69], %69 {strides = array<i32>} : memref<16x2x128xf32, #tpu.memory_space<vmem>>, vector<2x2x128xf32>,
    %c2_70 = arith.constant 2 : index
    %c0_71 = arith.constant 0 : index
    %c0_72 = arith.constant 0 : index
    %71 = vector.load %arg27[%c2_70, %c0_71, %c0_72] : memref<16x2x128xf32, #tpu.memory_space<vmem>>, vector<12x2x128xf32>
    tpu.vector_store %arg27[%c2_70, %c0_71, %c0_72], %66 {strides = array<i32>} : memref<16x2x128xf32, #tpu.memory_space<vmem>>, vector<12x2x128xf32>,
    %c0_73 = arith.constant 0 : index
    %c0_74 = arith.constant 0 : index
    %c0_75 = arith.constant 0 : index
    %72 = vector.load %arg27[%c0_73, %c0_74, %c0_75] : memref<16x2x128xf32, #tpu.memory_space<vmem>>, vector<14x2x128xf32>
    %73 = vector.shape_cast %72 : vector<14x2x128xf32> to vector<28x128xf32>
    %74 = arith.truncf %73 : vector<28x128xf32> to vector<28x128xbf16>
    %c0_76 = arith.constant 0 : index
    %c0_77 = arith.constant 0 : index
    %75 = vector.load %arg9[%c0_76, %c0_77] : memref<384x128xbf16, #tpu.memory_space<vmem>>, vector<128x128xbf16>
    %cst_78 = arith.constant dense<0.000000e+00> : vector<28x128xf32>
    %76 = tpu.matmul %74, %75, %cst_78 {dimension_numbers = #tpu.dot_dimension_numbers<[1], [0], [0], [1], [0, 0, 1, 1], [], []>} : vector<28x128xbf16>, vector<128x128xbf16>, vector<28x128xf32> -> vector<28x128xf32>
    %c1_79 = arith.constant 1 : index
    %c0_80 = arith.constant 0 : index
    %c0_81 = arith.constant 0 : index
    %77 = vector.load %arg27[%c1_79, %c0_80, %c0_81] : memref<16x2x128xf32, #tpu.memory_space<vmem>>, vector<14x2x128xf32>
    %78 = vector.shape_cast %77 : vector<14x2x128xf32> to vector<28x128xf32>
    %79 = arith.truncf %78 : vector<28x128xf32> to vector<28x128xbf16>
    %c128_82 = arith.constant 128 : index
    %c0_83 = arith.constant 0 : index
    %80 = vector.load %arg9[%c128_82, %c0_83] : memref<384x128xbf16, #tpu.memory_space<vmem>>, vector<128x128xbf16>
    %cst_84 = arith.constant dense<0.000000e+00> : vector<28x128xf32>
    %81 = tpu.matmul %79, %80, %cst_84 {dimension_numbers = #tpu.dot_dimension_numbers<[1], [0], [0], [1], [0, 0, 1, 1], [], []>} : vector<28x128xbf16>, vector<128x128xbf16>, vector<28x128xf32> -> vector<28x128xf32>
    %82 = arith.addf %76, %81 : vector<28x128xf32>
    %c2_85 = arith.constant 2 : index
    %c0_86 = arith.constant 0 : index
    %c0_87 = arith.constant 0 : index
    %83 = vector.load %arg27[%c2_85, %c0_86, %c0_87] : memref<16x2x128xf32, #tpu.memory_space<vmem>>, vector<14x2x128xf32>
    %84 = vector.shape_cast %83 : vector<14x2x128xf32> to vector<28x128xf32>
    %85 = arith.truncf %84 : vector<28x128xf32> to vector<28x128xbf16>
    %c256_88 = arith.constant 256 : index
    %c0_89 = arith.constant 0 : index
    %86 = vector.load %arg9[%c256_88, %c0_89] : memref<384x128xbf16, #tpu.memory_space<vmem>>, vector<128x128xbf16>
    %cst_90 = arith.constant dense<0.000000e+00> : vector<28x128xf32>
    %87 = tpu.matmul %85, %86, %cst_90 {dimension_numbers = #tpu.dot_dimension_numbers<[1], [0], [0], [1], [0, 0, 1, 1], [], []>} : vector<28x128xbf16>, vector<128x128xbf16>, vector<28x128xf32> -> vector<28x128xf32>
    %88 = arith.addf %82, %87 : vector<28x128xf32>
    %89 = vector.shape_cast %88 : vector<28x128xf32> to vector<14x2x128xf32>
    %c0_91 = arith.constant 0 : index
    %c0_92 = arith.constant 0 : index
    %90 = vector.load %arg10[%c0_91, %c0_92] : memref<1x128xf32, #tpu.memory_space<vmem>>, vector<1x128xf32>
    %91 = vector.shape_cast %90 : vector<1x128xf32> to vector<1x1x128xf32>
    %92 = vector.broadcast %91 : vector<1x1x128xf32> to vector<14x2x128xf32>
    %93 = arith.mulf %89, %92 : vector<14x2x128xf32>
    %c0_93 = arith.constant 0 : index
    %c0_94 = arith.constant 0 : index
    %94 = vector.load %arg11[%c0_93, %c0_94] : memref<1x128xf32, #tpu.memory_space<vmem>>, vector<1x128xf32>
    %95 = vector.shape_cast %94 : vector<1x128xf32> to vector<1x1x128xf32>
    %96 = vector.broadcast %95 : vector<1x1x128xf32> to vector<14x2x128xf32>
    %97 = arith.addf %93, %96 : vector<14x2x128xf32>
    %cst_95 = arith.constant 0.000000e+00 : f32
    %98 = vector.broadcast %cst_95 : f32 to vector<14x2x128xf32>
    %99 = arith.maximumf %97, %98 : vector<14x2x128xf32>
    %c0_96 = arith.constant 0 : index
    %100 = memref.load %arg0[%c0_96] : memref<1xi32, #tpu.memory_space<smem>>
    %c0_97 = arith.constant 0 : index
    %c0_98 = arith.constant 0 : index
    %101 = vector.load %arg1[%c0_97, %c0_98] : memref<2x1xi32, #tpu.memory_space<vmem>>, vector<2x1xi32>
    %102 = vector.shape_cast %101 : vector<2x1xi32> to vector<2x1xi32>
    %103 = vector.broadcast %102 : vector<2x1xi32> to vector<2x128xi32>
    %c1_i32 = arith.constant 1 : i32
    %104 = vector.broadcast %c1_i32 : i32 to vector<2x128xi32>
    %105 = arith.subi %103, %104 : vector<2x128xi32>
    %106 = vector.shape_cast %99 : vector<14x2x128xf32> to vector<28x128xf32>
    %107 = arith.truncf %106 : vector<28x128xf32> to vector<28x128xbf16>
    %c0_99 = arith.constant 0 : index
    %c0_100 = arith.constant 0 : index
    %108 = vector.load %arg12[%c0_99, %c0_100] : memref<128x1024xbf16, #tpu.memory_space<vmem>>, vector<128x1024xbf16>
    %cst_101 = arith.constant dense<0.000000e+00> : vector<28x1024xf32>
    %109 = tpu.matmul %107, %108, %cst_101 {dimension_numbers = #tpu.dot_dimension_numbers<[1], [0], [0], [1], [0, 0, 1, 1], [], []>} : vector<28x128xbf16>, vector<128x1024xbf16>, vector<28x1024xf32> -> vector<28x1024xf32>
    %c0_102 = arith.constant 0 : index
    %c0_103 = arith.constant 0 : index
    %110 = vector.load %arg13[%c0_102, %c0_103] : memref<1x1024xf32, #tpu.memory_space<vmem>>, vector<1x1024xf32>
    %111 = vector.broadcast %110 : vector<1x1024xf32> to vector<28x1024xf32>
    %112 = arith.addf %109, %111 : vector<28x1024xf32>
    %113 = vector.shape_cast %112 : vector<28x1024xf32> to vector<14x2x1024xf32>
    %c0_104 = arith.constant 0 : index
    %c0_105 = arith.constant 0 : index
    %c0_106 = arith.constant 0 : index
    %114 = vector.load %arg28[%c0_104, %c0_105, %c0_106] : memref<14x2x1024xf32, #tpu.memory_space<vmem>>, vector<14x2x1024xf32>
    tpu.vector_store %arg28[%c0_104, %c0_105, %c0_106], %113 {strides = array<i32>} : memref<14x2x1024xf32, #tpu.memory_space<vmem>>, vector<14x2x1024xf32>,
    %cst_107 = arith.constant 0.000000e+00 : f32
    %115 = vector.broadcast %cst_107 : f32 to vector<2x128xf32>
    %c0_108 = arith.constant 0 : index
    %c0_109 = arith.constant 0 : index
    %116 = vector.load %arg31[%c0_108, %c0_109] : memref<2x128xf32, #tpu.memory_space<vmem>>, vector<2x128xf32>
    tpu.vector_store %arg31[%c0_108, %c0_109], %115 {strides = array<i32>} : memref<2x128xf32, #tpu.memory_space<vmem>>, vector<2x128xf32>,
    %cst_110 = arith.constant 0.000000e+00 : f32
    %117 = vector.broadcast %cst_110 : f32 to vector<2x128xf32>
    %c0_111 = arith.constant 0 : index
    %c0_112 = arith.constant 0 : index
    %118 = vector.load %arg32[%c0_111, %c0_112] : memref<2x128xf32, #tpu.memory_space<vmem>>, vector<2x128xf32>
    tpu.vector_store %arg32[%c0_111, %c0_112], %117 {strides = array<i32>} : memref<2x128xf32, #tpu.memory_space<vmem>>, vector<2x128xf32>,
    %cst_113 = arith.constant 0.000000e+00 : f32
    %119 = vector.broadcast %cst_113 : f32 to vector<2x128xf32>
    %c0_114 = arith.constant 0 : index
    %c0_115 = arith.constant 0 : index
    %120 = vector.load %arg33[%c0_114, %c0_115] : memref<2x128xf32, #tpu.memory_space<vmem>>, vector<2x128xf32>
    tpu.vector_store %arg33[%c0_114, %c0_115], %119 {strides = array<i32>} : memref<2x128xf32, #tpu.memory_space<vmem>>, vector<2x128xf32>,
    %cst_116 = arith.constant 0.000000e+00 : f32
    %121 = vector.broadcast %cst_116 : f32 to vector<2x128xf32>
    %c0_117 = arith.constant 0 : index
    %c0_118 = arith.constant 0 : index
    %122 = vector.load %arg34[%c0_117, %c0_118] : memref<2x128xf32, #tpu.memory_space<vmem>>, vector<2x128xf32>
    tpu.vector_store %arg34[%c0_117, %c0_118], %121 {strides = array<i32>} : memref<2x128xf32, #tpu.memory_space<vmem>>, vector<2x128xf32>,
    %c14_i32 = arith.constant 14 : i32
    %123 = arith.subi %c14_i32, %100 : i32
    %c1_i32_119 = arith.constant 1 : i32
    %c1_i32_120 = arith.constant 1 : i32
    %124 = arith.subi %c1_i32_119, %c1_i32_120 : i32
    %125 = arith.addi %123, %124 : i32
    %c1_i32_121 = arith.constant 1 : i32
    %126 = arith.divsi %125, %c1_i32_121 : i32
    %c1_i32_122 = arith.constant 1 : i32
    %c0_i32 = arith.constant 0 : i32
    %127 = arith.subi %126, %c0_i32 : i32
    %128 = arith.addi %c0_i32, %127 : i32
    %c1_i32_123 = arith.constant 1 : i32
    scf.for %arg36 = %c0_i32 to %128 step %c1_i32_123  : i32 {
      %182 = arith.muli %arg36, %c1_i32_122 : i32
      %183 = arith.addi %100, %182 : i32
      %cst_186 = arith.constant 0.000000e+00 : f32
      %184 = vector.broadcast %cst_186 : f32 to vector<2x256xf32>
      %185 = arith.index_cast %183 : i32 to index
      %c0_187 = arith.constant 0 : index
      %c0_188 = arith.constant 0 : index
      %186 = vector.load %arg29[%185, %c0_187, %c0_188] : memref<14x2x256xf32, #tpu.memory_space<vmem>>, vector<1x2x256xf32>
      %187 = vector.shape_cast %186 : vector<1x2x256xf32> to vector<2x256xf32>
      %188 = vector.shape_cast %184 : vector<2x256xf32> to vector<1x2x256xf32>
      tpu.vector_store %arg29[%185, %c0_187, %c0_188], %188 {strides = array<i32>} : memref<14x2x256xf32, #tpu.memory_space<vmem>>, vector<1x2x256xf32>,
    }
    %c0_i32_124 = arith.constant 0 : i32
    %129 = arith.subi %100, %c0_i32_124 : i32
    %c1_i32_125 = arith.constant 1 : i32
    %c1_i32_126 = arith.constant 1 : i32
    %130 = arith.subi %c1_i32_125, %c1_i32_126 : i32
    %131 = arith.addi %129, %130 : i32
    %c1_i32_127 = arith.constant 1 : i32
    %132 = arith.divsi %131, %c1_i32_127 : i32
    %c1_i32_128 = arith.constant 1 : i32
    %c0_i32_129 = arith.constant 0 : i32
    %c0_i32_130 = arith.constant 0 : i32
    %133 = arith.subi %132, %c0_i32_130 : i32
    %134 = arith.addi %c0_i32_130, %133 : i32
    %c1_i32_131 = arith.constant 1 : i32
    scf.for %arg36 = %c0_i32_130 to %134 step %c1_i32_131  : i32 {
      %182 = arith.muli %arg36, %c1_i32_128 : i32
      %183 = arith.addi %c0_i32_129, %182 : i32
      %c1_i32_186 = arith.constant 1 : i32
      %184 = arith.subi %100, %c1_i32_186 : i32
      %185 = arith.subi %184, %183 : i32
      %186 = arith.index_cast %183 : i32 to index
      %c0_187 = arith.constant 0 : index
      %c0_188 = arith.constant 0 : index
      %187 = vector.load %arg28[%186, %c0_187, %c0_188] : memref<14x2x1024xf32, #tpu.memory_space<vmem>>, vector<1x2x1024xf32>
      %188 = vector.shape_cast %187 : vector<1x2x1024xf32> to vector<2x1024xf32>
      %189 = arith.index_cast %185 : i32 to index
      %c0_189 = arith.constant 0 : index
      %c0_190 = arith.constant 0 : index
      %190 = vector.load %arg28[%189, %c0_189, %c0_190] : memref<14x2x1024xf32, #tpu.memory_space<vmem>>, vector<1x2x1024xf32>
      %191 = vector.shape_cast %190 : vector<1x2x1024xf32> to vector<2x1024xf32>
      %c0_191 = arith.constant 0 : index
      %c0_192 = arith.constant 0 : index
      %192 = vector.load %arg31[%c0_191, %c0_192] : memref<2x128xf32, #tpu.memory_space<vmem>>, vector<2x128xf32>
      %193 = arith.truncf %192 : vector<2x128xf32> to vector<2x128xbf16>
      %c0_193 = arith.constant 0 : index
      %c0_194 = arith.constant 0 : index
      %194 = vector.load %arg14[%c0_193, %c0_194] : memref<128x512xbf16, #tpu.memory_space<vmem>>, vector<128x512xbf16>
      %cst_195 = arith.constant dense<0.000000e+00> : vector<2x512xf32>
      %195 = tpu.matmul %193, %194, %cst_195 {dimension_numbers = #tpu.dot_dimension_numbers<[1], [0], [0], [1], [0, 0, 1, 1], [], []>} : vector<2x128xbf16>, vector<128x512xbf16>, vector<2x512xf32> -> vector<2x512xf32>
      %196 = vector.extract_strided_slice %188 {offsets = [0, 0], sizes = [2, 512], strides = [1, 1]} : vector<2x1024xf32> to vector<2x512xf32>
      %197 = arith.addf %195, %196 : vector<2x512xf32>
      %c0_196 = arith.constant 0 : index
      %c0_197 = arith.constant 0 : index
      %198 = vector.load %arg33[%c0_196, %c0_197] : memref<2x128xf32, #tpu.memory_space<vmem>>, vector<2x128xf32>
      %199 = arith.truncf %198 : vector<2x128xf32> to vector<2x128xbf16>
      %c0_198 = arith.constant 0 : index
      %c0_199 = arith.constant 0 : index
      %200 = vector.load %arg15[%c0_198, %c0_199] : memref<128x512xbf16, #tpu.memory_space<vmem>>, vector<128x512xbf16>
      %cst_200 = arith.constant dense<0.000000e+00> : vector<2x512xf32>
      %201 = tpu.matmul %199, %200, %cst_200 {dimension_numbers = #tpu.dot_dimension_numbers<[1], [0], [0], [1], [0, 0, 1, 1], [], []>} : vector<2x128xbf16>, vector<128x512xbf16>, vector<2x512xf32> -> vector<2x512xf32>
      %202 = vector.extract_strided_slice %191 {offsets = [0, 512], sizes = [2, 512], strides = [1, 1]} : vector<2x1024xf32> to vector<2x512xf32>
      %203 = arith.addf %201, %202 : vector<2x512xf32>
      %c0_201 = arith.constant 0 : index
      %c0_202 = arith.constant 0 : index
      %204 = vector.load %arg32[%c0_201, %c0_202] : memref<2x128xf32, #tpu.memory_space<vmem>>, vector<2x128xf32>
      %205 = vector.extract_strided_slice %197 {offsets = [0, 0], sizes = [2, 128], strides = [1, 1]} : vector<2x512xf32> to vector<2x128xf32>
      %206 = arith.negf %205 : vector<2x128xf32>
      %207 = math.exp %206 : vector<2x128xf32>
      %cst_203 = arith.constant 1.000000e+00 : f32
      %208 = vector.broadcast %cst_203 : f32 to vector<2x128xf32>
      %209 = arith.addf %208, %207 : vector<2x128xf32>
      %210 = arith.divf %208, %209 : vector<2x128xf32>
      %211 = vector.extract_strided_slice %197 {offsets = [0, 128], sizes = [2, 128], strides = [1, 1]} : vector<2x512xf32> to vector<2x128xf32>
      %212 = arith.negf %211 : vector<2x128xf32>
      %213 = math.exp %212 : vector<2x128xf32>
      %cst_204 = arith.constant 1.000000e+00 : f32
      %214 = vector.broadcast %cst_204 : f32 to vector<2x128xf32>
      %215 = arith.addf %214, %213 : vector<2x128xf32>
      %216 = arith.divf %214, %215 : vector<2x128xf32>
      %217 = vector.extract_strided_slice %197 {offsets = [0, 256], sizes = [2, 128], strides = [1, 1]} : vector<2x512xf32> to vector<2x128xf32>
      %218 = math.tanh %217 : vector<2x128xf32>
      %219 = vector.extract_strided_slice %197 {offsets = [0, 384], sizes = [2, 128], strides = [1, 1]} : vector<2x512xf32> to vector<2x128xf32>
      %220 = arith.negf %219 : vector<2x128xf32>
      %221 = math.exp %220 : vector<2x128xf32>
      %cst_205 = arith.constant 1.000000e+00 : f32
      %222 = vector.broadcast %cst_205 : f32 to vector<2x128xf32>
      %223 = arith.addf %222, %221 : vector<2x128xf32>
      %224 = arith.divf %222, %223 : vector<2x128xf32>
      %225 = arith.mulf %216, %204 : vector<2x128xf32>
      %226 = arith.mulf %210, %218 : vector<2x128xf32>
      %227 = arith.addf %225, %226 : vector<2x128xf32>
      %228 = math.tanh %227 : vector<2x128xf32>
      %229 = arith.mulf %224, %228 : vector<2x128xf32>
      %c0_206 = arith.constant 0 : index
      %c0_207 = arith.constant 0 : index
      %230 = vector.load %arg34[%c0_206, %c0_207] : memref<2x128xf32, #tpu.memory_space<vmem>>, vector<2x128xf32>
      %231 = vector.extract_strided_slice %203 {offsets = [0, 0], sizes = [2, 128], strides = [1, 1]} : vector<2x512xf32> to vector<2x128xf32>
      %232 = arith.negf %231 : vector<2x128xf32>
      %233 = math.exp %232 : vector<2x128xf32>
      %cst_208 = arith.constant 1.000000e+00 : f32
      %234 = vector.broadcast %cst_208 : f32 to vector<2x128xf32>
      %235 = arith.addf %234, %233 : vector<2x128xf32>
      %236 = arith.divf %234, %235 : vector<2x128xf32>
      %237 = vector.extract_strided_slice %203 {offsets = [0, 128], sizes = [2, 128], strides = [1, 1]} : vector<2x512xf32> to vector<2x128xf32>
      %238 = arith.negf %237 : vector<2x128xf32>
      %239 = math.exp %238 : vector<2x128xf32>
      %cst_209 = arith.constant 1.000000e+00 : f32
      %240 = vector.broadcast %cst_209 : f32 to vector<2x128xf32>
      %241 = arith.addf %240, %239 : vector<2x128xf32>
      %242 = arith.divf %240, %241 : vector<2x128xf32>
      %243 = vector.extract_strided_slice %203 {offsets = [0, 256], sizes = [2, 128], strides = [1, 1]} : vector<2x512xf32> to vector<2x128xf32>
      %244 = math.tanh %243 : vector<2x128xf32>
      %245 = vector.extract_strided_slice %203 {offsets = [0, 384], sizes = [2, 128], strides = [1, 1]} : vector<2x512xf32> to vector<2x128xf32>
      %246 = arith.negf %245 : vector<2x128xf32>
      %247 = math.exp %246 : vector<2x128xf32>
      %cst_210 = arith.constant 1.000000e+00 : f32
      %248 = vector.broadcast %cst_210 : f32 to vector<2x128xf32>
      %249 = arith.addf %248, %247 : vector<2x128xf32>
      %250 = arith.divf %248, %249 : vector<2x128xf32>
      %251 = arith.mulf %242, %230 : vector<2x128xf32>
      %252 = arith.mulf %236, %244 : vector<2x128xf32>
      %253 = arith.addf %251, %252 : vector<2x128xf32>
      %254 = math.tanh %253 : vector<2x128xf32>
      %255 = arith.mulf %250, %254 : vector<2x128xf32>
      %256 = vector.broadcast %183 : i32 to vector<2x128xi32>
      %257 = arith.cmpi slt, %256, %103 : vector<2x128xi32>
      %258 = vector.broadcast %185 : i32 to vector<2x128xi32>
      %259 = arith.cmpi slt, %258, %103 : vector<2x128xi32>
      %c0_211 = arith.constant 0 : index
      %c0_212 = arith.constant 0 : index
      %260 = vector.load %arg31[%c0_211, %c0_212] : memref<2x128xf32, #tpu.memory_space<vmem>>, vector<2x128xf32>
      %261 = arith.select %257, %229, %260 : vector<2x128xi1>, vector<2x128xf32>
      %c0_213 = arith.constant 0 : index
      %c0_214 = arith.constant 0 : index
      %262 = vector.load %arg31[%c0_213, %c0_214] : memref<2x128xf32, #tpu.memory_space<vmem>>, vector<2x128xf32>
      tpu.vector_store %arg31[%c0_213, %c0_214], %261 {strides = array<i32>} : memref<2x128xf32, #tpu.memory_space<vmem>>, vector<2x128xf32>,
      %c0_215 = arith.constant 0 : index
      %c0_216 = arith.constant 0 : index
      %263 = vector.load %arg32[%c0_215, %c0_216] : memref<2x128xf32, #tpu.memory_space<vmem>>, vector<2x128xf32>
      %264 = arith.select %257, %227, %263 : vector<2x128xi1>, vector<2x128xf32>
      %c0_217 = arith.constant 0 : index
      %c0_218 = arith.constant 0 : index
      %265 = vector.load %arg32[%c0_217, %c0_218] : memref<2x128xf32, #tpu.memory_space<vmem>>, vector<2x128xf32>
      tpu.vector_store %arg32[%c0_217, %c0_218], %264 {strides = array<i32>} : memref<2x128xf32, #tpu.memory_space<vmem>>, vector<2x128xf32>,
      %c0_219 = arith.constant 0 : index
      %c0_220 = arith.constant 0 : index
      %266 = vector.load %arg33[%c0_219, %c0_220] : memref<2x128xf32, #tpu.memory_space<vmem>>, vector<2x128xf32>
      %267 = arith.select %259, %255, %266 : vector<2x128xi1>, vector<2x128xf32>
      %c0_221 = arith.constant 0 : index
      %c0_222 = arith.constant 0 : index
      %268 = vector.load %arg33[%c0_221, %c0_222] : memref<2x128xf32, #tpu.memory_space<vmem>>, vector<2x128xf32>
      tpu.vector_store %arg33[%c0_221, %c0_222], %267 {strides = array<i32>} : memref<2x128xf32, #tpu.memory_space<vmem>>, vector<2x128xf32>,
      %c0_223 = arith.constant 0 : index
      %c0_224 = arith.constant 0 : index
      %269 = vector.load %arg34[%c0_223, %c0_224] : memref<2x128xf32, #tpu.memory_space<vmem>>, vector<2x128xf32>
      %270 = arith.select %259, %253, %269 : vector<2x128xi1>, vector<2x128xf32>
      %c0_225 = arith.constant 0 : index
      %c0_226 = arith.constant 0 : index
      %271 = vector.load %arg34[%c0_225, %c0_226] : memref<2x128xf32, #tpu.memory_space<vmem>>, vector<2x128xf32>
      tpu.vector_store %arg34[%c0_225, %c0_226], %270 {strides = array<i32>} : memref<2x128xf32, #tpu.memory_space<vmem>>, vector<2x128xf32>,
      %cst_227 = arith.constant 0.000000e+00 : f32
      %272 = vector.broadcast %cst_227 : f32 to vector<2x128xf32>
      %273 = arith.select %257, %229, %272 : vector<2x128xi1>, vector<2x128xf32>
      %274 = arith.index_cast %183 : i32 to index
      %c0_228 = arith.constant 0 : index
      %c0_229 = arith.constant 0 : index
      %275 = vector.load %arg29[%274, %c0_228, %c0_229] : memref<14x2x256xf32, #tpu.memory_space<vmem>>, vector<1x2x128xf32>
      %276 = vector.shape_cast %275 : vector<1x2x128xf32> to vector<2x128xf32>
      %277 = vector.shape_cast %273 : vector<2x128xf32> to vector<1x2x128xf32>
      tpu.vector_store %arg29[%274, %c0_228, %c0_229], %277 {strides = array<i32>} : memref<14x2x256xf32, #tpu.memory_space<vmem>>, vector<1x2x128xf32>,
      %cst_230 = arith.constant 0.000000e+00 : f32
      %278 = vector.broadcast %cst_230 : f32 to vector<2x128xf32>
      %279 = arith.select %259, %255, %278 : vector<2x128xi1>, vector<2x128xf32>
      %280 = arith.index_cast %185 : i32 to index
      %c0_231 = arith.constant 0 : index
      %c128_232 = arith.constant 128 : index
      %281 = vector.load %arg29[%280, %c0_231, %c128_232] : memref<14x2x256xf32, #tpu.memory_space<vmem>>, vector<1x2x128xf32>
      %282 = vector.shape_cast %281 : vector<1x2x128xf32> to vector<2x128xf32>
      %283 = vector.shape_cast %279 : vector<2x128xf32> to vector<1x2x128xf32>
      tpu.vector_store %arg29[%280, %c0_231, %c128_232], %283 {strides = array<i32>} : memref<14x2x256xf32, #tpu.memory_space<vmem>>, vector<1x2x128xf32>,
    }
    %c0_132 = arith.constant 0 : index
    %c0_133 = arith.constant 0 : index
    %c0_134 = arith.constant 0 : index
    %135 = vector.load %arg29[%c0_132, %c0_133, %c0_134] : memref<14x2x256xf32, #tpu.memory_space<vmem>>, vector<14x2x256xf32>
    %136 = vector.shape_cast %135 : vector<14x2x256xf32> to vector<28x256xf32>
    %137 = arith.truncf %136 : vector<28x256xf32> to vector<28x256xbf16>
    %c0_135 = arith.constant 0 : index
    %c0_136 = arith.constant 0 : index
    %138 = vector.load %arg16[%c0_135, %c0_136] : memref<256x1024xbf16, #tpu.memory_space<vmem>>, vector<256x1024xbf16>
    %cst_137 = arith.constant dense<0.000000e+00> : vector<28x1024xf32>
    %139 = tpu.matmul %137, %138, %cst_137 {dimension_numbers = #tpu.dot_dimension_numbers<[1], [0], [0], [1], [0, 0, 1, 1], [], []>} : vector<28x256xbf16>, vector<256x1024xbf16>, vector<28x1024xf32> -> vector<28x1024xf32>
    %c0_138 = arith.constant 0 : index
    %c0_139 = arith.constant 0 : index
    %140 = vector.load %arg17[%c0_138, %c0_139] : memref<1x1024xf32, #tpu.memory_space<vmem>>, vector<1x1024xf32>
    %141 = vector.broadcast %140 : vector<1x1024xf32> to vector<28x1024xf32>
    %142 = arith.addf %139, %141 : vector<28x1024xf32>
    %143 = vector.shape_cast %142 : vector<28x1024xf32> to vector<14x2x1024xf32>
    %c0_140 = arith.constant 0 : index
    %c0_141 = arith.constant 0 : index
    %c0_142 = arith.constant 0 : index
    %144 = vector.load %arg30[%c0_140, %c0_141, %c0_142] : memref<14x2x1024xf32, #tpu.memory_space<vmem>>, vector<14x2x1024xf32>
    tpu.vector_store %arg30[%c0_140, %c0_141, %c0_142], %143 {strides = array<i32>} : memref<14x2x1024xf32, #tpu.memory_space<vmem>>, vector<14x2x1024xf32>,
    %cst_143 = arith.constant 0.000000e+00 : f32
    %145 = vector.broadcast %cst_143 : f32 to vector<2x128xf32>
    %c0_144 = arith.constant 0 : index
    %c0_145 = arith.constant 0 : index
    %146 = vector.load %arg31[%c0_144, %c0_145] : memref<2x128xf32, #tpu.memory_space<vmem>>, vector<2x128xf32>
    tpu.vector_store %arg31[%c0_144, %c0_145], %145 {strides = array<i32>} : memref<2x128xf32, #tpu.memory_space<vmem>>, vector<2x128xf32>,
    %cst_146 = arith.constant 0.000000e+00 : f32
    %147 = vector.broadcast %cst_146 : f32 to vector<2x128xf32>
    %c0_147 = arith.constant 0 : index
    %c0_148 = arith.constant 0 : index
    %148 = vector.load %arg32[%c0_147, %c0_148] : memref<2x128xf32, #tpu.memory_space<vmem>>, vector<2x128xf32>
    tpu.vector_store %arg32[%c0_147, %c0_148], %147 {strides = array<i32>} : memref<2x128xf32, #tpu.memory_space<vmem>>, vector<2x128xf32>,
    %cst_149 = arith.constant 0.000000e+00 : f32
    %149 = vector.broadcast %cst_149 : f32 to vector<2x128xf32>
    %c0_150 = arith.constant 0 : index
    %c0_151 = arith.constant 0 : index
    %150 = vector.load %arg33[%c0_150, %c0_151] : memref<2x128xf32, #tpu.memory_space<vmem>>, vector<2x128xf32>
    tpu.vector_store %arg33[%c0_150, %c0_151], %149 {strides = array<i32>} : memref<2x128xf32, #tpu.memory_space<vmem>>, vector<2x128xf32>,
    %cst_152 = arith.constant 0.000000e+00 : f32
    %151 = vector.broadcast %cst_152 : f32 to vector<2x128xf32>
    %c0_153 = arith.constant 0 : index
    %c0_154 = arith.constant 0 : index
    %152 = vector.load %arg34[%c0_153, %c0_154] : memref<2x128xf32, #tpu.memory_space<vmem>>, vector<2x128xf32>
    tpu.vector_store %arg34[%c0_153, %c0_154], %151 {strides = array<i32>} : memref<2x128xf32, #tpu.memory_space<vmem>>, vector<2x128xf32>,
    %cst_155 = arith.constant 0.000000e+00 : f32
    %153 = vector.broadcast %cst_155 : f32 to vector<2x128xf32>
    %c0_156 = arith.constant 0 : index
    %c0_157 = arith.constant 0 : index
    %154 = vector.load %arg35[%c0_156, %c0_157] : memref<2x128xf32, #tpu.memory_space<vmem>>, vector<2x128xf32>
    tpu.vector_store %arg35[%c0_156, %c0_157], %153 {strides = array<i32>} : memref<2x128xf32, #tpu.memory_space<vmem>>, vector<2x128xf32>,
    %c0_i32_158 = arith.constant 0 : i32
    %155 = arith.subi %100, %c0_i32_158 : i32
    %c1_i32_159 = arith.constant 1 : i32
    %c1_i32_160 = arith.constant 1 : i32
    %156 = arith.subi %c1_i32_159, %c1_i32_160 : i32
    %157 = arith.addi %155, %156 : i32
    %c1_i32_161 = arith.constant 1 : i32
    %158 = arith.divsi %157, %c1_i32_161 : i32
    %c1_i32_162 = arith.constant 1 : i32
    %c0_i32_163 = arith.constant 0 : i32
    %c0_i32_164 = arith.constant 0 : i32
    %159 = arith.subi %158, %c0_i32_164 : i32
    %160 = arith.addi %c0_i32_164, %159 : i32
    %c1_i32_165 = arith.constant 1 : i32
    scf.for %arg36 = %c0_i32_164 to %160 step %c1_i32_165  : i32 {
      %182 = arith.muli %arg36, %c1_i32_162 : i32
      %183 = arith.addi %c0_i32_163, %182 : i32
      %c1_i32_186 = arith.constant 1 : i32
      %184 = arith.subi %100, %c1_i32_186 : i32
      %185 = arith.subi %184, %183 : i32
      %186 = arith.index_cast %183 : i32 to index
      %c0_187 = arith.constant 0 : index
      %c0_188 = arith.constant 0 : index
      %187 = vector.load %arg30[%186, %c0_187, %c0_188] : memref<14x2x1024xf32, #tpu.memory_space<vmem>>, vector<1x2x1024xf32>
      %188 = vector.shape_cast %187 : vector<1x2x1024xf32> to vector<2x1024xf32>
      %189 = arith.index_cast %185 : i32 to index
      %c0_189 = arith.constant 0 : index
      %c0_190 = arith.constant 0 : index
      %190 = vector.load %arg30[%189, %c0_189, %c0_190] : memref<14x2x1024xf32, #tpu.memory_space<vmem>>, vector<1x2x1024xf32>
      %191 = vector.shape_cast %190 : vector<1x2x1024xf32> to vector<2x1024xf32>
      %c0_191 = arith.constant 0 : index
      %c0_192 = arith.constant 0 : index
      %192 = vector.load %arg31[%c0_191, %c0_192] : memref<2x128xf32, #tpu.memory_space<vmem>>, vector<2x128xf32>
      %193 = arith.truncf %192 : vector<2x128xf32> to vector<2x128xbf16>
      %c0_193 = arith.constant 0 : index
      %c0_194 = arith.constant 0 : index
      %194 = vector.load %arg18[%c0_193, %c0_194] : memref<128x512xbf16, #tpu.memory_space<vmem>>, vector<128x512xbf16>
      %cst_195 = arith.constant dense<0.000000e+00> : vector<2x512xf32>
      %195 = tpu.matmul %193, %194, %cst_195 {dimension_numbers = #tpu.dot_dimension_numbers<[1], [0], [0], [1], [0, 0, 1, 1], [], []>} : vector<2x128xbf16>, vector<128x512xbf16>, vector<2x512xf32> -> vector<2x512xf32>
      %196 = vector.extract_strided_slice %188 {offsets = [0, 0], sizes = [2, 512], strides = [1, 1]} : vector<2x1024xf32> to vector<2x512xf32>
      %197 = arith.addf %195, %196 : vector<2x512xf32>
      %c0_196 = arith.constant 0 : index
      %c0_197 = arith.constant 0 : index
      %198 = vector.load %arg33[%c0_196, %c0_197] : memref<2x128xf32, #tpu.memory_space<vmem>>, vector<2x128xf32>
      %199 = arith.truncf %198 : vector<2x128xf32> to vector<2x128xbf16>
      %c0_198 = arith.constant 0 : index
      %c0_199 = arith.constant 0 : index
      %200 = vector.load %arg19[%c0_198, %c0_199] : memref<128x512xbf16, #tpu.memory_space<vmem>>, vector<128x512xbf16>
      %cst_200 = arith.constant dense<0.000000e+00> : vector<2x512xf32>
      %201 = tpu.matmul %199, %200, %cst_200 {dimension_numbers = #tpu.dot_dimension_numbers<[1], [0], [0], [1], [0, 0, 1, 1], [], []>} : vector<2x128xbf16>, vector<128x512xbf16>, vector<2x512xf32> -> vector<2x512xf32>
      %202 = vector.extract_strided_slice %191 {offsets = [0, 512], sizes = [2, 512], strides = [1, 1]} : vector<2x1024xf32> to vector<2x512xf32>
      %203 = arith.addf %201, %202 : vector<2x512xf32>
      %c0_201 = arith.constant 0 : index
      %c0_202 = arith.constant 0 : index
      %204 = vector.load %arg32[%c0_201, %c0_202] : memref<2x128xf32, #tpu.memory_space<vmem>>, vector<2x128xf32>
      %205 = vector.extract_strided_slice %197 {offsets = [0, 0], sizes = [2, 128], strides = [1, 1]} : vector<2x512xf32> to vector<2x128xf32>
      %206 = arith.negf %205 : vector<2x128xf32>
      %207 = math.exp %206 : vector<2x128xf32>
      %cst_203 = arith.constant 1.000000e+00 : f32
      %208 = vector.broadcast %cst_203 : f32 to vector<2x128xf32>
      %209 = arith.addf %208, %207 : vector<2x128xf32>
      %210 = arith.divf %208, %209 : vector<2x128xf32>
      %211 = vector.extract_strided_slice %197 {offsets = [0, 128], sizes = [2, 128], strides = [1, 1]} : vector<2x512xf32> to vector<2x128xf32>
      %212 = arith.negf %211 : vector<2x128xf32>
      %213 = math.exp %212 : vector<2x128xf32>
      %cst_204 = arith.constant 1.000000e+00 : f32
      %214 = vector.broadcast %cst_204 : f32 to vector<2x128xf32>
      %215 = arith.addf %214, %213 : vector<2x128xf32>
      %216 = arith.divf %214, %215 : vector<2x128xf32>
      %217 = vector.extract_strided_slice %197 {offsets = [0, 256], sizes = [2, 128], strides = [1, 1]} : vector<2x512xf32> to vector<2x128xf32>
      %218 = math.tanh %217 : vector<2x128xf32>
      %219 = vector.extract_strided_slice %197 {offsets = [0, 384], sizes = [2, 128], strides = [1, 1]} : vector<2x512xf32> to vector<2x128xf32>
      %220 = arith.negf %219 : vector<2x128xf32>
      %221 = math.exp %220 : vector<2x128xf32>
      %cst_205 = arith.constant 1.000000e+00 : f32
      %222 = vector.broadcast %cst_205 : f32 to vector<2x128xf32>
      %223 = arith.addf %222, %221 : vector<2x128xf32>
      %224 = arith.divf %222, %223 : vector<2x128xf32>
      %225 = arith.mulf %216, %204 : vector<2x128xf32>
      %226 = arith.mulf %210, %218 : vector<2x128xf32>
      %227 = arith.addf %225, %226 : vector<2x128xf32>
      %228 = math.tanh %227 : vector<2x128xf32>
      %229 = arith.mulf %224, %228 : vector<2x128xf32>
      %c0_206 = arith.constant 0 : index
      %c0_207 = arith.constant 0 : index
      %230 = vector.load %arg34[%c0_206, %c0_207] : memref<2x128xf32, #tpu.memory_space<vmem>>, vector<2x128xf32>
      %231 = vector.extract_strided_slice %203 {offsets = [0, 0], sizes = [2, 128], strides = [1, 1]} : vector<2x512xf32> to vector<2x128xf32>
      %232 = arith.negf %231 : vector<2x128xf32>
      %233 = math.exp %232 : vector<2x128xf32>
      %cst_208 = arith.constant 1.000000e+00 : f32
      %234 = vector.broadcast %cst_208 : f32 to vector<2x128xf32>
      %235 = arith.addf %234, %233 : vector<2x128xf32>
      %236 = arith.divf %234, %235 : vector<2x128xf32>
      %237 = vector.extract_strided_slice %203 {offsets = [0, 128], sizes = [2, 128], strides = [1, 1]} : vector<2x512xf32> to vector<2x128xf32>
      %238 = arith.negf %237 : vector<2x128xf32>
      %239 = math.exp %238 : vector<2x128xf32>
      %cst_209 = arith.constant 1.000000e+00 : f32
      %240 = vector.broadcast %cst_209 : f32 to vector<2x128xf32>
      %241 = arith.addf %240, %239 : vector<2x128xf32>
      %242 = arith.divf %240, %241 : vector<2x128xf32>
      %243 = vector.extract_strided_slice %203 {offsets = [0, 256], sizes = [2, 128], strides = [1, 1]} : vector<2x512xf32> to vector<2x128xf32>
      %244 = math.tanh %243 : vector<2x128xf32>
      %245 = vector.extract_strided_slice %203 {offsets = [0, 384], sizes = [2, 128], strides = [1, 1]} : vector<2x512xf32> to vector<2x128xf32>
      %246 = arith.negf %245 : vector<2x128xf32>
      %247 = math.exp %246 : vector<2x128xf32>
      %cst_210 = arith.constant 1.000000e+00 : f32
      %248 = vector.broadcast %cst_210 : f32 to vector<2x128xf32>
      %249 = arith.addf %248, %247 : vector<2x128xf32>
      %250 = arith.divf %248, %249 : vector<2x128xf32>
      %251 = arith.mulf %242, %230 : vector<2x128xf32>
      %252 = arith.mulf %236, %244 : vector<2x128xf32>
      %253 = arith.addf %251, %252 : vector<2x128xf32>
      %254 = math.tanh %253 : vector<2x128xf32>
      %255 = arith.mulf %250, %254 : vector<2x128xf32>
      %256 = vector.broadcast %183 : i32 to vector<2x128xi32>
      %257 = arith.cmpi slt, %256, %103 : vector<2x128xi32>
      %258 = vector.broadcast %185 : i32 to vector<2x128xi32>
      %259 = arith.cmpi slt, %258, %103 : vector<2x128xi32>
      %c0_211 = arith.constant 0 : index
      %c0_212 = arith.constant 0 : index
      %260 = vector.load %arg31[%c0_211, %c0_212] : memref<2x128xf32, #tpu.memory_space<vmem>>, vector<2x128xf32>
      %261 = arith.select %257, %229, %260 : vector<2x128xi1>, vector<2x128xf32>
      %c0_213 = arith.constant 0 : index
      %c0_214 = arith.constant 0 : index
      %262 = vector.load %arg31[%c0_213, %c0_214] : memref<2x128xf32, #tpu.memory_space<vmem>>, vector<2x128xf32>
      tpu.vector_store %arg31[%c0_213, %c0_214], %261 {strides = array<i32>} : memref<2x128xf32, #tpu.memory_space<vmem>>, vector<2x128xf32>,
      %c0_215 = arith.constant 0 : index
      %c0_216 = arith.constant 0 : index
      %263 = vector.load %arg32[%c0_215, %c0_216] : memref<2x128xf32, #tpu.memory_space<vmem>>, vector<2x128xf32>
      %264 = arith.select %257, %227, %263 : vector<2x128xi1>, vector<2x128xf32>
      %c0_217 = arith.constant 0 : index
      %c0_218 = arith.constant 0 : index
      %265 = vector.load %arg32[%c0_217, %c0_218] : memref<2x128xf32, #tpu.memory_space<vmem>>, vector<2x128xf32>
      tpu.vector_store %arg32[%c0_217, %c0_218], %264 {strides = array<i32>} : memref<2x128xf32, #tpu.memory_space<vmem>>, vector<2x128xf32>,
      %c0_219 = arith.constant 0 : index
      %c0_220 = arith.constant 0 : index
      %266 = vector.load %arg33[%c0_219, %c0_220] : memref<2x128xf32, #tpu.memory_space<vmem>>, vector<2x128xf32>
      %267 = arith.select %259, %255, %266 : vector<2x128xi1>, vector<2x128xf32>
      %c0_221 = arith.constant 0 : index
      %c0_222 = arith.constant 0 : index
      %268 = vector.load %arg33[%c0_221, %c0_222] : memref<2x128xf32, #tpu.memory_space<vmem>>, vector<2x128xf32>
      tpu.vector_store %arg33[%c0_221, %c0_222], %267 {strides = array<i32>} : memref<2x128xf32, #tpu.memory_space<vmem>>, vector<2x128xf32>,
      %c0_223 = arith.constant 0 : index
      %c0_224 = arith.constant 0 : index
      %269 = vector.load %arg34[%c0_223, %c0_224] : memref<2x128xf32, #tpu.memory_space<vmem>>, vector<2x128xf32>
      %270 = arith.select %259, %253, %269 : vector<2x128xi1>, vector<2x128xf32>
      %c0_225 = arith.constant 0 : index
      %c0_226 = arith.constant 0 : index
      %271 = vector.load %arg34[%c0_225, %c0_226] : memref<2x128xf32, #tpu.memory_space<vmem>>, vector<2x128xf32>
      tpu.vector_store %arg34[%c0_225, %c0_226], %270 {strides = array<i32>} : memref<2x128xf32, #tpu.memory_space<vmem>>, vector<2x128xf32>,
      %272 = vector.broadcast %185 : i32 to vector<2x128xi32>
      %273 = arith.cmpi eq, %272, %105 : vector<2x128xi32>
      %c0_227 = arith.constant 0 : index
      %c0_228 = arith.constant 0 : index
      %274 = vector.load %arg35[%c0_227, %c0_228] : memref<2x128xf32, #tpu.memory_space<vmem>>, vector<2x128xf32>
      %275 = arith.select %273, %255, %274 : vector<2x128xi1>, vector<2x128xf32>
      %c0_229 = arith.constant 0 : index
      %c0_230 = arith.constant 0 : index
      %276 = vector.load %arg35[%c0_229, %c0_230] : memref<2x128xf32, #tpu.memory_space<vmem>>, vector<2x128xf32>
      tpu.vector_store %arg35[%c0_229, %c0_230], %275 {strides = array<i32>} : memref<2x128xf32, #tpu.memory_space<vmem>>, vector<2x128xf32>,
    }
    %c0_166 = arith.constant 0 : index
    %c0_167 = arith.constant 0 : index
    %161 = vector.load %arg31[%c0_166, %c0_167] : memref<2x128xf32, #tpu.memory_space<vmem>>, vector<2x128xf32>
    %162 = arith.truncf %161 : vector<2x128xf32> to vector<2x128xbf16>
    %c0_168 = arith.constant 0 : index
    %c0_169 = arith.constant 0 : index
    %163 = vector.load %arg20[%c0_168, %c0_169] : memref<256x128xbf16, #tpu.memory_space<vmem>>, vector<128x128xbf16>
    %cst_170 = arith.constant dense<0.000000e+00> : vector<2x128xf32>
    %164 = tpu.matmul %162, %163, %cst_170 {dimension_numbers = #tpu.dot_dimension_numbers<[1], [0], [0], [1], [0, 0, 1, 1], [], []>} : vector<2x128xbf16>, vector<128x128xbf16>, vector<2x128xf32> -> vector<2x128xf32>
    %c0_171 = arith.constant 0 : index
    %c0_172 = arith.constant 0 : index
    %165 = vector.load %arg35[%c0_171, %c0_172] : memref<2x128xf32, #tpu.memory_space<vmem>>, vector<2x128xf32>
    %166 = arith.truncf %165 : vector<2x128xf32> to vector<2x128xbf16>
    %c128_173 = arith.constant 128 : index
    %c0_174 = arith.constant 0 : index
    %167 = vector.load %arg20[%c128_173, %c0_174] : memref<256x128xbf16, #tpu.memory_space<vmem>>, vector<128x128xbf16>
    %cst_175 = arith.constant dense<0.000000e+00> : vector<2x128xf32>
    %168 = tpu.matmul %166, %167, %cst_175 {dimension_numbers = #tpu.dot_dimension_numbers<[1], [0], [0], [1], [0, 0, 1, 1], [], []>} : vector<2x128xbf16>, vector<128x128xbf16>, vector<2x128xf32> -> vector<2x128xf32>
    %169 = arith.addf %164, %168 : vector<2x128xf32>
    %c0_176 = arith.constant 0 : index
    %c0_177 = arith.constant 0 : index
    %170 = vector.load %arg21[%c0_176, %c0_177] : memref<1x128xf32, #tpu.memory_space<vmem>>, vector<1x128xf32>
    %171 = vector.broadcast %170 : vector<1x128xf32> to vector<2x128xf32>
    %172 = arith.addf %169, %171 : vector<2x128xf32>
    %cst_178 = arith.constant 0.000000e+00 : f32
    %173 = vector.broadcast %cst_178 : f32 to vector<2x128xf32>
    %174 = arith.maximumf %172, %173 : vector<2x128xf32>
    %175 = arith.truncf %174 : vector<2x128xf32> to vector<2x128xbf16>
    %c0_179 = arith.constant 0 : index
    %c0_180 = arith.constant 0 : index
    %176 = vector.load %arg22[%c0_179, %c0_180] : memref<128x128xbf16, #tpu.memory_space<vmem>>, vector<128x128xbf16>
    %cst_181 = arith.constant dense<0.000000e+00> : vector<2x128xf32>
    %177 = tpu.matmul %175, %176, %cst_181 {dimension_numbers = #tpu.dot_dimension_numbers<[1], [0], [0], [1], [0, 0, 1, 1], [], []>} : vector<2x128xbf16>, vector<128x128xbf16>, vector<2x128xf32> -> vector<2x128xf32>
    %c0_182 = arith.constant 0 : index
    %c0_183 = arith.constant 0 : index
    %178 = vector.load %arg23[%c0_182, %c0_183] : memref<1x128xf32, #tpu.memory_space<vmem>>, vector<1x128xf32>
    %179 = vector.broadcast %178 : vector<1x128xf32> to vector<2x128xf32>
    %180 = arith.addf %177, %179 : vector<2x128xf32>
    %c0_184 = arith.constant 0 : index
    %c0_185 = arith.constant 0 : index
    %181 = vector.load %arg24[%c0_184, %c0_185] : memref<2x128xf32, #tpu.memory_space<vmem>>, vector<2x128xf32>
    tpu.vector_store %arg24[%c0_184, %c0_185], %180 {strides = array<i32>} : memref<2x128xf32, #tpu.memory_space<vmem>>, vector<2x128xf32>,
    return
  }
}

</mosaic_0001>

<llo_original>
// kernel: forward.1
$region0: #{forward.1}
  #allocation0 [shape = 'u32[]', space=smem, size = 0x4, offset = 0x4, fixed_abs, tag = 'smem constant byte address 0x4 - core index']
  #allocation1 [shape = 'u32[144,128]{1,0:T(1,128)}', space=vmem, size = 0x12000, scoped, tag = 'internal scratch']
  #allocation2 [shape = 'f32[12,2,128]{2,1,0:T(2,128)}', space=vmem, size = 0x3000, scoped, tag = 'scratch operand']
  #allocation3 [shape = 'f32[14,2,128]{2,1,0:T(2,128)}', space=vmem, size = 0x3800, scoped, tag = 'scratch operand']
  #allocation4 [shape = 'f32[16,2,128]{2,1,0:T(2,128)}', space=vmem, size = 0x4000, scoped, tag = 'scratch operand']
  #allocation5 [shape = 'f32[14,2,1024]{2,1,0:T(2,128)}', space=vmem, size = 0x1c000, scoped, tag = 'scratch operand']
  #allocation6 [shape = 'f32[14,2,256]{2,1,0:T(2,128)}', space=vmem, size = 0x7000, scoped, tag = 'scratch operand']
  #allocation7 [shape = 'f32[14,2,1024]{2,1,0:T(2,128)}', space=vmem, size = 0x1c000, scoped, tag = 'scratch operand']
  #allocation8 [shape = 'f32[2,128]{1,0:T(2,128)}', space=vmem, size = 0x400, scoped, tag = 'scratch operand']
  #allocation9 [shape = 'f32[2,128]{1,0:T(2,128)}', space=vmem, size = 0x400, scoped, tag = 'scratch operand']
  #allocation10 [shape = 'f32[2,128]{1,0:T(2,128)}', space=vmem, size = 0x400, scoped, tag = 'scratch operand']
  #allocation11 [shape = 'f32[2,128]{1,0:T(2,128)}', space=vmem, size = 0x400, scoped, tag = 'scratch operand']
  #allocation12 [shape = 'f32[2,128]{1,0:T(2,128)}', space=vmem, size = 0x400, scoped, tag = 'scratch operand']
  #allocation13 [shape = 's32[1]{0:T(128)S(6)}', space=smem, size = 0x200, scoped, tag = 'scoped memory for forward.1']
  %s0 = inlined_call_operand.<no memory space> [shape: s32[1], index: 0, kind: input, shape index: {}]
  %s1 = inlined_call_operand.vmem [shape: s32[2,1], index: 1, kind: input, shape index: {}]
  %s2 = inlined_call_operand.vmem [shape: f32[8,2,128], index: 2, kind: input, shape index: {}]
  %s3 = inlined_call_operand.hbm [shape: bf16[384,128], index: 3, kind: input, shape index: {}]
  %s4 = inlined_call_operand.vmem [shape: f32[1,128], index: 4, kind: input, shape index: {}]
  %s5 = inlined_call_operand.vmem [shape: f32[1,128], index: 5, kind: input, shape index: {}]
  %s6 = inlined_call_operand.hbm [shape: bf16[384,128], index: 6, kind: input, shape index: {}]
  %s7 = inlined_call_operand.vmem [shape: f32[1,128], index: 7, kind: input, shape index: {}]
  %s8 = inlined_call_operand.vmem [shape: f32[1,128], index: 8, kind: input, shape index: {}]
  %s9 = inlined_call_operand.hbm [shape: bf16[384,128], index: 9, kind: input, shape index: {}]
  %s10 = inlined_call_operand.vmem [shape: f32[1,128], index: 10, kind: input, shape index: {}]
  %s11 = inlined_call_operand.vmem [shape: f32[1,128], index: 11, kind: input, shape index: {}]
  %s12 = inlined_call_operand.hbm [shape: bf16[128,1024], index: 12, kind: input, shape index: {}]
  %s13 = inlined_call_operand.vmem [shape: f32[1,1024], index: 13, kind: input, shape index: {}]
  %s14 = inlined_call_operand.vmem [shape: bf16[128,512], index: 14, kind: input, shape index: {}]
  %s15 = inlined_call_operand.hbm [shape: bf16[128,512], index: 15, kind: input, shape index: {}]
  %s16 = inlined_call_operand.hbm [shape: bf16[256,1024], index: 16, kind: input, shape index: {}]
  %s17 = inlined_call_operand.hbm [shape: f32[1,1024], index: 17, kind: input, shape index: {}]
  %s18 = inlined_call_operand.hbm [shape: bf16[128,512], index: 18, kind: input, shape index: {}]
  %s19 = inlined_call_operand.hbm [shape: bf16[128,512], index: 19, kind: input, shape index: {}]
  %s20 = inlined_call_operand.hbm [shape: bf16[256,128], index: 20, kind: input, shape index: {}]
  %s21 = inlined_call_operand.vmem [shape: f32[1,128], index: 21, kind: input, shape index: {}]
  %s22 = inlined_call_operand.hbm [shape: bf16[128,128], index: 22, kind: input, shape index: {}]
  %s23 = inlined_call_operand.vmem [shape: f32[1,128], index: 23, kind: input, shape index: {}]
  %s24 = inlined_call_operand.vmem [shape: f32[2,128], index: 24, kind: output, shape index: {}]
  %s25 = sld [smem:[#allocation0]]
  $region171: #{forward.1} parent=0
    _
  %s27 = ssub.s32 1, %s25
  %s28 = scalar_select 0, %s27, %s25
  %29 = sst [smem:[#allocation13]] %s0
  $region1: #{forward.1} parent=0
    #allocation14 [shape = 'u8[98304]{0}', space=vmem, size = 0x18000, scoped, tag = 'input window, operand 3, single buffered']
    #allocation15 [shape = 's32[1]{0}', space=sflag, size = 0x4, scoped, tag = 'scoped memory for forward.1']
    #allocation16 [shape = 'u8[98304]{0}', space=vmem, size = 0x18000, scoped, tag = 'input window, operand 6, single buffered']
    #allocation17 [shape = 's32[1]{0}', space=sflag, size = 0x4, scoped, tag = 'scoped memory for forward.1']
    #allocation18 [shape = 'u8[98304]{0}', space=vmem, size = 0x18000, scoped, tag = 'input window, operand 9, single buffered']
    #allocation19 [shape = 'u8[262144]{0}', space=vmem, size = 0x40000, scoped, tag = 'input window, operand 12, single buffered']
    #allocation20 [shape = 's32[1]{0}', space=sflag, size = 0x4, scoped, tag = 'scoped memory for forward.1']
    #allocation21 [shape = 'u8[131072]{0}', space=vmem, size = 0x20000, scoped, tag = 'input window, operand 15, single buffered']
    #allocation22 [shape = 'u8[524288]{0}', space=vmem, size = 0x80000, scoped, tag = 'input window, operand 16, single buffered']
    #allocation23 [shape = 's32[1]{0}', space=sflag, size = 0x4, scoped, tag = 'scoped memory for forward.1']
    #allocation24 [shape = 'u8[4096]{0}', space=vmem, size = 0x1000, scoped, tag = 'input window, operand 17, single buffered']
    #allocation25 [shape = 'u8[131072]{0}', space=vmem, size = 0x20000, scoped, tag = 'input window, operand 18, single buffered']
    #allocation26 [shape = 's32[1]{0}', space=sflag, size = 0x4, scoped, tag = 'scoped memory for forward.1']
    #allocation27 [shape = 'u8[131072]{0}', space=vmem, size = 0x20000, scoped, tag = 'input window, operand 19, single buffered']
    #allocation28 [shape = 'u8[65536]{0}', space=vmem, size = 0x10000, scoped, tag = 'input window, operand 20, single buffered']
    #allocation29 [shape = 's32[1]{0}', space=sflag, size = 0x4, scoped, tag = 'scoped memory for forward.1']
    #allocation30 [shape = 'u8[32768]{0}', space=vmem, size = 0x8000, scoped, tag = 'input window, operand 22, single buffered']
    %30 = vsyncpa [#allocation15], 0
    %31 = vsyncpa [#allocation17], 0
    %32 = vsyncpa [#allocation20], 0
    %33 = vsyncpa [#allocation23], 0
    %34 = vsyncpa [#allocation26], 0
    %35 = vsyncpa [#allocation29], 0
    // Predicated region
    $region2: #{forward.1} parent=1 // pred_check
      _
    $region3: #{forward.1} parent=1 // pred_check_branch
      %37 = sbr.rel (0) target = $region5
    $region4: #{forward.1} parent=1 // pred_region
      _
    $region5: #{forward.1} parent=1 // pred_fallthru
      _
    // Predicated region
    $region6: #{forward.1} parent=1 // pred_check
      _
    $region7: #{forward.1} parent=1 // pred_check_branch
      %39 = sbr.rel (0) target = $region9
    $region8: #{forward.1} parent=1 // pred_region
      _
    $region9: #{forward.1} parent=1 // pred_fallthru
      _
    // Predicated region
    $region10: #{forward.1} parent=1 // pred_check
      _
    $region11: #{forward.1} parent=1 // pred_check_branch
      %41 = sbr.rel (0) target = $region13
    $region12: #{forward.1} parent=1 // pred_region
      _
    $region13: #{forward.1} parent=1 // pred_fallthru
      _
    // Predicated region
    $region14: #{forward.1} parent=1 // pred_check
      _
    $region15: #{forward.1} parent=1 // pred_check_branch
      %43 = sbr.rel (0) target = $region17
    $region16: #{forward.1} parent=1 // pred_region
      %s45 = ssub.s32 3072, 3072
      %46 = vsyncadd [#allocation15], %s45
      %s47 = sshll.u32 [#allocation14], 4
      %s48 = int_to_ptr.vmem [resolvable:$true] %s47
      %53 = dma.hbm_to_vmem [thread:$0]  %s3, 3072, %s48, [#allocation15], 64, 64, 4
    $region17: #{forward.1} parent=1 // pred_fallthru
      _
    // Predicated region
    $region18: #{forward.1} parent=1 // pred_check
      _
    $region19: #{forward.1} parent=1 // pred_check_branch
      %55 = sbr.rel (0) target = $region21
    $region20: #{forward.1} parent=1 // pred_region
      _
    $region21: #{forward.1} parent=1 // pred_fallthru
      _
    // Predicated region
    $region22: #{forward.1} parent=1 // pred_check
      _
    $region23: #{forward.1} parent=1 // pred_check_branch
      %57 = sbr.rel (0) target = $region25
    $region24: #{forward.1} parent=1 // pred_region
      _
    $region25: #{forward.1} parent=1 // pred_fallthru
      _
    // Predicated region
    $region26: #{forward.1} parent=1 // pred_check
      _
    $region27: #{forward.1} parent=1 // pred_check_branch
      %59 = sbr.rel (0) target = $region29
    $region28: #{forward.1} parent=1 // pred_region
      %s61 = ssub.s32 3072, 3072
      %62 = vsyncadd [#allocation17], %s61
      %s63 = sshll.u32 [#allocation16], 4
      %s64 = int_to_ptr.vmem [resolvable:$true] %s63
      %69 = dma.hbm_to_vmem [thread:$0]  %s6, 3072, %s64, [#allocation17], 64, 64, 4
    $region29: #{forward.1} parent=1 // pred_fallthru
      _
    // Predicated region
    $region30: #{forward.1} parent=1 // pred_check
      _
    $region31: #{forward.1} parent=1 // pred_check_branch
      %71 = sbr.rel (0) target = $region33
    $region32: #{forward.1} parent=1 // pred_region
      _
    $region33: #{forward.1} parent=1 // pred_fallthru
      _
    // Predicated region
    $region34: #{forward.1} parent=1 // pred_check
      _
    $region35: #{forward.1} parent=1 // pred_check_branch
      %73 = sbr.rel (0) target = $region37
    $region36: #{forward.1} parent=1 // pred_region
      _
    $region37: #{forward.1} parent=1 // pred_fallthru
      _
    // Predicated region
    $region38: #{forward.1} parent=1 // pred_check
      _
    $region39: #{forward.1} parent=1 // pred_check_branch
      %75 = sbr.rel (0) target = $region41
    $region40: #{forward.1} parent=1 // pred_region
      %s77 = ssub.s32 3072, 3072
      %78 = vsyncadd [#allocation17], %s77
      %s79 = sshll.u32 [#allocation18], 4
      %s80 = int_to_ptr.vmem [resolvable:$true] %s79
      %85 = dma.hbm_to_vmem [thread:$0]  %s9, 3072, %s80, [#allocation17], 64, 64, 4
    $region41: #{forward.1} parent=1 // pred_fallthru
      _
    // Predicated region
    $region42: #{forward.1} parent=1 // pred_check
      _
    $region43: #{forward.1} parent=1 // pred_check_branch
      %87 = sbr.rel (0) target = $region45
    $region44: #{forward.1} parent=1 // pred_region
      _
    $region45: #{forward.1} parent=1 // pred_fallthru
      _
    // Predicated region
    $region46: #{forward.1} parent=1 // pred_check
      _
    $region47: #{forward.1} parent=1 // pred_check_branch
      %89 = sbr.rel (0) target = $region49
    $region48: #{forward.1} parent=1 // pred_region
      _
    $region49: #{forward.1} parent=1 // pred_fallthru
      _
    // Predicated region
    $region50: #{forward.1} parent=1 // pred_check
      _
    $region51: #{forward.1} parent=1 // pred_check_branch
      %91 = sbr.rel (0) target = $region53
    $region52: #{forward.1} parent=1 // pred_region
      %s93 = ssub.s32 8192, 8192
      %94 = vsyncadd [#allocation20], %s93
      %s95 = sshll.u32 [#allocation19], 4
      %s96 = int_to_ptr.vmem [resolvable:$true] %s95
      %101 = dma.hbm_to_vmem [thread:$0]  %s12, 8192, %s96, [#allocation20], 512, 512, 32
    $region53: #{forward.1} parent=1 // pred_fallthru
      _
    // Predicated region
    $region54: #{forward.1} parent=1 // pred_check
      _
    $region55: #{forward.1} parent=1 // pred_check_branch
      %103 = sbr.rel (0) target = $region57
    $region56: #{forward.1} parent=1 // pred_region
      _
    $region57: #{forward.1} parent=1 // pred_fallthru
      _
    // Predicated region
    $region58: #{forward.1} parent=1 // pred_check
      _
    $region59: #{forward.1} parent=1 // pred_check_branch
      %105 = sbr.rel (0) target = $region61
    $region60: #{forward.1} parent=1 // pred_region
      _
    $region61: #{forward.1} parent=1 // pred_fallthru
      _
    // Predicated region
    $region62: #{forward.1} parent=1 // pred_check
      _
    $region63: #{forward.1} parent=1 // pred_check_branch
      %107 = sbr.rel (0) target = $region65
    $region64: #{forward.1} parent=1 // pred_region
      %s109 = ssub.s32 4096, 4096
      %110 = vsyncadd [#allocation20], %s109
      %s111 = sshll.u32 [#allocation21], 4
      %s112 = int_to_ptr.vmem [resolvable:$true] %s111
      %117 = dma.hbm_to_vmem [thread:$0]  %s15, 4096, %s112, [#allocation20], 256, 256, 16
    $region65: #{forward.1} parent=1 // pred_fallthru
      _
    // Predicated region
    $region66: #{forward.1} parent=1 // pred_check
      _
    $region67: #{forward.1} parent=1 // pred_check_branch
      %119 = sbr.rel (0) target = $region69
    $region68: #{forward.1} parent=1 // pred_region
      %s121 = ssub.s32 16384, 16384
      %122 = vsyncadd [#allocation23], %s121
      %s123 = sshll.u32 [#allocation22], 4
      %s124 = int_to_ptr.vmem [resolvable:$true] %s123
      %129 = dma.hbm_to_vmem [thread:$0]  %s16, 16384, %s124, [#allocation23], 512, 512, 32
    $region69: #{forward.1} parent=1 // pred_fallthru
      _
    // Predicated region
    $region70: #{forward.1} parent=1 // pred_check
      _
    $region71: #{forward.1} parent=1 // pred_check_branch
      %131 = sbr.rel (0) target = $region73
    $region72: #{forward.1} parent=1 // pred_region
      %s133 = ssub.s32 128, 128
      %134 = vsyncadd [#allocation23], %s133
      %s136 = sshll.u32 [#allocation24], 4
      %s137 = int_to_ptr.vmem [resolvable:$true] %s136
      %139 = dma.hbm_to_vmem [thread:$0]  %s17, 128, %s137, [#allocation23]
    $region73: #{forward.1} parent=1 // pred_fallthru
      _
    // Predicated region
    $region74: #{forward.1} parent=1 // pred_check
      _
    $region75: #{forward.1} parent=1 // pred_check_branch
      %141 = sbr.rel (0) target = $region77
    $region76: #{forward.1} parent=1 // pred_region
      %s143 = ssub.s32 4096, 4096
      %144 = vsyncadd [#allocation26], %s143
      %s145 = sshll.u32 [#allocation25], 4
      %s146 = int_to_ptr.vmem [resolvable:$true] %s145
      %151 = dma.hbm_to_vmem [thread:$0]  %s18, 4096, %s146, [#allocation26], 256, 256, 16
    $region77: #{forward.1} parent=1 // pred_fallthru
      _
    // Predicated region
    $region78: #{forward.1} parent=1 // pred_check
      _
    $region79: #{forward.1} parent=1 // pred_check_branch
      %153 = sbr.rel (0) target = $region81
    $region80: #{forward.1} parent=1 // pred_region
      %s155 = ssub.s32 4096, 4096
      %156 = vsyncadd [#allocation26], %s155
      %s157 = sshll.u32 [#allocation27], 4
      %s158 = int_to_ptr.vmem [resolvable:$true] %s157
      %163 = dma.hbm_to_vmem [thread:$0]  %s19, 4096, %s158, [#allocation26], 256, 256, 16
    $region81: #{forward.1} parent=1 // pred_fallthru
      _
    // Predicated region
    $region82: #{forward.1} parent=1 // pred_check
      _
    $region83: #{forward.1} parent=1 // pred_check_branch
      %165 = sbr.rel (0) target = $region85
    $region84: #{forward.1} parent=1 // pred_region
      %s167 = ssub.s32 2048, 2048
      %168 = vsyncadd [#allocation29], %s167
      %s169 = sshll.u32 [#allocation28], 4
      %s170 = int_to_ptr.vmem [resolvable:$true] %s169
      %175 = dma.hbm_to_vmem [thread:$0]  %s20, 2048, %s170, [#allocation29], 64, 64, 4
    $region85: #{forward.1} parent=1 // pred_fallthru
      _
    // Predicated region
    $region86: #{forward.1} parent=1 // pred_check
      _
    $region87: #{forward.1} parent=1 // pred_check_branch
      %177 = sbr.rel (0) target = $region89
    $region88: #{forward.1} parent=1 // pred_region
      _
    $region89: #{forward.1} parent=1 // pred_fallthru
      _
    // Predicated region
    $region90: #{forward.1} parent=1 // pred_check
      _
    $region91: #{forward.1} parent=1 // pred_check_branch
      %179 = sbr.rel (0) target = $region93
    $region92: #{forward.1} parent=1 // pred_region
      %s181 = ssub.s32 1024, 1024
      %182 = vsyncadd [#allocation29], %s181
      %s183 = sshll.u32 [#allocation30], 4
      %s184 = int_to_ptr.vmem [resolvable:$true] %s183
      %189 = dma.hbm_to_vmem [thread:$0]  %s22, 1024, %s184, [#allocation29], 64, 64, 4
    $region93: #{forward.1} parent=1 // pred_fallthru
      _
    // Predicated region
    $region94: #{forward.1} parent=1 // pred_check
      _
    $region95: #{forward.1} parent=1 // pred_check_branch
      %191 = sbr.rel (0) target = $region97
    $region96: #{forward.1} parent=1 // pred_region
      _
    $region97: #{forward.1} parent=1 // pred_fallthru
      _
    // Predicated region
    $region98: #{forward.1} parent=1 // pred_check
      _
    $region99: #{forward.1} parent=1 // pred_check_branch
      %193 = sbr.rel (0) target = $region101
    $region100: #{forward.1} parent=1 // pred_region
      %194 = dma.done [#allocation15], 3072
    $region101: #{forward.1} parent=1 // pred_fallthru
      _
    // Predicated region
    $region102: #{forward.1} parent=1 // pred_check
      _
    $region103: #{forward.1} parent=1 // pred_check_branch
      %196 = sbr.rel (0) target = $region105
    $region104: #{forward.1} parent=1 // pred_region
      %197 = dma.done [#allocation17], 3072
    $region105: #{forward.1} parent=1 // pred_fallthru
      _
    // Predicated region
    $region106: #{forward.1} parent=1 // pred_check
      _
    $region107: #{forward.1} parent=1 // pred_check_branch
      %199 = sbr.rel (0) target = $region109
    $region108: #{forward.1} parent=1 // pred_region
      %200 = dma.done [#allocation17], 3072
    $region109: #{forward.1} parent=1 // pred_fallthru
      _
    // Predicated region
    $region110: #{forward.1} parent=1 // pred_check
      _
    $region111: #{forward.1} parent=1 // pred_check_branch
      %202 = sbr.rel (0) target = $region113
    $region112: #{forward.1} parent=1 // pred_region
      %203 = dma.done [#allocation20], 8192
    $region113: #{forward.1} parent=1 // pred_fallthru
      _
    // Predicated region
    $region114: #{forward.1} parent=1 // pred_check
      _
    $region115: #{forward.1} parent=1 // pred_check_branch
      %205 = sbr.rel (0) target = $region117
    $region116: #{forward.1} parent=1 // pred_region
      %206 = dma.done [#allocation20], 4096
    $region117: #{forward.1} parent=1 // pred_fallthru
      _
    // Predicated region
    $region118: #{forward.1} parent=1 // pred_check
      _
    $region119: #{forward.1} parent=1 // pred_check_branch
      %208 = sbr.rel (0) target = $region121
    $region120: #{forward.1} parent=1 // pred_region
      %209 = dma.done [#allocation23], 16384
    $region121: #{forward.1} parent=1 // pred_fallthru
      _
    // Predicated region
    $region122: #{forward.1} parent=1 // pred_check
      _
    $region123: #{forward.1} parent=1 // pred_check_branch
      %211 = sbr.rel (0) target = $region125
    $region124: #{forward.1} parent=1 // pred_region
      %212 = dma.done [#allocation23], 128
    $region125: #{forward.1} parent=1 // pred_fallthru
      _
    // Predicated region
    $region126: #{forward.1} parent=1 // pred_check
      _
    $region127: #{forward.1} parent=1 // pred_check_branch
      %214 = sbr.rel (0) target = $region129
    $region128: #{forward.1} parent=1 // pred_region
      %215 = dma.done [#allocation26], 4096
    $region129: #{forward.1} parent=1 // pred_fallthru
      _
    // Predicated region
    $region130: #{forward.1} parent=1 // pred_check
      _
    $region131: #{forward.1} parent=1 // pred_check_branch
      %217 = sbr.rel (0) target = $region133
    $region132: #{forward.1} parent=1 // pred_region
      %218 = dma.done [#allocation26], 4096
    $region133: #{forward.1} parent=1 // pred_fallthru
      _
    // Predicated region
    $region134: #{forward.1} parent=1 // pred_check
      _
    $region135: #{forward.1} parent=1 // pred_check_branch
      %220 = sbr.rel (0) target = $region137
    $region136: #{forward.1} parent=1 // pred_region
      %221 = dma.done [#allocation29], 2048
    $region137: #{forward.1} parent=1 // pred_fallthru
      _
    // Predicated region
    $region138: #{forward.1} parent=1 // pred_check
      _
    $region139: #{forward.1} parent=1 // pred_check_branch
      %223 = sbr.rel (0) target = $region141
    $region140: #{forward.1} parent=1 // pred_region
      %224 = dma.done [#allocation29], 1024
    $region141: #{forward.1} parent=1 // pred_fallthru
      _
    %v226 = vld [vmem:[%s2] sm:$0x3]
    %v227 = vld [vmem:[%s2 + $0x2] sm:$0x3]
    %v228 = vld [vmem:[%s2 + $0x4] sm:$0x3]
    %v229 = vld [vmem:[%s2 + $0x6] sm:$0x3]
    %v230 = vld [vmem:[%s2 + $0x8] sm:$0x3]
    %v231 = vld [vmem:[%s2 + $0xa] sm:$0x3]
    %v232 = vld [vmem:[%s2 + $0xc] sm:$0x3]
    %v233 = vld [vmem:[%s2 + $0xe] sm:$0x3]
    %234 = vst [vmem:[#allocation2] sm:$0x3] 0.0
    %235 = vst [vmem:[#allocation2 + $0x2] sm:$0x3] 0.0
    %s236 = scalar_lea.vmem [#allocation2], 20
    %237 = vst [vmem:[%s236] sm:$0x3] 0.0
    %238 = vst [vmem:[%s236 + $0x2] sm:$0x3] 0.0
    %s239 = scalar_lea.vmem [#allocation2], 4
    %240 = vst [vmem:[%s239] sm:$0x3] %v226
    %241 = vst [vmem:[%s239 + $0x2] sm:$0x3] %v227
    %242 = vst [vmem:[%s239 + $0x4] sm:$0x3] %v228
    %243 = vst [vmem:[%s239 + $0x6] sm:$0x3] %v229
    %244 = vst [vmem:[%s239 + $0x8] sm:$0x3] %v230
    %245 = vst [vmem:[%s239 + $0xa] sm:$0x3] %v231
    %246 = vst [vmem:[%s239 + $0xc] sm:$0x3] %v232
    %247 = vst [vmem:[%s239 + $0xe] sm:$0x3] %v233
    %v248 = vld [vmem:[#allocation2] sm:$0x3]
    %v249 = vld [vmem:[#allocation2 + $0x2] sm:$0x3]
    %v250 = vld [vmem:[#allocation2 + $0x4] sm:$0x3]
    %v251 = vld [vmem:[#allocation2 + $0x6] sm:$0x3]
    %v252 = vld [vmem:[#allocation2 + $0x8] sm:$0x3]
    %v253 = vld [vmem:[#allocation2 + $0xa] sm:$0x3]
    %v254 = vld [vmem:[#allocation2 + $0xc] sm:$0x3]
    %v255 = vld [vmem:[#allocation2 + $0xe] sm:$0x3]
    %v256 = vld [vmem:[#allocation2 + $0x10] sm:$0x3]
    %v257 = vld [vmem:[#allocation2 + $0x12] sm:$0x3]
    %v268 = vcombine.low %v248, %v249
    %v269 = vcombine.low %v250, %v251
    %v271 = vunpack.c.l.s4 1983009808
    %v272 = vunpack.c.0.s8 %v271
    %v273 = vlaneseq
    %v274 = vshrl.u32 %v273, 7
    %v275 = vsub.s32 %v272, %v274
    %v276 = vrot.slane %v268, %v275
    %v278 = vunpack.c.l.s4 1983009808
    %v279 = vunpack.c.0.s8 %v278
    %v280 = vlaneseq
    %v281 = vshrl.u32 %v280, 7
    %v282 = vsub.s32 %v279, %v281
    %v283 = vrot.slane %v269, %v282
    %v284 = vcombine.low %v276, %v283
    %v285 = vcombine.low %v252, %v253
    %v286 = vcombine.low %v254, %v255
    %v288 = vunpack.c.l.s4 1983009808
    %v289 = vunpack.c.0.s8 %v288
    %v290 = vlaneseq
    %v291 = vshrl.u32 %v290, 7
    %v292 = vsub.s32 %v289, %v291
    %v293 = vrot.slane %v285, %v292
    %v295 = vunpack.c.l.s4 1983009808
    %v296 = vunpack.c.0.s8 %v295
    %v297 = vlaneseq
    %v298 = vshrl.u32 %v297, 7
    %v299 = vsub.s32 %v296, %v298
    %v300 = vrot.slane %v286, %v299
    %v301 = vcombine.low %v293, %v300
    %v302 = vcombine.low %v256, %v257
    %v304 = vunpack.c.l.s4 1983009808
    %v305 = vunpack.c.0.s8 %v304
    %v306 = vlaneseq
    %v307 = vshrl.u32 %v306, 7
    %v308 = vsub.s32 %v305, %v307
    %v309 = vrot.slane %v302, %v308
    %v313 = vpack.c.bf16 %v301, %v284
    %v314 = vpack.c.bf16 %v309, %v309
    %v315 = vld [vmem:[#allocation14] sm:$0xf]
    %v316 = vld [vmem:[#allocation14 + $0x4] sm:$0xf]
    %v317 = vld [vmem:[#allocation14 + $0x8] sm:$0xf]
    %v318 = vld [vmem:[#allocation14 + $0xc] sm:$0xf]
    %v319 = vld [vmem:[#allocation14 + $0x10] sm:$0xf]
    %v320 = vld [vmem:[#allocation14 + $0x14] sm:$0xf]
    %v321 = vld [vmem:[#allocation14 + $0x18] sm:$0xf]
    %v322 = vld [vmem:[#allocation14 + $0x1c] sm:$0xf]
    %v323 = vld [vmem:[#allocation14 + $0x20] sm:$0xf]
    %v324 = vld [vmem:[#allocation14 + $0x24] sm:$0xf]
    %v325 = vld [vmem:[#allocation14 + $0x28] sm:$0xf]
    %v326 = vld [vmem:[#allocation14 + $0x2c] sm:$0xf]
    %v327 = vld [vmem:[#allocation14 + $0x30] sm:$0xf]
    %v328 = vld [vmem:[#allocation14 + $0x34] sm:$0xf]
    %v329 = vld [vmem:[#allocation14 + $0x38] sm:$0xf]
    %v330 = vld [vmem:[#allocation14 + $0x3c] sm:$0xf]
    %s331 = scalar_lea.vmem [#allocation2], 2
    %v332 = vld [vmem:[%s331] sm:$0x3]
    %v333 = vld [vmem:[%s331 + $0x2] sm:$0x3]
    %v334 = vld [vmem:[%s331 + $0x4] sm:$0x3]
    %v335 = vld [vmem:[%s331 + $0x6] sm:$0x3]
    %v336 = vld [vmem:[%s331 + $0x8] sm:$0x3]
    %v337 = vld [vmem:[%s331 + $0xa] sm:$0x3]
    %v338 = vld [vmem:[%s331 + $0xc] sm:$0x3]
    %v339 = vld [vmem:[%s331 + $0xe] sm:$0x3]
    %v340 = vld [vmem:[%s331 + $0x10] sm:$0x3]
    %v341 = vld [vmem:[%s331 + $0x12] sm:$0x3]
    %v352 = vcombine.low %v332, %v333
    %v353 = vcombine.low %v334, %v335
    %v355 = vunpack.c.l.s4 1983009808
    %v356 = vunpack.c.0.s8 %v355
    %v357 = vlaneseq
    %v358 = vshrl.u32 %v357, 7
    %v359 = vsub.s32 %v356, %v358
    %v360 = vrot.slane %v352, %v359
    %v362 = vunpack.c.l.s4 1983009808
    %v363 = vunpack.c.0.s8 %v362
    %v364 = vlaneseq
    %v365 = vshrl.u32 %v364, 7
    %v366 = vsub.s32 %v363, %v365
    %v367 = vrot.slane %v353, %v366
    %v368 = vcombine.low %v360, %v367
    %v369 = vcombine.low %v336, %v337
    %v370 = vcombine.low %v338, %v339
    %v372 = vunpack.c.l.s4 1983009808
    %v373 = vunpack.c.0.s8 %v372
    %v374 = vlaneseq
    %v375 = vshrl.u32 %v374, 7
    %v376 = vsub.s32 %v373, %v375
    %v377 = vrot.slane %v369, %v376
    %v379 = vunpack.c.l.s4 1983009808
    %v380 = vunpack.c.0.s8 %v379
    %v381 = vlaneseq
    %v382 = vshrl.u32 %v381, 7
    %v383 = vsub.s32 %v380, %v382
    %v384 = vrot.slane %v370, %v383
    %v385 = vcombine.low %v377, %v384
    %v386 = vcombine.low %v340, %v341
    %v388 = vunpack.c.l.s4 1983009808
    %v389 = vunpack.c.0.s8 %v388
    %v390 = vlaneseq
    %v391 = vshrl.u32 %v390, 7
    %v392 = vsub.s32 %v389, %v391
    %v393 = vrot.slane %v386, %v392
    %v397 = vpack.c.bf16 %v385, %v368
    %v398 = vpack.c.bf16 %v393, %v393
    %v399 = vld [vmem:[#allocation14 + $0x40] sm:$0xf]
    %v400 = vld [vmem:[#allocation14 + $0x44] sm:$0xf]
    %v401 = vld [vmem:[#allocation14 + $0x48] sm:$0xf]
    %v402 = vld [vmem:[#allocation14 + $0x4c] sm:$0xf]
    %v403 = vld [vmem:[#allocation14 + $0x50] sm:$0xf]
    %v404 = vld [vmem:[#allocation14 + $0x54] sm:$0xf]
    %v405 = vld [vmem:[#allocation14 + $0x58] sm:$0xf]
    %v406 = vld [vmem:[#allocation14 + $0x5c] sm:$0xf]
    %v407 = vld [vmem:[#allocation14 + $0x60] sm:$0xf]
    %v408 = vld [vmem:[#allocation14 + $0x64] sm:$0xf]
    %v409 = vld [vmem:[#allocation14 + $0x68] sm:$0xf]
    %v410 = vld [vmem:[#allocation14 + $0x6c] sm:$0xf]
    %v411 = vld [vmem:[#allocation14 + $0x70] sm:$0xf]
    %v412 = vld [vmem:[#allocation14 + $0x74] sm:$0xf]
    %v413 = vld [vmem:[#allocation14 + $0x78] sm:$0xf]
    %v414 = vld [vmem:[#allocation14 + $0x7c] sm:$0xf]
    %v431 = vunpack.c.l.b16 %v399
    %v432 = vunpack.c.l.b16 %v400
    %v433 = vunpack.c.l.b16 %v401
    %v434 = vunpack.c.l.b16 %v402
    %v435 = vunpack.c.l.b16 %v403
    %v436 = vunpack.c.l.b16 %v404
    %v437 = vunpack.c.l.b16 %v405
    %v438 = vunpack.c.l.b16 %v406
    %v439 = vunpack.c.l.b16 %v407
    %v440 = vunpack.c.l.b16 %v408
    %v441 = vunpack.c.l.b16 %v409
    %v442 = vunpack.c.l.b16 %v410
    %v443 = vunpack.c.l.b16 %v411
    %v444 = vunpack.c.l.b16 %v412
    %v445 = vunpack.c.l.b16 %v413
    %v446 = vunpack.c.l.b16 %v414
    %v447 = vpack.c.b16 %v432, %v431
    %v448 = vpack.c.b16 %v434, %v433
    %v449 = vpack.c.b16 %v436, %v435
    %v450 = vpack.c.b16 %v438, %v437
    %v451 = vpack.c.b16 %v440, %v439
    %v452 = vpack.c.b16 %v442, %v441
    %v453 = vpack.c.b16 %v444, %v443
    %v454 = vpack.c.b16 %v446, %v445
    %463 = vmatprep.subr.bf16.mxu0 0
    %464 = vmatpush1.bf16.msra.mxu0 %v447
    %465 = vmatprep.subr.bf16.mxu0 0
    %466 = vmatpush1.bf16.msra.mxu0 %v448
    %467 = vmatprep.subr.bf16.mxu0 0
    %468 = vmatpush1.bf16.msra.mxu0 %v449
    %469 = vmatprep.subr.bf16.mxu0 0
    %470 = vmatpush1.bf16.msra.mxu0 %v450
    %471 = vmatprep.subr.bf16.mxu0 0
    %472 = vmatpush1.bf16.msra.mxu0 %v451
    %473 = vmatprep.subr.bf16.mxu0 0
    %474 = vmatpush1.bf16.msra.mxu0 %v452
    %475 = vmatprep.subr.bf16.mxu0 0
    %476 = vmatpush1.bf16.msra.mxu0 %v453
    %477 = vmatprep.subr.bf16.mxu0 0
    %478 = vmatpush1.bf16.msra.mxu0 %v454
    %479 = vmatprep.subr.bf16.mxu0 0
    %480 = vmatpush1.bf16.msra.mxu0 0
    %481 = vmatprep.subr.bf16.mxu0 0
    %482 = vmatpush1.bf16.msra.mxu0 0
    %483 = vmatprep.subr.bf16.mxu0 0
    %484 = vmatpush1.bf16.msra.mxu0 0
    %485 = vmatprep.subr.bf16.mxu0 0
    %486 = vmatpush1.bf16.msra.mxu0 0
    %487 = vmatprep.subr.bf16.mxu0 0
    %488 = vmatpush1.bf16.msra.mxu0 0
    %489 = vmatprep.subr.bf16.mxu0 0
    %490 = vmatpush1.bf16.msra.mxu0 0
    %491 = vmatprep.subr.bf16.mxu0 0
    %492 = vmatpush1.bf16.msra.mxu0 0
    %493 = vmatprep.subr.bf16.mxu0 0
    %494 = vmatpush1.bf16.msra.mxu0 0
    %495 = vmatprep.mubr.bf16.mxu0 0
    %496 = vmatmul.mubr.bf16.gmra.mrb[0].mxu0 %v397
    %v497 = vpop.f32.mrb[0].mxu0
    %v498 = vadd.f32 0.0, %v497
    %v499 = vpop.f32.mrb[0].mxu0
    %v500 = vpop.f32.mrb[0].mxu0
    %v501 = vadd.f32 0.0, %v500
    %v502 = vpop.f32.mrb[0].mxu0
    %503 = vmatprep.mubr.bf16.mxu0 0
    %504 = vmatmul.mubr.bf16.gmra.mrb[0].mxu0 %v398
    %v505 = vpop.f32.mrb[0].mxu0
    %v506 = vadd.f32 0.0, %v505
    %v507 = vpop.f32.mrb[0].mxu0
    %v508 = vpop.f32.mrb[0].mxu0
    %v509 = vpop.f32.mrb[0].mxu0
    %510 = vdwg.mxu0
    %v527 = vunpack.c.l.b16 %v315
    %v528 = vunpack.c.l.b16 %v316
    %v529 = vunpack.c.l.b16 %v317
    %v530 = vunpack.c.l.b16 %v318
    %v531 = vunpack.c.l.b16 %v319
    %v532 = vunpack.c.l.b16 %v320
    %v533 = vunpack.c.l.b16 %v321
    %v534 = vunpack.c.l.b16 %v322
    %v535 = vunpack.c.l.b16 %v323
    %v536 = vunpack.c.l.b16 %v324
    %v537 = vunpack.c.l.b16 %v325
    %v538 = vunpack.c.l.b16 %v326
    %v539 = vunpack.c.l.b16 %v327
    %v540 = vunpack.c.l.b16 %v328
    %v541 = vunpack.c.l.b16 %v329
    %v542 = vunpack.c.l.b16 %v330
    %v543 = vpack.c.b16 %v528, %v527
    %v544 = vpack.c.b16 %v530, %v529
    %v545 = vpack.c.b16 %v532, %v531
    %v546 = vpack.c.b16 %v534, %v533
    %v547 = vpack.c.b16 %v536, %v535
    %v548 = vpack.c.b16 %v538, %v537
    %v549 = vpack.c.b16 %v540, %v539
    %v550 = vpack.c.b16 %v542, %v541
    %559 = vmatprep.subr.bf16.mxu0 0
    %560 = vmatpush1.bf16.msra.mxu0 %v543
    %561 = vmatprep.subr.bf16.mxu0 0
    %562 = vmatpush1.bf16.msra.mxu0 %v544
    %563 = vmatprep.subr.bf16.mxu0 0
    %564 = vmatpush1.bf16.msra.mxu0 %v545
    %565 = vmatprep.subr.bf16.mxu0 0
    %566 = vmatpush1.bf16.msra.mxu0 %v546
    %567 = vmatprep.subr.bf16.mxu0 0
    %568 = vmatpush1.bf16.msra.mxu0 %v547
    %569 = vmatprep.subr.bf16.mxu0 0
    %570 = vmatpush1.bf16.msra.mxu0 %v548
    %571 = vmatprep.subr.bf16.mxu0 0
    %572 = vmatpush1.bf16.msra.mxu0 %v549
    %573 = vmatprep.subr.bf16.mxu0 0
    %574 = vmatpush1.bf16.msra.mxu0 %v550
    %575 = vmatprep.subr.bf16.mxu0 0
    %576 = vmatpush1.bf16.msra.mxu0 0
    %577 = vmatprep.subr.bf16.mxu0 0
    %578 = vmatpush1.bf16.msra.mxu0 0
    %579 = vmatprep.subr.bf16.mxu0 0
    %580 = vmatpush1.bf16.msra.mxu0 0
    %581 = vmatprep.subr.bf16.mxu0 0
    %582 = vmatpush1.bf16.msra.mxu0 0
    %583 = vmatprep.subr.bf16.mxu0 0
    %584 = vmatpush1.bf16.msra.mxu0 0
    %585 = vmatprep.subr.bf16.mxu0 0
    %586 = vmatpush1.bf16.msra.mxu0 0
    %587 = vmatprep.subr.bf16.mxu0 0
    %588 = vmatpush1.bf16.msra.mxu0 0
    %589 = vmatprep.subr.bf16.mxu0 0
    %590 = vmatpush1.bf16.msra.mxu0 0
    %591 = vmatprep.mubr.bf16.mxu0 0
    %592 = vmatmul.mubr.bf16.gmra.mrb[0].mxu0 %v313
    %v593 = vpop.f32.mrb[0].mxu0
    %v594 = vadd.f32 %v498, %v593
    %v595 = vpop.f32.mrb[0].mxu0
    %v596 = vpop.f32.mrb[0].mxu0
    %v597 = vadd.f32 %v501, %v596
    %v598 = vpop.f32.mrb[0].mxu0
    %599 = vmatprep.mubr.bf16.mxu0 0
    %600 = vmatmul.mubr.bf16.gmra.mrb[0].mxu0 %v314
    %v601 = vpop.f32.mrb[0].mxu0
    %v602 = vadd.f32 %v506, %v601
    %v603 = vpop.f32.mrb[0].mxu0
    %v604 = vpop.f32.mrb[0].mxu0
    %v605 = vpop.f32.mrb[0].mxu0
    %606 = vdwg.mxu0
    %v607 = vld [vmem:[%s239] sm:$0x3]
    %v608 = vld [vmem:[%s239 + $0x2] sm:$0x3]
    %v609 = vld [vmem:[%s239 + $0x4] sm:$0x3]
    %v610 = vld [vmem:[%s239 + $0x6] sm:$0x3]
    %v611 = vld [vmem:[%s239 + $0x8] sm:$0x3]
    %v612 = vld [vmem:[%s239 + $0xa] sm:$0x3]
    %v613 = vld [vmem:[%s239 + $0xc] sm:$0x3]
    %v614 = vld [vmem:[%s239 + $0xe] sm:$0x3]
    %v615 = vld [vmem:[%s239 + $0x10] sm:$0x3]
    %v616 = vld [vmem:[%s239 + $0x12] sm:$0x3]
    %v627 = vcombine.low %v607, %v608
    %v628 = vcombine.low %v609, %v610
    %v630 = vunpack.c.l.s4 1983009808
    %v631 = vunpack.c.0.s8 %v630
    %v632 = vlaneseq
    %v633 = vshrl.u32 %v632, 7
    %v634 = vsub.s32 %v631, %v633
    %v635 = vrot.slane %v627, %v634
    %v637 = vunpack.c.l.s4 1983009808
    %v638 = vunpack.c.0.s8 %v637
    %v639 = vlaneseq
    %v640 = vshrl.u32 %v639, 7
    %v641 = vsub.s32 %v638, %v640
    %v642 = vrot.slane %v628, %v641
    %v643 = vcombine.low %v635, %v642
    %v644 = vcombine.low %v611, %v612
    %v645 = vcombine.low %v613, %v614
    %v647 = vunpack.c.l.s4 1983009808
    %v648 = vunpack.c.0.s8 %v647
    %v649 = vlaneseq
    %v650 = vshrl.u32 %v649, 7
    %v651 = vsub.s32 %v648, %v650
    %v652 = vrot.slane %v644, %v651
    %v654 = vunpack.c.l.s4 1983009808
    %v655 = vunpack.c.0.s8 %v654
    %v656 = vlaneseq
    %v657 = vshrl.u32 %v656, 7
    %v658 = vsub.s32 %v655, %v657
    %v659 = vrot.slane %v645, %v658
    %v660 = vcombine.low %v652, %v659
    %v661 = vcombine.low %v615, %v616
    %v663 = vunpack.c.l.s4 1983009808
    %v664 = vunpack.c.0.s8 %v663
    %v665 = vlaneseq
    %v666 = vshrl.u32 %v665, 7
    %v667 = vsub.s32 %v664, %v666
    %v668 = vrot.slane %v661, %v667
    %v672 = vpack.c.bf16 %v660, %v643
    %v673 = vpack.c.bf16 %v668, %v668
    %v674 = vld [vmem:[#allocation14 + $0x80] sm:$0xf]
    %v675 = vld [vmem:[#allocation14 + $0x84] sm:$0xf]
    %v676 = vld [vmem:[#allocation14 + $0x88] sm:$0xf]
    %v677 = vld [vmem:[#allocation14 + $0x8c] sm:$0xf]
    %v678 = vld [vmem:[#allocation14 + $0x90] sm:$0xf]
    %v679 = vld [vmem:[#allocation14 + $0x94] sm:$0xf]
    %v680 = vld [vmem:[#allocation14 + $0x98] sm:$0xf]
    %v681 = vld [vmem:[#allocation14 + $0x9c] sm:$0xf]
    %v682 = vld [vmem:[#allocation14 + $0xa0] sm:$0xf]
    %v683 = vld [vmem:[#allocation14 + $0xa4] sm:$0xf]
    %v684 = vld [vmem:[#allocation14 + $0xa8] sm:$0xf]
    %v685 = vld [vmem:[#allocation14 + $0xac] sm:$0xf]
    %v686 = vld [vmem:[#allocation14 + $0xb0] sm:$0xf]
    %v687 = vld [vmem:[#allocation14 + $0xb4] sm:$0xf]
    %v688 = vld [vmem:[#allocation14 + $0xb8] sm:$0xf]
    %v689 = vld [vmem:[#allocation14 + $0xbc] sm:$0xf]
    %v706 = vunpack.c.l.b16 %v674
    %v707 = vunpack.c.l.b16 %v675
    %v708 = vunpack.c.l.b16 %v676
    %v709 = vunpack.c.l.b16 %v677
    %v710 = vunpack.c.l.b16 %v678
    %v711 = vunpack.c.l.b16 %v679
    %v712 = vunpack.c.l.b16 %v680
    %v713 = vunpack.c.l.b16 %v681
    %v714 = vunpack.c.l.b16 %v682
    %v715 = vunpack.c.l.b16 %v683
    %v716 = vunpack.c.l.b16 %v684
    %v717 = vunpack.c.l.b16 %v685
    %v718 = vunpack.c.l.b16 %v686
    %v719 = vunpack.c.l.b16 %v687
    %v720 = vunpack.c.l.b16 %v688
    %v721 = vunpack.c.l.b16 %v689
    %v722 = vpack.c.b16 %v707, %v706
    %v723 = vpack.c.b16 %v709, %v708
    %v724 = vpack.c.b16 %v711, %v710
    %v725 = vpack.c.b16 %v713, %v712
    %v726 = vpack.c.b16 %v715, %v714
    %v727 = vpack.c.b16 %v717, %v716
    %v728 = vpack.c.b16 %v719, %v718
    %v729 = vpack.c.b16 %v721, %v720
    %738 = vmatprep.subr.bf16.mxu0 0
    %739 = vmatpush1.bf16.msra.mxu0 %v722
    %740 = vmatprep.subr.bf16.mxu0 0
    %741 = vmatpush1.bf16.msra.mxu0 %v723
    %742 = vmatprep.subr.bf16.mxu0 0
    %743 = vmatpush1.bf16.msra.mxu0 %v724
    %744 = vmatprep.subr.bf16.mxu0 0
    %745 = vmatpush1.bf16.msra.mxu0 %v725
    %746 = vmatprep.subr.bf16.mxu0 0
    %747 = vmatpush1.bf16.msra.mxu0 %v726
    %748 = vmatprep.subr.bf16.mxu0 0
    %749 = vmatpush1.bf16.msra.mxu0 %v727
    %750 = vmatprep.subr.bf16.mxu0 0
    %751 = vmatpush1.bf16.msra.mxu0 %v728
    %752 = vmatprep.subr.bf16.mxu0 0
    %753 = vmatpush1.bf16.msra.mxu0 %v729
    %754 = vmatprep.subr.bf16.mxu0 0
    %755 = vmatpush1.bf16.msra.mxu0 0
    %756 = vmatprep.subr.bf16.mxu0 0
    %757 = vmatpush1.bf16.msra.mxu0 0
    %758 = vmatprep.subr.bf16.mxu0 0
    %759 = vmatpush1.bf16.msra.mxu0 0
    %760 = vmatprep.subr.bf16.mxu0 0
    %761 = vmatpush1.bf16.msra.mxu0 0
    %762 = vmatprep.subr.bf16.mxu0 0
    %763 = vmatpush1.bf16.msra.mxu0 0
    %764 = vmatprep.subr.bf16.mxu0 0
    %765 = vmatpush1.bf16.msra.mxu0 0
    %766 = vmatprep.subr.bf16.mxu0 0
    %767 = vmatpush1.bf16.msra.mxu0 0
    %768 = vmatprep.subr.bf16.mxu0 0
    %769 = vmatpush1.bf16.msra.mxu0 0
    %770 = vmatprep.mubr.bf16.mxu0 0
    %771 = vmatmul.mubr.bf16.gmra.mrb[0].mxu0 %v672
    %v772 = vpop.f32.mrb[0].mxu0
    %v773 = vadd.f32 0.0, %v772
    %v774 = vpop.f32.mrb[0].mxu0
    %v775 = vpop.f32.mrb[0].mxu0
    %v776 = vadd.f32 0.0, %v775
    %v777 = vpop.f32.mrb[0].mxu0
    %778 = vmatprep.mubr.bf16.mxu0 0
    %779 = vmatmul.mubr.bf16.gmra.mrb[0].mxu0 %v673
    %v780 = vpop.f32.mrb[0].mxu0
    %v781 = vadd.f32 0.0, %v780
    %v782 = vpop.f32.mrb[0].mxu0
    %v783 = vpop.f32.mrb[0].mxu0
    %v784 = vpop.f32.mrb[0].mxu0
    %785 = vdwg.mxu0
    %v786 = vadd.f32 %v594, %v773
    %v787 = vadd.f32 %v597, %v776
    %v788 = vadd.f32 %v602, %v781
    %v792 = vcombine.high %v786, %v786
    %v794 = vunpack.c.l.s4 1983009808
    %v795 = vunpack.c.0.s8 %v794
    %v796 = vlaneseq
    %v797 = vshrl.u32 %v796, 7
    %v798 = vsub.s32 %v795, %v797
    %v799 = vrot.slane %v786, %v798
    %v801 = vunpack.c.l.s4 1983009808
    %v802 = vunpack.c.0.s8 %v801
    %v803 = vlaneseq
    %v804 = vshrl.u32 %v803, 7
    %v805 = vsub.s32 %v802, %v804
    %v806 = vrot.slane %v792, %v805
    %v807 = vcombine.high %v799, %v799
    %v808 = vcombine.high %v806, %v806
    %v809 = vcombine.high %v787, %v787
    %v811 = vunpack.c.l.s4 1983009808
    %v812 = vunpack.c.0.s8 %v811
    %v813 = vlaneseq
    %v814 = vshrl.u32 %v813, 7
    %v815 = vsub.s32 %v812, %v814
    %v816 = vrot.slane %v787, %v815
    %v818 = vunpack.c.l.s4 1983009808
    %v819 = vunpack.c.0.s8 %v818
    %v820 = vlaneseq
    %v821 = vshrl.u32 %v820, 7
    %v822 = vsub.s32 %v819, %v821
    %v823 = vrot.slane %v809, %v822
    %v824 = vcombine.high %v816, %v816
    %v825 = vcombine.high %v823, %v823
    %v827 = vunpack.c.l.s4 1983009808
    %v828 = vunpack.c.0.s8 %v827
    %v829 = vlaneseq
    %v830 = vshrl.u32 %v829, 7
    %v831 = vsub.s32 %v828, %v830
    %v832 = vrot.slane %v788, %v831
    %v833 = vcombine.high %v832, %v832
    %v844 = vld [vmem:[%s4] sm:$0x1]
    %v846 = vlaneseq
    %v847 = vshrl.u32 %v846, 7
    %v848 = vsub.s32 0, %v847
    %v849 = vrot.slane %v844, %v848
    %v851 = vmul.f32 %v799, %v849
    %v852 = vmul.f32 %v807, %v849
    %v853 = vmul.f32 %v806, %v849
    %v854 = vmul.f32 %v808, %v849
    %v855 = vmul.f32 %v816, %v849
    %v856 = vmul.f32 %v824, %v849
    %v857 = vmul.f32 %v823, %v849
    %v858 = vmul.f32 %v825, %v849
    %v859 = vmul.f32 %v832, %v849
    %v860 = vmul.f32 %v833, %v849
    %v861 = vld [vmem:[%s5] sm:$0x1]
    %v863 = vlaneseq
    %v864 = vshrl.u32 %v863, 7
    %v865 = vsub.s32 0, %v864
    %v866 = vrot.slane %v861, %v865
    %v868 = vadd.f32 %v851, %v866
    %v869 = vadd.f32 %v852, %v866
    %v870 = vadd.f32 %v853, %v866
    %v871 = vadd.f32 %v854, %v866
    %v872 = vadd.f32 %v855, %v866
    %v873 = vadd.f32 %v856, %v866
    %v874 = vadd.f32 %v857, %v866
    %v875 = vadd.f32 %v858, %v866
    %v876 = vadd.f32 %v859, %v866
    %v877 = vadd.f32 %v860, %v866
    %v878 = vmax.f32 %v868, 0.0
    %v879 = vmax.f32 %v869, 0.0
    %v880 = vmax.f32 %v870, 0.0
    %v881 = vmax.f32 %v871, 0.0
    %v882 = vmax.f32 %v872, 0.0
    %v883 = vmax.f32 %v873, 0.0
    %v884 = vmax.f32 %v874, 0.0
    %v885 = vmax.f32 %v875, 0.0
    %v886 = vmax.f32 %v876, 0.0
    %v887 = vmax.f32 %v877, 0.0
    %888 = vst [vmem:[#allocation3] sm:$0x3] 0.0
    %889 = vst [vmem:[#allocation3 + $0x2] sm:$0x3] 0.0
    %s890 = scalar_lea.vmem [#allocation3], 24
    %891 = vst [vmem:[%s890] sm:$0x3] 0.0
    %892 = vst [vmem:[%s890 + $0x2] sm:$0x3] 0.0
    %s893 = scalar_lea.vmem [#allocation3], 4
    %894 = vst [vmem:[%s893] sm:$0x3] %v878
    %895 = vst [vmem:[%s893 + $0x2] sm:$0x3] %v879
    %896 = vst [vmem:[%s893 + $0x4] sm:$0x3] %v880
    %897 = vst [vmem:[%s893 + $0x6] sm:$0x3] %v881
    %898 = vst [vmem:[%s893 + $0x8] sm:$0x3] %v882
    %899 = vst [vmem:[%s893 + $0xa] sm:$0x3] %v883
    %900 = vst [vmem:[%s893 + $0xc] sm:$0x3] %v884
    %901 = vst [vmem:[%s893 + $0xe] sm:$0x3] %v885
    %902 = vst [vmem:[%s893 + $0x10] sm:$0x3] %v886
    %903 = vst [vmem:[%s893 + $0x12] sm:$0x3] %v887
    %v904 = vld [vmem:[#allocation3] sm:$0x3]
    %v905 = vld [vmem:[#allocation3 + $0x2] sm:$0x3]
    %v906 = vld [vmem:[#allocation3 + $0x4] sm:$0x3]
    %v907 = vld [vmem:[#allocation3 + $0x6] sm:$0x3]
    %v908 = vld [vmem:[#allocation3 + $0x8] sm:$0x3]
    %v909 = vld [vmem:[#allocation3 + $0xa] sm:$0x3]
    %v910 = vld [vmem:[#allocation3 + $0xc] sm:$0x3]
    %v911 = vld [vmem:[#allocation3 + $0xe] sm:$0x3]
    %v912 = vld [vmem:[#allocation3 + $0x10] sm:$0x3]
    %v913 = vld [vmem:[#allocation3 + $0x12] sm:$0x3]
    %v914 = vld [vmem:[#allocation3 + $0x14] sm:$0x3]
    %v915 = vld [vmem:[#allocation3 + $0x16] sm:$0x3]
    %v928 = vcombine.low %v904, %v905
    %v929 = vcombine.low %v906, %v907
    %v931 = vunpack.c.l.s4 1983009808
    %v932 = vunpack.c.0.s8 %v931
    %v933 = vlaneseq
    %v934 = vshrl.u32 %v933, 7
    %v935 = vsub.s32 %v932, %v934
    %v936 = vrot.slane %v928, %v935
    %v938 = vunpack.c.l.s4 1983009808
    %v939 = vunpack.c.0.s8 %v938
    %v940 = vlaneseq
    %v941 = vshrl.u32 %v940, 7
    %v942 = vsub.s32 %v939, %v941
    %v943 = vrot.slane %v929, %v942
    %v944 = vcombine.low %v936, %v943
    %v945 = vcombine.low %v908, %v909
    %v946 = vcombine.low %v910, %v911
    %v948 = vunpack.c.l.s4 1983009808
    %v949 = vunpack.c.0.s8 %v948
    %v950 = vlaneseq
    %v951 = vshrl.u32 %v950, 7
    %v952 = vsub.s32 %v949, %v951
    %v953 = vrot.slane %v945, %v952
    %v955 = vunpack.c.l.s4 1983009808
    %v956 = vunpack.c.0.s8 %v955
    %v957 = vlaneseq
    %v958 = vshrl.u32 %v957, 7
    %v959 = vsub.s32 %v956, %v958
    %v960 = vrot.slane %v946, %v959
    %v961 = vcombine.low %v953, %v960
    %v962 = vcombine.low %v912, %v913
    %v963 = vcombine.low %v914, %v915
    %v965 = vunpack.c.l.s4 1983009808
    %v966 = vunpack.c.0.s8 %v965
    %v967 = vlaneseq
    %v968 = vshrl.u32 %v967, 7
    %v969 = vsub.s32 %v966, %v968
    %v970 = vrot.slane %v962, %v969
    %v972 = vunpack.c.l.s4 1983009808
    %v973 = vunpack.c.0.s8 %v972
    %v974 = vlaneseq
    %v975 = vshrl.u32 %v974, 7
    %v976 = vsub.s32 %v973, %v975
    %v977 = vrot.slane %v963, %v976
    %v978 = vcombine.low %v970, %v977
    %v982 = vpack.c.bf16 %v961, %v944
    %v983 = vpack.c.bf16 %v978, %v978
    %v984 = vld [vmem:[#allocation16] sm:$0xf]
    %v985 = vld [vmem:[#allocation16 + $0x4] sm:$0xf]
    %v986 = vld [vmem:[#allocation16 + $0x8] sm:$0xf]
    %v987 = vld [vmem:[#allocation16 + $0xc] sm:$0xf]
    %v988 = vld [vmem:[#allocation16 + $0x10] sm:$0xf]
    %v989 = vld [vmem:[#allocation16 + $0x14] sm:$0xf]
    %v990 = vld [vmem:[#allocation16 + $0x18] sm:$0xf]
    %v991 = vld [vmem:[#allocation16 + $0x1c] sm:$0xf]
    %v992 = vld [vmem:[#allocation16 + $0x20] sm:$0xf]
    %v993 = vld [vmem:[#allocation16 + $0x24] sm:$0xf]
    %v994 = vld [vmem:[#allocation16 + $0x28] sm:$0xf]
    %v995 = vld [vmem:[#allocation16 + $0x2c] sm:$0xf]
    %v996 = vld [vmem:[#allocation16 + $0x30] sm:$0xf]
    %v997 = vld [vmem:[#allocation16 + $0x34] sm:$0xf]
    %v998 = vld [vmem:[#allocation16 + $0x38] sm:$0xf]
    %v999 = vld [vmem:[#allocation16 + $0x3c] sm:$0xf]
    %s1000 = scalar_lea.vmem [#allocation3], 2
    %v1001 = vld [vmem:[%s1000] sm:$0x3]
    %v1002 = vld [vmem:[%s1000 + $0x2] sm:$0x3]
    %v1003 = vld [vmem:[%s1000 + $0x4] sm:$0x3]
    %v1004 = vld [vmem:[%s1000 + $0x6] sm:$0x3]
    %v1005 = vld [vmem:[%s1000 + $0x8] sm:$0x3]
    %v1006 = vld [vmem:[%s1000 + $0xa] sm:$0x3]
    %v1007 = vld [vmem:[%s1000 + $0xc] sm:$0x3]
    %v1008 = vld [vmem:[%s1000 + $0xe] sm:$0x3]
    %v1009 = vld [vmem:[%s1000 + $0x10] sm:$0x3]
    %v1010 = vld [vmem:[%s1000 + $0x12] sm:$0x3]
    %v1011 = vld [vmem:[%s1000 + $0x14] sm:$0x3]
    %v1012 = vld [vmem:[%s1000 + $0x16] sm:$0x3]
    %v1025 = vcombine.low %v1001, %v1002
    %v1026 = vcombine.low %v1003, %v1004
    %v1028 = vunpack.c.l.s4 1983009808
    %v1029 = vunpack.c.0.s8 %v1028
    %v1030 = vlaneseq
    %v1031 = vshrl.u32 %v1030, 7
    %v1032 = vsub.s32 %v1029, %v1031
    %v1033 = vrot.slane %v1025, %v1032
    %v1035 = vunpack.c.l.s4 1983009808
    %v1036 = vunpack.c.0.s8 %v1035
    %v1037 = vlaneseq
    %v1038 = vshrl.u32 %v1037, 7
    %v1039 = vsub.s32 %v1036, %v1038
    %v1040 = vrot.slane %v1026, %v1039
    %v1041 = vcombine.low %v1033, %v1040
    %v1042 = vcombine.low %v1005, %v1006
    %v1043 = vcombine.low %v1007, %v1008
    %v1045 = vunpack.c.l.s4 1983009808
    %v1046 = vunpack.c.0.s8 %v1045
    %v1047 = vlaneseq
    %v1048 = vshrl.u32 %v1047, 7
    %v1049 = vsub.s32 %v1046, %v1048
    %v1050 = vrot.slane %v1042, %v1049
    %v1052 = vunpack.c.l.s4 1983009808
    %v1053 = vunpack.c.0.s8 %v1052
    %v1054 = vlaneseq
    %v1055 = vshrl.u32 %v1054, 7
    %v1056 = vsub.s32 %v1053, %v1055
    %v1057 = vrot.slane %v1043, %v1056
    %v1058 = vcombine.low %v1050, %v1057
    %v1059 = vcombine.low %v1009, %v1010
    %v1060 = vcombine.low %v1011, %v1012
    %v1062 = vunpack.c.l.s4 1983009808
    %v1063 = vunpack.c.0.s8 %v1062
    %v1064 = vlaneseq
    %v1065 = vshrl.u32 %v1064, 7
    %v1066 = vsub.s32 %v1063, %v1065
    %v1067 = vrot.slane %v1059, %v1066
    %v1069 = vunpack.c.l.s4 1983009808
    %v1070 = vunpack.c.0.s8 %v1069
    %v1071 = vlaneseq
    %v1072 = vshrl.u32 %v1071, 7
    %v1073 = vsub.s32 %v1070, %v1072
    %v1074 = vrot.slane %v1060, %v1073
    %v1075 = vcombine.low %v1067, %v1074
    %v1079 = vpack.c.bf16 %v1058, %v1041
    %v1080 = vpack.c.bf16 %v1075, %v1075
    %v1081 = vld [vmem:[#allocation16 + $0x40] sm:$0xf]
    %v1082 = vld [vmem:[#allocation16 + $0x44] sm:$0xf]
    %v1083 = vld [vmem:[#allocation16 + $0x48] sm:$0xf]
    %v1084 = vld [vmem:[#allocation16 + $0x4c] sm:$0xf]
    %v1085 = vld [vmem:[#allocation16 + $0x50] sm:$0xf]
    %v1086 = vld [vmem:[#allocation16 + $0x54] sm:$0xf]
    %v1087 = vld [vmem:[#allocation16 + $0x58] sm:$0xf]
    %v1088 = vld [vmem:[#allocation16 + $0x5c] sm:$0xf]
    %v1089 = vld [vmem:[#allocation16 + $0x60] sm:$0xf]
    %v1090 = vld [vmem:[#allocation16 + $0x64] sm:$0xf]
    %v1091 = vld [vmem:[#allocation16 + $0x68] sm:$0xf]
    %v1092 = vld [vmem:[#allocation16 + $0x6c] sm:$0xf]
    %v1093 = vld [vmem:[#allocation16 + $0x70] sm:$0xf]
    %v1094 = vld [vmem:[#allocation16 + $0x74] sm:$0xf]
    %v1095 = vld [vmem:[#allocation16 + $0x78] sm:$0xf]
    %v1096 = vld [vmem:[#allocation16 + $0x7c] sm:$0xf]
    %v1113 = vunpack.c.l.b16 %v1081
    %v1114 = vunpack.c.l.b16 %v1082
    %v1115 = vunpack.c.l.b16 %v1083
    %v1116 = vunpack.c.l.b16 %v1084
    %v1117 = vunpack.c.l.b16 %v1085
    %v1118 = vunpack.c.l.b16 %v1086
    %v1119 = vunpack.c.l.b16 %v1087
    %v1120 = vunpack.c.l.b16 %v1088
    %v1121 = vunpack.c.l.b16 %v1089
    %v1122 = vunpack.c.l.b16 %v1090
    %v1123 = vunpack.c.l.b16 %v1091
    %v1124 = vunpack.c.l.b16 %v1092
    %v1125 = vunpack.c.l.b16 %v1093
    %v1126 = vunpack.c.l.b16 %v1094
    %v1127 = vunpack.c.l.b16 %v1095
    %v1128 = vunpack.c.l.b16 %v1096
    %v1129 = vpack.c.b16 %v1114, %v1113
    %v1130 = vpack.c.b16 %v1116, %v1115
    %v1131 = vpack.c.b16 %v1118, %v1117
    %v1132 = vpack.c.b16 %v1120, %v1119
    %v1133 = vpack.c.b16 %v1122, %v1121
    %v1134 = vpack.c.b16 %v1124, %v1123
    %v1135 = vpack.c.b16 %v1126, %v1125
    %v1136 = vpack.c.b16 %v1128, %v1127
    %1145 = vmatprep.subr.bf16.mxu0 0
    %1146 = vmatpush1.bf16.msra.mxu0 %v1129
    %1147 = vmatprep.subr.bf16.mxu0 0
    %1148 = vmatpush1.bf16.msra.mxu0 %v1130
    %1149 = vmatprep.subr.bf16.mxu0 0
    %1150 = vmatpush1.bf16.msra.mxu0 %v1131
    %1151 = vmatprep.subr.bf16.mxu0 0
    %1152 = vmatpush1.bf16.msra.mxu0 %v1132
    %1153 = vmatprep.subr.bf16.mxu0 0
    %1154 = vmatpush1.bf16.msra.mxu0 %v1133
    %1155 = vmatprep.subr.bf16.mxu0 0
    %1156 = vmatpush1.bf16.msra.mxu0 %v1134
    %1157 = vmatprep.subr.bf16.mxu0 0
    %1158 = vmatpush1.bf16.msra.mxu0 %v1135
    %1159 = vmatprep.subr.bf16.mxu0 0
    %1160 = vmatpush1.bf16.msra.mxu0 %v1136
    %1161 = vmatprep.subr.bf16.mxu0 0
    %1162 = vmatpush1.bf16.msra.mxu0 0
    %1163 = vmatprep.subr.bf16.mxu0 0
    %1164 = vmatpush1.bf16.msra.mxu0 0
    %1165 = vmatprep.subr.bf16.mxu0 0
    %1166 = vmatpush1.bf16.msra.mxu0 0
    %1167 = vmatprep.subr.bf16.mxu0 0
    %1168 = vmatpush1.bf16.msra.mxu0 0
    %1169 = vmatprep.subr.bf16.mxu0 0
    %1170 = vmatpush1.bf16.msra.mxu0 0
    %1171 = vmatprep.subr.bf16.mxu0 0
    %1172 = vmatpush1.bf16.msra.mxu0 0
    %1173 = vmatprep.subr.bf16.mxu0 0
    %1174 = vmatpush1.bf16.msra.mxu0 0
    %1175 = vmatprep.subr.bf16.mxu0 0
    %1176 = vmatpush1.bf16.msra.mxu0 0
    %1177 = vmatprep.mubr.bf16.mxu0 0
    %1178 = vmatmul.mubr.bf16.gmra.mrb[0].mxu0 %v1079
    %v1179 = vpop.f32.mrb[0].mxu0
    %v1180 = vadd.f32 0.0, %v1179
    %v1181 = vpop.f32.mrb[0].mxu0
    %v1182 = vpop.f32.mrb[0].mxu0
    %v1183 = vadd.f32 0.0, %v1182
    %v1184 = vpop.f32.mrb[0].mxu0
    %1185 = vmatprep.mubr.bf16.mxu0 0
    %1186 = vmatmul.mubr.bf16.gmra.mrb[0].mxu0 %v1080
    %v1187 = vpop.f32.mrb[0].mxu0
    %v1188 = vadd.f32 0.0, %v1187
    %v1189 = vpop.f32.mrb[0].mxu0
    %v1190 = vpop.f32.mrb[0].mxu0
    %v1191 = vpop.f32.mrb[0].mxu0
    %1192 = vdwg.mxu0
    %v1209 = vunpack.c.l.b16 %v984
    %v1210 = vunpack.c.l.b16 %v985
    %v1211 = vunpack.c.l.b16 %v986
    %v1212 = vunpack.c.l.b16 %v987
    %v1213 = vunpack.c.l.b16 %v988
    %v1214 = vunpack.c.l.b16 %v989
    %v1215 = vunpack.c.l.b16 %v990
    %v1216 = vunpack.c.l.b16 %v991
    %v1217 = vunpack.c.l.b16 %v992
    %v1218 = vunpack.c.l.b16 %v993
    %v1219 = vunpack.c.l.b16 %v994
    %v1220 = vunpack.c.l.b16 %v995
    %v1221 = vunpack.c.l.b16 %v996
    %v1222 = vunpack.c.l.b16 %v997
    %v1223 = vunpack.c.l.b16 %v998
    %v1224 = vunpack.c.l.b16 %v999
    %v1225 = vpack.c.b16 %v1210, %v1209
    %v1226 = vpack.c.b16 %v1212, %v1211
    %v1227 = vpack.c.b16 %v1214, %v1213
    %v1228 = vpack.c.b16 %v1216, %v1215
    %v1229 = vpack.c.b16 %v1218, %v1217
    %v1230 = vpack.c.b16 %v1220, %v1219
    %v1231 = vpack.c.b16 %v1222, %v1221
    %v1232 = vpack.c.b16 %v1224, %v1223
    %1241 = vmatprep.subr.bf16.mxu0 0
    %1242 = vmatpush1.bf16.msra.mxu0 %v1225
    %1243 = vmatprep.subr.bf16.mxu0 0
    %1244 = vmatpush1.bf16.msra.mxu0 %v1226
    %1245 = vmatprep.subr.bf16.mxu0 0
    %1246 = vmatpush1.bf16.msra.mxu0 %v1227
    %1247 = vmatprep.subr.bf16.mxu0 0
    %1248 = vmatpush1.bf16.msra.mxu0 %v1228
    %1249 = vmatprep.subr.bf16.mxu0 0
    %1250 = vmatpush1.bf16.msra.mxu0 %v1229
    %1251 = vmatprep.subr.bf16.mxu0 0
    %1252 = vmatpush1.bf16.msra.mxu0 %v1230
    %1253 = vmatprep.subr.bf16.mxu0 0
    %1254 = vmatpush1.bf16.msra.mxu0 %v1231
    %1255 = vmatprep.subr.bf16.mxu0 0
    %1256 = vmatpush1.bf16.msra.mxu0 %v1232
    %1257 = vmatprep.subr.bf16.mxu0 0
    %1258 = vmatpush1.bf16.msra.mxu0 0
    %1259 = vmatprep.subr.bf16.mxu0 0
    %1260 = vmatpush1.bf16.msra.mxu0 0
    %1261 = vmatprep.subr.bf16.mxu0 0
    %1262 = vmatpush1.bf16.msra.mxu0 0
    %1263 = vmatprep.subr.bf16.mxu0 0
    %1264 = vmatpush1.bf16.msra.mxu0 0
    %1265 = vmatprep.subr.bf16.mxu0 0
    %1266 = vmatpush1.bf16.msra.mxu0 0
    %1267 = vmatprep.subr.bf16.mxu0 0
    %1268 = vmatpush1.bf16.msra.mxu0 0
    %1269 = vmatprep.subr.bf16.mxu0 0
    %1270 = vmatpush1.bf16.msra.mxu0 0
    %1271 = vmatprep.subr.bf16.mxu0 0
    %1272 = vmatpush1.bf16.msra.mxu0 0
    %1273 = vmatprep.mubr.bf16.mxu0 0
    %1274 = vmatmul.mubr.bf16.gmra.mrb[0].mxu0 %v982
    %v1275 = vpop.f32.mrb[0].mxu0
    %v1276 = vadd.f32 %v1180, %v1275
    %v1277 = vpop.f32.mrb[0].mxu0
    %v1278 = vpop.f32.mrb[0].mxu0
    %v1279 = vadd.f32 %v1183, %v1278
    %v1280 = vpop.f32.mrb[0].mxu0
    %1281 = vmatprep.mubr.bf16.mxu0 0
    %1282 = vmatmul.mubr.bf16.gmra.mrb[0].mxu0 %v983
    %v1283 = vpop.f32.mrb[0].mxu0
    %v1284 = vadd.f32 %v1188, %v1283
    %v1285 = vpop.f32.mrb[0].mxu0
    %v1286 = vpop.f32.mrb[0].mxu0
    %v1287 = vpop.f32.mrb[0].mxu0
    %1288 = vdwg.mxu0
    %v1289 = vld [vmem:[%s893] sm:$0x3]
    %v1290 = vld [vmem:[%s893 + $0x2] sm:$0x3]
    %v1291 = vld [vmem:[%s893 + $0x4] sm:$0x3]
    %v1292 = vld [vmem:[%s893 + $0x6] sm:$0x3]
    %v1293 = vld [vmem:[%s893 + $0x8] sm:$0x3]
    %v1294 = vld [vmem:[%s893 + $0xa] sm:$0x3]
    %v1295 = vld [vmem:[%s893 + $0xc] sm:$0x3]
    %v1296 = vld [vmem:[%s893 + $0xe] sm:$0x3]
    %v1297 = vld [vmem:[%s893 + $0x10] sm:$0x3]
    %v1298 = vld [vmem:[%s893 + $0x12] sm:$0x3]
    %v1299 = vld [vmem:[%s893 + $0x14] sm:$0x3]
    %v1300 = vld [vmem:[%s893 + $0x16] sm:$0x3]
    %v1313 = vcombine.low %v1289, %v1290
    %v1314 = vcombine.low %v1291, %v1292
    %v1316 = vunpack.c.l.s4 1983009808
    %v1317 = vunpack.c.0.s8 %v1316
    %v1318 = vlaneseq
    %v1319 = vshrl.u32 %v1318, 7
    %v1320 = vsub.s32 %v1317, %v1319
    %v1321 = vrot.slane %v1313, %v1320
    %v1323 = vunpack.c.l.s4 1983009808
    %v1324 = vunpack.c.0.s8 %v1323
    %v1325 = vlaneseq
    %v1326 = vshrl.u32 %v1325, 7
    %v1327 = vsub.s32 %v1324, %v1326
    %v1328 = vrot.slane %v1314, %v1327
    %v1329 = vcombine.low %v1321, %v1328
    %v1330 = vcombine.low %v1293, %v1294
    %v1331 = vcombine.low %v1295, %v1296
    %v1333 = vunpack.c.l.s4 1983009808
    %v1334 = vunpack.c.0.s8 %v1333
    %v1335 = vlaneseq
    %v1336 = vshrl.u32 %v1335, 7
    %v1337 = vsub.s32 %v1334, %v1336
    %v1338 = vrot.slane %v1330, %v1337
    %v1340 = vunpack.c.l.s4 1983009808
    %v1341 = vunpack.c.0.s8 %v1340
    %v1342 = vlaneseq
    %v1343 = vshrl.u32 %v1342, 7
    %v1344 = vsub.s32 %v1341, %v1343
    %v1345 = vrot.slane %v1331, %v1344
    %v1346 = vcombine.low %v1338, %v1345
    %v1347 = vcombine.low %v1297, %v1298
    %v1348 = vcombine.low %v1299, %v1300
    %v1350 = vunpack.c.l.s4 1983009808
    %v1351 = vunpack.c.0.s8 %v1350
    %v1352 = vlaneseq
    %v1353 = vshrl.u32 %v1352, 7
    %v1354 = vsub.s32 %v1351, %v1353
    %v1355 = vrot.slane %v1347, %v1354
    %v1357 = vunpack.c.l.s4 1983009808
    %v1358 = vunpack.c.0.s8 %v1357
    %v1359 = vlaneseq
    %v1360 = vshrl.u32 %v1359, 7
    %v1361 = vsub.s32 %v1358, %v1360
    %v1362 = vrot.slane %v1348, %v1361
    %v1363 = vcombine.low %v1355, %v1362
    %v1367 = vpack.c.bf16 %v1346, %v1329
    %v1368 = vpack.c.bf16 %v1363, %v1363
    %v1369 = vld [vmem:[#allocation16 + $0x80] sm:$0xf]
    %v1370 = vld [vmem:[#allocation16 + $0x84] sm:$0xf]
    %v1371 = vld [vmem:[#allocation16 + $0x88] sm:$0xf]
    %v1372 = vld [vmem:[#allocation16 + $0x8c] sm:$0xf]
    %v1373 = vld [vmem:[#allocation16 + $0x90] sm:$0xf]
    %v1374 = vld [vmem:[#allocation16 + $0x94] sm:$0xf]
    %v1375 = vld [vmem:[#allocation16 + $0x98] sm:$0xf]
    %v1376 = vld [vmem:[#allocation16 + $0x9c] sm:$0xf]
    %v1377 = vld [vmem:[#allocation16 + $0xa0] sm:$0xf]
    %v1378 = vld [vmem:[#allocation16 + $0xa4] sm:$0xf]
    %v1379 = vld [vmem:[#allocation16 + $0xa8] sm:$0xf]
    %v1380 = vld [vmem:[#allocation16 + $0xac] sm:$0xf]
    %v1381 = vld [vmem:[#allocation16 + $0xb0] sm:$0xf]
    %v1382 = vld [vmem:[#allocation16 + $0xb4] sm:$0xf]
    %v1383 = vld [vmem:[#allocation16 + $0xb8] sm:$0xf]
    %v1384 = vld [vmem:[#allocation16 + $0xbc] sm:$0xf]
    %v1401 = vunpack.c.l.b16 %v1369
    %v1402 = vunpack.c.l.b16 %v1370
    %v1403 = vunpack.c.l.b16 %v1371
    %v1404 = vunpack.c.l.b16 %v1372
    %v1405 = vunpack.c.l.b16 %v1373
    %v1406 = vunpack.c.l.b16 %v1374
    %v1407 = vunpack.c.l.b16 %v1375
    %v1408 = vunpack.c.l.b16 %v1376
    %v1409 = vunpack.c.l.b16 %v1377
    %v1410 = vunpack.c.l.b16 %v1378
    %v1411 = vunpack.c.l.b16 %v1379
    %v1412 = vunpack.c.l.b16 %v1380
    %v1413 = vunpack.c.l.b16 %v1381
    %v1414 = vunpack.c.l.b16 %v1382
    %v1415 = vunpack.c.l.b16 %v1383
    %v1416 = vunpack.c.l.b16 %v1384
    %v1417 = vpack.c.b16 %v1402, %v1401
    %v1418 = vpack.c.b16 %v1404, %v1403
    %v1419 = vpack.c.b16 %v1406, %v1405
    %v1420 = vpack.c.b16 %v1408, %v1407
    %v1421 = vpack.c.b16 %v1410, %v1409
    %v1422 = vpack.c.b16 %v1412, %v1411
    %v1423 = vpack.c.b16 %v1414, %v1413
    %v1424 = vpack.c.b16 %v1416, %v1415
    %1433 = vmatprep.subr.bf16.mxu0 0
    %1434 = vmatpush1.bf16.msra.mxu0 %v1417
    %1435 = vmatprep.subr.bf16.mxu0 0
    %1436 = vmatpush1.bf16.msra.mxu0 %v1418
    %1437 = vmatprep.subr.bf16.mxu0 0
    %1438 = vmatpush1.bf16.msra.mxu0 %v1419
    %1439 = vmatprep.subr.bf16.mxu0 0
    %1440 = vmatpush1.bf16.msra.mxu0 %v1420
    %1441 = vmatprep.subr.bf16.mxu0 0
    %1442 = vmatpush1.bf16.msra.mxu0 %v1421
    %1443 = vmatprep.subr.bf16.mxu0 0
    %1444 = vmatpush1.bf16.msra.mxu0 %v1422
    %1445 = vmatprep.subr.bf16.mxu0 0
    %1446 = vmatpush1.bf16.msra.mxu0 %v1423
    %1447 = vmatprep.subr.bf16.mxu0 0
    %1448 = vmatpush1.bf16.msra.mxu0 %v1424
    %1449 = vmatprep.subr.bf16.mxu0 0
    %1450 = vmatpush1.bf16.msra.mxu0 0
    %1451 = vmatprep.subr.bf16.mxu0 0
    %1452 = vmatpush1.bf16.msra.mxu0 0
    %1453 = vmatprep.subr.bf16.mxu0 0
    %1454 = vmatpush1.bf16.msra.mxu0 0
    %1455 = vmatprep.subr.bf16.mxu0 0
    %1456 = vmatpush1.bf16.msra.mxu0 0
    %1457 = vmatprep.subr.bf16.mxu0 0
    %1458 = vmatpush1.bf16.msra.mxu0 0
    %1459 = vmatprep.subr.bf16.mxu0 0
    %1460 = vmatpush1.bf16.msra.mxu0 0
    %1461 = vmatprep.subr.bf16.mxu0 0
    %1462 = vmatpush1.bf16.msra.mxu0 0
    %1463 = vmatprep.subr.bf16.mxu0 0
    %1464 = vmatpush1.bf16.msra.mxu0 0
    %1465 = vmatprep.mubr.bf16.mxu0 0
    %1466 = vmatmul.mubr.bf16.gmra.mrb[0].mxu0 %v1367
    %v1467 = vpop.f32.mrb[0].mxu0
    %v1468 = vadd.f32 0.0, %v1467
    %v1469 = vpop.f32.mrb[0].mxu0
    %v1470 = vpop.f32.mrb[0].mxu0
    %v1471 = vadd.f32 0.0, %v1470
    %v1472 = vpop.f32.mrb[0].mxu0
    %1473 = vmatprep.mubr.bf16.mxu0 0
    %1474 = vmatmul.mubr.bf16.gmra.mrb[0].mxu0 %v1368
    %v1475 = vpop.f32.mrb[0].mxu0
    %v1476 = vadd.f32 0.0, %v1475
    %v1477 = vpop.f32.mrb[0].mxu0
    %v1478 = vpop.f32.mrb[0].mxu0
    %v1479 = vpop.f32.mrb[0].mxu0
    %1480 = vdwg.mxu0
    %v1481 = vadd.f32 %v1276, %v1468
    %v1482 = vadd.f32 %v1279, %v1471
    %v1483 = vadd.f32 %v1284, %v1476
    %v1487 = vcombine.high %v1481, %v1481
    %v1489 = vunpack.c.l.s4 1983009808
    %v1490 = vunpack.c.0.s8 %v1489
    %v1491 = vlaneseq
    %v1492 = vshrl.u32 %v1491, 7
    %v1493 = vsub.s32 %v1490, %v1492
    %v1494 = vrot.slane %v1481, %v1493
    %v1496 = vunpack.c.l.s4 1983009808
    %v1497 = vunpack.c.0.s8 %v1496
    %v1498 = vlaneseq
    %v1499 = vshrl.u32 %v1498, 7
    %v1500 = vsub.s32 %v1497, %v1499
    %v1501 = vrot.slane %v1487, %v1500
    %v1502 = vcombine.high %v1494, %v1494
    %v1503 = vcombine.high %v1501, %v1501
    %v1504 = vcombine.high %v1482, %v1482
    %v1506 = vunpack.c.l.s4 1983009808
    %v1507 = vunpack.c.0.s8 %v1506
    %v1508 = vlaneseq
    %v1509 = vshrl.u32 %v1508, 7
    %v1510 = vsub.s32 %v1507, %v1509
    %v1511 = vrot.slane %v1482, %v1510
    %v1513 = vunpack.c.l.s4 1983009808
    %v1514 = vunpack.c.0.s8 %v1513
    %v1515 = vlaneseq
    %v1516 = vshrl.u32 %v1515, 7
    %v1517 = vsub.s32 %v1514, %v1516
    %v1518 = vrot.slane %v1504, %v1517
    %v1519 = vcombine.high %v1511, %v1511
    %v1520 = vcombine.high %v1518, %v1518
    %v1521 = vcombine.high %v1483, %v1483
    %v1523 = vunpack.c.l.s4 1983009808
    %v1524 = vunpack.c.0.s8 %v1523
    %v1525 = vlaneseq
    %v1526 = vshrl.u32 %v1525, 7
    %v1527 = vsub.s32 %v1524, %v1526
    %v1528 = vrot.slane %v1483, %v1527
    %v1530 = vunpack.c.l.s4 1983009808
    %v1531 = vunpack.c.0.s8 %v1530
    %v1532 = vlaneseq
    %v1533 = vshrl.u32 %v1532, 7
    %v1534 = vsub.s32 %v1531, %v1533
    %v1535 = vrot.slane %v1521, %v1534
    %v1536 = vcombine.high %v1528, %v1528
    %v1537 = vcombine.high %v1535, %v1535
    %v1550 = vld [vmem:[%s7] sm:$0x1]
    %v1552 = vlaneseq
    %v1553 = vshrl.u32 %v1552, 7
    %v1554 = vsub.s32 0, %v1553
    %v1555 = vrot.slane %v1550, %v1554
    %v1557 = vmul.f32 %v1494, %v1555
    %v1558 = vmul.f32 %v1502, %v1555
    %v1559 = vmul.f32 %v1501, %v1555
    %v1560 = vmul.f32 %v1503, %v1555
    %v1561 = vmul.f32 %v1511, %v1555
    %v1562 = vmul.f32 %v1519, %v1555
    %v1563 = vmul.f32 %v1518, %v1555
    %v1564 = vmul.f32 %v1520, %v1555
    %v1565 = vmul.f32 %v1528, %v1555
    %v1566 = vmul.f32 %v1536, %v1555
    %v1567 = vmul.f32 %v1535, %v1555
    %v1568 = vmul.f32 %v1537, %v1555
    %v1569 = vld [vmem:[%s8] sm:$0x1]
    %v1571 = vlaneseq
    %v1572 = vshrl.u32 %v1571, 7
    %v1573 = vsub.s32 0, %v1572
    %v1574 = vrot.slane %v1569, %v1573
    %v1576 = vadd.f32 %v1557, %v1574
    %v1577 = vadd.f32 %v1558, %v1574
    %v1578 = vadd.f32 %v1559, %v1574
    %v1579 = vadd.f32 %v1560, %v1574
    %v1580 = vadd.f32 %v1561, %v1574
    %v1581 = vadd.f32 %v1562, %v1574
    %v1582 = vadd.f32 %v1563, %v1574
    %v1583 = vadd.f32 %v1564, %v1574
    %v1584 = vadd.f32 %v1565, %v1574
    %v1585 = vadd.f32 %v1566, %v1574
    %v1586 = vadd.f32 %v1567, %v1574
    %v1587 = vadd.f32 %v1568, %v1574
    %v1588 = vmax.f32 %v1576, 0.0
    %v1589 = vmax.f32 %v1577, 0.0
    %v1590 = vmax.f32 %v1578, 0.0
    %v1591 = vmax.f32 %v1579, 0.0
    %v1592 = vmax.f32 %v1580, 0.0
    %v1593 = vmax.f32 %v1581, 0.0
    %v1594 = vmax.f32 %v1582, 0.0
    %v1595 = vmax.f32 %v1583, 0.0
    %v1596 = vmax.f32 %v1584, 0.0
    %v1597 = vmax.f32 %v1585, 0.0
    %v1598 = vmax.f32 %v1586, 0.0
    %v1599 = vmax.f32 %v1587, 0.0
    %1600 = vst [vmem:[#allocation4] sm:$0x3] 0.0
    %1601 = vst [vmem:[#allocation4 + $0x2] sm:$0x3] 0.0
    %s1602 = scalar_lea.vmem [#allocation4], 28
    %1603 = vst [vmem:[%s1602] sm:$0x3] 0.0
    %1604 = vst [vmem:[%s1602 + $0x2] sm:$0x3] 0.0
    %s1605 = scalar_lea.vmem [#allocation4], 4
    %1606 = vst [vmem:[%s1605] sm:$0x3] %v1588
    %1607 = vst [vmem:[%s1605 + $0x2] sm:$0x3] %v1589
    %1608 = vst [vmem:[%s1605 + $0x4] sm:$0x3] %v1590
    %1609 = vst [vmem:[%s1605 + $0x6] sm:$0x3] %v1591
    %1610 = vst [vmem:[%s1605 + $0x8] sm:$0x3] %v1592
    %1611 = vst [vmem:[%s1605 + $0xa] sm:$0x3] %v1593
    %1612 = vst [vmem:[%s1605 + $0xc] sm:$0x3] %v1594
    %1613 = vst [vmem:[%s1605 + $0xe] sm:$0x3] %v1595
    %1614 = vst [vmem:[%s1605 + $0x10] sm:$0x3] %v1596
    %1615 = vst [vmem:[%s1605 + $0x12] sm:$0x3] %v1597
    %1616 = vst [vmem:[%s1605 + $0x14] sm:$0x3] %v1598
    %1617 = vst [vmem:[%s1605 + $0x16] sm:$0x3] %v1599
    %v1618 = vld [vmem:[#allocation4] sm:$0x3]
    %v1619 = vld [vmem:[#allocation4 + $0x2] sm:$0x3]
    %v1620 = vld [vmem:[#allocation4 + $0x4] sm:$0x3]
    %v1621 = vld [vmem:[#allocation4 + $0x6] sm:$0x3]
    %v1622 = vld [vmem:[#allocation4 + $0x8] sm:$0x3]
    %v1623 = vld [vmem:[#allocation4 + $0xa] sm:$0x3]
    %v1624 = vld [vmem:[#allocation4 + $0xc] sm:$0x3]
    %v1625 = vld [vmem:[#allocation4 + $0xe] sm:$0x3]
    %v1626 = vld [vmem:[#allocation4 + $0x10] sm:$0x3]
    %v1627 = vld [vmem:[#allocation4 + $0x12] sm:$0x3]
    %v1628 = vld [vmem:[#allocation4 + $0x14] sm:$0x3]
    %v1629 = vld [vmem:[#allocation4 + $0x16] sm:$0x3]
    %v1630 = vld [vmem:[#allocation4 + $0x18] sm:$0x3]
    %v1631 = vld [vmem:[#allocation4 + $0x1a] sm:$0x3]
    %v1646 = vcombine.low %v1618, %v1619
    %v1647 = vcombine.low %v1620, %v1621
    %v1649 = vunpack.c.l.s4 1983009808
    %v1650 = vunpack.c.0.s8 %v1649
    %v1651 = vlaneseq
    %v1652 = vshrl.u32 %v1651, 7
    %v1653 = vsub.s32 %v1650, %v1652
    %v1654 = vrot.slane %v1646, %v1653
    %v1656 = vunpack.c.l.s4 1983009808
    %v1657 = vunpack.c.0.s8 %v1656
    %v1658 = vlaneseq
    %v1659 = vshrl.u32 %v1658, 7
    %v1660 = vsub.s32 %v1657, %v1659
    %v1661 = vrot.slane %v1647, %v1660
    %v1662 = vcombine.low %v1654, %v1661
    %v1663 = vcombine.low %v1622, %v1623
    %v1664 = vcombine.low %v1624, %v1625
    %v1666 = vunpack.c.l.s4 1983009808
    %v1667 = vunpack.c.0.s8 %v1666
    %v1668 = vlaneseq
    %v1669 = vshrl.u32 %v1668, 7
    %v1670 = vsub.s32 %v1667, %v1669
    %v1671 = vrot.slane %v1663, %v1670
    %v1673 = vunpack.c.l.s4 1983009808
    %v1674 = vunpack.c.0.s8 %v1673
    %v1675 = vlaneseq
    %v1676 = vshrl.u32 %v1675, 7
    %v1677 = vsub.s32 %v1674, %v1676
    %v1678 = vrot.slane %v1664, %v1677
    %v1679 = vcombine.low %v1671, %v1678
    %v1680 = vcombine.low %v1626, %v1627
    %v1681 = vcombine.low %v1628, %v1629
    %v1683 = vunpack.c.l.s4 1983009808
    %v1684 = vunpack.c.0.s8 %v1683
    %v1685 = vlaneseq
    %v1686 = vshrl.u32 %v1685, 7
    %v1687 = vsub.s32 %v1684, %v1686
    %v1688 = vrot.slane %v1680, %v1687
    %v1690 = vunpack.c.l.s4 1983009808
    %v1691 = vunpack.c.0.s8 %v1690
    %v1692 = vlaneseq
    %v1693 = vshrl.u32 %v1692, 7
    %v1694 = vsub.s32 %v1691, %v1693
    %v1695 = vrot.slane %v1681, %v1694
    %v1696 = vcombine.low %v1688, %v1695
    %v1697 = vcombine.low %v1630, %v1631
    %v1699 = vunpack.c.l.s4 1983009808
    %v1700 = vunpack.c.0.s8 %v1699
    %v1701 = vlaneseq
    %v1702 = vshrl.u32 %v1701, 7
    %v1703 = vsub.s32 %v1700, %v1702
    %v1704 = vrot.slane %v1697, %v1703
    %v1709 = vpack.c.bf16 %v1679, %v1662
    %v1710 = vpack.c.bf16 %v1704, %v1696
    %v1711 = vld [vmem:[#allocation18] sm:$0xf]
    %v1712 = vld [vmem:[#allocation18 + $0x4] sm:$0xf]
    %v1713 = vld [vmem:[#allocation18 + $0x8] sm:$0xf]
    %v1714 = vld [vmem:[#allocation18 + $0xc] sm:$0xf]
    %v1715 = vld [vmem:[#allocation18 + $0x10] sm:$0xf]
    %v1716 = vld [vmem:[#allocation18 + $0x14] sm:$0xf]
    %v1717 = vld [vmem:[#allocation18 + $0x18] sm:$0xf]
    %v1718 = vld [vmem:[#allocation18 + $0x1c] sm:$0xf]
    %v1719 = vld [vmem:[#allocation18 + $0x20] sm:$0xf]
    %v1720 = vld [vmem:[#allocation18 + $0x24] sm:$0xf]
    %v1721 = vld [vmem:[#allocation18 + $0x28] sm:$0xf]
    %v1722 = vld [vmem:[#allocation18 + $0x2c] sm:$0xf]
    %v1723 = vld [vmem:[#allocation18 + $0x30] sm:$0xf]
    %v1724 = vld [vmem:[#allocation18 + $0x34] sm:$0xf]
    %v1725 = vld [vmem:[#allocation18 + $0x38] sm:$0xf]
    %v1726 = vld [vmem:[#allocation18 + $0x3c] sm:$0xf]
    %s1727 = scalar_lea.vmem [#allocation4], 2
    %v1728 = vld [vmem:[%s1727] sm:$0x3]
    %v1729 = vld [vmem:[%s1727 + $0x2] sm:$0x3]
    %v1730 = vld [vmem:[%s1727 + $0x4] sm:$0x3]
    %v1731 = vld [vmem:[%s1727 + $0x6] sm:$0x3]
    %v1732 = vld [vmem:[%s1727 + $0x8] sm:$0x3]
    %v1733 = vld [vmem:[%s1727 + $0xa] sm:$0x3]
    %v1734 = vld [vmem:[%s1727 + $0xc] sm:$0x3]
    %v1735 = vld [vmem:[%s1727 + $0xe] sm:$0x3]
    %v1736 = vld [vmem:[%s1727 + $0x10] sm:$0x3]
    %v1737 = vld [vmem:[%s1727 + $0x12] sm:$0x3]
    %v1738 = vld [vmem:[%s1727 + $0x14] sm:$0x3]
    %v1739 = vld [vmem:[%s1727 + $0x16] sm:$0x3]
    %v1740 = vld [vmem:[%s1727 + $0x18] sm:$0x3]
    %v1741 = vld [vmem:[%s1727 + $0x1a] sm:$0x3]
    %v1756 = vcombine.low %v1728, %v1729
    %v1757 = vcombine.low %v1730, %v1731
    %v1759 = vunpack.c.l.s4 1983009808
    %v1760 = vunpack.c.0.s8 %v1759
    %v1761 = vlaneseq
    %v1762 = vshrl.u32 %v1761, 7
    %v1763 = vsub.s32 %v1760, %v1762
    %v1764 = vrot.slane %v1756, %v1763
    %v1766 = vunpack.c.l.s4 1983009808
    %v1767 = vunpack.c.0.s8 %v1766
    %v1768 = vlaneseq
    %v1769 = vshrl.u32 %v1768, 7
    %v1770 = vsub.s32 %v1767, %v1769
    %v1771 = vrot.slane %v1757, %v1770
    %v1772 = vcombine.low %v1764, %v1771
    %v1773 = vcombine.low %v1732, %v1733
    %v1774 = vcombine.low %v1734, %v1735
    %v1776 = vunpack.c.l.s4 1983009808
    %v1777 = vunpack.c.0.s8 %v1776
    %v1778 = vlaneseq
    %v1779 = vshrl.u32 %v1778, 7
    %v1780 = vsub.s32 %v1777, %v1779
    %v1781 = vrot.slane %v1773, %v1780
    %v1783 = vunpack.c.l.s4 1983009808
    %v1784 = vunpack.c.0.s8 %v1783
    %v1785 = vlaneseq
    %v1786 = vshrl.u32 %v1785, 7
    %v1787 = vsub.s32 %v1784, %v1786
    %v1788 = vrot.slane %v1774, %v1787
    %v1789 = vcombine.low %v1781, %v1788
    %v1790 = vcombine.low %v1736, %v1737
    %v1791 = vcombine.low %v1738, %v1739
    %v1793 = vunpack.c.l.s4 1983009808
    %v1794 = vunpack.c.0.s8 %v1793
    %v1795 = vlaneseq
    %v1796 = vshrl.u32 %v1795, 7
    %v1797 = vsub.s32 %v1794, %v1796
    %v1798 = vrot.slane %v1790, %v1797
    %v1800 = vunpack.c.l.s4 1983009808
    %v1801 = vunpack.c.0.s8 %v1800
    %v1802 = vlaneseq
    %v1803 = vshrl.u32 %v1802, 7
    %v1804 = vsub.s32 %v1801, %v1803
    %v1805 = vrot.slane %v1791, %v1804
    %v1806 = vcombine.low %v1798, %v1805
    %v1807 = vcombine.low %v1740, %v1741
    %v1809 = vunpack.c.l.s4 1983009808
    %v1810 = vunpack.c.0.s8 %v1809
    %v1811 = vlaneseq
    %v1812 = vshrl.u32 %v1811, 7
    %v1813 = vsub.s32 %v1810, %v1812
    %v1814 = vrot.slane %v1807, %v1813
    %v1819 = vpack.c.bf16 %v1789, %v1772
    %v1820 = vpack.c.bf16 %v1814, %v1806
    %v1821 = vld [vmem:[#allocation18 + $0x40] sm:$0xf]
    %v1822 = vld [vmem:[#allocation18 + $0x44] sm:$0xf]
    %v1823 = vld [vmem:[#allocation18 + $0x48] sm:$0xf]
    %v1824 = vld [vmem:[#allocation18 + $0x4c] sm:$0xf]
    %v1825 = vld [vmem:[#allocation18 + $0x50] sm:$0xf]
    %v1826 = vld [vmem:[#allocation18 + $0x54] sm:$0xf]
    %v1827 = vld [vmem:[#allocation18 + $0x58] sm:$0xf]
    %v1828 = vld [vmem:[#allocation18 + $0x5c] sm:$0xf]
    %v1829 = vld [vmem:[#allocation18 + $0x60] sm:$0xf]
    %v1830 = vld [vmem:[#allocation18 + $0x64] sm:$0xf]
    %v1831 = vld [vmem:[#allocation18 + $0x68] sm:$0xf]
    %v1832 = vld [vmem:[#allocation18 + $0x6c] sm:$0xf]
    %v1833 = vld [vmem:[#allocation18 + $0x70] sm:$0xf]
    %v1834 = vld [vmem:[#allocation18 + $0x74] sm:$0xf]
    %v1835 = vld [vmem:[#allocation18 + $0x78] sm:$0xf]
    %v1836 = vld [vmem:[#allocation18 + $0x7c] sm:$0xf]
    %v1853 = vunpack.c.l.b16 %v1821
    %v1854 = vunpack.c.l.b16 %v1822
    %v1855 = vunpack.c.l.b16 %v1823
    %v1856 = vunpack.c.l.b16 %v1824
    %v1857 = vunpack.c.l.b16 %v1825
    %v1858 = vunpack.c.l.b16 %v1826
    %v1859 = vunpack.c.l.b16 %v1827
    %v1860 = vunpack.c.l.b16 %v1828
    %v1861 = vunpack.c.l.b16 %v1829
    %v1862 = vunpack.c.l.b16 %v1830
    %v1863 = vunpack.c.l.b16 %v1831
    %v1864 = vunpack.c.l.b16 %v1832
    %v1865 = vunpack.c.l.b16 %v1833
    %v1866 = vunpack.c.l.b16 %v1834
    %v1867 = vunpack.c.l.b16 %v1835
    %v1868 = vunpack.c.l.b16 %v1836
    %v1869 = vpack.c.b16 %v1854, %v1853
    %v1870 = vpack.c.b16 %v1856, %v1855
    %v1871 = vpack.c.b16 %v1858, %v1857
    %v1872 = vpack.c.b16 %v1860, %v1859
    %v1873 = vpack.c.b16 %v1862, %v1861
    %v1874 = vpack.c.b16 %v1864, %v1863
    %v1875 = vpack.c.b16 %v1866, %v1865
    %v1876 = vpack.c.b16 %v1868, %v1867
    %1885 = vmatprep.subr.bf16.mxu0 0
    %1886 = vmatpush1.bf16.msra.mxu0 %v1869
    %1887 = vmatprep.subr.bf16.mxu0 0
    %1888 = vmatpush1.bf16.msra.mxu0 %v1870
    %1889 = vmatprep.subr.bf16.mxu0 0
    %1890 = vmatpush1.bf16.msra.mxu0 %v1871
    %1891 = vmatprep.subr.bf16.mxu0 0
    %1892 = vmatpush1.bf16.msra.mxu0 %v1872
    %1893 = vmatprep.subr.bf16.mxu0 0
    %1894 = vmatpush1.bf16.msra.mxu0 %v1873
    %1895 = vmatprep.subr.bf16.mxu0 0
    %1896 = vmatpush1.bf16.msra.mxu0 %v1874
    %1897 = vmatprep.subr.bf16.mxu0 0
    %1898 = vmatpush1.bf16.msra.mxu0 %v1875
    %1899 = vmatprep.subr.bf16.mxu0 0
    %1900 = vmatpush1.bf16.msra.mxu0 %v1876
    %1901 = vmatprep.subr.bf16.mxu0 0
    %1902 = vmatpush1.bf16.msra.mxu0 0
    %1903 = vmatprep.subr.bf16.mxu0 0
    %1904 = vmatpush1.bf16.msra.mxu0 0
    %1905 = vmatprep.subr.bf16.mxu0 0
    %1906 = vmatpush1.bf16.msra.mxu0 0
    %1907 = vmatprep.subr.bf16.mxu0 0
    %1908 = vmatpush1.bf16.msra.mxu0 0
    %1909 = vmatprep.subr.bf16.mxu0 0
    %1910 = vmatpush1.bf16.msra.mxu0 0
    %1911 = vmatprep.subr.bf16.mxu0 0
    %1912 = vmatpush1.bf16.msra.mxu0 0
    %1913 = vmatprep.subr.bf16.mxu0 0
    %1914 = vmatpush1.bf16.msra.mxu0 0
    %1915 = vmatprep.subr.bf16.mxu0 0
    %1916 = vmatpush1.bf16.msra.mxu0 0
    %1917 = vmatprep.mubr.bf16.mxu0 0
    %1918 = vmatmul.mubr.bf16.gmra.mrb[0].mxu0 %v1819
    %v1919 = vpop.f32.mrb[0].mxu0
    %v1920 = vadd.f32 0.0, %v1919
    %v1921 = vpop.f32.mrb[0].mxu0
    %v1922 = vpop.f32.mrb[0].mxu0
    %v1923 = vadd.f32 0.0, %v1922
    %v1924 = vpop.f32.mrb[0].mxu0
    %1925 = vmatprep.mubr.bf16.mxu0 0
    %1926 = vmatmul.mubr.bf16.gmra.mrb[0].mxu0 %v1820
    %v1927 = vpop.f32.mrb[0].mxu0
    %v1928 = vadd.f32 0.0, %v1927
    %v1929 = vpop.f32.mrb[0].mxu0
    %v1930 = vpop.f32.mrb[0].mxu0
    %v1931 = vadd.f32 0.0, %v1930
    %v1932 = vpop.f32.mrb[0].mxu0
    %1933 = vdwg.mxu0
    %v1950 = vunpack.c.l.b16 %v1711
    %v1951 = vunpack.c.l.b16 %v1712
    %v1952 = vunpack.c.l.b16 %v1713
    %v1953 = vunpack.c.l.b16 %v1714
    %v1954 = vunpack.c.l.b16 %v1715
    %v1955 = vunpack.c.l.b16 %v1716
    %v1956 = vunpack.c.l.b16 %v1717
    %v1957 = vunpack.c.l.b16 %v1718
    %v1958 = vunpack.c.l.b16 %v1719
    %v1959 = vunpack.c.l.b16 %v1720
    %v1960 = vunpack.c.l.b16 %v1721
    %v1961 = vunpack.c.l.b16 %v1722
    %v1962 = vunpack.c.l.b16 %v1723
    %v1963 = vunpack.c.l.b16 %v1724
    %v1964 = vunpack.c.l.b16 %v1725
    %v1965 = vunpack.c.l.b16 %v1726
    %v1966 = vpack.c.b16 %v1951, %v1950
    %v1967 = vpack.c.b16 %v1953, %v1952
    %v1968 = vpack.c.b16 %v1955, %v1954
    %v1969 = vpack.c.b16 %v1957, %v1956
    %v1970 = vpack.c.b16 %v1959, %v1958
    %v1971 = vpack.c.b16 %v1961, %v1960
    %v1972 = vpack.c.b16 %v1963, %v1962
    %v1973 = vpack.c.b16 %v1965, %v1964
    %1982 = vmatprep.subr.bf16.mxu0 0
    %1983 = vmatpush1.bf16.msra.mxu0 %v1966
    %1984 = vmatprep.subr.bf16.mxu0 0
    %1985 = vmatpush1.bf16.msra.mxu0 %v1967
    %1986 = vmatprep.subr.bf16.mxu0 0
    %1987 = vmatpush1.bf16.msra.mxu0 %v1968
    %1988 = vmatprep.subr.bf16.mxu0 0
    %1989 = vmatpush1.bf16.msra.mxu0 %v1969
    %1990 = vmatprep.subr.bf16.mxu0 0
    %1991 = vmatpush1.bf16.msra.mxu0 %v1970
    %1992 = vmatprep.subr.bf16.mxu0 0
    %1993 = vmatpush1.bf16.msra.mxu0 %v1971
    %1994 = vmatprep.subr.bf16.mxu0 0
    %1995 = vmatpush1.bf16.msra.mxu0 %v1972
    %1996 = vmatprep.subr.bf16.mxu0 0
    %1997 = vmatpush1.bf16.msra.mxu0 %v1973
    %1998 = vmatprep.subr.bf16.mxu0 0
    %1999 = vmatpush1.bf16.msra.mxu0 0
    %2000 = vmatprep.subr.bf16.mxu0 0
    %2001 = vmatpush1.bf16.msra.mxu0 0
    %2002 = vmatprep.subr.bf16.mxu0 0
    %2003 = vmatpush1.bf16.msra.mxu0 0
    %2004 = vmatprep.subr.bf16.mxu0 0
    %2005 = vmatpush1.bf16.msra.mxu0 0
    %2006 = vmatprep.subr.bf16.mxu0 0
    %2007 = vmatpush1.bf16.msra.mxu0 0
    %2008 = vmatprep.subr.bf16.mxu0 0
    %2009 = vmatpush1.bf16.msra.mxu0 0
    %2010 = vmatprep.subr.bf16.mxu0 0
    %2011 = vmatpush1.bf16.msra.mxu0 0
    %2012 = vmatprep.subr.bf16.mxu0 0
    %2013 = vmatpush1.bf16.msra.mxu0 0
    %2014 = vmatprep.mubr.bf16.mxu0 0
    %2015 = vmatmul.mubr.bf16.gmra.mrb[0].mxu0 %v1709
    %v2016 = vpop.f32.mrb[0].mxu0
    %v2017 = vadd.f32 %v1920, %v2016
    %v2018 = vpop.f32.mrb[0].mxu0
    %v2019 = vpop.f32.mrb[0].mxu0
    %v2020 = vadd.f32 %v1923, %v2019
    %v2021 = vpop.f32.mrb[0].mxu0
    %2022 = vmatprep.mubr.bf16.mxu0 0
    %2023 = vmatmul.mubr.bf16.gmra.mrb[0].mxu0 %v1710
    %v2024 = vpop.f32.mrb[0].mxu0
    %v2025 = vadd.f32 %v1928, %v2024
    %v2026 = vpop.f32.mrb[0].mxu0
    %v2027 = vpop.f32.mrb[0].mxu0
    %v2028 = vadd.f32 %v1931, %v2027
    %v2029 = vpop.f32.mrb[0].mxu0
    %2030 = vdwg.mxu0
    %v2031 = vld [vmem:[%s1605] sm:$0x3]
    %v2032 = vld [vmem:[%s1605 + $0x2] sm:$0x3]
    %v2033 = vld [vmem:[%s1605 + $0x4] sm:$0x3]
    %v2034 = vld [vmem:[%s1605 + $0x6] sm:$0x3]
    %v2035 = vld [vmem:[%s1605 + $0x8] sm:$0x3]
    %v2036 = vld [vmem:[%s1605 + $0xa] sm:$0x3]
    %v2037 = vld [vmem:[%s1605 + $0xc] sm:$0x3]
    %v2038 = vld [vmem:[%s1605 + $0xe] sm:$0x3]
    %v2039 = vld [vmem:[%s1605 + $0x10] sm:$0x3]
    %v2040 = vld [vmem:[%s1605 + $0x12] sm:$0x3]
    %v2041 = vld [vmem:[%s1605 + $0x14] sm:$0x3]
    %v2042 = vld [vmem:[%s1605 + $0x16] sm:$0x3]
    %v2043 = vld [vmem:[%s1605 + $0x18] sm:$0x3]
    %v2044 = vld [vmem:[%s1605 + $0x1a] sm:$0x3]
    %v2059 = vcombine.low %v2031, %v2032
    %v2060 = vcombine.low %v2033, %v2034
    %v2062 = vunpack.c.l.s4 1983009808
    %v2063 = vunpack.c.0.s8 %v2062
    %v2064 = vlaneseq
    %v2065 = vshrl.u32 %v2064, 7
    %v2066 = vsub.s32 %v2063, %v2065
    %v2067 = vrot.slane %v2059, %v2066
    %v2069 = vunpack.c.l.s4 1983009808
    %v2070 = vunpack.c.0.s8 %v2069
    %v2071 = vlaneseq
    %v2072 = vshrl.u32 %v2071, 7
    %v2073 = vsub.s32 %v2070, %v2072
    %v2074 = vrot.slane %v2060, %v2073
    %v2075 = vcombine.low %v2067, %v2074
    %v2076 = vcombine.low %v2035, %v2036
    %v2077 = vcombine.low %v2037, %v2038
    %v2079 = vunpack.c.l.s4 1983009808
    %v2080 = vunpack.c.0.s8 %v2079
    %v2081 = vlaneseq
    %v2082 = vshrl.u32 %v2081, 7
    %v2083 = vsub.s32 %v2080, %v2082
    %v2084 = vrot.slane %v2076, %v2083
    %v2086 = vunpack.c.l.s4 1983009808
    %v2087 = vunpack.c.0.s8 %v2086
    %v2088 = vlaneseq
    %v2089 = vshrl.u32 %v2088, 7
    %v2090 = vsub.s32 %v2087, %v2089
    %v2091 = vrot.slane %v2077, %v2090
    %v2092 = vcombine.low %v2084, %v2091
    %v2093 = vcombine.low %v2039, %v2040
    %v2094 = vcombine.low %v2041, %v2042
    %v2096 = vunpack.c.l.s4 1983009808
    %v2097 = vunpack.c.0.s8 %v2096
    %v2098 = vlaneseq
    %v2099 = vshrl.u32 %v2098, 7
    %v2100 = vsub.s32 %v2097, %v2099
    %v2101 = vrot.slane %v2093, %v2100
    %v2103 = vunpack.c.l.s4 1983009808
    %v2104 = vunpack.c.0.s8 %v2103
    %v2105 = vlaneseq
    %v2106 = vshrl.u32 %v2105, 7
    %v2107 = vsub.s32 %v2104, %v2106
    %v2108 = vrot.slane %v2094, %v2107
    %v2109 = vcombine.low %v2101, %v2108
    %v2110 = vcombine.low %v2043, %v2044
    %v2112 = vunpack.c.l.s4 1983009808
    %v2113 = vunpack.c.0.s8 %v2112
    %v2114 = vlaneseq
    %v2115 = vshrl.u32 %v2114, 7
    %v2116 = vsub.s32 %v2113, %v2115
    %v2117 = vrot.slane %v2110, %v2116
    %v2122 = vpack.c.bf16 %v2092, %v2075
    %v2123 = vpack.c.bf16 %v2117, %v2109
    %v2124 = vld [vmem:[#allocation18 + $0x80] sm:$0xf]
    %v2125 = vld [vmem:[#allocation18 + $0x84] sm:$0xf]
    %v2126 = vld [vmem:[#allocation18 + $0x88] sm:$0xf]
    %v2127 = vld [vmem:[#allocation18 + $0x8c] sm:$0xf]
    %v2128 = vld [vmem:[#allocation18 + $0x90] sm:$0xf]
    %v2129 = vld [vmem:[#allocation18 + $0x94] sm:$0xf]
    %v2130 = vld [vmem:[#allocation18 + $0x98] sm:$0xf]
    %v2131 = vld [vmem:[#allocation18 + $0x9c] sm:$0xf]
    %v2132 = vld [vmem:[#allocation18 + $0xa0] sm:$0xf]
    %v2133 = vld [vmem:[#allocation18 + $0xa4] sm:$0xf]
    %v2134 = vld [vmem:[#allocation18 + $0xa8] sm:$0xf]
    %v2135 = vld [vmem:[#allocation18 + $0xac] sm:$0xf]
    %v2136 = vld [vmem:[#allocation18 + $0xb0] sm:$0xf]
    %v2137 = vld [vmem:[#allocation18 + $0xb4] sm:$0xf]
    %v2138 = vld [vmem:[#allocation18 + $0xb8] sm:$0xf]
    %v2139 = vld [vmem:[#allocation18 + $0xbc] sm:$0xf]
    %v2156 = vunpack.c.l.b16 %v2124
    %v2157 = vunpack.c.l.b16 %v2125
    %v2158 = vunpack.c.l.b16 %v2126
    %v2159 = vunpack.c.l.b16 %v2127
    %v2160 = vunpack.c.l.b16 %v2128
    %v2161 = vunpack.c.l.b16 %v2129
    %v2162 = vunpack.c.l.b16 %v2130
    %v2163 = vunpack.c.l.b16 %v2131
    %v2164 = vunpack.c.l.b16 %v2132
    %v2165 = vunpack.c.l.b16 %v2133
    %v2166 = vunpack.c.l.b16 %v2134
    %v2167 = vunpack.c.l.b16 %v2135
    %v2168 = vunpack.c.l.b16 %v2136
    %v2169 = vunpack.c.l.b16 %v2137
    %v2170 = vunpack.c.l.b16 %v2138
    %v2171 = vunpack.c.l.b16 %v2139
    %v2172 = vpack.c.b16 %v2157, %v2156
    %v2173 = vpack.c.b16 %v2159, %v2158
    %v2174 = vpack.c.b16 %v2161, %v2160
    %v2175 = vpack.c.b16 %v2163, %v2162
    %v2176 = vpack.c.b16 %v2165, %v2164
    %v2177 = vpack.c.b16 %v2167, %v2166
    %v2178 = vpack.c.b16 %v2169, %v2168
    %v2179 = vpack.c.b16 %v2171, %v2170
    %2188 = vmatprep.subr.bf16.mxu0 0
    %2189 = vmatpush1.bf16.msra.mxu0 %v2172
    %2190 = vmatprep.subr.bf16.mxu0 0
    %2191 = vmatpush1.bf16.msra.mxu0 %v2173
    %2192 = vmatprep.subr.bf16.mxu0 0
    %2193 = vmatpush1.bf16.msra.mxu0 %v2174
    %2194 = vmatprep.subr.bf16.mxu0 0
    %2195 = vmatpush1.bf16.msra.mxu0 %v2175
    %2196 = vmatprep.subr.bf16.mxu0 0
    %2197 = vmatpush1.bf16.msra.mxu0 %v2176
    %2198 = vmatprep.subr.bf16.mxu0 0
    %2199 = vmatpush1.bf16.msra.mxu0 %v2177
    %2200 = vmatprep.subr.bf16.mxu0 0
    %2201 = vmatpush1.bf16.msra.mxu0 %v2178
    %2202 = vmatprep.subr.bf16.mxu0 0
    %2203 = vmatpush1.bf16.msra.mxu0 %v2179
    %2204 = vmatprep.subr.bf16.mxu0 0
    %2205 = vmatpush1.bf16.msra.mxu0 0
    %2206 = vmatprep.subr.bf16.mxu0 0
    %2207 = vmatpush1.bf16.msra.mxu0 0
    %2208 = vmatprep.subr.bf16.mxu0 0
    %2209 = vmatpush1.bf16.msra.mxu0 0
    %2210 = vmatprep.subr.bf16.mxu0 0
    %2211 = vmatpush1.bf16.msra.mxu0 0
    %2212 = vmatprep.subr.bf16.mxu0 0
    %2213 = vmatpush1.bf16.msra.mxu0 0
    %2214 = vmatprep.subr.bf16.mxu0 0
    %2215 = vmatpush1.bf16.msra.mxu0 0
    %2216 = vmatprep.subr.bf16.mxu0 0
    %2217 = vmatpush1.bf16.msra.mxu0 0
    %2218 = vmatprep.subr.bf16.mxu0 0
    %2219 = vmatpush1.bf16.msra.mxu0 0
    %2220 = vmatprep.mubr.bf16.mxu0 0
    %2221 = vmatmul.mubr.bf16.gmra.mrb[0].mxu0 %v2122
    %v2222 = vpop.f32.mrb[0].mxu0
    %v2223 = vadd.f32 0.0, %v2222
    %v2224 = vpop.f32.mrb[0].mxu0
    %v2225 = vpop.f32.mrb[0].mxu0
    %v2226 = vadd.f32 0.0, %v2225
    %v2227 = vpop.f32.mrb[0].mxu0
    %2228 = vmatprep.mubr.bf16.mxu0 0
    %2229 = vmatmul.mubr.bf16.gmra.mrb[0].mxu0 %v2123
    %v2230 = vpop.f32.mrb[0].mxu0
    %v2231 = vadd.f32 0.0, %v2230
    %v2232 = vpop.f32.mrb[0].mxu0
    %v2233 = vpop.f32.mrb[0].mxu0
    %v2234 = vadd.f32 0.0, %v2233
    %v2235 = vpop.f32.mrb[0].mxu0
    %2236 = vdwg.mxu0
    %v2237 = vadd.f32 %v2017, %v2223
    %v2238 = vadd.f32 %v2020, %v2226
    %v2239 = vadd.f32 %v2025, %v2231
    %v2240 = vadd.f32 %v2028, %v2234
    %v2245 = vcombine.high %v2237, %v2237
    %v2247 = vunpack.c.l.s4 1983009808
    %v2248 = vunpack.c.0.s8 %v2247
    %v2249 = vlaneseq
    %v2250 = vshrl.u32 %v2249, 7
    %v2251 = vsub.s32 %v2248, %v2250
    %v2252 = vrot.slane %v2237, %v2251
    %v2254 = vunpack.c.l.s4 1983009808
    %v2255 = vunpack.c.0.s8 %v2254
    %v2256 = vlaneseq
    %v2257 = vshrl.u32 %v2256, 7
    %v2258 = vsub.s32 %v2255, %v2257
    %v2259 = vrot.slane %v2245, %v2258
    %v2260 = vcombine.high %v2252, %v2252
    %v2261 = vcombine.high %v2259, %v2259
    %v2262 = vcombine.high %v2238, %v2238
    %v2264 = vunpack.c.l.s4 1983009808
    %v2265 = vunpack.c.0.s8 %v2264
    %v2266 = vlaneseq
    %v2267 = vshrl.u32 %v2266, 7
    %v2268 = vsub.s32 %v2265, %v2267
    %v2269 = vrot.slane %v2238, %v2268
    %v2271 = vunpack.c.l.s4 1983009808
    %v2272 = vunpack.c.0.s8 %v2271
    %v2273 = vlaneseq
    %v2274 = vshrl.u32 %v2273, 7
    %v2275 = vsub.s32 %v2272, %v2274
    %v2276 = vrot.slane %v2262, %v2275
    %v2277 = vcombine.high %v2269, %v2269
    %v2278 = vcombine.high %v2276, %v2276
    %v2279 = vcombine.high %v2239, %v2239
    %v2281 = vunpack.c.l.s4 1983009808
    %v2282 = vunpack.c.0.s8 %v2281
    %v2283 = vlaneseq
    %v2284 = vshrl.u32 %v2283, 7
    %v2285 = vsub.s32 %v2282, %v2284
    %v2286 = vrot.slane %v2239, %v2285
    %v2288 = vunpack.c.l.s4 1983009808
    %v2289 = vunpack.c.0.s8 %v2288
    %v2290 = vlaneseq
    %v2291 = vshrl.u32 %v2290, 7
    %v2292 = vsub.s32 %v2289, %v2291
    %v2293 = vrot.slane %v2279, %v2292
    %v2294 = vcombine.high %v2286, %v2286
    %v2295 = vcombine.high %v2293, %v2293
    %v2297 = vunpack.c.l.s4 1983009808
    %v2298 = vunpack.c.0.s8 %v2297
    %v2299 = vlaneseq
    %v2300 = vshrl.u32 %v2299, 7
    %v2301 = vsub.s32 %v2298, %v2300
    %v2302 = vrot.slane %v2240, %v2301
    %v2303 = vcombine.high %v2302, %v2302
    %v2318 = vld [vmem:[%s10] sm:$0x1]
    %v2320 = vlaneseq
    %v2321 = vshrl.u32 %v2320, 7
    %v2322 = vsub.s32 0, %v2321
    %v2323 = vrot.slane %v2318, %v2322
    %v2325 = vmul.f32 %v2252, %v2323
    %v2326 = vmul.f32 %v2260, %v2323
    %v2327 = vmul.f32 %v2259, %v2323
    %v2328 = vmul.f32 %v2261, %v2323
    %v2329 = vmul.f32 %v2269, %v2323
    %v2330 = vmul.f32 %v2277, %v2323
    %v2331 = vmul.f32 %v2276, %v2323
    %v2332 = vmul.f32 %v2278, %v2323
    %v2333 = vmul.f32 %v2286, %v2323
    %v2334 = vmul.f32 %v2294, %v2323
    %v2335 = vmul.f32 %v2293, %v2323
    %v2336 = vmul.f32 %v2295, %v2323
    %v2337 = vmul.f32 %v2302, %v2323
    %v2338 = vmul.f32 %v2303, %v2323
    %v2339 = vld [vmem:[%s11] sm:$0x1]
    %v2341 = vlaneseq
    %v2342 = vshrl.u32 %v2341, 7
    %v2343 = vsub.s32 0, %v2342
    %v2344 = vrot.slane %v2339, %v2343
    %v2346 = vadd.f32 %v2325, %v2344
    %v2347 = vadd.f32 %v2326, %v2344
    %v2348 = vadd.f32 %v2327, %v2344
    %v2349 = vadd.f32 %v2328, %v2344
    %v2350 = vadd.f32 %v2329, %v2344
    %v2351 = vadd.f32 %v2330, %v2344
    %v2352 = vadd.f32 %v2331, %v2344
    %v2353 = vadd.f32 %v2332, %v2344
    %v2354 = vadd.f32 %v2333, %v2344
    %v2355 = vadd.f32 %v2334, %v2344
    %v2356 = vadd.f32 %v2335, %v2344
    %v2357 = vadd.f32 %v2336, %v2344
    %v2358 = vadd.f32 %v2337, %v2344
    %v2359 = vadd.f32 %v2338, %v2344
    %v2360 = vmax.f32 %v2346, 0.0
    %v2361 = vmax.f32 %v2347, 0.0
    %v2362 = vmax.f32 %v2348, 0.0
    %v2363 = vmax.f32 %v2349, 0.0
    %v2364 = vmax.f32 %v2350, 0.0
    %v2365 = vmax.f32 %v2351, 0.0
    %v2366 = vmax.f32 %v2352, 0.0
    %v2367 = vmax.f32 %v2353, 0.0
    %v2368 = vmax.f32 %v2354, 0.0
    %v2369 = vmax.f32 %v2355, 0.0
    %v2370 = vmax.f32 %v2356, 0.0
    %v2371 = vmax.f32 %v2357, 0.0
    %v2372 = vmax.f32 %v2358, 0.0
    %v2373 = vmax.f32 %v2359, 0.0
    %s2374 = sld [smem:[#allocation13]]
    %v2375 = vld [vmem:[%s1] sm:$0x3]
    %2376 = vset.pattern.permute.xlu0 0
    %2377 = vperm.xlu0 %2376, %v2375
    %v2378 = vpop.permute.xlu0 %2377
    %v2379 = vsub.s32 %v2378, 1
    %v2394 = vcombine.low %v2360, %v2361
    %v2395 = vcombine.low %v2362, %v2363
    %v2397 = vunpack.c.l.s4 1983009808
    %v2398 = vunpack.c.0.s8 %v2397
    %v2399 = vlaneseq
    %v2400 = vshrl.u32 %v2399, 7
    %v2401 = vsub.s32 %v2398, %v2400
    %v2402 = vrot.slane %v2394, %v2401
    %v2404 = vunpack.c.l.s4 1983009808
    %v2405 = vunpack.c.0.s8 %v2404
    %v2406 = vlaneseq
    %v2407 = vshrl.u32 %v2406, 7
    %v2408 = vsub.s32 %v2405, %v2407
    %v2409 = vrot.slane %v2395, %v2408
    %v2410 = vcombine.low %v2402, %v2409
    %v2411 = vcombine.low %v2364, %v2365
    %v2412 = vcombine.low %v2366, %v2367
    %v2414 = vunpack.c.l.s4 1983009808
    %v2415 = vunpack.c.0.s8 %v2414
    %v2416 = vlaneseq
    %v2417 = vshrl.u32 %v2416, 7
    %v2418 = vsub.s32 %v2415, %v2417
    %v2419 = vrot.slane %v2411, %v2418
    %v2421 = vunpack.c.l.s4 1983009808
    %v2422 = vunpack.c.0.s8 %v2421
    %v2423 = vlaneseq
    %v2424 = vshrl.u32 %v2423, 7
    %v2425 = vsub.s32 %v2422, %v2424
    %v2426 = vrot.slane %v2412, %v2425
    %v2427 = vcombine.low %v2419, %v2426
    %v2428 = vcombine.low %v2368, %v2369
    %v2429 = vcombine.low %v2370, %v2371
    %v2431 = vunpack.c.l.s4 1983009808
    %v2432 = vunpack.c.0.s8 %v2431
    %v2433 = vlaneseq
    %v2434 = vshrl.u32 %v2433, 7
    %v2435 = vsub.s32 %v2432, %v2434
    %v2436 = vrot.slane %v2428, %v2435
    %v2438 = vunpack.c.l.s4 1983009808
    %v2439 = vunpack.c.0.s8 %v2438
    %v2440 = vlaneseq
    %v2441 = vshrl.u32 %v2440, 7
    %v2442 = vsub.s32 %v2439, %v2441
    %v2443 = vrot.slane %v2429, %v2442
    %v2444 = vcombine.low %v2436, %v2443
    %v2445 = vcombine.low %v2372, %v2373
    %v2447 = vunpack.c.l.s4 1983009808
    %v2448 = vunpack.c.0.s8 %v2447
    %v2449 = vlaneseq
    %v2450 = vshrl.u32 %v2449, 7
    %v2451 = vsub.s32 %v2448, %v2450
    %v2452 = vrot.slane %v2445, %v2451
    %v2457 = vpack.c.bf16 %v2427, %v2410
    %v2458 = vpack.c.bf16 %v2452, %v2444
    %v2459 = vld [vmem:[#allocation19] sm:$0xff]
    %v2460 = vld [vmem:[#allocation19 + $0x8] sm:$0xff]
    %v2461 = vld [vmem:[#allocation19 + $0x10] sm:$0xff]
    %v2462 = vld [vmem:[#allocation19 + $0x18] sm:$0xff]
    %v2463 = vld [vmem:[#allocation19 + $0x20] sm:$0xff]
    %v2464 = vld [vmem:[#allocation19 + $0x28] sm:$0xff]
    %v2465 = vld [vmem:[#allocation19 + $0x30] sm:$0xff]
    %v2466 = vld [vmem:[#allocation19 + $0x38] sm:$0xff]
    %v2467 = vld [vmem:[#allocation19 + $0x40] sm:$0xff]
    %v2468 = vld [vmem:[#allocation19 + $0x48] sm:$0xff]
    %v2469 = vld [vmem:[#allocation19 + $0x50] sm:$0xff]
    %v2470 = vld [vmem:[#allocation19 + $0x58] sm:$0xff]
    %v2471 = vld [vmem:[#allocation19 + $0x60] sm:$0xff]
    %v2472 = vld [vmem:[#allocation19 + $0x68] sm:$0xff]
    %v2473 = vld [vmem:[#allocation19 + $0x70] sm:$0xff]
    %v2474 = vld [vmem:[#allocation19 + $0x78] sm:$0xff]
    %v2475 = vld [vmem:[#allocation19 + $0x80] sm:$0xff]
    %v2476 = vld [vmem:[#allocation19 + $0x88] sm:$0xff]
    %v2477 = vld [vmem:[#allocation19 + $0x90] sm:$0xff]
    %v2478 = vld [vmem:[#allocation19 + $0x98] sm:$0xff]
    %v2479 = vld [vmem:[#allocation19 + $0xa0] sm:$0xff]
    %v2480 = vld [vmem:[#allocation19 + $0xa8] sm:$0xff]
    %v2481 = vld [vmem:[#allocation19 + $0xb0] sm:$0xff]
    %v2482 = vld [vmem:[#allocation19 + $0xb8] sm:$0xff]
    %v2483 = vld [vmem:[#allocation19 + $0xc0] sm:$0xff]
    %v2484 = vld [vmem:[#allocation19 + $0xc8] sm:$0xff]
    %v2485 = vld [vmem:[#allocation19 + $0xd0] sm:$0xff]
    %v2486 = vld [vmem:[#allocation19 + $0xd8] sm:$0xff]
    %v2487 = vld [vmem:[#allocation19 + $0xe0] sm:$0xff]
    %v2488 = vld [vmem:[#allocation19 + $0xe8] sm:$0xff]
    %v2489 = vld [vmem:[#allocation19 + $0xf0] sm:$0xff]
    %v2490 = vld [vmem:[#allocation19 + $0xf8] sm:$0xff]
    %v2491 = vld [vmem:[#allocation19 + $0x100] sm:$0xff]
    %v2492 = vld [vmem:[#allocation19 + $0x108] sm:$0xff]
    %v2493 = vld [vmem:[#allocation19 + $0x110] sm:$0xff]
    %v2494 = vld [vmem:[#allocation19 + $0x118] sm:$0xff]
    %v2495 = vld [vmem:[#allocation19 + $0x120] sm:$0xff]
    %v2496 = vld [vmem:[#allocation19 + $0x128] sm:$0xff]
    %v2497 = vld [vmem:[#allocation19 + $0x130] sm:$0xff]
    %v2498 = vld [vmem:[#allocation19 + $0x138] sm:$0xff]
    %v2499 = vld [vmem:[#allocation19 + $0x140] sm:$0xff]
    %v2500 = vld [vmem:[#allocation19 + $0x148] sm:$0xff]
    %v2501 = vld [vmem:[#allocation19 + $0x150] sm:$0xff]
    %v2502 = vld [vmem:[#allocation19 + $0x158] sm:$0xff]
    %v2503 = vld [vmem:[#allocation19 + $0x160] sm:$0xff]
    %v2504 = vld [vmem:[#allocation19 + $0x168] sm:$0xff]
    %v2505 = vld [vmem:[#allocation19 + $0x170] sm:$0xff]
    %v2506 = vld [vmem:[#allocation19 + $0x178] sm:$0xff]
    %v2507 = vld [vmem:[#allocation19 + $0x180] sm:$0xff]
    %v2508 = vld [vmem:[#allocation19 + $0x188] sm:$0xff]
    %v2509 = vld [vmem:[#allocation19 + $0x190] sm:$0xff]
    %v2510 = vld [vmem:[#allocation19 + $0x198] sm:$0xff]
    %v2511 = vld [vmem:[#allocation19 + $0x1a0] sm:$0xff]
    %v2512 = vld [vmem:[#allocation19 + $0x1a8] sm:$0xff]
    %v2513 = vld [vmem:[#allocation19 + $0x1b0] sm:$0xff]
    %v2514 = vld [vmem:[#allocation19 + $0x1b8] sm:$0xff]
    %v2515 = vld [vmem:[#allocation19 + $0x1c0] sm:$0xff]
    %v2516 = vld [vmem:[#allocation19 + $0x1c8] sm:$0xff]
    %v2517 = vld [vmem:[#allocation19 + $0x1d0] sm:$0xff]
    %v2518 = vld [vmem:[#allocation19 + $0x1d8] sm:$0xff]
    %v2519 = vld [vmem:[#allocation19 + $0x1e0] sm:$0xff]
    %v2520 = vld [vmem:[#allocation19 + $0x1e8] sm:$0xff]
    %v2521 = vld [vmem:[#allocation19 + $0x1f0] sm:$0xff]
    %v2522 = vld [vmem:[#allocation19 + $0x1f8] sm:$0xff]
    %v2523 = vld [vmem:[%s13] sm:$0xff]
    %v2525 = vlaneseq
    %v2526 = vshrl.u32 %v2525, 7
    %v2527 = vsub.s32 0, %v2526
    %v2528 = vrot.slane %v2523, %v2527
    %v2529 = vlaneseq
    %v2530 = vshrl.u32 %v2529, 7
    %v2531 = vsub.s32 1, %v2530
    %v2532 = vrot.slane %v2523, %v2531
    %v2533 = vlaneseq
    %v2534 = vshrl.u32 %v2533, 7
    %v2535 = vsub.s32 2, %v2534
    %v2536 = vrot.slane %v2523, %v2535
    %v2537 = vlaneseq
    %v2538 = vshrl.u32 %v2537, 7
    %v2539 = vsub.s32 3, %v2538
    %v2540 = vrot.slane %v2523, %v2539
    %v2541 = vlaneseq
    %v2542 = vshrl.u32 %v2541, 7
    %v2543 = vsub.s32 4, %v2542
    %v2544 = vrot.slane %v2523, %v2543
    %v2545 = vlaneseq
    %v2546 = vshrl.u32 %v2545, 7
    %v2547 = vsub.s32 5, %v2546
    %v2548 = vrot.slane %v2523, %v2547
    %v2549 = vlaneseq
    %v2550 = vshrl.u32 %v2549, 7
    %v2551 = vsub.s32 6, %v2550
    %v2552 = vrot.slane %v2523, %v2551
    %v2553 = vlaneseq
    %v2554 = vshrl.u32 %v2553, 7
    %v2555 = vsub.s32 7, %v2554
    %v2556 = vrot.slane %v2523, %v2555
    %v2629 = vunpack.c.l.b16 %v2459
    %v2630 = vunpack.c.h.b16 %v2459
    %v2631 = vunpack.c.l.b16 %v2460
    %v2632 = vunpack.c.h.b16 %v2460
    %v2633 = vunpack.c.l.b16 %v2461
    %v2634 = vunpack.c.h.b16 %v2461
    %v2635 = vunpack.c.l.b16 %v2462
    %v2636 = vunpack.c.h.b16 %v2462
    %v2637 = vunpack.c.l.b16 %v2463
    %v2638 = vunpack.c.h.b16 %v2463
    %v2639 = vunpack.c.l.b16 %v2464
    %v2640 = vunpack.c.h.b16 %v2464
    %v2641 = vunpack.c.l.b16 %v2465
    %v2642 = vunpack.c.h.b16 %v2465
    %v2643 = vunpack.c.l.b16 %v2466
    %v2644 = vunpack.c.h.b16 %v2466
    %v2645 = vunpack.c.l.b16 %v2467
    %v2646 = vunpack.c.h.b16 %v2467
    %v2647 = vunpack.c.l.b16 %v2468
    %v2648 = vunpack.c.h.b16 %v2468
    %v2649 = vunpack.c.l.b16 %v2469
    %v2650 = vunpack.c.h.b16 %v2469
    %v2651 = vunpack.c.l.b16 %v2470
    %v2652 = vunpack.c.h.b16 %v2470
    %v2653 = vunpack.c.l.b16 %v2471
    %v2654 = vunpack.c.h.b16 %v2471
    %v2655 = vunpack.c.l.b16 %v2472
    %v2656 = vunpack.c.h.b16 %v2472
    %v2657 = vunpack.c.l.b16 %v2473
    %v2658 = vunpack.c.h.b16 %v2473
    %v2659 = vunpack.c.l.b16 %v2474
    %v2660 = vunpack.c.h.b16 %v2474
    %v2661 = vunpack.c.l.b16 %v2475
    %v2662 = vunpack.c.h.b16 %v2475
    %v2663 = vunpack.c.l.b16 %v2476
    %v2664 = vunpack.c.h.b16 %v2476
    %v2665 = vunpack.c.l.b16 %v2477
    %v2666 = vunpack.c.h.b16 %v2477
    %v2667 = vunpack.c.l.b16 %v2478
    %v2668 = vunpack.c.h.b16 %v2478
    %v2669 = vunpack.c.l.b16 %v2479
    %v2670 = vunpack.c.h.b16 %v2479
    %v2671 = vunpack.c.l.b16 %v2480
    %v2672 = vunpack.c.h.b16 %v2480
    %v2673 = vunpack.c.l.b16 %v2481
    %v2674 = vunpack.c.h.b16 %v2481
    %v2675 = vunpack.c.l.b16 %v2482
    %v2676 = vunpack.c.h.b16 %v2482
    %v2677 = vunpack.c.l.b16 %v2483
    %v2678 = vunpack.c.h.b16 %v2483
    %v2679 = vunpack.c.l.b16 %v2484
    %v2680 = vunpack.c.h.b16 %v2484
    %v2681 = vunpack.c.l.b16 %v2485
    %v2682 = vunpack.c.h.b16 %v2485
    %v2683 = vunpack.c.l.b16 %v2486
    %v2684 = vunpack.c.h.b16 %v2486
    %v2685 = vunpack.c.l.b16 %v2487
    %v2686 = vunpack.c.h.b16 %v2487
    %v2687 = vunpack.c.l.b16 %v2488
    %v2688 = vunpack.c.h.b16 %v2488
    %v2689 = vunpack.c.l.b16 %v2489
    %v2690 = vunpack.c.h.b16 %v2489
    %v2691 = vunpack.c.l.b16 %v2490
    %v2692 = vunpack.c.h.b16 %v2490
    %v2693 = vunpack.c.l.b16 %v2491
    %v2694 = vunpack.c.h.b16 %v2491
    %v2695 = vunpack.c.l.b16 %v2492
    %v2696 = vunpack.c.h.b16 %v2492
    %v2697 = vunpack.c.l.b16 %v2493
    %v2698 = vunpack.c.h.b16 %v2493
    %v2699 = vunpack.c.l.b16 %v2494
    %v2700 = vunpack.c.h.b16 %v2494
    %v2701 = vunpack.c.l.b16 %v2495
    %v2702 = vunpack.c.h.b16 %v2495
    %v2703 = vunpack.c.l.b16 %v2496
    %v2704 = vunpack.c.h.b16 %v2496
    %v2705 = vunpack.c.l.b16 %v2497
    %v2706 = vunpack.c.h.b16 %v2497
    %v2707 = vunpack.c.l.b16 %v2498
    %v2708 = vunpack.c.h.b16 %v2498
    %v2709 = vunpack.c.l.b16 %v2499
    %v2710 = vunpack.c.h.b16 %v2499
    %v2711 = vunpack.c.l.b16 %v2500
    %v2712 = vunpack.c.h.b16 %v2500
    %v2713 = vunpack.c.l.b16 %v2501
    %v2714 = vunpack.c.h.b16 %v2501
    %v2715 = vunpack.c.l.b16 %v2502
    %v2716 = vunpack.c.h.b16 %v2502
    %v2717 = vunpack.c.l.b16 %v2503
    %v2718 = vunpack.c.h.b16 %v2503
    %v2719 = vunpack.c.l.b16 %v2504
    %v2720 = vunpack.c.h.b16 %v2504
    %v2721 = vunpack.c.l.b16 %v2505
    %v2722 = vunpack.c.h.b16 %v2505
    %v2723 = vunpack.c.l.b16 %v2506
    %v2724 = vunpack.c.h.b16 %v2506
    %v2725 = vunpack.c.l.b16 %v2507
    %v2726 = vunpack.c.h.b16 %v2507
    %v2727 = vunpack.c.l.b16 %v2508
    %v2728 = vunpack.c.h.b16 %v2508
    %v2729 = vunpack.c.l.b16 %v2509
    %v2730 = vunpack.c.h.b16 %v2509
    %v2731 = vunpack.c.l.b16 %v2510
    %v2732 = vunpack.c.h.b16 %v2510
    %v2733 = vunpack.c.l.b16 %v2511
    %v2734 = vunpack.c.h.b16 %v2511
    %v2735 = vunpack.c.l.b16 %v2512
    %v2736 = vunpack.c.h.b16 %v2512
    %v2737 = vunpack.c.l.b16 %v2513
    %v2738 = vunpack.c.h.b16 %v2513
    %v2739 = vunpack.c.l.b16 %v2514
    %v2740 = vunpack.c.h.b16 %v2514
    %v2741 = vunpack.c.l.b16 %v2515
    %v2742 = vunpack.c.h.b16 %v2515
    %v2743 = vunpack.c.l.b16 %v2516
    %v2744 = vunpack.c.h.b16 %v2516
    %v2745 = vunpack.c.l.b16 %v2517
    %v2746 = vunpack.c.h.b16 %v2517
    %v2747 = vunpack.c.l.b16 %v2518
    %v2748 = vunpack.c.h.b16 %v2518
    %v2749 = vunpack.c.l.b16 %v2519
    %v2750 = vunpack.c.h.b16 %v2519
    %v2751 = vunpack.c.l.b16 %v2520
    %v2752 = vunpack.c.h.b16 %v2520
    %v2753 = vunpack.c.l.b16 %v2521
    %v2754 = vunpack.c.h.b16 %v2521
    %v2755 = vunpack.c.l.b16 %v2522
    %v2756 = vunpack.c.h.b16 %v2522
    %v2757 = vpack.c.b16 %v2637, %v2629
    %v2758 = vpack.c.b16 %v2638, %v2630
    %v2759 = vpack.c.b16 %v2639, %v2631
    %v2760 = vpack.c.b16 %v2640, %v2632
    %v2761 = vpack.c.b16 %v2641, %v2633
    %v2762 = vpack.c.b16 %v2642, %v2634
    %v2763 = vpack.c.b16 %v2643, %v2635
    %v2764 = vpack.c.b16 %v2644, %v2636
    %v2765 = vpack.c.b16 %v2653, %v2645
    %v2766 = vpack.c.b16 %v2654, %v2646
    %v2767 = vpack.c.b16 %v2655, %v2647
    %v2768 = vpack.c.b16 %v2656, %v2648
    %v2769 = vpack.c.b16 %v2657, %v2649
    %v2770 = vpack.c.b16 %v2658, %v2650
    %v2771 = vpack.c.b16 %v2659, %v2651
    %v2772 = vpack.c.b16 %v2660, %v2652
    %v2773 = vpack.c.b16 %v2669, %v2661
    %v2774 = vpack.c.b16 %v2670, %v2662
    %v2775 = vpack.c.b16 %v2671, %v2663
    %v2776 = vpack.c.b16 %v2672, %v2664
    %v2777 = vpack.c.b16 %v2673, %v2665
    %v2778 = vpack.c.b16 %v2674, %v2666
    %v2779 = vpack.c.b16 %v2675, %v2667
    %v2780 = vpack.c.b16 %v2676, %v2668
    %v2781 = vpack.c.b16 %v2685, %v2677
    %v2782 = vpack.c.b16 %v2686, %v2678
    %v2783 = vpack.c.b16 %v2687, %v2679
    %v2784 = vpack.c.b16 %v2688, %v2680
    %v2785 = vpack.c.b16 %v2689, %v2681
    %v2786 = vpack.c.b16 %v2690, %v2682
    %v2787 = vpack.c.b16 %v2691, %v2683
    %v2788 = vpack.c.b16 %v2692, %v2684
    %v2789 = vpack.c.b16 %v2701, %v2693
    %v2790 = vpack.c.b16 %v2702, %v2694
    %v2791 = vpack.c.b16 %v2703, %v2695
    %v2792 = vpack.c.b16 %v2704, %v2696
    %v2793 = vpack.c.b16 %v2705, %v2697
    %v2794 = vpack.c.b16 %v2706, %v2698
    %v2795 = vpack.c.b16 %v2707, %v2699
    %v2796 = vpack.c.b16 %v2708, %v2700
    %v2797 = vpack.c.b16 %v2717, %v2709
    %v2798 = vpack.c.b16 %v2718, %v2710
    %v2799 = vpack.c.b16 %v2719, %v2711
    %v2800 = vpack.c.b16 %v2720, %v2712
    %v2801 = vpack.c.b16 %v2721, %v2713
    %v2802 = vpack.c.b16 %v2722, %v2714
    %v2803 = vpack.c.b16 %v2723, %v2715
    %v2804 = vpack.c.b16 %v2724, %v2716
    %v2805 = vpack.c.b16 %v2733, %v2725
    %v2806 = vpack.c.b16 %v2734, %v2726
    %v2807 = vpack.c.b16 %v2735, %v2727
    %v2808 = vpack.c.b16 %v2736, %v2728
    %v2809 = vpack.c.b16 %v2737, %v2729
    %v2810 = vpack.c.b16 %v2738, %v2730
    %v2811 = vpack.c.b16 %v2739, %v2731
    %v2812 = vpack.c.b16 %v2740, %v2732
    %v2813 = vpack.c.b16 %v2749, %v2741
    %v2814 = vpack.c.b16 %v2750, %v2742
    %v2815 = vpack.c.b16 %v2751, %v2743
    %v2816 = vpack.c.b16 %v2752, %v2744
    %v2817 = vpack.c.b16 %v2753, %v2745
    %v2818 = vpack.c.b16 %v2754, %v2746
    %v2819 = vpack.c.b16 %v2755, %v2747
    %v2820 = vpack.c.b16 %v2756, %v2748
    %2885 = vmatprep.subr.bf16.mxu0 %v2758
    %2886 = vmatpush1.bf16.msra.mxu0 %v2757
    %2887 = vmatprep.subr.bf16.mxu0 %v2766
    %2888 = vmatpush1.bf16.msra.mxu0 %v2765
    %2889 = vmatprep.subr.bf16.mxu0 %v2774
    %2890 = vmatpush1.bf16.msra.mxu0 %v2773
    %2891 = vmatprep.subr.bf16.mxu0 %v2782
    %2892 = vmatpush1.bf16.msra.mxu0 %v2781
    %2893 = vmatprep.subr.bf16.mxu0 %v2790
    %2894 = vmatpush1.bf16.msra.mxu0 %v2789
    %2895 = vmatprep.subr.bf16.mxu0 %v2798
    %2896 = vmatpush1.bf16.msra.mxu0 %v2797
    %2897 = vmatprep.subr.bf16.mxu0 %v2806
    %2898 = vmatpush1.bf16.msra.mxu0 %v2805
    %2899 = vmatprep.subr.bf16.mxu0 %v2814
    %2900 = vmatpush1.bf16.msra.mxu0 %v2813
    %2901 = vmatprep.subr.bf16.mxu0 0
    %2902 = vmatpush1.bf16.msra.mxu0 0
    %2903 = vmatprep.subr.bf16.mxu0 0
    %2904 = vmatpush1.bf16.msra.mxu0 0
    %2905 = vmatprep.subr.bf16.mxu0 0
    %2906 = vmatpush1.bf16.msra.mxu0 0
    %2907 = vmatprep.subr.bf16.mxu0 0
    %2908 = vmatpush1.bf16.msra.mxu0 0
    %2909 = vmatprep.subr.bf16.mxu0 0
    %2910 = vmatpush1.bf16.msra.mxu0 0
    %2911 = vmatprep.subr.bf16.mxu0 0
    %2912 = vmatpush1.bf16.msra.mxu0 0
    %2913 = vmatprep.subr.bf16.mxu0 0
    %2914 = vmatpush1.bf16.msra.mxu0 0
    %2915 = vmatprep.subr.bf16.mxu0 0
    %2916 = vmatpush1.bf16.msra.mxu0 0
    %2917 = vmatprep.mubr.bf16.mxu0 0
    %2918 = vmatmul.mubr.bf16.gmra.mrb[0].mxu0 %v2457
    %v2919 = vpop.f32.mrb[0].mxu0
    %v2920 = vadd.f32 %v2528, %v2919
    %v2921 = vpop.f32.mrb[0].mxu0
    %v2922 = vadd.f32 %v2532, %v2921
    %v2923 = vpop.f32.mrb[0].mxu0
    %v2924 = vadd.f32 %v2528, %v2923
    %v2925 = vpop.f32.mrb[0].mxu0
    %v2926 = vadd.f32 %v2532, %v2925
    %2927 = vmatprep.mubr.bf16.mxu0 0
    %2928 = vmatmul.mubr.bf16.gmra.mrb[0].mxu0 %v2458
    %v2929 = vpop.f32.mrb[0].mxu0
    %v2930 = vadd.f32 %v2528, %v2929
    %v2931 = vpop.f32.mrb[0].mxu0
    %v2932 = vadd.f32 %v2532, %v2931
    %v2933 = vpop.f32.mrb[0].mxu0
    %v2934 = vadd.f32 %v2528, %v2933
    %v2935 = vpop.f32.mrb[0].mxu0
    %v2936 = vadd.f32 %v2532, %v2935
    %2937 = vdwg.mxu0
    %2938 = vmatprep.subr.bf16.mxu0 %v2760
    %2939 = vmatpush1.bf16.msra.mxu0 %v2759
    %2940 = vmatprep.subr.bf16.mxu0 %v2768
    %2941 = vmatpush1.bf16.msra.mxu0 %v2767
    %2942 = vmatprep.subr.bf16.mxu0 %v2776
    %2943 = vmatpush1.bf16.msra.mxu0 %v2775
    %2944 = vmatprep.subr.bf16.mxu0 %v2784
    %2945 = vmatpush1.bf16.msra.mxu0 %v2783
    %2946 = vmatprep.subr.bf16.mxu0 %v2792
    %2947 = vmatpush1.bf16.msra.mxu0 %v2791
    %2948 = vmatprep.subr.bf16.mxu0 %v2800
    %2949 = vmatpush1.bf16.msra.mxu0 %v2799
    %2950 = vmatprep.subr.bf16.mxu0 %v2808
    %2951 = vmatpush1.bf16.msra.mxu0 %v2807
    %2952 = vmatprep.subr.bf16.mxu0 %v2816
    %2953 = vmatpush1.bf16.msra.mxu0 %v2815
    %2954 = vmatprep.subr.bf16.mxu0 0
    %2955 = vmatpush1.bf16.msra.mxu0 0
    %2956 = vmatprep.subr.bf16.mxu0 0
    %2957 = vmatpush1.bf16.msra.mxu0 0
    %2958 = vmatprep.subr.bf16.mxu0 0
    %2959 = vmatpush1.bf16.msra.mxu0 0
    %2960 = vmatprep.subr.bf16.mxu0 0
    %2961 = vmatpush1.bf16.msra.mxu0 0
    %2962 = vmatprep.subr.bf16.mxu0 0
    %2963 = vmatpush1.bf16.msra.mxu0 0
    %2964 = vmatprep.subr.bf16.mxu0 0
    %2965 = vmatpush1.bf16.msra.mxu0 0
    %2966 = vmatprep.subr.bf16.mxu0 0
    %2967 = vmatpush1.bf16.msra.mxu0 0
    %2968 = vmatprep.subr.bf16.mxu0 0
    %2969 = vmatpush1.bf16.msra.mxu0 0
    %2970 = vmatprep.mubr.bf16.mxu0 0
    %2971 = vmatmul.mubr.bf16.gmra.mrb[0].mxu0 %v2457
    %v2972 = vpop.f32.mrb[0].mxu0
    %v2973 = vadd.f32 %v2536, %v2972
    %v2974 = vpop.f32.mrb[0].mxu0
    %v2975 = vadd.f32 %v2540, %v2974
    %v2976 = vpop.f32.mrb[0].mxu0
    %v2977 = vadd.f32 %v2536, %v2976
    %v2978 = vpop.f32.mrb[0].mxu0
    %v2979 = vadd.f32 %v2540, %v2978
    %2980 = vmatprep.mubr.bf16.mxu0 0
    %2981 = vmatmul.mubr.bf16.gmra.mrb[0].mxu0 %v2458
    %v2982 = vpop.f32.mrb[0].mxu0
    %v2983 = vadd.f32 %v2536, %v2982
    %v2984 = vpop.f32.mrb[0].mxu0
    %v2985 = vadd.f32 %v2540, %v2984
    %v2986 = vpop.f32.mrb[0].mxu0
    %v2987 = vadd.f32 %v2536, %v2986
    %v2988 = vpop.f32.mrb[0].mxu0
    %v2989 = vadd.f32 %v2540, %v2988
    %2990 = vdwg.mxu0
    %2991 = vmatprep.subr.bf16.mxu0 %v2762
    %2992 = vmatpush1.bf16.msra.mxu0 %v2761
    %2993 = vmatprep.subr.bf16.mxu0 %v2770
    %2994 = vmatpush1.bf16.msra.mxu0 %v2769
    %2995 = vmatprep.subr.bf16.mxu0 %v2778
    %2996 = vmatpush1.bf16.msra.mxu0 %v2777
    %2997 = vmatprep.subr.bf16.mxu0 %v2786
    %2998 = vmatpush1.bf16.msra.mxu0 %v2785
    %2999 = vmatprep.subr.bf16.mxu0 %v2794
    %3000 = vmatpush1.bf16.msra.mxu0 %v2793
    %3001 = vmatprep.subr.bf16.mxu0 %v2802
    %3002 = vmatpush1.bf16.msra.mxu0 %v2801
    %3003 = vmatprep.subr.bf16.mxu0 %v2810
    %3004 = vmatpush1.bf16.msra.mxu0 %v2809
    %3005 = vmatprep.subr.bf16.mxu0 %v2818
    %3006 = vmatpush1.bf16.msra.mxu0 %v2817
    %3007 = vmatprep.subr.bf16.mxu0 0
    %3008 = vmatpush1.bf16.msra.mxu0 0
    %3009 = vmatprep.subr.bf16.mxu0 0
    %3010 = vmatpush1.bf16.msra.mxu0 0
    %3011 = vmatprep.subr.bf16.mxu0 0
    %3012 = vmatpush1.bf16.msra.mxu0 0
    %3013 = vmatprep.subr.bf16.mxu0 0
    %3014 = vmatpush1.bf16.msra.mxu0 0
    %3015 = vmatprep.subr.bf16.mxu0 0
    %3016 = vmatpush1.bf16.msra.mxu0 0
    %3017 = vmatprep.subr.bf16.mxu0 0
    %3018 = vmatpush1.bf16.msra.mxu0 0
    %3019 = vmatprep.subr.bf16.mxu0 0
    %3020 = vmatpush1.bf16.msra.mxu0 0
    %3021 = vmatprep.subr.bf16.mxu0 0
    %3022 = vmatpush1.bf16.msra.mxu0 0
    %3023 = vmatprep.mubr.bf16.mxu0 0
    %3024 = vmatmul.mubr.bf16.gmra.mrb[0].mxu0 %v2457
    %v3025 = vpop.f32.mrb[0].mxu0
    %v3026 = vadd.f32 %v2544, %v3025
    %v3027 = vpop.f32.mrb[0].mxu0
    %v3028 = vadd.f32 %v2548, %v3027
    %v3029 = vpop.f32.mrb[0].mxu0
    %v3030 = vadd.f32 %v2544, %v3029
    %v3031 = vpop.f32.mrb[0].mxu0
    %v3032 = vadd.f32 %v2548, %v3031
    %3033 = vmatprep.mubr.bf16.mxu0 0
    %3034 = vmatmul.mubr.bf16.gmra.mrb[0].mxu0 %v2458
    %v3035 = vpop.f32.mrb[0].mxu0
    %v3036 = vadd.f32 %v2544, %v3035
    %v3037 = vpop.f32.mrb[0].mxu0
    %v3038 = vadd.f32 %v2548, %v3037
    %v3039 = vpop.f32.mrb[0].mxu0
    %v3040 = vadd.f32 %v2544, %v3039
    %v3041 = vpop.f32.mrb[0].mxu0
    %v3042 = vadd.f32 %v2548, %v3041
    %3043 = vdwg.mxu0
    %3044 = vmatprep.subr.bf16.mxu0 %v2764
    %3045 = vmatpush1.bf16.msra.mxu0 %v2763
    %3046 = vmatprep.subr.bf16.mxu0 %v2772
    %3047 = vmatpush1.bf16.msra.mxu0 %v2771
    %3048 = vmatprep.subr.bf16.mxu0 %v2780
    %3049 = vmatpush1.bf16.msra.mxu0 %v2779
    %3050 = vmatprep.subr.bf16.mxu0 %v2788
    %3051 = vmatpush1.bf16.msra.mxu0 %v2787
    %3052 = vmatprep.subr.bf16.mxu0 %v2796
    %3053 = vmatpush1.bf16.msra.mxu0 %v2795
    %3054 = vmatprep.subr.bf16.mxu0 %v2804
    %3055 = vmatpush1.bf16.msra.mxu0 %v2803
    %3056 = vmatprep.subr.bf16.mxu0 %v2812
    %3057 = vmatpush1.bf16.msra.mxu0 %v2811
    %3058 = vmatprep.subr.bf16.mxu0 %v2820
    %3059 = vmatpush1.bf16.msra.mxu0 %v2819
    %3060 = vmatprep.subr.bf16.mxu0 0
    %3061 = vmatpush1.bf16.msra.mxu0 0
    %3062 = vmatprep.subr.bf16.mxu0 0
    %3063 = vmatpush1.bf16.msra.mxu0 0
    %3064 = vmatprep.subr.bf16.mxu0 0
    %3065 = vmatpush1.bf16.msra.mxu0 0
    %3066 = vmatprep.subr.bf16.mxu0 0
    %3067 = vmatpush1.bf16.msra.mxu0 0
    %3068 = vmatprep.subr.bf16.mxu0 0
    %3069 = vmatpush1.bf16.msra.mxu0 0
    %3070 = vmatprep.subr.bf16.mxu0 0
    %3071 = vmatpush1.bf16.msra.mxu0 0
    %3072 = vmatprep.subr.bf16.mxu0 0
    %3073 = vmatpush1.bf16.msra.mxu0 0
    %3074 = vmatprep.subr.bf16.mxu0 0
    %3075 = vmatpush1.bf16.msra.mxu0 0
    %3076 = vmatprep.mubr.bf16.mxu0 0
    %3077 = vmatmul.mubr.bf16.gmra.mrb[0].mxu0 %v2457
    %v3078 = vpop.f32.mrb[0].mxu0
    %v3079 = vadd.f32 %v2552, %v3078
    %v3080 = vpop.f32.mrb[0].mxu0
    %v3081 = vadd.f32 %v2556, %v3080
    %v3082 = vpop.f32.mrb[0].mxu0
    %v3083 = vadd.f32 %v2552, %v3082
    %v3084 = vpop.f32.mrb[0].mxu0
    %v3085 = vadd.f32 %v2556, %v3084
    %3086 = vmatprep.mubr.bf16.mxu0 0
    %3087 = vmatmul.mubr.bf16.gmra.mrb[0].mxu0 %v2458
    %v3088 = vpop.f32.mrb[0].mxu0
    %v3089 = vadd.f32 %v2552, %v3088
    %v3090 = vpop.f32.mrb[0].mxu0
    %v3091 = vadd.f32 %v2556, %v3090
    %v3092 = vpop.f32.mrb[0].mxu0
    %v3093 = vadd.f32 %v2552, %v3092
    %v3094 = vpop.f32.mrb[0].mxu0
    %v3095 = vadd.f32 %v2556, %v3094
    %3096 = vdwg.mxu0
    %v3129 = vcombine.low %v2920, %v2922
    %v3130 = vcombine.high %v2920, %v2922
    %v3131 = vcombine.low %v2973, %v2975
    %v3132 = vcombine.high %v2973, %v2975
    %v3134 = vunpack.c.l.s4 1983009808
    %v3135 = vunpack.c.0.s8 %v3134
    %v3136 = vlaneseq
    %v3137 = vshrl.u32 %v3136, 7
    %v3138 = vsub.s32 %v3135, %v3137
    %v3139 = vrot.slane %v3129, %v3138
    %v3141 = vunpack.c.l.s4 1983009808
    %v3142 = vunpack.c.0.s8 %v3141
    %v3143 = vlaneseq
    %v3144 = vshrl.u32 %v3143, 7
    %v3145 = vsub.s32 %v3142, %v3144
    %v3146 = vrot.slane %v3130, %v3145
    %v3148 = vunpack.c.l.s4 1983009808
    %v3149 = vunpack.c.0.s8 %v3148
    %v3150 = vlaneseq
    %v3151 = vshrl.u32 %v3150, 7
    %v3152 = vsub.s32 %v3149, %v3151
    %v3153 = vrot.slane %v3131, %v3152
    %v3155 = vunpack.c.l.s4 1983009808
    %v3156 = vunpack.c.0.s8 %v3155
    %v3157 = vlaneseq
    %v3158 = vshrl.u32 %v3157, 7
    %v3159 = vsub.s32 %v3156, %v3158
    %v3160 = vrot.slane %v3132, %v3159
    %v3161 = vcombine.low %v3139, %v3153
    %v3162 = vcombine.high %v3139, %v3153
    %v3163 = vcombine.low %v3146, %v3160
    %v3164 = vcombine.high %v3146, %v3160
    %v3165 = vcombine.low %v3026, %v3028
    %v3166 = vcombine.high %v3026, %v3028
    %v3167 = vcombine.low %v3079, %v3081
    %v3168 = vcombine.high %v3079, %v3081
    %v3170 = vunpack.c.l.s4 1983009808
    %v3171 = vunpack.c.0.s8 %v3170
    %v3172 = vlaneseq
    %v3173 = vshrl.u32 %v3172, 7
    %v3174 = vsub.s32 %v3171, %v3173
    %v3175 = vrot.slane %v3165, %v3174
    %v3177 = vunpack.c.l.s4 1983009808
    %v3178 = vunpack.c.0.s8 %v3177
    %v3179 = vlaneseq
    %v3180 = vshrl.u32 %v3179, 7
    %v3181 = vsub.s32 %v3178, %v3180
    %v3182 = vrot.slane %v3166, %v3181
    %v3184 = vunpack.c.l.s4 1983009808
    %v3185 = vunpack.c.0.s8 %v3184
    %v3186 = vlaneseq
    %v3187 = vshrl.u32 %v3186, 7
    %v3188 = vsub.s32 %v3185, %v3187
    %v3189 = vrot.slane %v3167, %v3188
    %v3191 = vunpack.c.l.s4 1983009808
    %v3192 = vunpack.c.0.s8 %v3191
    %v3193 = vlaneseq
    %v3194 = vshrl.u32 %v3193, 7
    %v3195 = vsub.s32 %v3192, %v3194
    %v3196 = vrot.slane %v3168, %v3195
    %v3197 = vcombine.low %v3175, %v3189
    %v3198 = vcombine.high %v3175, %v3189
    %v3199 = vcombine.low %v3182, %v3196
    %v3200 = vcombine.high %v3182, %v3196
    %v3201 = vcombine.low %v2924, %v2926
    %v3202 = vcombine.high %v2924, %v2926
    %v3203 = vcombine.low %v2977, %v2979
    %v3204 = vcombine.high %v2977, %v2979
    %v3206 = vunpack.c.l.s4 1983009808
    %v3207 = vunpack.c.0.s8 %v3206
    %v3208 = vlaneseq
    %v3209 = vshrl.u32 %v3208, 7
    %v3210 = vsub.s32 %v3207, %v3209
    %v3211 = vrot.slane %v3201, %v3210
    %v3213 = vunpack.c.l.s4 1983009808
    %v3214 = vunpack.c.0.s8 %v3213
    %v3215 = vlaneseq
    %v3216 = vshrl.u32 %v3215, 7
    %v3217 = vsub.s32 %v3214, %v3216
    %v3218 = vrot.slane %v3202, %v3217
    %v3220 = vunpack.c.l.s4 1983009808
    %v3221 = vunpack.c.0.s8 %v3220
    %v3222 = vlaneseq
    %v3223 = vshrl.u32 %v3222, 7
    %v3224 = vsub.s32 %v3221, %v3223
    %v3225 = vrot.slane %v3203, %v3224
    %v3227 = vunpack.c.l.s4 1983009808
    %v3228 = vunpack.c.0.s8 %v3227
    %v3229 = vlaneseq
    %v3230 = vshrl.u32 %v3229, 7
    %v3231 = vsub.s32 %v3228, %v3230
    %v3232 = vrot.slane %v3204, %v3231
    %v3233 = vcombine.low %v3211, %v3225
    %v3234 = vcombine.high %v3211, %v3225
    %v3235 = vcombine.low %v3218, %v3232
    %v3236 = vcombine.high %v3218, %v3232
    %v3237 = vcombine.low %v3030, %v3032
    %v3238 = vcombine.high %v3030, %v3032
    %v3239 = vcombine.low %v3083, %v3085
    %v3240 = vcombine.high %v3083, %v3085
    %v3242 = vunpack.c.l.s4 1983009808
    %v3243 = vunpack.c.0.s8 %v3242
    %v3244 = vlaneseq
    %v3245 = vshrl.u32 %v3244, 7
    %v3246 = vsub.s32 %v3243, %v3245
    %v3247 = vrot.slane %v3237, %v3246
    %v3249 = vunpack.c.l.s4 1983009808
    %v3250 = vunpack.c.0.s8 %v3249
    %v3251 = vlaneseq
    %v3252 = vshrl.u32 %v3251, 7
    %v3253 = vsub.s32 %v3250, %v3252
    %v3254 = vrot.slane %v3238, %v3253
    %v3256 = vunpack.c.l.s4 1983009808
    %v3257 = vunpack.c.0.s8 %v3256
    %v3258 = vlaneseq
    %v3259 = vshrl.u32 %v3258, 7
    %v3260 = vsub.s32 %v3257, %v3259
    %v3261 = vrot.slane %v3239, %v3260
    %v3263 = vunpack.c.l.s4 1983009808
    %v3264 = vunpack.c.0.s8 %v3263
    %v3265 = vlaneseq
    %v3266 = vshrl.u32 %v3265, 7
    %v3267 = vsub.s32 %v3264, %v3266
    %v3268 = vrot.slane %v3240, %v3267
    %v3269 = vcombine.low %v3247, %v3261
    %v3270 = vcombine.high %v3247, %v3261
    %v3271 = vcombine.low %v3254, %v3268
    %v3272 = vcombine.high %v3254, %v3268
    %v3273 = vcombine.low %v2930, %v2932
    %v3274 = vcombine.high %v2930, %v2932
    %v3275 = vcombine.low %v2983, %v2985
    %v3276 = vcombine.high %v2983, %v2985
    %v3278 = vunpack.c.l.s4 1983009808
    %v3279 = vunpack.c.0.s8 %v3278
    %v3280 = vlaneseq
    %v3281 = vshrl.u32 %v3280, 7
    %v3282 = vsub.s32 %v3279, %v3281
    %v3283 = vrot.slane %v3273, %v3282
    %v3285 = vunpack.c.l.s4 1983009808
    %v3286 = vunpack.c.0.s8 %v3285
    %v3287 = vlaneseq
    %v3288 = vshrl.u32 %v3287, 7
    %v3289 = vsub.s32 %v3286, %v3288
    %v3290 = vrot.slane %v3274, %v3289
    %v3292 = vunpack.c.l.s4 1983009808
    %v3293 = vunpack.c.0.s8 %v3292
    %v3294 = vlaneseq
    %v3295 = vshrl.u32 %v3294, 7
    %v3296 = vsub.s32 %v3293, %v3295
    %v3297 = vrot.slane %v3275, %v3296
    %v3299 = vunpack.c.l.s4 1983009808
    %v3300 = vunpack.c.0.s8 %v3299
    %v3301 = vlaneseq
    %v3302 = vshrl.u32 %v3301, 7
    %v3303 = vsub.s32 %v3300, %v3302
    %v3304 = vrot.slane %v3276, %v3303
    %v3305 = vcombine.low %v3283, %v3297
    %v3306 = vcombine.high %v3283, %v3297
    %v3307 = vcombine.low %v3290, %v3304
    %v3308 = vcombine.high %v3290, %v3304
    %v3309 = vcombine.low %v3036, %v3038
    %v3310 = vcombine.high %v3036, %v3038
    %v3311 = vcombine.low %v3089, %v3091
    %v3312 = vcombine.high %v3089, %v3091
    %v3314 = vunpack.c.l.s4 1983009808
    %v3315 = vunpack.c.0.s8 %v3314
    %v3316 = vlaneseq
    %v3317 = vshrl.u32 %v3316, 7
    %v3318 = vsub.s32 %v3315, %v3317
    %v3319 = vrot.slane %v3309, %v3318
    %v3321 = vunpack.c.l.s4 1983009808
    %v3322 = vunpack.c.0.s8 %v3321
    %v3323 = vlaneseq
    %v3324 = vshrl.u32 %v3323, 7
    %v3325 = vsub.s32 %v3322, %v3324
    %v3326 = vrot.slane %v3310, %v3325
    %v3328 = vunpack.c.l.s4 1983009808
    %v3329 = vunpack.c.0.s8 %v3328
    %v3330 = vlaneseq
    %v3331 = vshrl.u32 %v3330, 7
    %v3332 = vsub.s32 %v3329, %v3331
    %v3333 = vrot.slane %v3311, %v3332
    %v3335 = vunpack.c.l.s4 1983009808
    %v3336 = vunpack.c.0.s8 %v3335
    %v3337 = vlaneseq
    %v3338 = vshrl.u32 %v3337, 7
    %v3339 = vsub.s32 %v3336, %v3338
    %v3340 = vrot.slane %v3312, %v3339
    %v3341 = vcombine.low %v3319, %v3333
    %v3342 = vcombine.high %v3319, %v3333
    %v3343 = vcombine.low %v3326, %v3340
    %v3344 = vcombine.high %v3326, %v3340
    %v3345 = vcombine.low %v2934, %v2936
    %v3346 = vcombine.low %v2987, %v2989
    %v3348 = vunpack.c.l.s4 1983009808
    %v3349 = vunpack.c.0.s8 %v3348
    %v3350 = vlaneseq
    %v3351 = vshrl.u32 %v3350, 7
    %v3352 = vsub.s32 %v3349, %v3351
    %v3353 = vrot.slane %v3345, %v3352
    %v3355 = vunpack.c.l.s4 1983009808
    %v3356 = vunpack.c.0.s8 %v3355
    %v3357 = vlaneseq
    %v3358 = vshrl.u32 %v3357, 7
    %v3359 = vsub.s32 %v3356, %v3358
    %v3360 = vrot.slane %v3346, %v3359
    %v3361 = vcombine.low %v3353, %v3360
    %v3362 = vcombine.high %v3353, %v3360
    %v3363 = vcombine.low %v3040, %v3042
    %v3364 = vcombine.low %v3093, %v3095
    %v3366 = vunpack.c.l.s4 1983009808
    %v3367 = vunpack.c.0.s8 %v3366
    %v3368 = vlaneseq
    %v3369 = vshrl.u32 %v3368, 7
    %v3370 = vsub.s32 %v3367, %v3369
    %v3371 = vrot.slane %v3363, %v3370
    %v3373 = vunpack.c.l.s4 1983009808
    %v3374 = vunpack.c.0.s8 %v3373
    %v3375 = vlaneseq
    %v3376 = vshrl.u32 %v3375, 7
    %v3377 = vsub.s32 %v3374, %v3376
    %v3378 = vrot.slane %v3364, %v3377
    %v3379 = vcombine.low %v3371, %v3378
    %v3380 = vcombine.high %v3371, %v3378
    %3409 = vst [vmem:[#allocation5] sm:$0xff] %v3161
    %3410 = vst [vmem:[#allocation5 + $0x8] sm:$0xff] %v3197
    %3411 = vst [vmem:[#allocation5 + $0x10] sm:$0xff] %v3162
    %3412 = vst [vmem:[#allocation5 + $0x18] sm:$0xff] %v3198
    %3413 = vst [vmem:[#allocation5 + $0x20] sm:$0xff] %v3163
    %3414 = vst [vmem:[#allocation5 + $0x28] sm:$0xff] %v3199
    %3415 = vst [vmem:[#allocation5 + $0x30] sm:$0xff] %v3164
    %3416 = vst [vmem:[#allocation5 + $0x38] sm:$0xff] %v3200
    %3417 = vst [vmem:[#allocation5 + $0x40] sm:$0xff] %v3233
    %3418 = vst [vmem:[#allocation5 + $0x48] sm:$0xff] %v3269
    %3419 = vst [vmem:[#allocation5 + $0x50] sm:$0xff] %v3234
    %3420 = vst [vmem:[#allocation5 + $0x58] sm:$0xff] %v3270
    %3421 = vst [vmem:[#allocation5 + $0x60] sm:$0xff] %v3235
    %3422 = vst [vmem:[#allocation5 + $0x68] sm:$0xff] %v3271
    %3423 = vst [vmem:[#allocation5 + $0x70] sm:$0xff] %v3236
    %3424 = vst [vmem:[#allocation5 + $0x78] sm:$0xff] %v3272
    %3425 = vst [vmem:[#allocation5 + $0x80] sm:$0xff] %v3305
    %3426 = vst [vmem:[#allocation5 + $0x88] sm:$0xff] %v3341
    %3427 = vst [vmem:[#allocation5 + $0x90] sm:$0xff] %v3306
    %3428 = vst [vmem:[#allocation5 + $0x98] sm:$0xff] %v3342
    %3429 = vst [vmem:[#allocation5 + $0xa0] sm:$0xff] %v3307
    %3430 = vst [vmem:[#allocation5 + $0xa8] sm:$0xff] %v3343
    %3431 = vst [vmem:[#allocation5 + $0xb0] sm:$0xff] %v3308
    %3432 = vst [vmem:[#allocation5 + $0xb8] sm:$0xff] %v3344
    %3433 = vst [vmem:[#allocation5 + $0xc0] sm:$0xff] %v3361
    %3434 = vst [vmem:[#allocation5 + $0xc8] sm:$0xff] %v3379
    %3435 = vst [vmem:[#allocation5 + $0xd0] sm:$0xff] %v3362
    %3436 = vst [vmem:[#allocation5 + $0xd8] sm:$0xff] %v3380
    %3437 = vst [vmem:[#allocation8] sm:$0x3] 0.0
    %3438 = vst [vmem:[#allocation9] sm:$0x3] 0.0
    %3439 = vst [vmem:[#allocation10] sm:$0x3] 0.0
    %3440 = vst [vmem:[#allocation11] sm:$0x3] 0.0
    %s3441 = ssub.s32 14, %s2374
    // While loop
    $region142: #{forward.1} parent=1 // loop_pre_header
      _
    $region143: #{forward.1} parent=1 // loop_header
      %s3443 = sphi 0, %s3445
      %p3444 = scmp.ge.s32.totalorder %s3443, %s3441
    $region144: #{forward.1} parent=1 // loop_header_branch
      %3447 = sbr.rel (%p3444) target = $region148
    $region145: #{forward.1} parent=1 // loop_body
      %s3448 = sadd.s32 %s2374, %s3443
      %s3449 = smul.u32 %s3448, 2
      %s3450 = smul.addr %s3449, 2
      %s3451 = scalar_lea.vmem [#allocation6], %s3450
      %3452 = vst [vmem:[%s3451] sm:$0xf] 0.0
    $region146: #{forward.1} parent=1 // loop_footer
      %s3445 = sadd.s32 %s3443, 1
    $region147: #{forward.1} parent=1 // loop_footer_branch
      %3442 = sbr.rel target = $region143
    $region148: #{forward.1} parent=1 // loop_exit
      _
    // While loop
    $region149: #{forward.1} parent=1 // loop_pre_header
      _
    $region150: #{forward.1} parent=1 // loop_header
      %s3454 = sphi 0, %s3456
      %p3455 = scmp.ge.s32.totalorder %s3454, %s2374
    $region151: #{forward.1} parent=1 // loop_header_branch
      %3458 = sbr.rel (%p3455) target = $region155
    $region152: #{forward.1} parent=1 // loop_body
      %s3459 = ssub.s32 %s2374, 1
      %s3460 = ssub.s32 %s3459, %s3454
      %s3461 = smul.u32 %s3454, 8
      %s3462 = smul.addr %s3461, 2
      %s3463 = scalar_lea.vmem [#allocation5], %s3462
      %v3464 = vld [vmem:[%s3463] sm:$0xff]
      %s3465 = smul.u32 %s3460, 8
      %s3466 = smul.addr %s3465, 2
      %s3467 = scalar_lea.vmem [#allocation5], %s3466
      %v3468 = vld [vmem:[%s3467 + $0x8] sm:$0xff]
      %v3469 = vld [vmem:[#allocation8] sm:$0x3]
      %v3470 = vpack.c.bf16 %v3469, %v3469
      %v3471 = vld [vmem:[%s14] sm:$0xff]
      %v3472 = vld [vmem:[%s14 + $0x8] sm:$0xff]
      %v3473 = vld [vmem:[%s14 + $0x10] sm:$0xff]
      %v3474 = vld [vmem:[%s14 + $0x18] sm:$0xff]
      %v3475 = vld [vmem:[%s14 + $0x20] sm:$0xff]
      %v3476 = vld [vmem:[%s14 + $0x28] sm:$0xff]
      %v3477 = vld [vmem:[%s14 + $0x30] sm:$0xff]
      %v3478 = vld [vmem:[%s14 + $0x38] sm:$0xff]
      %v3479 = vld [vmem:[%s14 + $0x40] sm:$0xff]
      %v3480 = vld [vmem:[%s14 + $0x48] sm:$0xff]
      %v3481 = vld [vmem:[%s14 + $0x50] sm:$0xff]
      %v3482 = vld [vmem:[%s14 + $0x58] sm:$0xff]
      %v3483 = vld [vmem:[%s14 + $0x60] sm:$0xff]
      %v3484 = vld [vmem:[%s14 + $0x68] sm:$0xff]
      %v3485 = vld [vmem:[%s14 + $0x70] sm:$0xff]
      %v3486 = vld [vmem:[%s14 + $0x78] sm:$0xff]
      %v3487 = vld [vmem:[%s14 + $0x80] sm:$0xff]
      %v3488 = vld [vmem:[%s14 + $0x88] sm:$0xff]
      %v3489 = vld [vmem:[%s14 + $0x90] sm:$0xff]
      %v3490 = vld [vmem:[%s14 + $0x98] sm:$0xff]
      %v3491 = vld [vmem:[%s14 + $0xa0] sm:$0xff]
      %v3492 = vld [vmem:[%s14 + $0xa8] sm:$0xff]
      %v3493 = vld [vmem:[%s14 + $0xb0] sm:$0xff]
      %v3494 = vld [vmem:[%s14 + $0xb8] sm:$0xff]
      %v3495 = vld [vmem:[%s14 + $0xc0] sm:$0xff]
      %v3496 = vld [vmem:[%s14 + $0xc8] sm:$0xff]
      %v3497 = vld [vmem:[%s14 + $0xd0] sm:$0xff]
      %v3498 = vld [vmem:[%s14 + $0xd8] sm:$0xff]
      %v3499 = vld [vmem:[%s14 + $0xe0] sm:$0xff]
      %v3500 = vld [vmem:[%s14 + $0xe8] sm:$0xff]
      %v3501 = vld [vmem:[%s14 + $0xf0] sm:$0xff]
      %v3502 = vld [vmem:[%s14 + $0xf8] sm:$0xff]
      %v3535 = vunpack.c.l.b16 %v3471
      %v3536 = vunpack.c.h.b16 %v3471
      %v3537 = vunpack.c.l.b16 %v3472
      %v3538 = vunpack.c.h.b16 %v3472
      %v3539 = vunpack.c.l.b16 %v3473
      %v3540 = vunpack.c.h.b16 %v3473
      %v3541 = vunpack.c.l.b16 %v3474
      %v3542 = vunpack.c.h.b16 %v3474
      %v3543 = vunpack.c.l.b16 %v3475
      %v3544 = vunpack.c.h.b16 %v3475
      %v3545 = vunpack.c.l.b16 %v3476
      %v3546 = vunpack.c.h.b16 %v3476
      %v3547 = vunpack.c.l.b16 %v3477
      %v3548 = vunpack.c.h.b16 %v3477
      %v3549 = vunpack.c.l.b16 %v3478
      %v3550 = vunpack.c.h.b16 %v3478
      %v3551 = vunpack.c.l.b16 %v3479
      %v3552 = vunpack.c.h.b16 %v3479
      %v3553 = vunpack.c.l.b16 %v3480
      %v3554 = vunpack.c.h.b16 %v3480
      %v3555 = vunpack.c.l.b16 %v3481
      %v3556 = vunpack.c.h.b16 %v3481
      %v3557 = vunpack.c.l.b16 %v3482
      %v3558 = vunpack.c.h.b16 %v3482
      %v3559 = vunpack.c.l.b16 %v3483
      %v3560 = vunpack.c.h.b16 %v3483
      %v3561 = vunpack.c.l.b16 %v3484
      %v3562 = vunpack.c.h.b16 %v3484
      %v3563 = vunpack.c.l.b16 %v3485
      %v3564 = vunpack.c.h.b16 %v3485
      %v3565 = vunpack.c.l.b16 %v3486
      %v3566 = vunpack.c.h.b16 %v3486
      %v3567 = vunpack.c.l.b16 %v3487
      %v3568 = vunpack.c.h.b16 %v3487
      %v3569 = vunpack.c.l.b16 %v3488
      %v3570 = vunpack.c.h.b16 %v3488
      %v3571 = vunpack.c.l.b16 %v3489
      %v3572 = vunpack.c.h.b16 %v3489
      %v3573 = vunpack.c.l.b16 %v3490
      %v3574 = vunpack.c.h.b16 %v3490
      %v3575 = vunpack.c.l.b16 %v3491
      %v3576 = vunpack.c.h.b16 %v3491
      %v3577 = vunpack.c.l.b16 %v3492
      %v3578 = vunpack.c.h.b16 %v3492
      %v3579 = vunpack.c.l.b16 %v3493
      %v3580 = vunpack.c.h.b16 %v3493
      %v3581 = vunpack.c.l.b16 %v3494
      %v3582 = vunpack.c.h.b16 %v3494
      %v3583 = vunpack.c.l.b16 %v3495
      %v3584 = vunpack.c.h.b16 %v3495
      %v3585 = vunpack.c.l.b16 %v3496
      %v3586 = vunpack.c.h.b16 %v3496
      %v3587 = vunpack.c.l.b16 %v3497
      %v3588 = vunpack.c.h.b16 %v3497
      %v3589 = vunpack.c.l.b16 %v3498
      %v3590 = vunpack.c.h.b16 %v3498
      %v3591 = vunpack.c.l.b16 %v3499
      %v3592 = vunpack.c.h.b16 %v3499
      %v3593 = vunpack.c.l.b16 %v3500
      %v3594 = vunpack.c.h.b16 %v3500
      %v3595 = vunpack.c.l.b16 %v3501
      %v3596 = vunpack.c.h.b16 %v3501
      %v3597 = vunpack.c.l.b16 %v3502
      %v3598 = vunpack.c.h.b16 %v3502
      %v3599 = vpack.c.b16 %v3539, %v3535
      %v3600 = vpack.c.b16 %v3540, %v3536
      %v3601 = vpack.c.b16 %v3541, %v3537
      %v3602 = vpack.c.b16 %v3542, %v3538
      %v3603 = vpack.c.b16 %v3547, %v3543
      %v3604 = vpack.c.b16 %v3548, %v3544
      %v3605 = vpack.c.b16 %v3549, %v3545
      %v3606 = vpack.c.b16 %v3550, %v3546
      %v3607 = vpack.c.b16 %v3555, %v3551
      %v3608 = vpack.c.b16 %v3556, %v3552
      %v3609 = vpack.c.b16 %v3557, %v3553
      %v3610 = vpack.c.b16 %v3558, %v3554
      %v3611 = vpack.c.b16 %v3563, %v3559
      %v3612 = vpack.c.b16 %v3564, %v3560
      %v3613 = vpack.c.b16 %v3565, %v3561
      %v3614 = vpack.c.b16 %v3566, %v3562
      %v3615 = vpack.c.b16 %v3571, %v3567
      %v3616 = vpack.c.b16 %v3572, %v3568
      %v3617 = vpack.c.b16 %v3573, %v3569
      %v3618 = vpack.c.b16 %v3574, %v3570
      %v3619 = vpack.c.b16 %v3579, %v3575
      %v3620 = vpack.c.b16 %v3580, %v3576
      %v3621 = vpack.c.b16 %v3581, %v3577
      %v3622 = vpack.c.b16 %v3582, %v3578
      %v3623 = vpack.c.b16 %v3587, %v3583
      %v3624 = vpack.c.b16 %v3588, %v3584
      %v3625 = vpack.c.b16 %v3589, %v3585
      %v3626 = vpack.c.b16 %v3590, %v3586
      %v3627 = vpack.c.b16 %v3595, %v3591
      %v3628 = vpack.c.b16 %v3596, %v3592
      %v3629 = vpack.c.b16 %v3597, %v3593
      %v3630 = vpack.c.b16 %v3598, %v3594
      %v3664 = vcombine.high %v3464, %v3464
      %v3666 = vunpack.c.l.s4 1983009808
      %v3667 = vunpack.c.0.s8 %v3666
      %v3668 = vlaneseq
      %v3669 = vshrl.u32 %v3668, 7
      %v3670 = vsub.s32 %v3667, %v3669
      %v3671 = vrot.slane %v3464, %v3670
      %v3673 = vunpack.c.l.s4 1983009808
      %v3674 = vunpack.c.0.s8 %v3673
      %v3675 = vlaneseq
      %v3676 = vshrl.u32 %v3675, 7
      %v3677 = vsub.s32 %v3674, %v3676
      %v3678 = vrot.slane %v3664, %v3677
      %v3679 = vcombine.high %v3671, %v3671
      %v3680 = vcombine.high %v3678, %v3678
      %3685 = vmatprep.subr.bf16.mxu0 %v3600
      %3686 = vmatpush1.bf16.msra.mxu0 %v3599
      %3687 = vmatprep.subr.bf16.mxu0 %v3604
      %3688 = vmatpush1.bf16.msra.mxu0 %v3603
      %3689 = vmatprep.subr.bf16.mxu0 %v3608
      %3690 = vmatpush1.bf16.msra.mxu0 %v3607
      %3691 = vmatprep.subr.bf16.mxu0 %v3612
      %3692 = vmatpush1.bf16.msra.mxu0 %v3611
      %3693 = vmatprep.subr.bf16.mxu0 %v3616
      %3694 = vmatpush1.bf16.msra.mxu0 %v3615
      %3695 = vmatprep.subr.bf16.mxu0 %v3620
      %3696 = vmatpush1.bf16.msra.mxu0 %v3619
      %3697 = vmatprep.subr.bf16.mxu0 %v3624
      %3698 = vmatpush1.bf16.msra.mxu0 %v3623
      %3699 = vmatprep.subr.bf16.mxu0 %v3628
      %3700 = vmatpush1.bf16.msra.mxu0 %v3627
      %3701 = vmatprep.subr.bf16.mxu0 0
      %3702 = vmatpush1.bf16.msra.mxu0 0
      %3703 = vmatprep.subr.bf16.mxu0 0
      %3704 = vmatpush1.bf16.msra.mxu0 0
      %3705 = vmatprep.subr.bf16.mxu0 0
      %3706 = vmatpush1.bf16.msra.mxu0 0
      %3707 = vmatprep.subr.bf16.mxu0 0
      %3708 = vmatpush1.bf16.msra.mxu0 0
      %3709 = vmatprep.subr.bf16.mxu0 0
      %3710 = vmatpush1.bf16.msra.mxu0 0
      %3711 = vmatprep.subr.bf16.mxu0 0
      %3712 = vmatpush1.bf16.msra.mxu0 0
      %3713 = vmatprep.subr.bf16.mxu0 0
      %3714 = vmatpush1.bf16.msra.mxu0 0
      %3715 = vmatprep.subr.bf16.mxu0 0
      %3716 = vmatpush1.bf16.msra.mxu0 0
      %3717 = vmatprep.mubr.bf16.mxu0 0
      %3718 = vmatmul.mubr.bf16.gmra.mrb[0].mxu0 %v3470
      %v3719 = vpop.f32.mrb[0].mxu0
      %v3720 = vadd.f32 %v3671, %v3719
      %v3721 = vpop.f32.mrb[0].mxu0
      %v3722 = vadd.f32 %v3679, %v3721
      %v3723 = vpop.f32.mrb[0].mxu0
      %v3724 = vpop.f32.mrb[0].mxu0
      %3725 = vdwg.mxu0
      %3726 = vmatprep.subr.bf16.mxu0 %v3602
      %3727 = vmatpush1.bf16.msra.mxu0 %v3601
      %3728 = vmatprep.subr.bf16.mxu0 %v3606
      %3729 = vmatpush1.bf16.msra.mxu0 %v3605
      %3730 = vmatprep.subr.bf16.mxu0 %v3610
      %3731 = vmatpush1.bf16.msra.mxu0 %v3609
      %3732 = vmatprep.subr.bf16.mxu0 %v3614
      %3733 = vmatpush1.bf16.msra.mxu0 %v3613
      %3734 = vmatprep.subr.bf16.mxu0 %v3618
      %3735 = vmatpush1.bf16.msra.mxu0 %v3617
      %3736 = vmatprep.subr.bf16.mxu0 %v3622
      %3737 = vmatpush1.bf16.msra.mxu0 %v3621
      %3738 = vmatprep.subr.bf16.mxu0 %v3626
      %3739 = vmatpush1.bf16.msra.mxu0 %v3625
      %3740 = vmatprep.subr.bf16.mxu0 %v3630
      %3741 = vmatpush1.bf16.msra.mxu0 %v3629
      %3742 = vmatprep.subr.bf16.mxu0 0
      %3743 = vmatpush1.bf16.msra.mxu0 0
      %3744 = vmatprep.subr.bf16.mxu0 0
      %3745 = vmatpush1.bf16.msra.mxu0 0
      %3746 = vmatprep.subr.bf16.mxu0 0
      %3747 = vmatpush1.bf16.msra.mxu0 0
      %3748 = vmatprep.subr.bf16.mxu0 0
      %3749 = vmatpush1.bf16.msra.mxu0 0
      %3750 = vmatprep.subr.bf16.mxu0 0
      %3751 = vmatpush1.bf16.msra.mxu0 0
      %3752 = vmatprep.subr.bf16.mxu0 0
      %3753 = vmatpush1.bf16.msra.mxu0 0
      %3754 = vmatprep.subr.bf16.mxu0 0
      %3755 = vmatpush1.bf16.msra.mxu0 0
      %3756 = vmatprep.subr.bf16.mxu0 0
      %3757 = vmatpush1.bf16.msra.mxu0 0
      %3758 = vmatprep.mubr.bf16.mxu0 0
      %3759 = vmatmul.mubr.bf16.gmra.mrb[0].mxu0 %v3470
      %v3760 = vpop.f32.mrb[0].mxu0
      %v3761 = vadd.f32 %v3678, %v3760
      %v3762 = vpop.f32.mrb[0].mxu0
      %v3763 = vadd.f32 %v3680, %v3762
      %v3764 = vpop.f32.mrb[0].mxu0
      %v3765 = vpop.f32.mrb[0].mxu0
      %3766 = vdwg.mxu0
      %v3767 = vld [vmem:[#allocation10] sm:$0x3]
      %v3768 = vpack.c.bf16 %v3767, %v3767
      %v3769 = vld [vmem:[#allocation21] sm:$0xff]
      %v3770 = vld [vmem:[#allocation21 + $0x8] sm:$0xff]
      %v3771 = vld [vmem:[#allocation21 + $0x10] sm:$0xff]
      %v3772 = vld [vmem:[#allocation21 + $0x18] sm:$0xff]
      %v3773 = vld [vmem:[#allocation21 + $0x20] sm:$0xff]
      %v3774 = vld [vmem:[#allocation21 + $0x28] sm:$0xff]
      %v3775 = vld [vmem:[#allocation21 + $0x30] sm:$0xff]
      %v3776 = vld [vmem:[#allocation21 + $0x38] sm:$0xff]
      %v3777 = vld [vmem:[#allocation21 + $0x40] sm:$0xff]
      %v3778 = vld [vmem:[#allocation21 + $0x48] sm:$0xff]
      %v3779 = vld [vmem:[#allocation21 + $0x50] sm:$0xff]
      %v3780 = vld [vmem:[#allocation21 + $0x58] sm:$0xff]
      %v3781 = vld [vmem:[#allocation21 + $0x60] sm:$0xff]
      %v3782 = vld [vmem:[#allocation21 + $0x68] sm:$0xff]
      %v3783 = vld [vmem:[#allocation21 + $0x70] sm:$0xff]
      %v3784 = vld [vmem:[#allocation21 + $0x78] sm:$0xff]
      %v3785 = vld [vmem:[#allocation21 + $0x80] sm:$0xff]
      %v3786 = vld [vmem:[#allocation21 + $0x88] sm:$0xff]
      %v3787 = vld [vmem:[#allocation21 + $0x90] sm:$0xff]
      %v3788 = vld [vmem:[#allocation21 + $0x98] sm:$0xff]
      %v3789 = vld [vmem:[#allocation21 + $0xa0] sm:$0xff]
      %v3790 = vld [vmem:[#allocation21 + $0xa8] sm:$0xff]
      %v3791 = vld [vmem:[#allocation21 + $0xb0] sm:$0xff]
      %v3792 = vld [vmem:[#allocation21 + $0xb8] sm:$0xff]
      %v3793 = vld [vmem:[#allocation21 + $0xc0] sm:$0xff]
      %v3794 = vld [vmem:[#allocation21 + $0xc8] sm:$0xff]
      %v3795 = vld [vmem:[#allocation21 + $0xd0] sm:$0xff]
      %v3796 = vld [vmem:[#allocation21 + $0xd8] sm:$0xff]
      %v3797 = vld [vmem:[#allocation21 + $0xe0] sm:$0xff]
      %v3798 = vld [vmem:[#allocation21 + $0xe8] sm:$0xff]
      %v3799 = vld [vmem:[#allocation21 + $0xf0] sm:$0xff]
      %v3800 = vld [vmem:[#allocation21 + $0xf8] sm:$0xff]
      %v3833 = vunpack.c.l.b16 %v3769
      %v3834 = vunpack.c.h.b16 %v3769
      %v3835 = vunpack.c.l.b16 %v3770
      %v3836 = vunpack.c.h.b16 %v3770
      %v3837 = vunpack.c.l.b16 %v3771
      %v3838 = vunpack.c.h.b16 %v3771
      %v3839 = vunpack.c.l.b16 %v3772
      %v3840 = vunpack.c.h.b16 %v3772
      %v3841 = vunpack.c.l.b16 %v3773
      %v3842 = vunpack.c.h.b16 %v3773
      %v3843 = vunpack.c.l.b16 %v3774
      %v3844 = vunpack.c.h.b16 %v3774
      %v3845 = vunpack.c.l.b16 %v3775
      %v3846 = vunpack.c.h.b16 %v3775
      %v3847 = vunpack.c.l.b16 %v3776
      %v3848 = vunpack.c.h.b16 %v3776
      %v3849 = vunpack.c.l.b16 %v3777
      %v3850 = vunpack.c.h.b16 %v3777
      %v3851 = vunpack.c.l.b16 %v3778
      %v3852 = vunpack.c.h.b16 %v3778
      %v3853 = vunpack.c.l.b16 %v3779
      %v3854 = vunpack.c.h.b16 %v3779
      %v3855 = vunpack.c.l.b16 %v3780
      %v3856 = vunpack.c.h.b16 %v3780
      %v3857 = vunpack.c.l.b16 %v3781
      %v3858 = vunpack.c.h.b16 %v3781
      %v3859 = vunpack.c.l.b16 %v3782
      %v3860 = vunpack.c.h.b16 %v3782
      %v3861 = vunpack.c.l.b16 %v3783
      %v3862 = vunpack.c.h.b16 %v3783
      %v3863 = vunpack.c.l.b16 %v3784
      %v3864 = vunpack.c.h.b16 %v3784
      %v3865 = vunpack.c.l.b16 %v3785
      %v3866 = vunpack.c.h.b16 %v3785
      %v3867 = vunpack.c.l.b16 %v3786
      %v3868 = vunpack.c.h.b16 %v3786
      %v3869 = vunpack.c.l.b16 %v3787
      %v3870 = vunpack.c.h.b16 %v3787
      %v3871 = vunpack.c.l.b16 %v3788
      %v3872 = vunpack.c.h.b16 %v3788
      %v3873 = vunpack.c.l.b16 %v3789
      %v3874 = vunpack.c.h.b16 %v3789
      %v3875 = vunpack.c.l.b16 %v3790
      %v3876 = vunpack.c.h.b16 %v3790
      %v3877 = vunpack.c.l.b16 %v3791
      %v3878 = vunpack.c.h.b16 %v3791
      %v3879 = vunpack.c.l.b16 %v3792
      %v3880 = vunpack.c.h.b16 %v3792
      %v3881 = vunpack.c.l.b16 %v3793
      %v3882 = vunpack.c.h.b16 %v3793
      %v3883 = vunpack.c.l.b16 %v3794
      %v3884 = vunpack.c.h.b16 %v3794
      %v3885 = vunpack.c.l.b16 %v3795
      %v3886 = vunpack.c.h.b16 %v3795
      %v3887 = vunpack.c.l.b16 %v3796
      %v3888 = vunpack.c.h.b16 %v3796
      %v3889 = vunpack.c.l.b16 %v3797
      %v3890 = vunpack.c.h.b16 %v3797
      %v3891 = vunpack.c.l.b16 %v3798
      %v3892 = vunpack.c.h.b16 %v3798
      %v3893 = vunpack.c.l.b16 %v3799
      %v3894 = vunpack.c.h.b16 %v3799
      %v3895 = vunpack.c.l.b16 %v3800
      %v3896 = vunpack.c.h.b16 %v3800
      %v3897 = vpack.c.b16 %v3837, %v3833
      %v3898 = vpack.c.b16 %v3838, %v3834
      %v3899 = vpack.c.b16 %v3839, %v3835
      %v3900 = vpack.c.b16 %v3840, %v3836
      %v3901 = vpack.c.b16 %v3845, %v3841
      %v3902 = vpack.c.b16 %v3846, %v3842
      %v3903 = vpack.c.b16 %v3847, %v3843
      %v3904 = vpack.c.b16 %v3848, %v3844
      %v3905 = vpack.c.b16 %v3853, %v3849
      %v3906 = vpack.c.b16 %v3854, %v3850
      %v3907 = vpack.c.b16 %v3855, %v3851
      %v3908 = vpack.c.b16 %v3856, %v3852
      %v3909 = vpack.c.b16 %v3861, %v3857
      %v3910 = vpack.c.b16 %v3862, %v3858
      %v3911 = vpack.c.b16 %v3863, %v3859
      %v3912 = vpack.c.b16 %v3864, %v3860
      %v3913 = vpack.c.b16 %v3869, %v3865
      %v3914 = vpack.c.b16 %v3870, %v3866
      %v3915 = vpack.c.b16 %v3871, %v3867
      %v3916 = vpack.c.b16 %v3872, %v3868
      %v3917 = vpack.c.b16 %v3877, %v3873
      %v3918 = vpack.c.b16 %v3878, %v3874
      %v3919 = vpack.c.b16 %v3879, %v3875
      %v3920 = vpack.c.b16 %v3880, %v3876
      %v3921 = vpack.c.b16 %v3885, %v3881
      %v3922 = vpack.c.b16 %v3886, %v3882
      %v3923 = vpack.c.b16 %v3887, %v3883
      %v3924 = vpack.c.b16 %v3888, %v3884
      %v3925 = vpack.c.b16 %v3893, %v3889
      %v3926 = vpack.c.b16 %v3894, %v3890
      %v3927 = vpack.c.b16 %v3895, %v3891
      %v3928 = vpack.c.b16 %v3896, %v3892
      %v3962 = vcombine.high %v3468, %v3468
      %v3964 = vunpack.c.l.s4 1983009808
      %v3965 = vunpack.c.0.s8 %v3964
      %v3966 = vlaneseq
      %v3967 = vshrl.u32 %v3966, 7
      %v3968 = vsub.s32 %v3965, %v3967
      %v3969 = vrot.slane %v3468, %v3968
      %v3971 = vunpack.c.l.s4 1983009808
      %v3972 = vunpack.c.0.s8 %v3971
      %v3973 = vlaneseq
      %v3974 = vshrl.u32 %v3973, 7
      %v3975 = vsub.s32 %v3972, %v3974
      %v3976 = vrot.slane %v3962, %v3975
      %v3977 = vcombine.high %v3969, %v3969
      %v3978 = vcombine.high %v3976, %v3976
      %3983 = vmatprep.subr.bf16.mxu0 %v3898
      %3984 = vmatpush1.bf16.msra.mxu0 %v3897
      %3985 = vmatprep.subr.bf16.mxu0 %v3902
      %3986 = vmatpush1.bf16.msra.mxu0 %v3901
      %3987 = vmatprep.subr.bf16.mxu0 %v3906
      %3988 = vmatpush1.bf16.msra.mxu0 %v3905
      %3989 = vmatprep.subr.bf16.mxu0 %v3910
      %3990 = vmatpush1.bf16.msra.mxu0 %v3909
      %3991 = vmatprep.subr.bf16.mxu0 %v3914
      %3992 = vmatpush1.bf16.msra.mxu0 %v3913
      %3993 = vmatprep.subr.bf16.mxu0 %v3918
      %3994 = vmatpush1.bf16.msra.mxu0 %v3917
      %3995 = vmatprep.subr.bf16.mxu0 %v3922
      %3996 = vmatpush1.bf16.msra.mxu0 %v3921
      %3997 = vmatprep.subr.bf16.mxu0 %v3926
      %3998 = vmatpush1.bf16.msra.mxu0 %v3925
      %3999 = vmatprep.subr.bf16.mxu0 0
      %4000 = vmatpush1.bf16.msra.mxu0 0
      %4001 = vmatprep.subr.bf16.mxu0 0
      %4002 = vmatpush1.bf16.msra.mxu0 0
      %4003 = vmatprep.subr.bf16.mxu0 0
      %4004 = vmatpush1.bf16.msra.mxu0 0
      %4005 = vmatprep.subr.bf16.mxu0 0
      %4006 = vmatpush1.bf16.msra.mxu0 0
      %4007 = vmatprep.subr.bf16.mxu0 0
      %4008 = vmatpush1.bf16.msra.mxu0 0
      %4009 = vmatprep.subr.bf16.mxu0 0
      %4010 = vmatpush1.bf16.msra.mxu0 0
      %4011 = vmatprep.subr.bf16.mxu0 0
      %4012 = vmatpush1.bf16.msra.mxu0 0
      %4013 = vmatprep.subr.bf16.mxu0 0
      %4014 = vmatpush1.bf16.msra.mxu0 0
      %4015 = vmatprep.mubr.bf16.mxu0 0
      %4016 = vmatmul.mubr.bf16.gmra.mrb[0].mxu0 %v3768
      %v4017 = vpop.f32.mrb[0].mxu0
      %v4018 = vadd.f32 %v3969, %v4017
      %v4019 = vpop.f32.mrb[0].mxu0
      %v4020 = vadd.f32 %v3977, %v4019
      %v4021 = vpop.f32.mrb[0].mxu0
      %v4022 = vpop.f32.mrb[0].mxu0
      %4023 = vdwg.mxu0
      %4024 = vmatprep.subr.bf16.mxu0 %v3900
      %4025 = vmatpush1.bf16.msra.mxu0 %v3899
      %4026 = vmatprep.subr.bf16.mxu0 %v3904
      %4027 = vmatpush1.bf16.msra.mxu0 %v3903
      %4028 = vmatprep.subr.bf16.mxu0 %v3908
      %4029 = vmatpush1.bf16.msra.mxu0 %v3907
      %4030 = vmatprep.subr.bf16.mxu0 %v3912
      %4031 = vmatpush1.bf16.msra.mxu0 %v3911
      %4032 = vmatprep.subr.bf16.mxu0 %v3916
      %4033 = vmatpush1.bf16.msra.mxu0 %v3915
      %4034 = vmatprep.subr.bf16.mxu0 %v3920
      %4035 = vmatpush1.bf16.msra.mxu0 %v3919
      %4036 = vmatprep.subr.bf16.mxu0 %v3924
      %4037 = vmatpush1.bf16.msra.mxu0 %v3923
      %4038 = vmatprep.subr.bf16.mxu0 %v3928
      %4039 = vmatpush1.bf16.msra.mxu0 %v3927
      %4040 = vmatprep.subr.bf16.mxu0 0
      %4041 = vmatpush1.bf16.msra.mxu0 0
      %4042 = vmatprep.subr.bf16.mxu0 0
      %4043 = vmatpush1.bf16.msra.mxu0 0
      %4044 = vmatprep.subr.bf16.mxu0 0
      %4045 = vmatpush1.bf16.msra.mxu0 0
      %4046 = vmatprep.subr.bf16.mxu0 0
      %4047 = vmatpush1.bf16.msra.mxu0 0
      %4048 = vmatprep.subr.bf16.mxu0 0
      %4049 = vmatpush1.bf16.msra.mxu0 0
      %4050 = vmatprep.subr.bf16.mxu0 0
      %4051 = vmatpush1.bf16.msra.mxu0 0
      %4052 = vmatprep.subr.bf16.mxu0 0
      %4053 = vmatpush1.bf16.msra.mxu0 0
      %4054 = vmatprep.subr.bf16.mxu0 0
      %4055 = vmatpush1.bf16.msra.mxu0 0
      %4056 = vmatprep.mubr.bf16.mxu0 0
      %4057 = vmatmul.mubr.bf16.gmra.mrb[0].mxu0 %v3768
      %v4058 = vpop.f32.mrb[0].mxu0
      %v4059 = vadd.f32 %v3976, %v4058
      %v4060 = vpop.f32.mrb[0].mxu0
      %v4061 = vadd.f32 %v3978, %v4060
      %v4062 = vpop.f32.mrb[0].mxu0
      %v4063 = vpop.f32.mrb[0].mxu0
      %4064 = vdwg.mxu0
      %v4065 = vld [vmem:[#allocation9] sm:$0x3]
      %v4066 = vxor.u32 %v3720, 2147483648
      %v4067 = vmul.f32 %v4066, 1.442695
      %v4068 = vpow.pop %v4067
      %v4069 = vadd.f32 %v4068, 1.0
      %v4070 = vrcp.pop %v4069
      %v4071 = vmul.f32 1.0, %v4070
      %v4072 = vxor.u32 %v3722, 2147483648
      %v4073 = vmul.f32 %v4072, 1.442695
      %v4074 = vpow.pop %v4073
      %v4075 = vadd.f32 %v4074, 1.0
      %v4076 = vrcp.pop %v4075
      %v4077 = vmul.f32 1.0, %v4076
      %v4078 = vtanh.pop %v3761
      %v4079 = vxor.u32 %v3763, 2147483648
      %v4080 = vmul.f32 %v4079, 1.442695
      %v4081 = vpow.pop %v4080
      %v4082 = vadd.f32 %v4081, 1.0
      %v4083 = vrcp.pop %v4082
      %v4084 = vmul.f32 1.0, %v4083
      %v4085 = vmul.f32 %v4077, %v4065
      %v4086 = vmul.f32 %v4071, %v4078
      %v4087 = vadd.f32 %v4085, %v4086
      %v4088 = vtanh.pop %v4087
      %v4089 = vmul.f32 %v4084, %v4088
      %v4090 = vld [vmem:[#allocation11] sm:$0x3]
      %v4091 = vxor.u32 %v4018, 2147483648
      %v4092 = vmul.f32 %v4091, 1.442695
      %v4093 = vpow.pop %v4092
      %v4094 = vadd.f32 %v4093, 1.0
      %v4095 = vrcp.pop %v4094
      %v4096 = vmul.f32 1.0, %v4095
      %v4097 = vxor.u32 %v4020, 2147483648
      %v4098 = vmul.f32 %v4097, 1.442695
      %v4099 = vpow.pop %v4098
      %v4100 = vadd.f32 %v4099, 1.0
      %v4101 = vrcp.pop %v4100
      %v4102 = vmul.f32 1.0, %v4101
      %v4103 = vtanh.pop %v4059
      %v4104 = vxor.u32 %v4061, 2147483648
      %v4105 = vmul.f32 %v4104, 1.442695
      %v4106 = vpow.pop %v4105
      %v4107 = vadd.f32 %v4106, 1.0
      %v4108 = vrcp.pop %v4107
      %v4109 = vmul.f32 1.0, %v4108
      %v4110 = vmul.f32 %v4102, %v4090
      %v4111 = vmul.f32 %v4096, %v4103
      %v4112 = vadd.f32 %v4110, %v4111
      %v4113 = vtanh.pop %v4112
      %v4114 = vmul.f32 %v4109, %v4113
      %v4115 = vstv %s3454
      %vm4116 = vcmp.lt.s32.totalorder %v4115, %v2378
      %v4117 = vstv %s3460
      %vm4118 = vcmp.lt.s32.totalorder %v4117, %v2378
      %v4119 = vsel %vm4116, %v4089, %v3469
      %4120 = vst [vmem:[#allocation8] sm:$0x3] %v4119
      %v4121 = vld [vmem:[#allocation9] sm:$0x3]
      %v4122 = vsel %vm4116, %v4087, %v4121
      %4123 = vst [vmem:[#allocation9] sm:$0x3] %v4122
      %v4124 = vld [vmem:[#allocation10] sm:$0x3]
      %v4125 = vsel %vm4118, %v4114, %v4124
      %4126 = vst [vmem:[#allocation10] sm:$0x3] %v4125
      %v4127 = vld [vmem:[#allocation11] sm:$0x3]
      %v4128 = vsel %vm4118, %v4112, %v4127
      %4129 = vst [vmem:[#allocation11] sm:$0x3] %v4128
      %v4130 = vsel %vm4116, %v4089, 0.0
      %s4131 = smul.u32 %s3454, 2
      %s4132 = smul.addr %s4131, 2
      %s4133 = scalar_lea.vmem [#allocation6], %s4132
      %4134 = vst [vmem:[%s4133] sm:$0x3] %v4130
      %v4135 = vsel %vm4118, %v4114, 0.0
      %s4136 = smul.u32 %s3460, 2
      %s4137 = smul.addr %s4136, 2
      %s4138 = scalar_lea.vmem [#allocation6], %s4137
      %4139 = vst [vmem:[%s4138 + $0x2] sm:$0x3] %v4135
    $region153: #{forward.1} parent=1 // loop_footer
      %s3456 = sadd.s32 %s3454, 1
    $region154: #{forward.1} parent=1 // loop_footer_branch
      %3453 = sbr.rel target = $region150
    $region155: #{forward.1} parent=1 // loop_exit
      _
    %v4140 = vld [vmem:[#allocation6] sm:$0xf]
    %v4141 = vld [vmem:[#allocation6 + $0x4] sm:$0xf]
    %v4142 = vld [vmem:[#allocation6 + $0x8] sm:$0xf]
    %v4143 = vld [vmem:[#allocation6 + $0xc] sm:$0xf]
    %v4144 = vld [vmem:[#allocation6 + $0x10] sm:$0xf]
    %v4145 = vld [vmem:[#allocation6 + $0x14] sm:$0xf]
    %v4146 = vld [vmem:[#allocation6 + $0x18] sm:$0xf]
    %v4147 = vld [vmem:[#allocation6 + $0x1c] sm:$0xf]
    %v4148 = vld [vmem:[#allocation6 + $0x20] sm:$0xf]
    %v4149 = vld [vmem:[#allocation6 + $0x24] sm:$0xf]
    %v4150 = vld [vmem:[#allocation6 + $0x28] sm:$0xf]
    %v4151 = vld [vmem:[#allocation6 + $0x2c] sm:$0xf]
    %v4152 = vld [vmem:[#allocation6 + $0x30] sm:$0xf]
    %v4153 = vld [vmem:[#allocation6 + $0x34] sm:$0xf]
    %v4168 = vcombine.low %v4140, %v4141
    %v4169 = vcombine.low %v4142, %v4143
    %v4171 = vunpack.c.l.s4 1983009808
    %v4172 = vunpack.c.0.s8 %v4171
    %v4173 = vlaneseq
    %v4174 = vshrl.u32 %v4173, 7
    %v4175 = vsub.s32 %v4172, %v4174
    %v4176 = vrot.slane %v4168, %v4175
    %v4178 = vunpack.c.l.s4 1983009808
    %v4179 = vunpack.c.0.s8 %v4178
    %v4180 = vlaneseq
    %v4181 = vshrl.u32 %v4180, 7
    %v4182 = vsub.s32 %v4179, %v4181
    %v4183 = vrot.slane %v4169, %v4182
    %v4184 = vcombine.low %v4176, %v4183
    %v4185 = vcombine.high %v4176, %v4183
    %v4186 = vcombine.low %v4144, %v4145
    %v4187 = vcombine.low %v4146, %v4147
    %v4189 = vunpack.c.l.s4 1983009808
    %v4190 = vunpack.c.0.s8 %v4189
    %v4191 = vlaneseq
    %v4192 = vshrl.u32 %v4191, 7
    %v4193 = vsub.s32 %v4190, %v4192
    %v4194 = vrot.slane %v4186, %v4193
    %v4196 = vunpack.c.l.s4 1983009808
    %v4197 = vunpack.c.0.s8 %v4196
    %v4198 = vlaneseq
    %v4199 = vshrl.u32 %v4198, 7
    %v4200 = vsub.s32 %v4197, %v4199
    %v4201 = vrot.slane %v4187, %v4200
    %v4202 = vcombine.low %v4194, %v4201
    %v4203 = vcombine.high %v4194, %v4201
    %v4204 = vcombine.low %v4148, %v4149
    %v4205 = vcombine.low %v4150, %v4151
    %v4207 = vunpack.c.l.s4 1983009808
    %v4208 = vunpack.c.0.s8 %v4207
    %v4209 = vlaneseq
    %v4210 = vshrl.u32 %v4209, 7
    %v4211 = vsub.s32 %v4208, %v4210
    %v4212 = vrot.slane %v4204, %v4211
    %v4214 = vunpack.c.l.s4 1983009808
    %v4215 = vunpack.c.0.s8 %v4214
    %v4216 = vlaneseq
    %v4217 = vshrl.u32 %v4216, 7
    %v4218 = vsub.s32 %v4215, %v4217
    %v4219 = vrot.slane %v4205, %v4218
    %v4220 = vcombine.low %v4212, %v4219
    %v4221 = vcombine.high %v4212, %v4219
    %v4222 = vcombine.low %v4152, %v4153
    %v4224 = vunpack.c.l.s4 1983009808
    %v4225 = vunpack.c.0.s8 %v4224
    %v4226 = vlaneseq
    %v4227 = vshrl.u32 %v4226, 7
    %v4228 = vsub.s32 %v4225, %v4227
    %v4229 = vrot.slane %v4222, %v4228
    %v4230 = vcombine.high %v4229, %v4229
    %v4239 = vpack.c.bf16 %v4202, %v4184
    %v4240 = vpack.c.bf16 %v4203, %v4185
    %v4241 = vpack.c.bf16 %v4229, %v4220
    %v4242 = vpack.c.bf16 %v4230, %v4221
    %v4243 = vld [vmem:[#allocation22] sm:$0xff]
    %v4244 = vld [vmem:[#allocation22 + $0x8] sm:$0xff]
    %v4245 = vld [vmem:[#allocation22 + $0x10] sm:$0xff]
    %v4246 = vld [vmem:[#allocation22 + $0x18] sm:$0xff]
    %v4247 = vld [vmem:[#allocation22 + $0x20] sm:$0xff]
    %v4248 = vld [vmem:[#allocation22 + $0x28] sm:$0xff]
    %v4249 = vld [vmem:[#allocation22 + $0x30] sm:$0xff]
    %v4250 = vld [vmem:[#allocation22 + $0x38] sm:$0xff]
    %v4251 = vld [vmem:[#allocation22 + $0x40] sm:$0xff]
    %v4252 = vld [vmem:[#allocation22 + $0x48] sm:$0xff]
    %v4253 = vld [vmem:[#allocation22 + $0x50] sm:$0xff]
    %v4254 = vld [vmem:[#allocation22 + $0x58] sm:$0xff]
    %v4255 = vld [vmem:[#allocation22 + $0x60] sm:$0xff]
    %v4256 = vld [vmem:[#allocation22 + $0x68] sm:$0xff]
    %v4257 = vld [vmem:[#allocation22 + $0x70] sm:$0xff]
    %v4258 = vld [vmem:[#allocation22 + $0x78] sm:$0xff]
    %v4259 = vld [vmem:[#allocation22 + $0x80] sm:$0xff]
    %v4260 = vld [vmem:[#allocation22 + $0x88] sm:$0xff]
    %v4261 = vld [vmem:[#allocation22 + $0x90] sm:$0xff]
    %v4262 = vld [vmem:[#allocation22 + $0x98] sm:$0xff]
    %v4263 = vld [vmem:[#allocation22 + $0xa0] sm:$0xff]
    %v4264 = vld [vmem:[#allocation22 + $0xa8] sm:$0xff]
    %v4265 = vld [vmem:[#allocation22 + $0xb0] sm:$0xff]
    %v4266 = vld [vmem:[#allocation22 + $0xb8] sm:$0xff]
    %v4267 = vld [vmem:[#allocation22 + $0xc0] sm:$0xff]
    %v4268 = vld [vmem:[#allocation22 + $0xc8] sm:$0xff]
    %v4269 = vld [vmem:[#allocation22 + $0xd0] sm:$0xff]
    %v4270 = vld [vmem:[#allocation22 + $0xd8] sm:$0xff]
    %v4271 = vld [vmem:[#allocation22 + $0xe0] sm:$0xff]
    %v4272 = vld [vmem:[#allocation22 + $0xe8] sm:$0xff]
    %v4273 = vld [vmem:[#allocation22 + $0xf0] sm:$0xff]
    %v4274 = vld [vmem:[#allocation22 + $0xf8] sm:$0xff]
    %v4275 = vld [vmem:[#allocation22 + $0x100] sm:$0xff]
    %v4276 = vld [vmem:[#allocation22 + $0x108] sm:$0xff]
    %v4277 = vld [vmem:[#allocation22 + $0x110] sm:$0xff]
    %v4278 = vld [vmem:[#allocation22 + $0x118] sm:$0xff]
    %v4279 = vld [vmem:[#allocation22 + $0x120] sm:$0xff]
    %v4280 = vld [vmem:[#allocation22 + $0x128] sm:$0xff]
    %v4281 = vld [vmem:[#allocation22 + $0x130] sm:$0xff]
    %v4282 = vld [vmem:[#allocation22 + $0x138] sm:$0xff]
    %v4283 = vld [vmem:[#allocation22 + $0x140] sm:$0xff]
    %v4284 = vld [vmem:[#allocation22 + $0x148] sm:$0xff]
    %v4285 = vld [vmem:[#allocation22 + $0x150] sm:$0xff]
    %v4286 = vld [vmem:[#allocation22 + $0x158] sm:$0xff]
    %v4287 = vld [vmem:[#allocation22 + $0x160] sm:$0xff]
    %v4288 = vld [vmem:[#allocation22 + $0x168] sm:$0xff]
    %v4289 = vld [vmem:[#allocation22 + $0x170] sm:$0xff]
    %v4290 = vld [vmem:[#allocation22 + $0x178] sm:$0xff]
    %v4291 = vld [vmem:[#allocation22 + $0x180] sm:$0xff]
    %v4292 = vld [vmem:[#allocation22 + $0x188] sm:$0xff]
    %v4293 = vld [vmem:[#allocation22 + $0x190] sm:$0xff]
    %v4294 = vld [vmem:[#allocation22 + $0x198] sm:$0xff]
    %v4295 = vld [vmem:[#allocation22 + $0x1a0] sm:$0xff]
    %v4296 = vld [vmem:[#allocation22 + $0x1a8] sm:$0xff]
    %v4297 = vld [vmem:[#allocation22 + $0x1b0] sm:$0xff]
    %v4298 = vld [vmem:[#allocation22 + $0x1b8] sm:$0xff]
    %v4299 = vld [vmem:[#allocation22 + $0x1c0] sm:$0xff]
    %v4300 = vld [vmem:[#allocation22 + $0x1c8] sm:$0xff]
    %v4301 = vld [vmem:[#allocation22 + $0x1d0] sm:$0xff]
    %v4302 = vld [vmem:[#allocation22 + $0x1d8] sm:$0xff]
    %v4303 = vld [vmem:[#allocation22 + $0x1e0] sm:$0xff]
    %v4304 = vld [vmem:[#allocation22 + $0x1e8] sm:$0xff]
    %v4305 = vld [vmem:[#allocation22 + $0x1f0] sm:$0xff]
    %v4306 = vld [vmem:[#allocation22 + $0x1f8] sm:$0xff]
    %v4307 = vld [vmem:[#allocation22 + $0x200] sm:$0xff]
    %v4308 = vld [vmem:[#allocation22 + $0x208] sm:$0xff]
    %v4309 = vld [vmem:[#allocation22 + $0x210] sm:$0xff]
    %v4310 = vld [vmem:[#allocation22 + $0x218] sm:$0xff]
    %v4311 = vld [vmem:[#allocation22 + $0x220] sm:$0xff]
    %v4312 = vld [vmem:[#allocation22 + $0x228] sm:$0xff]
    %v4313 = vld [vmem:[#allocation22 + $0x230] sm:$0xff]
    %v4314 = vld [vmem:[#allocation22 + $0x238] sm:$0xff]
    %v4315 = vld [vmem:[#allocation22 + $0x240] sm:$0xff]
    %v4316 = vld [vmem:[#allocation22 + $0x248] sm:$0xff]
    %v4317 = vld [vmem:[#allocation22 + $0x250] sm:$0xff]
    %v4318 = vld [vmem:[#allocation22 + $0x258] sm:$0xff]
    %v4319 = vld [vmem:[#allocation22 + $0x260] sm:$0xff]
    %v4320 = vld [vmem:[#allocation22 + $0x268] sm:$0xff]
    %v4321 = vld [vmem:[#allocation22 + $0x270] sm:$0xff]
    %v4322 = vld [vmem:[#allocation22 + $0x278] sm:$0xff]
    %v4323 = vld [vmem:[#allocation22 + $0x280] sm:$0xff]
    %v4324 = vld [vmem:[#allocation22 + $0x288] sm:$0xff]
    %v4325 = vld [vmem:[#allocation22 + $0x290] sm:$0xff]
    %v4326 = vld [vmem:[#allocation22 + $0x298] sm:$0xff]
    %v4327 = vld [vmem:[#allocation22 + $0x2a0] sm:$0xff]
    %v4328 = vld [vmem:[#allocation22 + $0x2a8] sm:$0xff]
    %v4329 = vld [vmem:[#allocation22 + $0x2b0] sm:$0xff]
    %v4330 = vld [vmem:[#allocation22 + $0x2b8] sm:$0xff]
    %v4331 = vld [vmem:[#allocation22 + $0x2c0] sm:$0xff]
    %v4332 = vld [vmem:[#allocation22 + $0x2c8] sm:$0xff]
    %v4333 = vld [vmem:[#allocation22 + $0x2d0] sm:$0xff]
    %v4334 = vld [vmem:[#allocation22 + $0x2d8] sm:$0xff]
    %v4335 = vld [vmem:[#allocation22 + $0x2e0] sm:$0xff]
    %v4336 = vld [vmem:[#allocation22 + $0x2e8] sm:$0xff]
    %v4337 = vld [vmem:[#allocation22 + $0x2f0] sm:$0xff]
    %v4338 = vld [vmem:[#allocation22 + $0x2f8] sm:$0xff]
    %v4339 = vld [vmem:[#allocation22 + $0x300] sm:$0xff]
    %v4340 = vld [vmem:[#allocation22 + $0x308] sm:$0xff]
    %v4341 = vld [vmem:[#allocation22 + $0x310] sm:$0xff]
    %v4342 = vld [vmem:[#allocation22 + $0x318] sm:$0xff]
    %v4343 = vld [vmem:[#allocation22 + $0x320] sm:$0xff]
    %v4344 = vld [vmem:[#allocation22 + $0x328] sm:$0xff]
    %v4345 = vld [vmem:[#allocation22 + $0x330] sm:$0xff]
    %v4346 = vld [vmem:[#allocation22 + $0x338] sm:$0xff]
    %v4347 = vld [vmem:[#allocation22 + $0x340] sm:$0xff]
    %v4348 = vld [vmem:[#allocation22 + $0x348] sm:$0xff]
    %v4349 = vld [vmem:[#allocation22 + $0x350] sm:$0xff]
    %v4350 = vld [vmem:[#allocation22 + $0x358] sm:$0xff]
    %v4351 = vld [vmem:[#allocation22 + $0x360] sm:$0xff]
    %v4352 = vld [vmem:[#allocation22 + $0x368] sm:$0xff]
    %v4353 = vld [vmem:[#allocation22 + $0x370] sm:$0xff]
    %v4354 = vld [vmem:[#allocation22 + $0x378] sm:$0xff]
    %v4355 = vld [vmem:[#allocation22 + $0x380] sm:$0xff]
    %v4356 = vld [vmem:[#allocation22 + $0x388] sm:$0xff]
    %v4357 = vld [vmem:[#allocation22 + $0x390] sm:$0xff]
    %v4358 = vld [vmem:[#allocation22 + $0x398] sm:$0xff]
    %v4359 = vld [vmem:[#allocation22 + $0x3a0] sm:$0xff]
    %v4360 = vld [vmem:[#allocation22 + $0x3a8] sm:$0xff]
    %v4361 = vld [vmem:[#allocation22 + $0x3b0] sm:$0xff]
    %v4362 = vld [vmem:[#allocation22 + $0x3b8] sm:$0xff]
    %v4363 = vld [vmem:[#allocation22 + $0x3c0] sm:$0xff]
    %v4364 = vld [vmem:[#allocation22 + $0x3c8] sm:$0xff]
    %v4365 = vld [vmem:[#allocation22 + $0x3d0] sm:$0xff]
    %v4366 = vld [vmem:[#allocation22 + $0x3d8] sm:$0xff]
    %v4367 = vld [vmem:[#allocation22 + $0x3e0] sm:$0xff]
    %v4368 = vld [vmem:[#allocation22 + $0x3e8] sm:$0xff]
    %v4369 = vld [vmem:[#allocation22 + $0x3f0] sm:$0xff]
    %v4370 = vld [vmem:[#allocation22 + $0x3f8] sm:$0xff]
    %v4371 = vld [vmem:[#allocation24] sm:$0xff]
    %v4373 = vlaneseq
    %v4374 = vshrl.u32 %v4373, 7
    %v4375 = vsub.s32 0, %v4374
    %v4376 = vrot.slane %v4371, %v4375
    %v4377 = vlaneseq
    %v4378 = vshrl.u32 %v4377, 7
    %v4379 = vsub.s32 1, %v4378
    %v4380 = vrot.slane %v4371, %v4379
    %v4381 = vlaneseq
    %v4382 = vshrl.u32 %v4381, 7
    %v4383 = vsub.s32 2, %v4382
    %v4384 = vrot.slane %v4371, %v4383
    %v4385 = vlaneseq
    %v4386 = vshrl.u32 %v4385, 7
    %v4387 = vsub.s32 3, %v4386
    %v4388 = vrot.slane %v4371, %v4387
    %v4389 = vlaneseq
    %v4390 = vshrl.u32 %v4389, 7
    %v4391 = vsub.s32 4, %v4390
    %v4392 = vrot.slane %v4371, %v4391
    %v4393 = vlaneseq
    %v4394 = vshrl.u32 %v4393, 7
    %v4395 = vsub.s32 5, %v4394
    %v4396 = vrot.slane %v4371, %v4395
    %v4397 = vlaneseq
    %v4398 = vshrl.u32 %v4397, 7
    %v4399 = vsub.s32 6, %v4398
    %v4400 = vrot.slane %v4371, %v4399
    %v4401 = vlaneseq
    %v4402 = vshrl.u32 %v4401, 7
    %v4403 = vsub.s32 7, %v4402
    %v4404 = vrot.slane %v4371, %v4403
    %v4541 = vunpack.c.l.b16 %v4243
    %v4542 = vunpack.c.h.b16 %v4243
    %v4543 = vunpack.c.l.b16 %v4244
    %v4544 = vunpack.c.h.b16 %v4244
    %v4545 = vunpack.c.l.b16 %v4245
    %v4546 = vunpack.c.h.b16 %v4245
    %v4547 = vunpack.c.l.b16 %v4246
    %v4548 = vunpack.c.h.b16 %v4246
    %v4549 = vunpack.c.l.b16 %v4247
    %v4550 = vunpack.c.h.b16 %v4247
    %v4551 = vunpack.c.l.b16 %v4248
    %v4552 = vunpack.c.h.b16 %v4248
    %v4553 = vunpack.c.l.b16 %v4249
    %v4554 = vunpack.c.h.b16 %v4249
    %v4555 = vunpack.c.l.b16 %v4250
    %v4556 = vunpack.c.h.b16 %v4250
    %v4557 = vunpack.c.l.b16 %v4251
    %v4558 = vunpack.c.h.b16 %v4251
    %v4559 = vunpack.c.l.b16 %v4252
    %v4560 = vunpack.c.h.b16 %v4252
    %v4561 = vunpack.c.l.b16 %v4253
    %v4562 = vunpack.c.h.b16 %v4253
    %v4563 = vunpack.c.l.b16 %v4254
    %v4564 = vunpack.c.h.b16 %v4254
    %v4565 = vunpack.c.l.b16 %v4255
    %v4566 = vunpack.c.h.b16 %v4255
    %v4567 = vunpack.c.l.b16 %v4256
    %v4568 = vunpack.c.h.b16 %v4256
    %v4569 = vunpack.c.l.b16 %v4257
    %v4570 = vunpack.c.h.b16 %v4257
    %v4571 = vunpack.c.l.b16 %v4258
    %v4572 = vunpack.c.h.b16 %v4258
    %v4573 = vunpack.c.l.b16 %v4259
    %v4574 = vunpack.c.h.b16 %v4259
    %v4575 = vunpack.c.l.b16 %v4260
    %v4576 = vunpack.c.h.b16 %v4260
    %v4577 = vunpack.c.l.b16 %v4261
    %v4578 = vunpack.c.h.b16 %v4261
    %v4579 = vunpack.c.l.b16 %v4262
    %v4580 = vunpack.c.h.b16 %v4262
    %v4581 = vunpack.c.l.b16 %v4263
    %v4582 = vunpack.c.h.b16 %v4263
    %v4583 = vunpack.c.l.b16 %v4264
    %v4584 = vunpack.c.h.b16 %v4264
    %v4585 = vunpack.c.l.b16 %v4265
    %v4586 = vunpack.c.h.b16 %v4265
    %v4587 = vunpack.c.l.b16 %v4266
    %v4588 = vunpack.c.h.b16 %v4266
    %v4589 = vunpack.c.l.b16 %v4267
    %v4590 = vunpack.c.h.b16 %v4267
    %v4591 = vunpack.c.l.b16 %v4268
    %v4592 = vunpack.c.h.b16 %v4268
    %v4593 = vunpack.c.l.b16 %v4269
    %v4594 = vunpack.c.h.b16 %v4269
    %v4595 = vunpack.c.l.b16 %v4270
    %v4596 = vunpack.c.h.b16 %v4270
    %v4597 = vunpack.c.l.b16 %v4271
    %v4598 = vunpack.c.h.b16 %v4271
    %v4599 = vunpack.c.l.b16 %v4272
    %v4600 = vunpack.c.h.b16 %v4272
    %v4601 = vunpack.c.l.b16 %v4273
    %v4602 = vunpack.c.h.b16 %v4273
    %v4603 = vunpack.c.l.b16 %v4274
    %v4604 = vunpack.c.h.b16 %v4274
    %v4605 = vunpack.c.l.b16 %v4275
    %v4606 = vunpack.c.h.b16 %v4275
    %v4607 = vunpack.c.l.b16 %v4276
    %v4608 = vunpack.c.h.b16 %v4276
    %v4609 = vunpack.c.l.b16 %v4277
    %v4610 = vunpack.c.h.b16 %v4277
    %v4611 = vunpack.c.l.b16 %v4278
    %v4612 = vunpack.c.h.b16 %v4278
    %v4613 = vunpack.c.l.b16 %v4279
    %v4614 = vunpack.c.h.b16 %v4279
    %v4615 = vunpack.c.l.b16 %v4280
    %v4616 = vunpack.c.h.b16 %v4280
    %v4617 = vunpack.c.l.b16 %v4281
    %v4618 = vunpack.c.h.b16 %v4281
    %v4619 = vunpack.c.l.b16 %v4282
    %v4620 = vunpack.c.h.b16 %v4282
    %v4621 = vunpack.c.l.b16 %v4283
    %v4622 = vunpack.c.h.b16 %v4283
    %v4623 = vunpack.c.l.b16 %v4284
    %v4624 = vunpack.c.h.b16 %v4284
    %v4625 = vunpack.c.l.b16 %v4285
    %v4626 = vunpack.c.h.b16 %v4285
    %v4627 = vunpack.c.l.b16 %v4286
    %v4628 = vunpack.c.h.b16 %v4286
    %v4629 = vunpack.c.l.b16 %v4287
    %v4630 = vunpack.c.h.b16 %v4287
    %v4631 = vunpack.c.l.b16 %v4288
    %v4632 = vunpack.c.h.b16 %v4288
    %v4633 = vunpack.c.l.b16 %v4289
    %v4634 = vunpack.c.h.b16 %v4289
    %v4635 = vunpack.c.l.b16 %v4290
    %v4636 = vunpack.c.h.b16 %v4290
    %v4637 = vunpack.c.l.b16 %v4291
    %v4638 = vunpack.c.h.b16 %v4291
    %v4639 = vunpack.c.l.b16 %v4292
    %v4640 = vunpack.c.h.b16 %v4292
    %v4641 = vunpack.c.l.b16 %v4293
    %v4642 = vunpack.c.h.b16 %v4293
    %v4643 = vunpack.c.l.b16 %v4294
    %v4644 = vunpack.c.h.b16 %v4294
    %v4645 = vunpack.c.l.b16 %v4295
    %v4646 = vunpack.c.h.b16 %v4295
    %v4647 = vunpack.c.l.b16 %v4296
    %v4648 = vunpack.c.h.b16 %v4296
    %v4649 = vunpack.c.l.b16 %v4297
    %v4650 = vunpack.c.h.b16 %v4297
    %v4651 = vunpack.c.l.b16 %v4298
    %v4652 = vunpack.c.h.b16 %v4298
    %v4653 = vunpack.c.l.b16 %v4299
    %v4654 = vunpack.c.h.b16 %v4299
    %v4655 = vunpack.c.l.b16 %v4300
    %v4656 = vunpack.c.h.b16 %v4300
    %v4657 = vunpack.c.l.b16 %v4301
    %v4658 = vunpack.c.h.b16 %v4301
    %v4659 = vunpack.c.l.b16 %v4302
    %v4660 = vunpack.c.h.b16 %v4302
    %v4661 = vunpack.c.l.b16 %v4303
    %v4662 = vunpack.c.h.b16 %v4303
    %v4663 = vunpack.c.l.b16 %v4304
    %v4664 = vunpack.c.h.b16 %v4304
    %v4665 = vunpack.c.l.b16 %v4305
    %v4666 = vunpack.c.h.b16 %v4305
    %v4667 = vunpack.c.l.b16 %v4306
    %v4668 = vunpack.c.h.b16 %v4306
    %v4669 = vunpack.c.l.b16 %v4307
    %v4670 = vunpack.c.h.b16 %v4307
    %v4671 = vunpack.c.l.b16 %v4308
    %v4672 = vunpack.c.h.b16 %v4308
    %v4673 = vunpack.c.l.b16 %v4309
    %v4674 = vunpack.c.h.b16 %v4309
    %v4675 = vunpack.c.l.b16 %v4310
    %v4676 = vunpack.c.h.b16 %v4310
    %v4677 = vunpack.c.l.b16 %v4311
    %v4678 = vunpack.c.h.b16 %v4311
    %v4679 = vunpack.c.l.b16 %v4312
    %v4680 = vunpack.c.h.b16 %v4312
    %v4681 = vunpack.c.l.b16 %v4313
    %v4682 = vunpack.c.h.b16 %v4313
    %v4683 = vunpack.c.l.b16 %v4314
    %v4684 = vunpack.c.h.b16 %v4314
    %v4685 = vunpack.c.l.b16 %v4315
    %v4686 = vunpack.c.h.b16 %v4315
    %v4687 = vunpack.c.l.b16 %v4316
    %v4688 = vunpack.c.h.b16 %v4316
    %v4689 = vunpack.c.l.b16 %v4317
    %v4690 = vunpack.c.h.b16 %v4317
    %v4691 = vunpack.c.l.b16 %v4318
    %v4692 = vunpack.c.h.b16 %v4318
    %v4693 = vunpack.c.l.b16 %v4319
    %v4694 = vunpack.c.h.b16 %v4319
    %v4695 = vunpack.c.l.b16 %v4320
    %v4696 = vunpack.c.h.b16 %v4320
    %v4697 = vunpack.c.l.b16 %v4321
    %v4698 = vunpack.c.h.b16 %v4321
    %v4699 = vunpack.c.l.b16 %v4322
    %v4700 = vunpack.c.h.b16 %v4322
    %v4701 = vunpack.c.l.b16 %v4323
    %v4702 = vunpack.c.h.b16 %v4323
    %v4703 = vunpack.c.l.b16 %v4324
    %v4704 = vunpack.c.h.b16 %v4324
    %v4705 = vunpack.c.l.b16 %v4325
    %v4706 = vunpack.c.h.b16 %v4325
    %v4707 = vunpack.c.l.b16 %v4326
    %v4708 = vunpack.c.h.b16 %v4326
    %v4709 = vunpack.c.l.b16 %v4327
    %v4710 = vunpack.c.h.b16 %v4327
    %v4711 = vunpack.c.l.b16 %v4328
    %v4712 = vunpack.c.h.b16 %v4328
    %v4713 = vunpack.c.l.b16 %v4329
    %v4714 = vunpack.c.h.b16 %v4329
    %v4715 = vunpack.c.l.b16 %v4330
    %v4716 = vunpack.c.h.b16 %v4330
    %v4717 = vunpack.c.l.b16 %v4331
    %v4718 = vunpack.c.h.b16 %v4331
    %v4719 = vunpack.c.l.b16 %v4332
    %v4720 = vunpack.c.h.b16 %v4332
    %v4721 = vunpack.c.l.b16 %v4333
    %v4722 = vunpack.c.h.b16 %v4333
    %v4723 = vunpack.c.l.b16 %v4334
    %v4724 = vunpack.c.h.b16 %v4334
    %v4725 = vunpack.c.l.b16 %v4335
    %v4726 = vunpack.c.h.b16 %v4335
    %v4727 = vunpack.c.l.b16 %v4336
    %v4728 = vunpack.c.h.b16 %v4336
    %v4729 = vunpack.c.l.b16 %v4337
    %v4730 = vunpack.c.h.b16 %v4337
    %v4731 = vunpack.c.l.b16 %v4338
    %v4732 = vunpack.c.h.b16 %v4338
    %v4733 = vunpack.c.l.b16 %v4339
    %v4734 = vunpack.c.h.b16 %v4339
    %v4735 = vunpack.c.l.b16 %v4340
    %v4736 = vunpack.c.h.b16 %v4340
    %v4737 = vunpack.c.l.b16 %v4341
    %v4738 = vunpack.c.h.b16 %v4341
    %v4739 = vunpack.c.l.b16 %v4342
    %v4740 = vunpack.c.h.b16 %v4342
    %v4741 = vunpack.c.l.b16 %v4343
    %v4742 = vunpack.c.h.b16 %v4343
    %v4743 = vunpack.c.l.b16 %v4344
    %v4744 = vunpack.c.h.b16 %v4344
    %v4745 = vunpack.c.l.b16 %v4345
    %v4746 = vunpack.c.h.b16 %v4345
    %v4747 = vunpack.c.l.b16 %v4346
    %v4748 = vunpack.c.h.b16 %v4346
    %v4749 = vunpack.c.l.b16 %v4347
    %v4750 = vunpack.c.h.b16 %v4347
    %v4751 = vunpack.c.l.b16 %v4348
    %v4752 = vunpack.c.h.b16 %v4348
    %v4753 = vunpack.c.l.b16 %v4349
    %v4754 = vunpack.c.h.b16 %v4349
    %v4755 = vunpack.c.l.b16 %v4350
    %v4756 = vunpack.c.h.b16 %v4350
    %v4757 = vunpack.c.l.b16 %v4351
    %v4758 = vunpack.c.h.b16 %v4351
    %v4759 = vunpack.c.l.b16 %v4352
    %v4760 = vunpack.c.h.b16 %v4352
    %v4761 = vunpack.c.l.b16 %v4353
    %v4762 = vunpack.c.h.b16 %v4353
    %v4763 = vunpack.c.l.b16 %v4354
    %v4764 = vunpack.c.h.b16 %v4354
    %v4765 = vunpack.c.l.b16 %v4355
    %v4766 = vunpack.c.h.b16 %v4355
    %v4767 = vunpack.c.l.b16 %v4356
    %v4768 = vunpack.c.h.b16 %v4356
    %v4769 = vunpack.c.l.b16 %v4357
    %v4770 = vunpack.c.h.b16 %v4357
    %v4771 = vunpack.c.l.b16 %v4358
    %v4772 = vunpack.c.h.b16 %v4358
    %v4773 = vunpack.c.l.b16 %v4359
    %v4774 = vunpack.c.h.b16 %v4359
    %v4775 = vunpack.c.l.b16 %v4360
    %v4776 = vunpack.c.h.b16 %v4360
    %v4777 = vunpack.c.l.b16 %v4361
    %v4778 = vunpack.c.h.b16 %v4361
    %v4779 = vunpack.c.l.b16 %v4362
    %v4780 = vunpack.c.h.b16 %v4362
    %v4781 = vunpack.c.l.b16 %v4363
    %v4782 = vunpack.c.h.b16 %v4363
    %v4783 = vunpack.c.l.b16 %v4364
    %v4784 = vunpack.c.h.b16 %v4364
    %v4785 = vunpack.c.l.b16 %v4365
    %v4786 = vunpack.c.h.b16 %v4365
    %v4787 = vunpack.c.l.b16 %v4366
    %v4788 = vunpack.c.h.b16 %v4366
    %v4789 = vunpack.c.l.b16 %v4367
    %v4790 = vunpack.c.h.b16 %v4367
    %v4791 = vunpack.c.l.b16 %v4368
    %v4792 = vunpack.c.h.b16 %v4368
    %v4793 = vunpack.c.l.b16 %v4369
    %v4794 = vunpack.c.h.b16 %v4369
    %v4795 = vunpack.c.l.b16 %v4370
    %v4796 = vunpack.c.h.b16 %v4370
    %v4797 = vpack.c.b16 %v4549, %v4541
    %v4798 = vpack.c.b16 %v4550, %v4542
    %v4799 = vpack.c.b16 %v4551, %v4543
    %v4800 = vpack.c.b16 %v4552, %v4544
    %v4801 = vpack.c.b16 %v4553, %v4545
    %v4802 = vpack.c.b16 %v4554, %v4546
    %v4803 = vpack.c.b16 %v4555, %v4547
    %v4804 = vpack.c.b16 %v4556, %v4548
    %v4805 = vpack.c.b16 %v4565, %v4557
    %v4806 = vpack.c.b16 %v4566, %v4558
    %v4807 = vpack.c.b16 %v4567, %v4559
    %v4808 = vpack.c.b16 %v4568, %v4560
    %v4809 = vpack.c.b16 %v4569, %v4561
    %v4810 = vpack.c.b16 %v4570, %v4562
    %v4811 = vpack.c.b16 %v4571, %v4563
    %v4812 = vpack.c.b16 %v4572, %v4564
    %v4813 = vpack.c.b16 %v4581, %v4573
    %v4814 = vpack.c.b16 %v4582, %v4574
    %v4815 = vpack.c.b16 %v4583, %v4575
    %v4816 = vpack.c.b16 %v4584, %v4576
    %v4817 = vpack.c.b16 %v4585, %v4577
    %v4818 = vpack.c.b16 %v4586, %v4578
    %v4819 = vpack.c.b16 %v4587, %v4579
    %v4820 = vpack.c.b16 %v4588, %v4580
    %v4821 = vpack.c.b16 %v4597, %v4589
    %v4822 = vpack.c.b16 %v4598, %v4590
    %v4823 = vpack.c.b16 %v4599, %v4591
    %v4824 = vpack.c.b16 %v4600, %v4592
    %v4825 = vpack.c.b16 %v4601, %v4593
    %v4826 = vpack.c.b16 %v4602, %v4594
    %v4827 = vpack.c.b16 %v4603, %v4595
    %v4828 = vpack.c.b16 %v4604, %v4596
    %v4829 = vpack.c.b16 %v4613, %v4605
    %v4830 = vpack.c.b16 %v4614, %v4606
    %v4831 = vpack.c.b16 %v4615, %v4607
    %v4832 = vpack.c.b16 %v4616, %v4608
    %v4833 = vpack.c.b16 %v4617, %v4609
    %v4834 = vpack.c.b16 %v4618, %v4610
    %v4835 = vpack.c.b16 %v4619, %v4611
    %v4836 = vpack.c.b16 %v4620, %v4612
    %v4837 = vpack.c.b16 %v4629, %v4621
    %v4838 = vpack.c.b16 %v4630, %v4622
    %v4839 = vpack.c.b16 %v4631, %v4623
    %v4840 = vpack.c.b16 %v4632, %v4624
    %v4841 = vpack.c.b16 %v4633, %v4625
    %v4842 = vpack.c.b16 %v4634, %v4626
    %v4843 = vpack.c.b16 %v4635, %v4627
    %v4844 = vpack.c.b16 %v4636, %v4628
    %v4845 = vpack.c.b16 %v4645, %v4637
    %v4846 = vpack.c.b16 %v4646, %v4638
    %v4847 = vpack.c.b16 %v4647, %v4639
    %v4848 = vpack.c.b16 %v4648, %v4640
    %v4849 = vpack.c.b16 %v4649, %v4641
    %v4850 = vpack.c.b16 %v4650, %v4642
    %v4851 = vpack.c.b16 %v4651, %v4643
    %v4852 = vpack.c.b16 %v4652, %v4644
    %v4853 = vpack.c.b16 %v4661, %v4653
    %v4854 = vpack.c.b16 %v4662, %v4654
    %v4855 = vpack.c.b16 %v4663, %v4655
    %v4856 = vpack.c.b16 %v4664, %v4656
    %v4857 = vpack.c.b16 %v4665, %v4657
    %v4858 = vpack.c.b16 %v4666, %v4658
    %v4859 = vpack.c.b16 %v4667, %v4659
    %v4860 = vpack.c.b16 %v4668, %v4660
    %v4861 = vpack.c.b16 %v4677, %v4669
    %v4862 = vpack.c.b16 %v4678, %v4670
    %v4863 = vpack.c.b16 %v4679, %v4671
    %v4864 = vpack.c.b16 %v4680, %v4672
    %v4865 = vpack.c.b16 %v4681, %v4673
    %v4866 = vpack.c.b16 %v4682, %v4674
    %v4867 = vpack.c.b16 %v4683, %v4675
    %v4868 = vpack.c.b16 %v4684, %v4676
    %v4869 = vpack.c.b16 %v4693, %v4685
    %v4870 = vpack.c.b16 %v4694, %v4686
    %v4871 = vpack.c.b16 %v4695, %v4687
    %v4872 = vpack.c.b16 %v4696, %v4688
    %v4873 = vpack.c.b16 %v4697, %v4689
    %v4874 = vpack.c.b16 %v4698, %v4690
    %v4875 = vpack.c.b16 %v4699, %v4691
    %v4876 = vpack.c.b16 %v4700, %v4692
    %v4877 = vpack.c.b16 %v4709, %v4701
    %v4878 = vpack.c.b16 %v4710, %v4702
    %v4879 = vpack.c.b16 %v4711, %v4703
    %v4880 = vpack.c.b16 %v4712, %v4704
    %v4881 = vpack.c.b16 %v4713, %v4705
    %v4882 = vpack.c.b16 %v4714, %v4706
    %v4883 = vpack.c.b16 %v4715, %v4707
    %v4884 = vpack.c.b16 %v4716, %v4708
    %v4885 = vpack.c.b16 %v4725, %v4717
    %v4886 = vpack.c.b16 %v4726, %v4718
    %v4887 = vpack.c.b16 %v4727, %v4719
    %v4888 = vpack.c.b16 %v4728, %v4720
    %v4889 = vpack.c.b16 %v4729, %v4721
    %v4890 = vpack.c.b16 %v4730, %v4722
    %v4891 = vpack.c.b16 %v4731, %v4723
    %v4892 = vpack.c.b16 %v4732, %v4724
    %v4893 = vpack.c.b16 %v4741, %v4733
    %v4894 = vpack.c.b16 %v4742, %v4734
    %v4895 = vpack.c.b16 %v4743, %v4735
    %v4896 = vpack.c.b16 %v4744, %v4736
    %v4897 = vpack.c.b16 %v4745, %v4737
    %v4898 = vpack.c.b16 %v4746, %v4738
    %v4899 = vpack.c.b16 %v4747, %v4739
    %v4900 = vpack.c.b16 %v4748, %v4740
    %v4901 = vpack.c.b16 %v4757, %v4749
    %v4902 = vpack.c.b16 %v4758, %v4750
    %v4903 = vpack.c.b16 %v4759, %v4751
    %v4904 = vpack.c.b16 %v4760, %v4752
    %v4905 = vpack.c.b16 %v4761, %v4753
    %v4906 = vpack.c.b16 %v4762, %v4754
    %v4907 = vpack.c.b16 %v4763, %v4755
    %v4908 = vpack.c.b16 %v4764, %v4756
    %v4909 = vpack.c.b16 %v4773, %v4765
    %v4910 = vpack.c.b16 %v4774, %v4766
    %v4911 = vpack.c.b16 %v4775, %v4767
    %v4912 = vpack.c.b16 %v4776, %v4768
    %v4913 = vpack.c.b16 %v4777, %v4769
    %v4914 = vpack.c.b16 %v4778, %v4770
    %v4915 = vpack.c.b16 %v4779, %v4771
    %v4916 = vpack.c.b16 %v4780, %v4772
    %v4917 = vpack.c.b16 %v4789, %v4781
    %v4918 = vpack.c.b16 %v4790, %v4782
    %v4919 = vpack.c.b16 %v4791, %v4783
    %v4920 = vpack.c.b16 %v4792, %v4784
    %v4921 = vpack.c.b16 %v4793, %v4785
    %v4922 = vpack.c.b16 %v4794, %v4786
    %v4923 = vpack.c.b16 %v4795, %v4787
    %v4924 = vpack.c.b16 %v4796, %v4788
    %5053 = vmatprep.subr.bf16.mxu0 %v4798
    %5054 = vmatpush1.bf16.msra.mxu0 %v4797
    %5055 = vmatprep.subr.bf16.mxu0 %v4806
    %5056 = vmatpush1.bf16.msra.mxu0 %v4805
    %5057 = vmatprep.subr.bf16.mxu0 %v4814
    %5058 = vmatpush1.bf16.msra.mxu0 %v4813
    %5059 = vmatprep.subr.bf16.mxu0 %v4822
    %5060 = vmatpush1.bf16.msra.mxu0 %v4821
    %5061 = vmatprep.subr.bf16.mxu0 %v4830
    %5062 = vmatpush1.bf16.msra.mxu0 %v4829
    %5063 = vmatprep.subr.bf16.mxu0 %v4838
    %5064 = vmatpush1.bf16.msra.mxu0 %v4837
    %5065 = vmatprep.subr.bf16.mxu0 %v4846
    %5066 = vmatpush1.bf16.msra.mxu0 %v4845
    %5067 = vmatprep.subr.bf16.mxu0 %v4854
    %5068 = vmatpush1.bf16.msra.mxu0 %v4853
    %5069 = vmatprep.subr.bf16.mxu0 %v4862
    %5070 = vmatpush1.bf16.msra.mxu0 %v4861
    %5071 = vmatprep.subr.bf16.mxu0 %v4870
    %5072 = vmatpush1.bf16.msra.mxu0 %v4869
    %5073 = vmatprep.subr.bf16.mxu0 %v4878
    %5074 = vmatpush1.bf16.msra.mxu0 %v4877
    %5075 = vmatprep.subr.bf16.mxu0 %v4886
    %5076 = vmatpush1.bf16.msra.mxu0 %v4885
    %5077 = vmatprep.subr.bf16.mxu0 %v4894
    %5078 = vmatpush1.bf16.msra.mxu0 %v4893
    %5079 = vmatprep.subr.bf16.mxu0 %v4902
    %5080 = vmatpush1.bf16.msra.mxu0 %v4901
    %5081 = vmatprep.subr.bf16.mxu0 %v4910
    %5082 = vmatpush1.bf16.msra.mxu0 %v4909
    %5083 = vmatprep.subr.bf16.mxu0 %v4918
    %5084 = vmatpush1.bf16.msra.mxu0 %v4917
    %5085 = vmatprep.mubr.bf16.mxu0 %v4240
    %5086 = vmatmul.mubr.bf16.gmra.mrb[0].mxu0 %v4239
    %v5087 = vpop.f32.mrb[0].mxu0
    %v5088 = vadd.f32 %v4376, %v5087
    %v5089 = vpop.f32.mrb[0].mxu0
    %v5090 = vadd.f32 %v4380, %v5089
    %v5091 = vpop.f32.mrb[0].mxu0
    %v5092 = vadd.f32 %v4376, %v5091
    %v5093 = vpop.f32.mrb[0].mxu0
    %v5094 = vadd.f32 %v4380, %v5093
    %5095 = vmatprep.mubr.bf16.mxu0 %v4242
    %5096 = vmatmul.mubr.bf16.gmra.mrb[0].mxu0 %v4241
    %v5097 = vpop.f32.mrb[0].mxu0
    %v5098 = vadd.f32 %v4376, %v5097
    %v5099 = vpop.f32.mrb[0].mxu0
    %v5100 = vadd.f32 %v4380, %v5099
    %v5101 = vpop.f32.mrb[0].mxu0
    %v5102 = vadd.f32 %v4376, %v5101
    %v5103 = vpop.f32.mrb[0].mxu0
    %v5104 = vadd.f32 %v4380, %v5103
    %5105 = vdwg.mxu0
    %5106 = vmatprep.subr.bf16.mxu0 %v4800
    %5107 = vmatpush1.bf16.msra.mxu0 %v4799
    %5108 = vmatprep.subr.bf16.mxu0 %v4808
    %5109 = vmatpush1.bf16.msra.mxu0 %v4807
    %5110 = vmatprep.subr.bf16.mxu0 %v4816
    %5111 = vmatpush1.bf16.msra.mxu0 %v4815
    %5112 = vmatprep.subr.bf16.mxu0 %v4824
    %5113 = vmatpush1.bf16.msra.mxu0 %v4823
    %5114 = vmatprep.subr.bf16.mxu0 %v4832
    %5115 = vmatpush1.bf16.msra.mxu0 %v4831
    %5116 = vmatprep.subr.bf16.mxu0 %v4840
    %5117 = vmatpush1.bf16.msra.mxu0 %v4839
    %5118 = vmatprep.subr.bf16.mxu0 %v4848
    %5119 = vmatpush1.bf16.msra.mxu0 %v4847
    %5120 = vmatprep.subr.bf16.mxu0 %v4856
    %5121 = vmatpush1.bf16.msra.mxu0 %v4855
    %5122 = vmatprep.subr.bf16.mxu0 %v4864
    %5123 = vmatpush1.bf16.msra.mxu0 %v4863
    %5124 = vmatprep.subr.bf16.mxu0 %v4872
    %5125 = vmatpush1.bf16.msra.mxu0 %v4871
    %5126 = vmatprep.subr.bf16.mxu0 %v4880
    %5127 = vmatpush1.bf16.msra.mxu0 %v4879
    %5128 = vmatprep.subr.bf16.mxu0 %v4888
    %5129 = vmatpush1.bf16.msra.mxu0 %v4887
    %5130 = vmatprep.subr.bf16.mxu0 %v4896
    %5131 = vmatpush1.bf16.msra.mxu0 %v4895
    %5132 = vmatprep.subr.bf16.mxu0 %v4904
    %5133 = vmatpush1.bf16.msra.mxu0 %v4903
    %5134 = vmatprep.subr.bf16.mxu0 %v4912
    %5135 = vmatpush1.bf16.msra.mxu0 %v4911
    %5136 = vmatprep.subr.bf16.mxu0 %v4920
    %5137 = vmatpush1.bf16.msra.mxu0 %v4919
    %5138 = vmatprep.mubr.bf16.mxu0 %v4240
    %5139 = vmatmul.mubr.bf16.gmra.mrb[0].mxu0 %v4239
    %v5140 = vpop.f32.mrb[0].mxu0
    %v5141 = vadd.f32 %v4384, %v5140
    %v5142 = vpop.f32.mrb[0].mxu0
    %v5143 = vadd.f32 %v4388, %v5142
    %v5144 = vpop.f32.mrb[0].mxu0
    %v5145 = vadd.f32 %v4384, %v5144
    %v5146 = vpop.f32.mrb[0].mxu0
    %v5147 = vadd.f32 %v4388, %v5146
    %5148 = vmatprep.mubr.bf16.mxu0 %v4242
    %5149 = vmatmul.mubr.bf16.gmra.mrb[0].mxu0 %v4241
    %v5150 = vpop.f32.mrb[0].mxu0
    %v5151 = vadd.f32 %v4384, %v5150
    %v5152 = vpop.f32.mrb[0].mxu0
    %v5153 = vadd.f32 %v4388, %v5152
    %v5154 = vpop.f32.mrb[0].mxu0
    %v5155 = vadd.f32 %v4384, %v5154
    %v5156 = vpop.f32.mrb[0].mxu0
    %v5157 = vadd.f32 %v4388, %v5156
    %5158 = vdwg.mxu0
    %5159 = vmatprep.subr.bf16.mxu0 %v4802
    %5160 = vmatpush1.bf16.msra.mxu0 %v4801
    %5161 = vmatprep.subr.bf16.mxu0 %v4810
    %5162 = vmatpush1.bf16.msra.mxu0 %v4809
    %5163 = vmatprep.subr.bf16.mxu0 %v4818
    %5164 = vmatpush1.bf16.msra.mxu0 %v4817
    %5165 = vmatprep.subr.bf16.mxu0 %v4826
    %5166 = vmatpush1.bf16.msra.mxu0 %v4825
    %5167 = vmatprep.subr.bf16.mxu0 %v4834
    %5168 = vmatpush1.bf16.msra.mxu0 %v4833
    %5169 = vmatprep.subr.bf16.mxu0 %v4842
    %5170 = vmatpush1.bf16.msra.mxu0 %v4841
    %5171 = vmatprep.subr.bf16.mxu0 %v4850
    %5172 = vmatpush1.bf16.msra.mxu0 %v4849
    %5173 = vmatprep.subr.bf16.mxu0 %v4858
    %5174 = vmatpush1.bf16.msra.mxu0 %v4857
    %5175 = vmatprep.subr.bf16.mxu0 %v4866
    %5176 = vmatpush1.bf16.msra.mxu0 %v4865
    %5177 = vmatprep.subr.bf16.mxu0 %v4874
    %5178 = vmatpush1.bf16.msra.mxu0 %v4873
    %5179 = vmatprep.subr.bf16.mxu0 %v4882
    %5180 = vmatpush1.bf16.msra.mxu0 %v4881
    %5181 = vmatprep.subr.bf16.mxu0 %v4890
    %5182 = vmatpush1.bf16.msra.mxu0 %v4889
    %5183 = vmatprep.subr.bf16.mxu0 %v4898
    %5184 = vmatpush1.bf16.msra.mxu0 %v4897
    %5185 = vmatprep.subr.bf16.mxu0 %v4906
    %5186 = vmatpush1.bf16.msra.mxu0 %v4905
    %5187 = vmatprep.subr.bf16.mxu0 %v4914
    %5188 = vmatpush1.bf16.msra.mxu0 %v4913
    %5189 = vmatprep.subr.bf16.mxu0 %v4922
    %5190 = vmatpush1.bf16.msra.mxu0 %v4921
    %5191 = vmatprep.mubr.bf16.mxu0 %v4240
    %5192 = vmatmul.mubr.bf16.gmra.mrb[0].mxu0 %v4239
    %v5193 = vpop.f32.mrb[0].mxu0
    %v5194 = vadd.f32 %v4392, %v5193
    %v5195 = vpop.f32.mrb[0].mxu0
    %v5196 = vadd.f32 %v4396, %v5195
    %v5197 = vpop.f32.mrb[0].mxu0
    %v5198 = vadd.f32 %v4392, %v5197
    %v5199 = vpop.f32.mrb[0].mxu0
    %v5200 = vadd.f32 %v4396, %v5199
    %5201 = vmatprep.mubr.bf16.mxu0 %v4242
    %5202 = vmatmul.mubr.bf16.gmra.mrb[0].mxu0 %v4241
    %v5203 = vpop.f32.mrb[0].mxu0
    %v5204 = vadd.f32 %v4392, %v5203
    %v5205 = vpop.f32.mrb[0].mxu0
    %v5206 = vadd.f32 %v4396, %v5205
    %v5207 = vpop.f32.mrb[0].mxu0
    %v5208 = vadd.f32 %v4392, %v5207
    %v5209 = vpop.f32.mrb[0].mxu0
    %v5210 = vadd.f32 %v4396, %v5209
    %5211 = vdwg.mxu0
    %5212 = vmatprep.subr.bf16.mxu0 %v4804
    %5213 = vmatpush1.bf16.msra.mxu0 %v4803
    %5214 = vmatprep.subr.bf16.mxu0 %v4812
    %5215 = vmatpush1.bf16.msra.mxu0 %v4811
    %5216 = vmatprep.subr.bf16.mxu0 %v4820
    %5217 = vmatpush1.bf16.msra.mxu0 %v4819
    %5218 = vmatprep.subr.bf16.mxu0 %v4828
    %5219 = vmatpush1.bf16.msra.mxu0 %v4827
    %5220 = vmatprep.subr.bf16.mxu0 %v4836
    %5221 = vmatpush1.bf16.msra.mxu0 %v4835
    %5222 = vmatprep.subr.bf16.mxu0 %v4844
    %5223 = vmatpush1.bf16.msra.mxu0 %v4843
    %5224 = vmatprep.subr.bf16.mxu0 %v4852
    %5225 = vmatpush1.bf16.msra.mxu0 %v4851
    %5226 = vmatprep.subr.bf16.mxu0 %v4860
    %5227 = vmatpush1.bf16.msra.mxu0 %v4859
    %5228 = vmatprep.subr.bf16.mxu0 %v4868
    %5229 = vmatpush1.bf16.msra.mxu0 %v4867
    %5230 = vmatprep.subr.bf16.mxu0 %v4876
    %5231 = vmatpush1.bf16.msra.mxu0 %v4875
    %5232 = vmatprep.subr.bf16.mxu0 %v4884
    %5233 = vmatpush1.bf16.msra.mxu0 %v4883
    %5234 = vmatprep.subr.bf16.mxu0 %v4892
    %5235 = vmatpush1.bf16.msra.mxu0 %v4891
    %5236 = vmatprep.subr.bf16.mxu0 %v4900
    %5237 = vmatpush1.bf16.msra.mxu0 %v4899
    %5238 = vmatprep.subr.bf16.mxu0 %v4908
    %5239 = vmatpush1.bf16.msra.mxu0 %v4907
    %5240 = vmatprep.subr.bf16.mxu0 %v4916
    %5241 = vmatpush1.bf16.msra.mxu0 %v4915
    %5242 = vmatprep.subr.bf16.mxu0 %v4924
    %5243 = vmatpush1.bf16.msra.mxu0 %v4923
    %5244 = vmatprep.mubr.bf16.mxu0 %v4240
    %5245 = vmatmul.mubr.bf16.gmra.mrb[0].mxu0 %v4239
    %v5246 = vpop.f32.mrb[0].mxu0
    %v5247 = vadd.f32 %v4400, %v5246
    %v5248 = vpop.f32.mrb[0].mxu0
    %v5249 = vadd.f32 %v4404, %v5248
    %v5250 = vpop.f32.mrb[0].mxu0
    %v5251 = vadd.f32 %v4400, %v5250
    %v5252 = vpop.f32.mrb[0].mxu0
    %v5253 = vadd.f32 %v4404, %v5252
    %5254 = vmatprep.mubr.bf16.mxu0 %v4242
    %5255 = vmatmul.mubr.bf16.gmra.mrb[0].mxu0 %v4241
    %v5256 = vpop.f32.mrb[0].mxu0
    %v5257 = vadd.f32 %v4400, %v5256
    %v5258 = vpop.f32.mrb[0].mxu0
    %v5259 = vadd.f32 %v4404, %v5258
    %v5260 = vpop.f32.mrb[0].mxu0
    %v5261 = vadd.f32 %v4400, %v5260
    %v5262 = vpop.f32.mrb[0].mxu0
    %v5263 = vadd.f32 %v4404, %v5262
    %5264 = vdwg.mxu0
    %v5297 = vcombine.low %v5088, %v5090
    %v5298 = vcombine.high %v5088, %v5090
    %v5299 = vcombine.low %v5141, %v5143
    %v5300 = vcombine.high %v5141, %v5143
    %v5302 = vunpack.c.l.s4 1983009808
    %v5303 = vunpack.c.0.s8 %v5302
    %v5304 = vlaneseq
    %v5305 = vshrl.u32 %v5304, 7
    %v5306 = vsub.s32 %v5303, %v5305
    %v5307 = vrot.slane %v5297, %v5306
    %v5309 = vunpack.c.l.s4 1983009808
    %v5310 = vunpack.c.0.s8 %v5309
    %v5311 = vlaneseq
    %v5312 = vshrl.u32 %v5311, 7
    %v5313 = vsub.s32 %v5310, %v5312
    %v5314 = vrot.slane %v5298, %v5313
    %v5316 = vunpack.c.l.s4 1983009808
    %v5317 = vunpack.c.0.s8 %v5316
    %v5318 = vlaneseq
    %v5319 = vshrl.u32 %v5318, 7
    %v5320 = vsub.s32 %v5317, %v5319
    %v5321 = vrot.slane %v5299, %v5320
    %v5323 = vunpack.c.l.s4 1983009808
    %v5324 = vunpack.c.0.s8 %v5323
    %v5325 = vlaneseq
    %v5326 = vshrl.u32 %v5325, 7
    %v5327 = vsub.s32 %v5324, %v5326
    %v5328 = vrot.slane %v5300, %v5327
    %v5329 = vcombine.low %v5307, %v5321
    %v5330 = vcombine.high %v5307, %v5321
    %v5331 = vcombine.low %v5314, %v5328
    %v5332 = vcombine.high %v5314, %v5328
    %v5333 = vcombine.low %v5194, %v5196
    %v5334 = vcombine.high %v5194, %v5196
    %v5335 = vcombine.low %v5247, %v5249
    %v5336 = vcombine.high %v5247, %v5249
    %v5338 = vunpack.c.l.s4 1983009808
    %v5339 = vunpack.c.0.s8 %v5338
    %v5340 = vlaneseq
    %v5341 = vshrl.u32 %v5340, 7
    %v5342 = vsub.s32 %v5339, %v5341
    %v5343 = vrot.slane %v5333, %v5342
    %v5345 = vunpack.c.l.s4 1983009808
    %v5346 = vunpack.c.0.s8 %v5345
    %v5347 = vlaneseq
    %v5348 = vshrl.u32 %v5347, 7
    %v5349 = vsub.s32 %v5346, %v5348
    %v5350 = vrot.slane %v5334, %v5349
    %v5352 = vunpack.c.l.s4 1983009808
    %v5353 = vunpack.c.0.s8 %v5352
    %v5354 = vlaneseq
    %v5355 = vshrl.u32 %v5354, 7
    %v5356 = vsub.s32 %v5353, %v5355
    %v5357 = vrot.slane %v5335, %v5356
    %v5359 = vunpack.c.l.s4 1983009808
    %v5360 = vunpack.c.0.s8 %v5359
    %v5361 = vlaneseq
    %v5362 = vshrl.u32 %v5361, 7
    %v5363 = vsub.s32 %v5360, %v5362
    %v5364 = vrot.slane %v5336, %v5363
    %v5365 = vcombine.low %v5343, %v5357
    %v5366 = vcombine.high %v5343, %v5357
    %v5367 = vcombine.low %v5350, %v5364
    %v5368 = vcombine.high %v5350, %v5364
    %v5369 = vcombine.low %v5092, %v5094
    %v5370 = vcombine.high %v5092, %v5094
    %v5371 = vcombine.low %v5145, %v5147
    %v5372 = vcombine.high %v5145, %v5147
    %v5374 = vunpack.c.l.s4 1983009808
    %v5375 = vunpack.c.0.s8 %v5374
    %v5376 = vlaneseq
    %v5377 = vshrl.u32 %v5376, 7
    %v5378 = vsub.s32 %v5375, %v5377
    %v5379 = vrot.slane %v5369, %v5378
    %v5381 = vunpack.c.l.s4 1983009808
    %v5382 = vunpack.c.0.s8 %v5381
    %v5383 = vlaneseq
    %v5384 = vshrl.u32 %v5383, 7
    %v5385 = vsub.s32 %v5382, %v5384
    %v5386 = vrot.slane %v5370, %v5385
    %v5388 = vunpack.c.l.s4 1983009808
    %v5389 = vunpack.c.0.s8 %v5388
    %v5390 = vlaneseq
    %v5391 = vshrl.u32 %v5390, 7
    %v5392 = vsub.s32 %v5389, %v5391
    %v5393 = vrot.slane %v5371, %v5392
    %v5395 = vunpack.c.l.s4 1983009808
    %v5396 = vunpack.c.0.s8 %v5395
    %v5397 = vlaneseq
    %v5398 = vshrl.u32 %v5397, 7
    %v5399 = vsub.s32 %v5396, %v5398
    %v5400 = vrot.slane %v5372, %v5399
    %v5401 = vcombine.low %v5379, %v5393
    %v5402 = vcombine.high %v5379, %v5393
    %v5403 = vcombine.low %v5386, %v5400
    %v5404 = vcombine.high %v5386, %v5400
    %v5405 = vcombine.low %v5198, %v5200
    %v5406 = vcombine.high %v5198, %v5200
    %v5407 = vcombine.low %v5251, %v5253
    %v5408 = vcombine.high %v5251, %v5253
    %v5410 = vunpack.c.l.s4 1983009808
    %v5411 = vunpack.c.0.s8 %v5410
    %v5412 = vlaneseq
    %v5413 = vshrl.u32 %v5412, 7
    %v5414 = vsub.s32 %v5411, %v5413
    %v5415 = vrot.slane %v5405, %v5414
    %v5417 = vunpack.c.l.s4 1983009808
    %v5418 = vunpack.c.0.s8 %v5417
    %v5419 = vlaneseq
    %v5420 = vshrl.u32 %v5419, 7
    %v5421 = vsub.s32 %v5418, %v5420
    %v5422 = vrot.slane %v5406, %v5421
    %v5424 = vunpack.c.l.s4 1983009808
    %v5425 = vunpack.c.0.s8 %v5424
    %v5426 = vlaneseq
    %v5427 = vshrl.u32 %v5426, 7
    %v5428 = vsub.s32 %v5425, %v5427
    %v5429 = vrot.slane %v5407, %v5428
    %v5431 = vunpack.c.l.s4 1983009808
    %v5432 = vunpack.c.0.s8 %v5431
    %v5433 = vlaneseq
    %v5434 = vshrl.u32 %v5433, 7
    %v5435 = vsub.s32 %v5432, %v5434
    %v5436 = vrot.slane %v5408, %v5435
    %v5437 = vcombine.low %v5415, %v5429
    %v5438 = vcombine.high %v5415, %v5429
    %v5439 = vcombine.low %v5422, %v5436
    %v5440 = vcombine.high %v5422, %v5436
    %v5441 = vcombine.low %v5098, %v5100
    %v5442 = vcombine.high %v5098, %v5100
    %v5443 = vcombine.low %v5151, %v5153
    %v5444 = vcombine.high %v5151, %v5153
    %v5446 = vunpack.c.l.s4 1983009808
    %v5447 = vunpack.c.0.s8 %v5446
    %v5448 = vlaneseq
    %v5449 = vshrl.u32 %v5448, 7
    %v5450 = vsub.s32 %v5447, %v5449
    %v5451 = vrot.slane %v5441, %v5450
    %v5453 = vunpack.c.l.s4 1983009808
    %v5454 = vunpack.c.0.s8 %v5453
    %v5455 = vlaneseq
    %v5456 = vshrl.u32 %v5455, 7
    %v5457 = vsub.s32 %v5454, %v5456
    %v5458 = vrot.slane %v5442, %v5457
    %v5460 = vunpack.c.l.s4 1983009808
    %v5461 = vunpack.c.0.s8 %v5460
    %v5462 = vlaneseq
    %v5463 = vshrl.u32 %v5462, 7
    %v5464 = vsub.s32 %v5461, %v5463
    %v5465 = vrot.slane %v5443, %v5464
    %v5467 = vunpack.c.l.s4 1983009808
    %v5468 = vunpack.c.0.s8 %v5467
    %v5469 = vlaneseq
    %v5470 = vshrl.u32 %v5469, 7
    %v5471 = vsub.s32 %v5468, %v5470
    %v5472 = vrot.slane %v5444, %v5471
    %v5473 = vcombine.low %v5451, %v5465
    %v5474 = vcombine.high %v5451, %v5465
    %v5475 = vcombine.low %v5458, %v5472
    %v5476 = vcombine.high %v5458, %v5472
    %v5477 = vcombine.low %v5204, %v5206
    %v5478 = vcombine.high %v5204, %v5206
    %v5479 = vcombine.low %v5257, %v5259
    %v5480 = vcombine.high %v5257, %v5259
    %v5482 = vunpack.c.l.s4 1983009808
    %v5483 = vunpack.c.0.s8 %v5482
    %v5484 = vlaneseq
    %v5485 = vshrl.u32 %v5484, 7
    %v5486 = vsub.s32 %v5483, %v5485
    %v5487 = vrot.slane %v5477, %v5486
    %v5489 = vunpack.c.l.s4 1983009808
    %v5490 = vunpack.c.0.s8 %v5489
    %v5491 = vlaneseq
    %v5492 = vshrl.u32 %v5491, 7
    %v5493 = vsub.s32 %v5490, %v5492
    %v5494 = vrot.slane %v5478, %v5493
    %v5496 = vunpack.c.l.s4 1983009808
    %v5497 = vunpack.c.0.s8 %v5496
    %v5498 = vlaneseq
    %v5499 = vshrl.u32 %v5498, 7
    %v5500 = vsub.s32 %v5497, %v5499
    %v5501 = vrot.slane %v5479, %v5500
    %v5503 = vunpack.c.l.s4 1983009808
    %v5504 = vunpack.c.0.s8 %v5503
    %v5505 = vlaneseq
    %v5506 = vshrl.u32 %v5505, 7
    %v5507 = vsub.s32 %v5504, %v5506
    %v5508 = vrot.slane %v5480, %v5507
    %v5509 = vcombine.low %v5487, %v5501
    %v5510 = vcombine.high %v5487, %v5501
    %v5511 = vcombine.low %v5494, %v5508
    %v5512 = vcombine.high %v5494, %v5508
    %v5513 = vcombine.low %v5102, %v5104
    %v5514 = vcombine.low %v5155, %v5157
    %v5516 = vunpack.c.l.s4 1983009808
    %v5517 = vunpack.c.0.s8 %v5516
    %v5518 = vlaneseq
    %v5519 = vshrl.u32 %v5518, 7
    %v5520 = vsub.s32 %v5517, %v5519
    %v5521 = vrot.slane %v5513, %v5520
    %v5523 = vunpack.c.l.s4 1983009808
    %v5524 = vunpack.c.0.s8 %v5523
    %v5525 = vlaneseq
    %v5526 = vshrl.u32 %v5525, 7
    %v5527 = vsub.s32 %v5524, %v5526
    %v5528 = vrot.slane %v5514, %v5527
    %v5529 = vcombine.low %v5521, %v5528
    %v5530 = vcombine.high %v5521, %v5528
    %v5531 = vcombine.low %v5208, %v5210
    %v5532 = vcombine.low %v5261, %v5263
    %v5534 = vunpack.c.l.s4 1983009808
    %v5535 = vunpack.c.0.s8 %v5534
    %v5536 = vlaneseq
    %v5537 = vshrl.u32 %v5536, 7
    %v5538 = vsub.s32 %v5535, %v5537
    %v5539 = vrot.slane %v5531, %v5538
    %v5541 = vunpack.c.l.s4 1983009808
    %v5542 = vunpack.c.0.s8 %v5541
    %v5543 = vlaneseq
    %v5544 = vshrl.u32 %v5543, 7
    %v5545 = vsub.s32 %v5542, %v5544
    %v5546 = vrot.slane %v5532, %v5545
    %v5547 = vcombine.low %v5539, %v5546
    %v5548 = vcombine.high %v5539, %v5546
    %5577 = vst [vmem:[#allocation7] sm:$0xff] %v5329
    %5578 = vst [vmem:[#allocation7 + $0x8] sm:$0xff] %v5365
    %5579 = vst [vmem:[#allocation7 + $0x10] sm:$0xff] %v5330
    %5580 = vst [vmem:[#allocation7 + $0x18] sm:$0xff] %v5366
    %5581 = vst [vmem:[#allocation7 + $0x20] sm:$0xff] %v5331
    %5582 = vst [vmem:[#allocation7 + $0x28] sm:$0xff] %v5367
    %5583 = vst [vmem:[#allocation7 + $0x30] sm:$0xff] %v5332
    %5584 = vst [vmem:[#allocation7 + $0x38] sm:$0xff] %v5368
    %5585 = vst [vmem:[#allocation7 + $0x40] sm:$0xff] %v5401
    %5586 = vst [vmem:[#allocation7 + $0x48] sm:$0xff] %v5437
    %5587 = vst [vmem:[#allocation7 + $0x50] sm:$0xff] %v5402
    %5588 = vst [vmem:[#allocation7 + $0x58] sm:$0xff] %v5438
    %5589 = vst [vmem:[#allocation7 + $0x60] sm:$0xff] %v5403
    %5590 = vst [vmem:[#allocation7 + $0x68] sm:$0xff] %v5439
    %5591 = vst [vmem:[#allocation7 + $0x70] sm:$0xff] %v5404
    %5592 = vst [vmem:[#allocation7 + $0x78] sm:$0xff] %v5440
    %5593 = vst [vmem:[#allocation7 + $0x80] sm:$0xff] %v5473
    %5594 = vst [vmem:[#allocation7 + $0x88] sm:$0xff] %v5509
    %5595 = vst [vmem:[#allocation7 + $0x90] sm:$0xff] %v5474
    %5596 = vst [vmem:[#allocation7 + $0x98] sm:$0xff] %v5510
    %5597 = vst [vmem:[#allocation7 + $0xa0] sm:$0xff] %v5475
    %5598 = vst [vmem:[#allocation7 + $0xa8] sm:$0xff] %v5511
    %5599 = vst [vmem:[#allocation7 + $0xb0] sm:$0xff] %v5476
    %5600 = vst [vmem:[#allocation7 + $0xb8] sm:$0xff] %v5512
    %5601 = vst [vmem:[#allocation7 + $0xc0] sm:$0xff] %v5529
    %5602 = vst [vmem:[#allocation7 + $0xc8] sm:$0xff] %v5547
    %5603 = vst [vmem:[#allocation7 + $0xd0] sm:$0xff] %v5530
    %5604 = vst [vmem:[#allocation7 + $0xd8] sm:$0xff] %v5548
    %5605 = vst [vmem:[#allocation8] sm:$0x3] 0.0
    %5606 = vst [vmem:[#allocation9] sm:$0x3] 0.0
    %5607 = vst [vmem:[#allocation10] sm:$0x3] 0.0
    %5608 = vst [vmem:[#allocation11] sm:$0x3] 0.0
    %5609 = vst [vmem:[#allocation12] sm:$0x3] 0.0
    // While loop
    $region156: #{forward.1} parent=1 // loop_pre_header
      _
    $region157: #{forward.1} parent=1 // loop_header
      %s5611 = sphi 0, %s5613
      %p5612 = scmp.ge.s32.totalorder %s5611, %s2374
    $region158: #{forward.1} parent=1 // loop_header_branch
      %5615 = sbr.rel (%p5612) target = $region162
    $region159: #{forward.1} parent=1 // loop_body
      %s5616 = ssub.s32 %s2374, 1
      %s5617 = ssub.s32 %s5616, %s5611
      %s5618 = smul.u32 %s5611, 8
      %s5619 = smul.addr %s5618, 2
      %s5620 = scalar_lea.vmem [#allocation7], %s5619
      %v5621 = vld [vmem:[%s5620] sm:$0xff]
      %s5622 = smul.u32 %s5617, 8
      %s5623 = smul.addr %s5622, 2
      %s5624 = scalar_lea.vmem [#allocation7], %s5623
      %v5625 = vld [vmem:[%s5624 + $0x8] sm:$0xff]
      %v5626 = vld [vmem:[#allocation8] sm:$0x3]
      %v5627 = vpack.c.bf16 %v5626, %v5626
      %v5628 = vld [vmem:[#allocation25] sm:$0xff]
      %v5629 = vld [vmem:[#allocation25 + $0x8] sm:$0xff]
      %v5630 = vld [vmem:[#allocation25 + $0x10] sm:$0xff]
      %v5631 = vld [vmem:[#allocation25 + $0x18] sm:$0xff]
      %v5632 = vld [vmem:[#allocation25 + $0x20] sm:$0xff]
      %v5633 = vld [vmem:[#allocation25 + $0x28] sm:$0xff]
      %v5634 = vld [vmem:[#allocation25 + $0x30] sm:$0xff]
      %v5635 = vld [vmem:[#allocation25 + $0x38] sm:$0xff]
      %v5636 = vld [vmem:[#allocation25 + $0x40] sm:$0xff]
      %v5637 = vld [vmem:[#allocation25 + $0x48] sm:$0xff]
      %v5638 = vld [vmem:[#allocation25 + $0x50] sm:$0xff]
      %v5639 = vld [vmem:[#allocation25 + $0x58] sm:$0xff]
      %v5640 = vld [vmem:[#allocation25 + $0x60] sm:$0xff]
      %v5641 = vld [vmem:[#allocation25 + $0x68] sm:$0xff]
      %v5642 = vld [vmem:[#allocation25 + $0x70] sm:$0xff]
      %v5643 = vld [vmem:[#allocation25 + $0x78] sm:$0xff]
      %v5644 = vld [vmem:[#allocation25 + $0x80] sm:$0xff]
      %v5645 = vld [vmem:[#allocation25 + $0x88] sm:$0xff]
      %v5646 = vld [vmem:[#allocation25 + $0x90] sm:$0xff]
      %v5647 = vld [vmem:[#allocation25 + $0x98] sm:$0xff]
      %v5648 = vld [vmem:[#allocation25 + $0xa0] sm:$0xff]
      %v5649 = vld [vmem:[#allocation25 + $0xa8] sm:$0xff]
      %v5650 = vld [vmem:[#allocation25 + $0xb0] sm:$0xff]
      %v5651 = vld [vmem:[#allocation25 + $0xb8] sm:$0xff]
      %v5652 = vld [vmem:[#allocation25 + $0xc0] sm:$0xff]
      %v5653 = vld [vmem:[#allocation25 + $0xc8] sm:$0xff]
      %v5654 = vld [vmem:[#allocation25 + $0xd0] sm:$0xff]
      %v5655 = vld [vmem:[#allocation25 + $0xd8] sm:$0xff]
      %v5656 = vld [vmem:[#allocation25 + $0xe0] sm:$0xff]
      %v5657 = vld [vmem:[#allocation25 + $0xe8] sm:$0xff]
      %v5658 = vld [vmem:[#allocation25 + $0xf0] sm:$0xff]
      %v5659 = vld [vmem:[#allocation25 + $0xf8] sm:$0xff]
      %v5692 = vunpack.c.l.b16 %v5628
      %v5693 = vunpack.c.h.b16 %v5628
      %v5694 = vunpack.c.l.b16 %v5629
      %v5695 = vunpack.c.h.b16 %v5629
      %v5696 = vunpack.c.l.b16 %v5630
      %v5697 = vunpack.c.h.b16 %v5630
      %v5698 = vunpack.c.l.b16 %v5631
      %v5699 = vunpack.c.h.b16 %v5631
      %v5700 = vunpack.c.l.b16 %v5632
      %v5701 = vunpack.c.h.b16 %v5632
      %v5702 = vunpack.c.l.b16 %v5633
      %v5703 = vunpack.c.h.b16 %v5633
      %v5704 = vunpack.c.l.b16 %v5634
      %v5705 = vunpack.c.h.b16 %v5634
      %v5706 = vunpack.c.l.b16 %v5635
      %v5707 = vunpack.c.h.b16 %v5635
      %v5708 = vunpack.c.l.b16 %v5636
      %v5709 = vunpack.c.h.b16 %v5636
      %v5710 = vunpack.c.l.b16 %v5637
      %v5711 = vunpack.c.h.b16 %v5637
      %v5712 = vunpack.c.l.b16 %v5638
      %v5713 = vunpack.c.h.b16 %v5638
      %v5714 = vunpack.c.l.b16 %v5639
      %v5715 = vunpack.c.h.b16 %v5639
      %v5716 = vunpack.c.l.b16 %v5640
      %v5717 = vunpack.c.h.b16 %v5640
      %v5718 = vunpack.c.l.b16 %v5641
      %v5719 = vunpack.c.h.b16 %v5641
      %v5720 = vunpack.c.l.b16 %v5642
      %v5721 = vunpack.c.h.b16 %v5642
      %v5722 = vunpack.c.l.b16 %v5643
      %v5723 = vunpack.c.h.b16 %v5643
      %v5724 = vunpack.c.l.b16 %v5644
      %v5725 = vunpack.c.h.b16 %v5644
      %v5726 = vunpack.c.l.b16 %v5645
      %v5727 = vunpack.c.h.b16 %v5645
      %v5728 = vunpack.c.l.b16 %v5646
      %v5729 = vunpack.c.h.b16 %v5646
      %v5730 = vunpack.c.l.b16 %v5647
      %v5731 = vunpack.c.h.b16 %v5647
      %v5732 = vunpack.c.l.b16 %v5648
      %v5733 = vunpack.c.h.b16 %v5648
      %v5734 = vunpack.c.l.b16 %v5649
      %v5735 = vunpack.c.h.b16 %v5649
      %v5736 = vunpack.c.l.b16 %v5650
      %v5737 = vunpack.c.h.b16 %v5650
      %v5738 = vunpack.c.l.b16 %v5651
      %v5739 = vunpack.c.h.b16 %v5651
      %v5740 = vunpack.c.l.b16 %v5652
      %v5741 = vunpack.c.h.b16 %v5652
      %v5742 = vunpack.c.l.b16 %v5653
      %v5743 = vunpack.c.h.b16 %v5653
      %v5744 = vunpack.c.l.b16 %v5654
      %v5745 = vunpack.c.h.b16 %v5654
      %v5746 = vunpack.c.l.b16 %v5655
      %v5747 = vunpack.c.h.b16 %v5655
      %v5748 = vunpack.c.l.b16 %v5656
      %v5749 = vunpack.c.h.b16 %v5656
      %v5750 = vunpack.c.l.b16 %v5657
      %v5751 = vunpack.c.h.b16 %v5657
      %v5752 = vunpack.c.l.b16 %v5658
      %v5753 = vunpack.c.h.b16 %v5658
      %v5754 = vunpack.c.l.b16 %v5659
      %v5755 = vunpack.c.h.b16 %v5659
      %v5756 = vpack.c.b16 %v5696, %v5692
      %v5757 = vpack.c.b16 %v5697, %v5693
      %v5758 = vpack.c.b16 %v5698, %v5694
      %v5759 = vpack.c.b16 %v5699, %v5695
      %v5760 = vpack.c.b16 %v5704, %v5700
      %v5761 = vpack.c.b16 %v5705, %v5701
      %v5762 = vpack.c.b16 %v5706, %v5702
      %v5763 = vpack.c.b16 %v5707, %v5703
      %v5764 = vpack.c.b16 %v5712, %v5708
      %v5765 = vpack.c.b16 %v5713, %v5709
      %v5766 = vpack.c.b16 %v5714, %v5710
      %v5767 = vpack.c.b16 %v5715, %v5711
      %v5768 = vpack.c.b16 %v5720, %v5716
      %v5769 = vpack.c.b16 %v5721, %v5717
      %v5770 = vpack.c.b16 %v5722, %v5718
      %v5771 = vpack.c.b16 %v5723, %v5719
      %v5772 = vpack.c.b16 %v5728, %v5724
      %v5773 = vpack.c.b16 %v5729, %v5725
      %v5774 = vpack.c.b16 %v5730, %v5726
      %v5775 = vpack.c.b16 %v5731, %v5727
      %v5776 = vpack.c.b16 %v5736, %v5732
      %v5777 = vpack.c.b16 %v5737, %v5733
      %v5778 = vpack.c.b16 %v5738, %v5734
      %v5779 = vpack.c.b16 %v5739, %v5735
      %v5780 = vpack.c.b16 %v5744, %v5740
      %v5781 = vpack.c.b16 %v5745, %v5741
      %v5782 = vpack.c.b16 %v5746, %v5742
      %v5783 = vpack.c.b16 %v5747, %v5743
      %v5784 = vpack.c.b16 %v5752, %v5748
      %v5785 = vpack.c.b16 %v5753, %v5749
      %v5786 = vpack.c.b16 %v5754, %v5750
      %v5787 = vpack.c.b16 %v5755, %v5751
      %v5821 = vcombine.high %v5621, %v5621
      %v5823 = vunpack.c.l.s4 1983009808
      %v5824 = vunpack.c.0.s8 %v5823
      %v5825 = vlaneseq
      %v5826 = vshrl.u32 %v5825, 7
      %v5827 = vsub.s32 %v5824, %v5826
      %v5828 = vrot.slane %v5621, %v5827
      %v5830 = vunpack.c.l.s4 1983009808
      %v5831 = vunpack.c.0.s8 %v5830
      %v5832 = vlaneseq
      %v5833 = vshrl.u32 %v5832, 7
      %v5834 = vsub.s32 %v5831, %v5833
      %v5835 = vrot.slane %v5821, %v5834
      %v5836 = vcombine.high %v5828, %v5828
      %v5837 = vcombine.high %v5835, %v5835
      %5842 = vmatprep.subr.bf16.mxu0 %v5757
      %5843 = vmatpush1.bf16.msra.mxu0 %v5756
      %5844 = vmatprep.subr.bf16.mxu0 %v5761
      %5845 = vmatpush1.bf16.msra.mxu0 %v5760
      %5846 = vmatprep.subr.bf16.mxu0 %v5765
      %5847 = vmatpush1.bf16.msra.mxu0 %v5764
      %5848 = vmatprep.subr.bf16.mxu0 %v5769
      %5849 = vmatpush1.bf16.msra.mxu0 %v5768
      %5850 = vmatprep.subr.bf16.mxu0 %v5773
      %5851 = vmatpush1.bf16.msra.mxu0 %v5772
      %5852 = vmatprep.subr.bf16.mxu0 %v5777
      %5853 = vmatpush1.bf16.msra.mxu0 %v5776
      %5854 = vmatprep.subr.bf16.mxu0 %v5781
      %5855 = vmatpush1.bf16.msra.mxu0 %v5780
      %5856 = vmatprep.subr.bf16.mxu0 %v5785
      %5857 = vmatpush1.bf16.msra.mxu0 %v5784
      %5858 = vmatprep.subr.bf16.mxu0 0
      %5859 = vmatpush1.bf16.msra.mxu0 0
      %5860 = vmatprep.subr.bf16.mxu0 0
      %5861 = vmatpush1.bf16.msra.mxu0 0
      %5862 = vmatprep.subr.bf16.mxu0 0
      %5863 = vmatpush1.bf16.msra.mxu0 0
      %5864 = vmatprep.subr.bf16.mxu0 0
      %5865 = vmatpush1.bf16.msra.mxu0 0
      %5866 = vmatprep.subr.bf16.mxu0 0
      %5867 = vmatpush1.bf16.msra.mxu0 0
      %5868 = vmatprep.subr.bf16.mxu0 0
      %5869 = vmatpush1.bf16.msra.mxu0 0
      %5870 = vmatprep.subr.bf16.mxu0 0
      %5871 = vmatpush1.bf16.msra.mxu0 0
      %5872 = vmatprep.subr.bf16.mxu0 0
      %5873 = vmatpush1.bf16.msra.mxu0 0
      %5874 = vmatprep.mubr.bf16.mxu0 0
      %5875 = vmatmul.mubr.bf16.gmra.mrb[0].mxu0 %v5627
      %v5876 = vpop.f32.mrb[0].mxu0
      %v5877 = vadd.f32 %v5828, %v5876
      %v5878 = vpop.f32.mrb[0].mxu0
      %v5879 = vadd.f32 %v5836, %v5878
      %v5880 = vpop.f32.mrb[0].mxu0
      %v5881 = vpop.f32.mrb[0].mxu0
      %5882 = vdwg.mxu0
      %5883 = vmatprep.subr.bf16.mxu0 %v5759
      %5884 = vmatpush1.bf16.msra.mxu0 %v5758
      %5885 = vmatprep.subr.bf16.mxu0 %v5763
      %5886 = vmatpush1.bf16.msra.mxu0 %v5762
      %5887 = vmatprep.subr.bf16.mxu0 %v5767
      %5888 = vmatpush1.bf16.msra.mxu0 %v5766
      %5889 = vmatprep.subr.bf16.mxu0 %v5771
      %5890 = vmatpush1.bf16.msra.mxu0 %v5770
      %5891 = vmatprep.subr.bf16.mxu0 %v5775
      %5892 = vmatpush1.bf16.msra.mxu0 %v5774
      %5893 = vmatprep.subr.bf16.mxu0 %v5779
      %5894 = vmatpush1.bf16.msra.mxu0 %v5778
      %5895 = vmatprep.subr.bf16.mxu0 %v5783
      %5896 = vmatpush1.bf16.msra.mxu0 %v5782
      %5897 = vmatprep.subr.bf16.mxu0 %v5787
      %5898 = vmatpush1.bf16.msra.mxu0 %v5786
      %5899 = vmatprep.subr.bf16.mxu0 0
      %5900 = vmatpush1.bf16.msra.mxu0 0
      %5901 = vmatprep.subr.bf16.mxu0 0
      %5902 = vmatpush1.bf16.msra.mxu0 0
      %5903 = vmatprep.subr.bf16.mxu0 0
      %5904 = vmatpush1.bf16.msra.mxu0 0
      %5905 = vmatprep.subr.bf16.mxu0 0
      %5906 = vmatpush1.bf16.msra.mxu0 0
      %5907 = vmatprep.subr.bf16.mxu0 0
      %5908 = vmatpush1.bf16.msra.mxu0 0
      %5909 = vmatprep.subr.bf16.mxu0 0
      %5910 = vmatpush1.bf16.msra.mxu0 0
      %5911 = vmatprep.subr.bf16.mxu0 0
      %5912 = vmatpush1.bf16.msra.mxu0 0
      %5913 = vmatprep.subr.bf16.mxu0 0
      %5914 = vmatpush1.bf16.msra.mxu0 0
      %5915 = vmatprep.mubr.bf16.mxu0 0
      %5916 = vmatmul.mubr.bf16.gmra.mrb[0].mxu0 %v5627
      %v5917 = vpop.f32.mrb[0].mxu0
      %v5918 = vadd.f32 %v5835, %v5917
      %v5919 = vpop.f32.mrb[0].mxu0
      %v5920 = vadd.f32 %v5837, %v5919
      %v5921 = vpop.f32.mrb[0].mxu0
      %v5922 = vpop.f32.mrb[0].mxu0
      %5923 = vdwg.mxu0
      %v5924 = vld [vmem:[#allocation10] sm:$0x3]
      %v5925 = vpack.c.bf16 %v5924, %v5924
      %v5926 = vld [vmem:[#allocation27] sm:$0xff]
      %v5927 = vld [vmem:[#allocation27 + $0x8] sm:$0xff]
      %v5928 = vld [vmem:[#allocation27 + $0x10] sm:$0xff]
      %v5929 = vld [vmem:[#allocation27 + $0x18] sm:$0xff]
      %v5930 = vld [vmem:[#allocation27 + $0x20] sm:$0xff]
      %v5931 = vld [vmem:[#allocation27 + $0x28] sm:$0xff]
      %v5932 = vld [vmem:[#allocation27 + $0x30] sm:$0xff]
      %v5933 = vld [vmem:[#allocation27 + $0x38] sm:$0xff]
      %v5934 = vld [vmem:[#allocation27 + $0x40] sm:$0xff]
      %v5935 = vld [vmem:[#allocation27 + $0x48] sm:$0xff]
      %v5936 = vld [vmem:[#allocation27 + $0x50] sm:$0xff]
      %v5937 = vld [vmem:[#allocation27 + $0x58] sm:$0xff]
      %v5938 = vld [vmem:[#allocation27 + $0x60] sm:$0xff]
      %v5939 = vld [vmem:[#allocation27 + $0x68] sm:$0xff]
      %v5940 = vld [vmem:[#allocation27 + $0x70] sm:$0xff]
      %v5941 = vld [vmem:[#allocation27 + $0x78] sm:$0xff]
      %v5942 = vld [vmem:[#allocation27 + $0x80] sm:$0xff]
      %v5943 = vld [vmem:[#allocation27 + $0x88] sm:$0xff]
      %v5944 = vld [vmem:[#allocation27 + $0x90] sm:$0xff]
      %v5945 = vld [vmem:[#allocation27 + $0x98] sm:$0xff]
      %v5946 = vld [vmem:[#allocation27 + $0xa0] sm:$0xff]
      %v5947 = vld [vmem:[#allocation27 + $0xa8] sm:$0xff]
      %v5948 = vld [vmem:[#allocation27 + $0xb0] sm:$0xff]
      %v5949 = vld [vmem:[#allocation27 + $0xb8] sm:$0xff]
      %v5950 = vld [vmem:[#allocation27 + $0xc0] sm:$0xff]
      %v5951 = vld [vmem:[#allocation27 + $0xc8] sm:$0xff]
      %v5952 = vld [vmem:[#allocation27 + $0xd0] sm:$0xff]
      %v5953 = vld [vmem:[#allocation27 + $0xd8] sm:$0xff]
      %v5954 = vld [vmem:[#allocation27 + $0xe0] sm:$0xff]
      %v5955 = vld [vmem:[#allocation27 + $0xe8] sm:$0xff]
      %v5956 = vld [vmem:[#allocation27 + $0xf0] sm:$0xff]
      %v5957 = vld [vmem:[#allocation27 + $0xf8] sm:$0xff]
      %v5990 = vunpack.c.l.b16 %v5926
      %v5991 = vunpack.c.h.b16 %v5926
      %v5992 = vunpack.c.l.b16 %v5927
      %v5993 = vunpack.c.h.b16 %v5927
      %v5994 = vunpack.c.l.b16 %v5928
      %v5995 = vunpack.c.h.b16 %v5928
      %v5996 = vunpack.c.l.b16 %v5929
      %v5997 = vunpack.c.h.b16 %v5929
      %v5998 = vunpack.c.l.b16 %v5930
      %v5999 = vunpack.c.h.b16 %v5930
      %v6000 = vunpack.c.l.b16 %v5931
      %v6001 = vunpack.c.h.b16 %v5931
      %v6002 = vunpack.c.l.b16 %v5932
      %v6003 = vunpack.c.h.b16 %v5932
      %v6004 = vunpack.c.l.b16 %v5933
      %v6005 = vunpack.c.h.b16 %v5933
      %v6006 = vunpack.c.l.b16 %v5934
      %v6007 = vunpack.c.h.b16 %v5934
      %v6008 = vunpack.c.l.b16 %v5935
      %v6009 = vunpack.c.h.b16 %v5935
      %v6010 = vunpack.c.l.b16 %v5936
      %v6011 = vunpack.c.h.b16 %v5936
      %v6012 = vunpack.c.l.b16 %v5937
      %v6013 = vunpack.c.h.b16 %v5937
      %v6014 = vunpack.c.l.b16 %v5938
      %v6015 = vunpack.c.h.b16 %v5938
      %v6016 = vunpack.c.l.b16 %v5939
      %v6017 = vunpack.c.h.b16 %v5939
      %v6018 = vunpack.c.l.b16 %v5940
      %v6019 = vunpack.c.h.b16 %v5940
      %v6020 = vunpack.c.l.b16 %v5941
      %v6021 = vunpack.c.h.b16 %v5941
      %v6022 = vunpack.c.l.b16 %v5942
      %v6023 = vunpack.c.h.b16 %v5942
      %v6024 = vunpack.c.l.b16 %v5943
      %v6025 = vunpack.c.h.b16 %v5943
      %v6026 = vunpack.c.l.b16 %v5944
      %v6027 = vunpack.c.h.b16 %v5944
      %v6028 = vunpack.c.l.b16 %v5945
      %v6029 = vunpack.c.h.b16 %v5945
      %v6030 = vunpack.c.l.b16 %v5946
      %v6031 = vunpack.c.h.b16 %v5946
      %v6032 = vunpack.c.l.b16 %v5947
      %v6033 = vunpack.c.h.b16 %v5947
      %v6034 = vunpack.c.l.b16 %v5948
      %v6035 = vunpack.c.h.b16 %v5948
      %v6036 = vunpack.c.l.b16 %v5949
      %v6037 = vunpack.c.h.b16 %v5949
      %v6038 = vunpack.c.l.b16 %v5950
      %v6039 = vunpack.c.h.b16 %v5950
      %v6040 = vunpack.c.l.b16 %v5951
      %v6041 = vunpack.c.h.b16 %v5951
      %v6042 = vunpack.c.l.b16 %v5952
      %v6043 = vunpack.c.h.b16 %v5952
      %v6044 = vunpack.c.l.b16 %v5953
      %v6045 = vunpack.c.h.b16 %v5953
      %v6046 = vunpack.c.l.b16 %v5954
      %v6047 = vunpack.c.h.b16 %v5954
      %v6048 = vunpack.c.l.b16 %v5955
      %v6049 = vunpack.c.h.b16 %v5955
      %v6050 = vunpack.c.l.b16 %v5956
      %v6051 = vunpack.c.h.b16 %v5956
      %v6052 = vunpack.c.l.b16 %v5957
      %v6053 = vunpack.c.h.b16 %v5957
      %v6054 = vpack.c.b16 %v5994, %v5990
      %v6055 = vpack.c.b16 %v5995, %v5991
      %v6056 = vpack.c.b16 %v5996, %v5992
      %v6057 = vpack.c.b16 %v5997, %v5993
      %v6058 = vpack.c.b16 %v6002, %v5998
      %v6059 = vpack.c.b16 %v6003, %v5999
      %v6060 = vpack.c.b16 %v6004, %v6000
      %v6061 = vpack.c.b16 %v6005, %v6001
      %v6062 = vpack.c.b16 %v6010, %v6006
      %v6063 = vpack.c.b16 %v6011, %v6007
      %v6064 = vpack.c.b16 %v6012, %v6008
      %v6065 = vpack.c.b16 %v6013, %v6009
      %v6066 = vpack.c.b16 %v6018, %v6014
      %v6067 = vpack.c.b16 %v6019, %v6015
      %v6068 = vpack.c.b16 %v6020, %v6016
      %v6069 = vpack.c.b16 %v6021, %v6017
      %v6070 = vpack.c.b16 %v6026, %v6022
      %v6071 = vpack.c.b16 %v6027, %v6023
      %v6072 = vpack.c.b16 %v6028, %v6024
      %v6073 = vpack.c.b16 %v6029, %v6025
      %v6074 = vpack.c.b16 %v6034, %v6030
      %v6075 = vpack.c.b16 %v6035, %v6031
      %v6076 = vpack.c.b16 %v6036, %v6032
      %v6077 = vpack.c.b16 %v6037, %v6033
      %v6078 = vpack.c.b16 %v6042, %v6038
      %v6079 = vpack.c.b16 %v6043, %v6039
      %v6080 = vpack.c.b16 %v6044, %v6040
      %v6081 = vpack.c.b16 %v6045, %v6041
      %v6082 = vpack.c.b16 %v6050, %v6046
      %v6083 = vpack.c.b16 %v6051, %v6047
      %v6084 = vpack.c.b16 %v6052, %v6048
      %v6085 = vpack.c.b16 %v6053, %v6049
      %v6119 = vcombine.high %v5625, %v5625
      %v6121 = vunpack.c.l.s4 1983009808
      %v6122 = vunpack.c.0.s8 %v6121
      %v6123 = vlaneseq
      %v6124 = vshrl.u32 %v6123, 7
      %v6125 = vsub.s32 %v6122, %v6124
      %v6126 = vrot.slane %v5625, %v6125
      %v6128 = vunpack.c.l.s4 1983009808
      %v6129 = vunpack.c.0.s8 %v6128
      %v6130 = vlaneseq
      %v6131 = vshrl.u32 %v6130, 7
      %v6132 = vsub.s32 %v6129, %v6131
      %v6133 = vrot.slane %v6119, %v6132
      %v6134 = vcombine.high %v6126, %v6126
      %v6135 = vcombine.high %v6133, %v6133
      %6140 = vmatprep.subr.bf16.mxu0 %v6055
      %6141 = vmatpush1.bf16.msra.mxu0 %v6054
      %6142 = vmatprep.subr.bf16.mxu0 %v6059
      %6143 = vmatpush1.bf16.msra.mxu0 %v6058
      %6144 = vmatprep.subr.bf16.mxu0 %v6063
      %6145 = vmatpush1.bf16.msra.mxu0 %v6062
      %6146 = vmatprep.subr.bf16.mxu0 %v6067
      %6147 = vmatpush1.bf16.msra.mxu0 %v6066
      %6148 = vmatprep.subr.bf16.mxu0 %v6071
      %6149 = vmatpush1.bf16.msra.mxu0 %v6070
      %6150 = vmatprep.subr.bf16.mxu0 %v6075
      %6151 = vmatpush1.bf16.msra.mxu0 %v6074
      %6152 = vmatprep.subr.bf16.mxu0 %v6079
      %6153 = vmatpush1.bf16.msra.mxu0 %v6078
      %6154 = vmatprep.subr.bf16.mxu0 %v6083
      %6155 = vmatpush1.bf16.msra.mxu0 %v6082
      %6156 = vmatprep.subr.bf16.mxu0 0
      %6157 = vmatpush1.bf16.msra.mxu0 0
      %6158 = vmatprep.subr.bf16.mxu0 0
      %6159 = vmatpush1.bf16.msra.mxu0 0
      %6160 = vmatprep.subr.bf16.mxu0 0
      %6161 = vmatpush1.bf16.msra.mxu0 0
      %6162 = vmatprep.subr.bf16.mxu0 0
      %6163 = vmatpush1.bf16.msra.mxu0 0
      %6164 = vmatprep.subr.bf16.mxu0 0
      %6165 = vmatpush1.bf16.msra.mxu0 0
      %6166 = vmatprep.subr.bf16.mxu0 0
      %6167 = vmatpush1.bf16.msra.mxu0 0
      %6168 = vmatprep.subr.bf16.mxu0 0
      %6169 = vmatpush1.bf16.msra.mxu0 0
      %6170 = vmatprep.subr.bf16.mxu0 0
      %6171 = vmatpush1.bf16.msra.mxu0 0
      %6172 = vmatprep.mubr.bf16.mxu0 0
      %6173 = vmatmul.mubr.bf16.gmra.mrb[0].mxu0 %v5925
      %v6174 = vpop.f32.mrb[0].mxu0
      %v6175 = vadd.f32 %v6126, %v6174
      %v6176 = vpop.f32.mrb[0].mxu0
      %v6177 = vadd.f32 %v6134, %v6176
      %v6178 = vpop.f32.mrb[0].mxu0
      %v6179 = vpop.f32.mrb[0].mxu0
      %6180 = vdwg.mxu0
      %6181 = vmatprep.subr.bf16.mxu0 %v6057
      %6182 = vmatpush1.bf16.msra.mxu0 %v6056
      %6183 = vmatprep.subr.bf16.mxu0 %v6061
      %6184 = vmatpush1.bf16.msra.mxu0 %v6060
      %6185 = vmatprep.subr.bf16.mxu0 %v6065
      %6186 = vmatpush1.bf16.msra.mxu0 %v6064
      %6187 = vmatprep.subr.bf16.mxu0 %v6069
      %6188 = vmatpush1.bf16.msra.mxu0 %v6068
      %6189 = vmatprep.subr.bf16.mxu0 %v6073
      %6190 = vmatpush1.bf16.msra.mxu0 %v6072
      %6191 = vmatprep.subr.bf16.mxu0 %v6077
      %6192 = vmatpush1.bf16.msra.mxu0 %v6076
      %6193 = vmatprep.subr.bf16.mxu0 %v6081
      %6194 = vmatpush1.bf16.msra.mxu0 %v6080
      %6195 = vmatprep.subr.bf16.mxu0 %v6085
      %6196 = vmatpush1.bf16.msra.mxu0 %v6084
      %6197 = vmatprep.subr.bf16.mxu0 0
      %6198 = vmatpush1.bf16.msra.mxu0 0
      %6199 = vmatprep.subr.bf16.mxu0 0
      %6200 = vmatpush1.bf16.msra.mxu0 0
      %6201 = vmatprep.subr.bf16.mxu0 0
      %6202 = vmatpush1.bf16.msra.mxu0 0
      %6203 = vmatprep.subr.bf16.mxu0 0
      %6204 = vmatpush1.bf16.msra.mxu0 0
      %6205 = vmatprep.subr.bf16.mxu0 0
      %6206 = vmatpush1.bf16.msra.mxu0 0
      %6207 = vmatprep.subr.bf16.mxu0 0
      %6208 = vmatpush1.bf16.msra.mxu0 0
      %6209 = vmatprep.subr.bf16.mxu0 0
      %6210 = vmatpush1.bf16.msra.mxu0 0
      %6211 = vmatprep.subr.bf16.mxu0 0
      %6212 = vmatpush1.bf16.msra.mxu0 0
      %6213 = vmatprep.mubr.bf16.mxu0 0
      %6214 = vmatmul.mubr.bf16.gmra.mrb[0].mxu0 %v5925
      %v6215 = vpop.f32.mrb[0].mxu0
      %v6216 = vadd.f32 %v6133, %v6215
      %v6217 = vpop.f32.mrb[0].mxu0
      %v6218 = vadd.f32 %v6135, %v6217
      %v6219 = vpop.f32.mrb[0].mxu0
      %v6220 = vpop.f32.mrb[0].mxu0
      %6221 = vdwg.mxu0
      %v6222 = vld [vmem:[#allocation9] sm:$0x3]
      %v6223 = vxor.u32 %v5877, 2147483648
      %v6224 = vmul.f32 %v6223, 1.442695
      %v6225 = vpow.pop %v6224
      %v6226 = vadd.f32 %v6225, 1.0
      %v6227 = vrcp.pop %v6226
      %v6228 = vmul.f32 1.0, %v6227
      %v6229 = vxor.u32 %v5879, 2147483648
      %v6230 = vmul.f32 %v6229, 1.442695
      %v6231 = vpow.pop %v6230
      %v6232 = vadd.f32 %v6231, 1.0
      %v6233 = vrcp.pop %v6232
      %v6234 = vmul.f32 1.0, %v6233
      %v6235 = vtanh.pop %v5918
      %v6236 = vxor.u32 %v5920, 2147483648
      %v6237 = vmul.f32 %v6236, 1.442695
      %v6238 = vpow.pop %v6237
      %v6239 = vadd.f32 %v6238, 1.0
      %v6240 = vrcp.pop %v6239
      %v6241 = vmul.f32 1.0, %v6240
      %v6242 = vmul.f32 %v6234, %v6222
      %v6243 = vmul.f32 %v6228, %v6235
      %v6244 = vadd.f32 %v6242, %v6243
      %v6245 = vtanh.pop %v6244
      %v6246 = vmul.f32 %v6241, %v6245
      %v6247 = vld [vmem:[#allocation11] sm:$0x3]
      %v6248 = vxor.u32 %v6175, 2147483648
      %v6249 = vmul.f32 %v6248, 1.442695
      %v6250 = vpow.pop %v6249
      %v6251 = vadd.f32 %v6250, 1.0
      %v6252 = vrcp.pop %v6251
      %v6253 = vmul.f32 1.0, %v6252
      %v6254 = vxor.u32 %v6177, 2147483648
      %v6255 = vmul.f32 %v6254, 1.442695
      %v6256 = vpow.pop %v6255
      %v6257 = vadd.f32 %v6256, 1.0
      %v6258 = vrcp.pop %v6257
      %v6259 = vmul.f32 1.0, %v6258
      %v6260 = vtanh.pop %v6216
      %v6261 = vxor.u32 %v6218, 2147483648
      %v6262 = vmul.f32 %v6261, 1.442695
      %v6263 = vpow.pop %v6262
      %v6264 = vadd.f32 %v6263, 1.0
      %v6265 = vrcp.pop %v6264
      %v6266 = vmul.f32 1.0, %v6265
      %v6267 = vmul.f32 %v6259, %v6247
      %v6268 = vmul.f32 %v6253, %v6260
      %v6269 = vadd.f32 %v6267, %v6268
      %v6270 = vtanh.pop %v6269
      %v6271 = vmul.f32 %v6266, %v6270
      %v6272 = vstv %s5611
      %vm6273 = vcmp.lt.s32.totalorder %v6272, %v2378
      %v6274 = vstv %s5617
      %vm6275 = vcmp.lt.s32.totalorder %v6274, %v2378
      %v6276 = vsel %vm6273, %v6246, %v5626
      %6277 = vst [vmem:[#allocation8] sm:$0x3] %v6276
      %v6278 = vld [vmem:[#allocation9] sm:$0x3]
      %v6279 = vsel %vm6273, %v6244, %v6278
      %6280 = vst [vmem:[#allocation9] sm:$0x3] %v6279
      %v6281 = vld [vmem:[#allocation10] sm:$0x3]
      %v6282 = vsel %vm6275, %v6271, %v6281
      %6283 = vst [vmem:[#allocation10] sm:$0x3] %v6282
      %v6284 = vld [vmem:[#allocation11] sm:$0x3]
      %v6285 = vsel %vm6275, %v6269, %v6284
      %6286 = vst [vmem:[#allocation11] sm:$0x3] %v6285
      %vm6287 = vcmp.eq.s32.totalorder %v6274, %v2379
      %v6288 = vld [vmem:[#allocation12] sm:$0x3]
      %v6289 = vsel %vm6287, %v6271, %v6288
      %6290 = vst [vmem:[#allocation12] sm:$0x3] %v6289
    $region160: #{forward.1} parent=1 // loop_footer
      %s5613 = sadd.s32 %s5611, 1
    $region161: #{forward.1} parent=1 // loop_footer_branch
      %5610 = sbr.rel target = $region157
    $region162: #{forward.1} parent=1 // loop_exit
      _
    %v6291 = vld [vmem:[#allocation8] sm:$0x3]
    %v6292 = vpack.c.bf16 %v6291, %v6291
    %v6293 = vld [vmem:[#allocation28] sm:$0xf]
    %v6294 = vld [vmem:[#allocation28 + $0x4] sm:$0xf]
    %v6295 = vld [vmem:[#allocation28 + $0x8] sm:$0xf]
    %v6296 = vld [vmem:[#allocation28 + $0xc] sm:$0xf]
    %v6297 = vld [vmem:[#allocation28 + $0x10] sm:$0xf]
    %v6298 = vld [vmem:[#allocation28 + $0x14] sm:$0xf]
    %v6299 = vld [vmem:[#allocation28 + $0x18] sm:$0xf]
    %v6300 = vld [vmem:[#allocation28 + $0x1c] sm:$0xf]
    %v6301 = vld [vmem:[#allocation28 + $0x20] sm:$0xf]
    %v6302 = vld [vmem:[#allocation28 + $0x24] sm:$0xf]
    %v6303 = vld [vmem:[#allocation28 + $0x28] sm:$0xf]
    %v6304 = vld [vmem:[#allocation28 + $0x2c] sm:$0xf]
    %v6305 = vld [vmem:[#allocation28 + $0x30] sm:$0xf]
    %v6306 = vld [vmem:[#allocation28 + $0x34] sm:$0xf]
    %v6307 = vld [vmem:[#allocation28 + $0x38] sm:$0xf]
    %v6308 = vld [vmem:[#allocation28 + $0x3c] sm:$0xf]
    %v6309 = vld [vmem:[#allocation12] sm:$0x3]
    %v6310 = vpack.c.bf16 %v6309, %v6309
    %v6311 = vld [vmem:[#allocation28 + $0x40] sm:$0xf]
    %v6312 = vld [vmem:[#allocation28 + $0x44] sm:$0xf]
    %v6313 = vld [vmem:[#allocation28 + $0x48] sm:$0xf]
    %v6314 = vld [vmem:[#allocation28 + $0x4c] sm:$0xf]
    %v6315 = vld [vmem:[#allocation28 + $0x50] sm:$0xf]
    %v6316 = vld [vmem:[#allocation28 + $0x54] sm:$0xf]
    %v6317 = vld [vmem:[#allocation28 + $0x58] sm:$0xf]
    %v6318 = vld [vmem:[#allocation28 + $0x5c] sm:$0xf]
    %v6319 = vld [vmem:[#allocation28 + $0x60] sm:$0xf]
    %v6320 = vld [vmem:[#allocation28 + $0x64] sm:$0xf]
    %v6321 = vld [vmem:[#allocation28 + $0x68] sm:$0xf]
    %v6322 = vld [vmem:[#allocation28 + $0x6c] sm:$0xf]
    %v6323 = vld [vmem:[#allocation28 + $0x70] sm:$0xf]
    %v6324 = vld [vmem:[#allocation28 + $0x74] sm:$0xf]
    %v6325 = vld [vmem:[#allocation28 + $0x78] sm:$0xf]
    %v6326 = vld [vmem:[#allocation28 + $0x7c] sm:$0xf]
    %v6343 = vunpack.c.l.b16 %v6311
    %v6344 = vunpack.c.l.b16 %v6312
    %v6345 = vunpack.c.l.b16 %v6313
    %v6346 = vunpack.c.l.b16 %v6314
    %v6347 = vunpack.c.l.b16 %v6315
    %v6348 = vunpack.c.l.b16 %v6316
    %v6349 = vunpack.c.l.b16 %v6317
    %v6350 = vunpack.c.l.b16 %v6318
    %v6351 = vunpack.c.l.b16 %v6319
    %v6352 = vunpack.c.l.b16 %v6320
    %v6353 = vunpack.c.l.b16 %v6321
    %v6354 = vunpack.c.l.b16 %v6322
    %v6355 = vunpack.c.l.b16 %v6323
    %v6356 = vunpack.c.l.b16 %v6324
    %v6357 = vunpack.c.l.b16 %v6325
    %v6358 = vunpack.c.l.b16 %v6326
    %v6359 = vpack.c.b16 %v6344, %v6343
    %v6360 = vpack.c.b16 %v6346, %v6345
    %v6361 = vpack.c.b16 %v6348, %v6347
    %v6362 = vpack.c.b16 %v6350, %v6349
    %v6363 = vpack.c.b16 %v6352, %v6351
    %v6364 = vpack.c.b16 %v6354, %v6353
    %v6365 = vpack.c.b16 %v6356, %v6355
    %v6366 = vpack.c.b16 %v6358, %v6357
    %6375 = vmatprep.subr.bf16.mxu0 0
    %6376 = vmatpush1.bf16.msra.mxu0 %v6359
    %6377 = vmatprep.subr.bf16.mxu0 0
    %6378 = vmatpush1.bf16.msra.mxu0 %v6360
    %6379 = vmatprep.subr.bf16.mxu0 0
    %6380 = vmatpush1.bf16.msra.mxu0 %v6361
    %6381 = vmatprep.subr.bf16.mxu0 0
    %6382 = vmatpush1.bf16.msra.mxu0 %v6362
    %6383 = vmatprep.subr.bf16.mxu0 0
    %6384 = vmatpush1.bf16.msra.mxu0 %v6363
    %6385 = vmatprep.subr.bf16.mxu0 0
    %6386 = vmatpush1.bf16.msra.mxu0 %v6364
    %6387 = vmatprep.subr.bf16.mxu0 0
    %6388 = vmatpush1.bf16.msra.mxu0 %v6365
    %6389 = vmatprep.subr.bf16.mxu0 0
    %6390 = vmatpush1.bf16.msra.mxu0 %v6366
    %6391 = vmatprep.subr.bf16.mxu0 0
    %6392 = vmatpush1.bf16.msra.mxu0 0
    %6393 = vmatprep.subr.bf16.mxu0 0
    %6394 = vmatpush1.bf16.msra.mxu0 0
    %6395 = vmatprep.subr.bf16.mxu0 0
    %6396 = vmatpush1.bf16.msra.mxu0 0
    %6397 = vmatprep.subr.bf16.mxu0 0
    %6398 = vmatpush1.bf16.msra.mxu0 0
    %6399 = vmatprep.subr.bf16.mxu0 0
    %6400 = vmatpush1.bf16.msra.mxu0 0
    %6401 = vmatprep.subr.bf16.mxu0 0
    %6402 = vmatpush1.bf16.msra.mxu0 0
    %6403 = vmatprep.subr.bf16.mxu0 0
    %6404 = vmatpush1.bf16.msra.mxu0 0
    %6405 = vmatprep.subr.bf16.mxu0 0
    %6406 = vmatpush1.bf16.msra.mxu0 0
    %6407 = vmatprep.mubr.bf16.mxu0 0
    %6408 = vmatmul.mubr.bf16.gmra.mrb[0].mxu0 %v6310
    %v6409 = vpop.f32.mrb[0].mxu0
    %v6410 = vadd.f32 0.0, %v6409
    %v6411 = vpop.f32.mrb[0].mxu0
    %v6412 = vpop.f32.mrb[0].mxu0
    %v6413 = vpop.f32.mrb[0].mxu0
    %6414 = vdwg.mxu0
    %v6431 = vunpack.c.l.b16 %v6293
    %v6432 = vunpack.c.l.b16 %v6294
    %v6433 = vunpack.c.l.b16 %v6295
    %v6434 = vunpack.c.l.b16 %v6296
    %v6435 = vunpack.c.l.b16 %v6297
    %v6436 = vunpack.c.l.b16 %v6298
    %v6437 = vunpack.c.l.b16 %v6299
    %v6438 = vunpack.c.l.b16 %v6300
    %v6439 = vunpack.c.l.b16 %v6301
    %v6440 = vunpack.c.l.b16 %v6302
    %v6441 = vunpack.c.l.b16 %v6303
    %v6442 = vunpack.c.l.b16 %v6304
    %v6443 = vunpack.c.l.b16 %v6305
    %v6444 = vunpack.c.l.b16 %v6306
    %v6445 = vunpack.c.l.b16 %v6307
    %v6446 = vunpack.c.l.b16 %v6308
    %v6447 = vpack.c.b16 %v6432, %v6431
    %v6448 = vpack.c.b16 %v6434, %v6433
    %v6449 = vpack.c.b16 %v6436, %v6435
    %v6450 = vpack.c.b16 %v6438, %v6437
    %v6451 = vpack.c.b16 %v6440, %v6439
    %v6452 = vpack.c.b16 %v6442, %v6441
    %v6453 = vpack.c.b16 %v6444, %v6443
    %v6454 = vpack.c.b16 %v6446, %v6445
    %6463 = vmatprep.subr.bf16.mxu0 0
    %6464 = vmatpush1.bf16.msra.mxu0 %v6447
    %6465 = vmatprep.subr.bf16.mxu0 0
    %6466 = vmatpush1.bf16.msra.mxu0 %v6448
    %6467 = vmatprep.subr.bf16.mxu0 0
    %6468 = vmatpush1.bf16.msra.mxu0 %v6449
    %6469 = vmatprep.subr.bf16.mxu0 0
    %6470 = vmatpush1.bf16.msra.mxu0 %v6450
    %6471 = vmatprep.subr.bf16.mxu0 0
    %6472 = vmatpush1.bf16.msra.mxu0 %v6451
    %6473 = vmatprep.subr.bf16.mxu0 0
    %6474 = vmatpush1.bf16.msra.mxu0 %v6452
    %6475 = vmatprep.subr.bf16.mxu0 0
    %6476 = vmatpush1.bf16.msra.mxu0 %v6453
    %6477 = vmatprep.subr.bf16.mxu0 0
    %6478 = vmatpush1.bf16.msra.mxu0 %v6454
    %6479 = vmatprep.subr.bf16.mxu0 0
    %6480 = vmatpush1.bf16.msra.mxu0 0
    %6481 = vmatprep.subr.bf16.mxu0 0
    %6482 = vmatpush1.bf16.msra.mxu0 0
    %6483 = vmatprep.subr.bf16.mxu0 0
    %6484 = vmatpush1.bf16.msra.mxu0 0
    %6485 = vmatprep.subr.bf16.mxu0 0
    %6486 = vmatpush1.bf16.msra.mxu0 0
    %6487 = vmatprep.subr.bf16.mxu0 0
    %6488 = vmatpush1.bf16.msra.mxu0 0
    %6489 = vmatprep.subr.bf16.mxu0 0
    %6490 = vmatpush1.bf16.msra.mxu0 0
    %6491 = vmatprep.subr.bf16.mxu0 0
    %6492 = vmatpush1.bf16.msra.mxu0 0
    %6493 = vmatprep.subr.bf16.mxu0 0
    %6494 = vmatpush1.bf16.msra.mxu0 0
    %6495 = vmatprep.mubr.bf16.mxu0 0
    %6496 = vmatmul.mubr.bf16.gmra.mrb[0].mxu0 %v6292
    %v6497 = vpop.f32.mrb[0].mxu0
    %v6498 = vadd.f32 %v6410, %v6497
    %v6499 = vpop.f32.mrb[0].mxu0
    %v6500 = vpop.f32.mrb[0].mxu0
    %v6501 = vpop.f32.mrb[0].mxu0
    %6502 = vdwg.mxu0
    %v6503 = vld [vmem:[%s21] sm:$0x1]
    %v6505 = vlaneseq
    %v6506 = vshrl.u32 %v6505, 7
    %v6507 = vsub.s32 0, %v6506
    %v6508 = vrot.slane %v6503, %v6507
    %v6510 = vadd.f32 %v6498, %v6508
    %v6511 = vmax.f32 %v6510, 0.0
    %v6512 = vpack.c.bf16 %v6511, %v6511
    %v6513 = vld [vmem:[#allocation30] sm:$0xf]
    %v6514 = vld [vmem:[#allocation30 + $0x4] sm:$0xf]
    %v6515 = vld [vmem:[#allocation30 + $0x8] sm:$0xf]
    %v6516 = vld [vmem:[#allocation30 + $0xc] sm:$0xf]
    %v6517 = vld [vmem:[#allocation30 + $0x10] sm:$0xf]
    %v6518 = vld [vmem:[#allocation30 + $0x14] sm:$0xf]
    %v6519 = vld [vmem:[#allocation30 + $0x18] sm:$0xf]
    %v6520 = vld [vmem:[#allocation30 + $0x1c] sm:$0xf]
    %v6521 = vld [vmem:[#allocation30 + $0x20] sm:$0xf]
    %v6522 = vld [vmem:[#allocation30 + $0x24] sm:$0xf]
    %v6523 = vld [vmem:[#allocation30 + $0x28] sm:$0xf]
    %v6524 = vld [vmem:[#allocation30 + $0x2c] sm:$0xf]
    %v6525 = vld [vmem:[#allocation30 + $0x30] sm:$0xf]
    %v6526 = vld [vmem:[#allocation30 + $0x34] sm:$0xf]
    %v6527 = vld [vmem:[#allocation30 + $0x38] sm:$0xf]
    %v6528 = vld [vmem:[#allocation30 + $0x3c] sm:$0xf]
    %v6529 = vld [vmem:[%s23] sm:$0x1]
    %v6531 = vlaneseq
    %v6532 = vshrl.u32 %v6531, 7
    %v6533 = vsub.s32 0, %v6532
    %v6534 = vrot.slane %v6529, %v6533
    %v6552 = vunpack.c.l.b16 %v6513
    %v6553 = vunpack.c.l.b16 %v6514
    %v6554 = vunpack.c.l.b16 %v6515
    %v6555 = vunpack.c.l.b16 %v6516
    %v6556 = vunpack.c.l.b16 %v6517
    %v6557 = vunpack.c.l.b16 %v6518
    %v6558 = vunpack.c.l.b16 %v6519
    %v6559 = vunpack.c.l.b16 %v6520
    %v6560 = vunpack.c.l.b16 %v6521
    %v6561 = vunpack.c.l.b16 %v6522
    %v6562 = vunpack.c.l.b16 %v6523
    %v6563 = vunpack.c.l.b16 %v6524
    %v6564 = vunpack.c.l.b16 %v6525
    %v6565 = vunpack.c.l.b16 %v6526
    %v6566 = vunpack.c.l.b16 %v6527
    %v6567 = vunpack.c.l.b16 %v6528
    %v6568 = vpack.c.b16 %v6553, %v6552
    %v6569 = vpack.c.b16 %v6555, %v6554
    %v6570 = vpack.c.b16 %v6557, %v6556
    %v6571 = vpack.c.b16 %v6559, %v6558
    %v6572 = vpack.c.b16 %v6561, %v6560
    %v6573 = vpack.c.b16 %v6563, %v6562
    %v6574 = vpack.c.b16 %v6565, %v6564
    %v6575 = vpack.c.b16 %v6567, %v6566
    %6584 = vmatprep.subr.bf16.mxu0 0
    %6585 = vmatpush1.bf16.msra.mxu0 %v6568
    %6586 = vmatprep.subr.bf16.mxu0 0
    %6587 = vmatpush1.bf16.msra.mxu0 %v6569
    %6588 = vmatprep.subr.bf16.mxu0 0
    %6589 = vmatpush1.bf16.msra.mxu0 %v6570
    %6590 = vmatprep.subr.bf16.mxu0 0
    %6591 = vmatpush1.bf16.msra.mxu0 %v6571
    %6592 = vmatprep.subr.bf16.mxu0 0
    %6593 = vmatpush1.bf16.msra.mxu0 %v6572
    %6594 = vmatprep.subr.bf16.mxu0 0
    %6595 = vmatpush1.bf16.msra.mxu0 %v6573
    %6596 = vmatprep.subr.bf16.mxu0 0
    %6597 = vmatpush1.bf16.msra.mxu0 %v6574
    %6598 = vmatprep.subr.bf16.mxu0 0
    %6599 = vmatpush1.bf16.msra.mxu0 %v6575
    %6600 = vmatprep.subr.bf16.mxu0 0
    %6601 = vmatpush1.bf16.msra.mxu0 0
    %6602 = vmatprep.subr.bf16.mxu0 0
    %6603 = vmatpush1.bf16.msra.mxu0 0
    %6604 = vmatprep.subr.bf16.mxu0 0
    %6605 = vmatpush1.bf16.msra.mxu0 0
    %6606 = vmatprep.subr.bf16.mxu0 0
    %6607 = vmatpush1.bf16.msra.mxu0 0
    %6608 = vmatprep.subr.bf16.mxu0 0
    %6609 = vmatpush1.bf16.msra.mxu0 0
    %6610 = vmatprep.subr.bf16.mxu0 0
    %6611 = vmatpush1.bf16.msra.mxu0 0
    %6612 = vmatprep.subr.bf16.mxu0 0
    %6613 = vmatpush1.bf16.msra.mxu0 0
    %6614 = vmatprep.subr.bf16.mxu0 0
    %6615 = vmatpush1.bf16.msra.mxu0 0
    %6616 = vmatprep.mubr.bf16.mxu0 0
    %6617 = vmatmul.mubr.bf16.gmra.mrb[0].mxu0 %v6512
    %v6618 = vpop.f32.mrb[0].mxu0
    %v6619 = vadd.f32 %v6534, %v6618
    %v6620 = vpop.f32.mrb[0].mxu0
    %v6621 = vpop.f32.mrb[0].mxu0
    %v6622 = vpop.f32.mrb[0].mxu0
    %6623 = vdwg.mxu0
    %6624 = vst [vmem:[%s24] sm:$0x3] %v6619
    // Predicated region
    $region163: #{forward.1} parent=1 // pred_check
      _
    $region164: #{forward.1} parent=1 // pred_check_branch
      %6626 = sbr.rel (0) target = $region166
    $region165: #{forward.1} parent=1 // pred_region
      _
    $region166: #{forward.1} parent=1 // pred_fallthru
      _
    // Predicated region
    $region167: #{forward.1} parent=1 // pred_check
      _
    $region168: #{forward.1} parent=1 // pred_check_branch
      %6628 = sbr.rel (0) target = $region170
    $region169: #{forward.1} parent=1 // pred_region
      _
    $region170: #{forward.1} parent=1 // pred_fallthru
      _
    %6629 = vsyncpa [#allocation15], 1
    %6630 = vsyncpa [#allocation17], 1
    %6631 = vsyncpa [#allocation20], 1
    %6632 = vsyncpa [#allocation23], 1
    %6633 = vsyncpa [#allocation26], 1
    %6634 = vsyncpa [#allocation29], 1

</llo_original>
